<compile_context>
chip_gen: v6e
topology: v6e:2x2x1
jax: 0.10.0
libtpu: 0.0.40
codegen_flags: <defaults>
</compile_context>

<pallas_src>
import functools

import jax
import jax.numpy as jnp
from jax.experimental import pallas as pl
from jax.experimental.pallas import tpu as pltpu  # noqa: F401  (TPU backend assumed)

EPS = 1e-5     # nn.TransformerEncoder/DecoderLayer default layer_norm_eps
NEG = -1e30    # finite "minus infinity" for additive masks


# ------------------------------ fused kernel --------------------------------


def _make_fused_kernel(treedef, n_leaves, *, N, Ts, Tt, H, num_heads):
    hd = H // num_heads
    scale = 1.0 / float(hd) ** 0.5
    f32 = jnp.float32

    def layer_norm(x, g, b):
        mean = jnp.mean(x, axis=-1, keepdims=True)
        c = x - mean
        var = jnp.mean(c * c, axis=-1, keepdims=True)
        return c * jax.lax.rsqrt(var + EPS) * g + b

    def attn(q2d, k2d, v2d, Tq, Tk, mask, wo, bo):
        # q2d: (N*Tq, H); k2d/v2d: (N*Tk, H); mask broadcastable to (N,Tq,Tk) or None.
        q3 = q2d.reshape(N, Tq, H)
        k3 = k2d.reshape(N, Tk, H)
        v3 = v2d.reshape(N, Tk, H)
        acc = None
        for h in range(num_heads):          # static unroll (num_heads = 2)
            lo, hi = h * hd, (h + 1) * hd
            s = jnp.einsum("nqd,nkd->nqk", q3[:, :, lo:hi], k3[:, :, lo:hi],
                           preferred_element_type=f32) * scale
            if mask is not None:
                s = s + mask
            m = jnp.max(s, axis=-1, keepdims=True)
            p = jnp.exp(s - m)
            p = p * pl.reciprocal(jnp.sum(p, axis=-1, keepdims=True), approx=True)
            oh = jnp.einsum("nqk,nkd->nqd", p, v3[:, :, lo:hi],
                            preferred_element_type=f32)
            # per-head slice of the output projection avoids a lane concat
            ch = jnp.dot(oh.reshape(N * Tq, hd), wo[lo:hi, :],
                         preferred_element_type=f32)
            acc = ch if acc is None else acc + ch
        return acc + bo

    def kernel(*refs):
        src_ref, tgt_ref, skpm_ref, tkpm_ref = refs[:4]
        prm = jax.tree_util.tree_unflatten(treedef, refs[4:4 + n_leaves])
        out_ref = refs[4 + n_leaves]

        x = src_ref[...]                      # (N*Ts, H) encoder stream
        y = tgt_ref[...]                      # (N*Tt, H) decoder stream
        skpm = skpm_ref[...]                  # (N, Ts) additive 0 / NEG
        tkpm = tkpm_ref[...]                  # (N, Tt) additive 0 / NEG

        # masks built in-kernel (a few VPU ops); nothing broadcast in HBM.
        enc_mask = skpm[:, None, :]                       # (N, 1, Ts) -> broadcasts
        row = jax.lax.broadcasted_iota(jnp.int32, (Tt, Tt), 0)
        col = jax.lax.broadcasted_iota(jnp.int32, (Tt, Tt), 1)
        causal = jnp.where(col > row, NEG, 0.0).astype(f32)
        dec_mask = causal[None, :, :] + tkpm[:, None, :]  # (N, Tt, Tt)

        # ------------- encoder (post-norm, relu; dropout = eval identity) ----
        # TODO(synk): dropout (p=0.2) treated as identity; torch RNG not reproduced.
        for lp in prm["enc_layers"]:
            V = lp["vecs"][...]                           # (6, H) packed vectors
            bo, b2 = V[0:1], V[1:2]
            ln1g, ln1b, ln2g, ln2b = V[2:3], V[3:4], V[4:5], V[5:6]
            qkv = (jnp.dot(x, lp["wqkv"][...], preferred_element_type=f32)
                   + lp["bqkv"][...])
            a = attn(qkv[:, :H], qkv[:, H:2 * H], qkv[:, 2 * H:],
                     Ts, Ts, enc_mask, lp["wo"][...], bo)
            x = layer_norm(x + a, ln1g, ln1b)
            h1 = jnp.maximum(
                jnp.dot(x, lp["w1"][...], preferred_element_type=f32) + lp["b1"][...],
                0.0)
            f = jnp.dot(h1, lp["w2"][...], preferred_element_type=f32) + b2
            x = layer_norm(x + f, ln2g, ln2b)

        norms = prm["norms"][...]                         # (4, H)
        mem = layer_norm(x, norms[0:1], norms[1:2])

        # ------------- decoder ------------------------------------------------
        for lp in prm["dec_layers"]:
            V = lp["vecs"][...]                           # (10, H) packed vectors
            bo_s, bq, bo_c, b2 = V[0:1], V[1:2], V[2:3], V[3:4]
            ln1g, ln1b = V[4:5], V[5:6]
            ln2g, ln2b = V[6:7], V[7:8]
            ln3g, ln3b = V[8:9], V[9:10]

            qkv = (jnp.dot(y, lp["wqkv"][...], preferred_element_type=f32)
                   + lp["bqkv"][...])
            a = attn(qkv[:, :H], qkv[:, H:2 * H], qkv[:, 2 * H:],
                     Tt, Tt, dec_mask, lp["wo_self"][...], bo_s)
            y = layer_norm(y + a, ln1g, ln1b)

            # memory_key_padding_mask is None in the reference -> no mask at all.
            q = jnp.dot(y, lp["wq"][...], preferred_element_type=f32) + bq
            kv = (jnp.dot(mem, lp["wkv"][...], preferred_element_type=f32)
                  + lp["bkv"][...])
            c = attn(q, kv[:, :H], kv[:, H:], Tt, Ts, None, lp["wo_cross"][...], bo_c)
            y = layer_norm(y + c, ln2g, ln2b)

            h1 = jnp.maximum(
                jnp.dot(y, lp["w1"][...], preferred_element_type=f32) + lp["b1"][...],
                0.0)
            f = jnp.dot(h1, lp["w2"][...], preferred_element_type=f32) + b2
            y = layer_norm(y + f, ln3g, ln3b)

        y = layer_norm(y, norms[2:3], norms[3:4])

        # ------------- final projection (lane-dense, padded to 128) ----------
        out_ref[...] = (jnp.dot(y, prm["final_w"][...], preferred_element_type=f32)
                        + prm["final_b"][...])

    return kernel


# --------------------------- parameter packing ------------------------------


def _row(v):
    return v.reshape(1, -1)


def _pack_params(p, o_pad):
    """Repack raw params for the fused kernel: fused QKV / KV weights, all
    width-H vectors of a layer stacked into one (rows, H) slab, final
    projection zero-padded to a 128-lane multiple."""

    def pack_enc(l):
        a = l["self_attn"]
        vecs = jnp.stack([a["bo"], l["b2"],
                          l["ln1_g"], l["ln1_b"], l["ln2_g"], l["ln2_b"]])
        return dict(
            wqkv=jnp.concatenate([a["wq"], a["wk"], a["wv"]], axis=1),
            bqkv=_row(jnp.concatenate([a["bq"], a["bk"], a["bv"]])),
            wo=a["wo"],
            w1=l["w1"], b1=_row(l["b1"]), w2=l["w2"],
            vecs=vecs)

    def pack_dec(l):
        s, c = l["self_attn"], l["cross_attn"]
        vecs = jnp.stack([s["bo"], c["bq"], c["bo"], l["b2"],
                          l["ln1_g"], l["ln1_b"], l["ln2_g"], l["ln2_b"],
                          l["ln3_g"], l["ln3_b"]])
        return dict(
            wqkv=jnp.concatenate([s["wq"], s["wk"], s["wv"]], axis=1),
            bqkv=_row(jnp.concatenate([s["bq"], s["bk"], s["bv"]])),
            wo_self=s["wo"],
            wq=c["wq"],
            wkv=jnp.concatenate([c["wk"], c["wv"]], axis=1),
            bkv=_row(jnp.concatenate([c["bk"], c["bv"]])),
            wo_cross=c["wo"],
            w1=l["w1"], b1=_row(l["b1"]), w2=l["w2"],
            vecs=vecs)

    out_dim = p["final_w"].shape[1]
    return dict(
        enc_layers=[pack_enc(l) for l in p["enc_layers"]],
        dec_layers=[pack_dec(l) for l in p["dec_layers"]],
        norms=jnp.stack([p["enc_norm_g"], p["enc_norm_b"],
                         p["dec_norm_g"], p["dec_norm_b"]]),
        final_w=jnp.pad(p["final_w"], ((0, 0), (0, o_pad - out_dim))),
        final_b=_row(jnp.pad(p["final_b"], (0, o_pad - out_dim))))


# ------------------------------ forward pass ---------------------------------


def add_start_token(tgt, start_token=2):
    # Torch version uses .item() (host control flow); reproduced as a traced
    # whole-batch predicate (matches torch.all(...) over the batch).
    shifted = jnp.concatenate(
        [jnp.full((tgt.shape[0], 1), start_token, tgt.dtype), tgt[:, :-1]], axis=1)
    cond = jnp.all(tgt[:, :2] == start_token)
    return jnp.where(cond, tgt, shifted)


def full_transformer_forward(params, src, tgt, *, num_heads=2, pad_idx=1):
    N, Ts = src.shape
    tgt = add_start_token(tgt)
    Tt = tgt.shape[1]
    H = params["src_emb"].shape[1]
    out_dim = params["final_w"].shape[1]
    o_pad = ((out_dim + 127) // 128) * 128

    # token/positional embeddings: tiny gathers done in XLA (no one-hot matmul).
    src_pos = jnp.arange(Ts, dtype=jnp.int32)
    tgt_pos = jnp.arange(Tt, dtype=jnp.int32)
    src_emb = params["src_emb"][src] + params["src_pos_emb"][src_pos][None]
    tgt_emb = params["tgt_emb"][tgt] + params["tgt_pos_emb"][tgt_pos][None]

    skpm = jnp.where(src == pad_idx, NEG, 0.0).astype(jnp.float32)
    tkpm = jnp.where(tgt == pad_idx, NEG, 0.0).astype(jnp.float32)

    kparams = _pack_params(params, o_pad)
    leaves, treedef = jax.tree_util.tree_flatten(kparams)
    kernel = _make_fused_kernel(treedef, len(leaves), N=N, Ts=Ts, Tt=Tt, H=H,
                                num_heads=num_heads)
    # TODO(synk): for large batches add a "parallel" batch grid so v7x's two
    # TensorCores split the work; at N=2, T=8 one fused invocation is optimal.
    out = pl.pallas_call(
        kernel,
        out_shape=jax.ShapeDtypeStruct((N * Tt, o_pad), jnp.float32),
    )(src_emb.reshape(N * Ts, H).astype(jnp.float32),
      tgt_emb.reshape(N * Tt, H).astype(jnp.float32),
      skpm, tkpm, *leaves)
    return out.reshape(N, Tt, o_pad)[:, :, :out_dim]


# ----------------------------- parameter init --------------------------------


def init_params(key, *, input_size, output_size, hidden_dim, dim_feedforward,
                num_layers_enc, num_layers_dec, max_length):
    H, F = hidden_dim, dim_feedforward
    keys = iter(jax.random.split(key, 128))

    def w(shape, scale=0.05):
        return jax.random.normal(next(keys), shape, jnp.float32) * scale

    zeros = lambda n: jnp.zeros((n,), jnp.float32)
    ones = lambda n: jnp.ones((n,), jnp.float32)

    def mha_p():
        return dict(wq=w((H, H)), bq=zeros(H), wk=w((H, H)), bk=zeros(H),
                    wv=w((H, H)), bv=zeros(H), wo=w((H, H)), bo=zeros(H))

    enc_layers = [
        dict(self_attn=mha_p(),
             w1=w((H, F)), b1=zeros(F), w2=w((F, H)), b2=zeros(H),
             ln1_g=ones(H), ln1_b=zeros(H), ln2_g=ones(H), ln2_b=zeros(H))
        for _ in range(num_layers_enc)
    ]
    dec_layers = [
        dict(self_attn=mha_p(), cross_attn=mha_p(),
             w1=w((H, F)), b1=zeros(F), w2=w((F, H)), b2=zeros(H),
             ln1_g=ones(H), ln1_b=zeros(H), ln2_g=ones(H), ln2_b=zeros(H),
             ln3_g=ones(H), ln3_b=zeros(H))
        for _ in range(num_layers_dec)
    ]
    return dict(
        src_emb=w((input_size, H)), tgt_emb=w((output_size, H)),
        src_pos_emb=w((max_length, H)), tgt_pos_emb=w((max_length, H)),
        enc_layers=enc_layers, dec_layers=dec_layers,
        enc_norm_g=ones(H), enc_norm_b=zeros(H),
        dec_norm_g=ones(H), dec_norm_b=zeros(H),
        final_w=w((H, output_size)), final_b=zeros(output_size),
    )


# ---------------------------------- main --------------------------------------


if __name__ == "__main__":
    # Small configuration consistent with the module's forward pass.
    N, T = 2, 8
    input_size, output_size = 11, 13
    hidden_dim, num_heads, dim_feedforward = 32, 2, 64
    num_layers_enc, num_layers_dec, max_length, pad_idx = 2, 2, 43, 1

    root = jax.random.PRNGKey(0)
    kp, ks, kt = jax.random.split(root, 3)
    params = init_params(
        kp, input_size=input_size, output_size=output_size, hidden_dim=hidden_dim,
        dim_feedforward=dim_feedforward, num_layers_enc=num_layers_enc,
        num_layers_dec=num_layers_dec, max_length=max_length)

    src = jax.random.randint(ks, (N, T), 0, input_size, dtype=jnp.int32)
    tgt = jax.random.randint(kt, (N, T), 0, output_size, dtype=jnp.int32)

    fwd = jax.jit(functools.partial(full_transformer_forward,
                                    num_heads=num_heads, pad_idx=pad_idx))
    out = fwd(params, src, tgt)
    out = jax.block_until_ready(out)

    assert out.shape == (N, T, output_size), out.shape
    assert bool(jnp.all(jnp.isfinite(out)))
    print("KERNEL_OK")
</pallas_src>

<mosaic_0001>
module attributes {stable_mosaic.version = 11 : i64} {
  func.func @kernel(%arg0: memref<16x32xf32, #tpu.memory_space<vmem>>, %arg1: memref<16x32xf32, #tpu.memory_space<vmem>>, %arg2: memref<2x8xf32, #tpu.memory_space<vmem>>, %arg3: memref<2x8xf32, #tpu.memory_space<vmem>>, %arg4: memref<1x64xf32, #tpu.memory_space<vmem>>, %arg5: memref<1x64xf32, #tpu.memory_space<vmem>>, %arg6: memref<1x96xf32, #tpu.memory_space<vmem>>, %arg7: memref<10x32xf32, #tpu.memory_space<vmem>>, %arg8: memref<32x64xf32, #tpu.memory_space<vmem>>, %arg9: memref<64x32xf32, #tpu.memory_space<vmem>>, %arg10: memref<32x64xf32, #tpu.memory_space<vmem>>, %arg11: memref<32x32xf32, #tpu.memory_space<vmem>>, %arg12: memref<32x32xf32, #tpu.memory_space<vmem>>, %arg13: memref<32x32xf32, #tpu.memory_space<vmem>>, %arg14: memref<32x96xf32, #tpu.memory_space<vmem>>, %arg15: memref<1x64xf32, #tpu.memory_space<vmem>>, %arg16: memref<1x64xf32, #tpu.memory_space<vmem>>, %arg17: memref<1x96xf32, #tpu.memory_space<vmem>>, %arg18: memref<10x32xf32, #tpu.memory_space<vmem>>, %arg19: memref<32x64xf32, #tpu.memory_space<vmem>>, %arg20: memref<64x32xf32, #tpu.memory_space<vmem>>, %arg21: memref<32x64xf32, #tpu.memory_space<vmem>>, %arg22: memref<32x32xf32, #tpu.memory_space<vmem>>, %arg23: memref<32x32xf32, #tpu.memory_space<vmem>>, %arg24: memref<32x32xf32, #tpu.memory_space<vmem>>, %arg25: memref<32x96xf32, #tpu.memory_space<vmem>>, %arg26: memref<1x64xf32, #tpu.memory_space<vmem>>, %arg27: memref<1x96xf32, #tpu.memory_space<vmem>>, %arg28: memref<6x32xf32, #tpu.memory_space<vmem>>, %arg29: memref<32x64xf32, #tpu.memory_space<vmem>>, %arg30: memref<64x32xf32, #tpu.memory_space<vmem>>, %arg31: memref<32x32xf32, #tpu.memory_space<vmem>>, %arg32: memref<32x96xf32, #tpu.memory_space<vmem>>, %arg33: memref<1x64xf32, #tpu.memory_space<vmem>>, %arg34: memref<1x96xf32, #tpu.memory_space<vmem>>, %arg35: memref<6x32xf32, #tpu.memory_space<vmem>>, %arg36: memref<32x64xf32, #tpu.memory_space<vmem>>, %arg37: memref<64x32xf32, #tpu.memory_space<vmem>>, %arg38: memref<32x32xf32, #tpu.memory_space<vmem>>, %arg39: memref<32x96xf32, #tpu.memory_space<vmem>>, %arg40: memref<1x128xf32, #tpu.memory_space<vmem>>, %arg41: memref<32x128xf32, #tpu.memory_space<vmem>>, %arg42: memref<4x32xf32, #tpu.memory_space<vmem>>, %arg43: memref<16x128xf32, #tpu.memory_space<vmem>>) attributes {dimension_semantics = [], scalar_prefetch = 0 : i64, scratch_operands = 0 : i64, tpu.core_type = #tpu.core_type<tc>} {
    %c0 = arith.constant 0 : index
    %c0_0 = arith.constant 0 : index
    %0 = vector.load %arg0[%c0, %c0_0] : memref<16x32xf32, #tpu.memory_space<vmem>>, vector<16x32xf32>
    %c0_1 = arith.constant 0 : index
    %c0_2 = arith.constant 0 : index
    %1 = vector.load %arg1[%c0_1, %c0_2] : memref<16x32xf32, #tpu.memory_space<vmem>>, vector<16x32xf32>
    %c0_3 = arith.constant 0 : index
    %c0_4 = arith.constant 0 : index
    %2 = vector.load %arg2[%c0_3, %c0_4] : memref<2x8xf32, #tpu.memory_space<vmem>>, vector<2x8xf32>
    %c0_5 = arith.constant 0 : index
    %c0_6 = arith.constant 0 : index
    %3 = vector.load %arg3[%c0_5, %c0_6] : memref<2x8xf32, #tpu.memory_space<vmem>>, vector<2x8xf32>
    %4 = vector.shape_cast %2 : vector<2x8xf32> to vector<2x1x8xf32>
    %5 = tpu.iota {dimensions = array<i32: 0>} : vector<8x8xi32>
    %6 = tpu.iota {dimensions = array<i32: 1>} : vector<8x8xi32>
    %7 = arith.cmpi sgt, %6, %5 : vector<8x8xi32>
    %cst = arith.constant -1.000000e+30 : f32
    %cst_7 = arith.constant 0.000000e+00 : f32
    %8 = vector.broadcast %cst : f32 to vector<8x8xf32>
    %9 = vector.broadcast %cst_7 : f32 to vector<8x8xf32>
    %10 = arith.select %7, %8, %9 : vector<8x8xi1>, vector<8x8xf32>
    %11 = vector.shape_cast %10 : vector<8x8xf32> to vector<1x8x8xf32>
    %12 = vector.shape_cast %3 : vector<2x8xf32> to vector<2x1x8xf32>
    %13 = vector.broadcast %11 : vector<1x8x8xf32> to vector<2x8x8xf32>
    %14 = vector.broadcast %12 : vector<2x1x8xf32> to vector<2x8x8xf32>
    %15 = arith.addf %13, %14 : vector<2x8x8xf32>
    %c0_8 = arith.constant 0 : index
    %c0_9 = arith.constant 0 : index
    %16 = vector.load %arg28[%c0_8, %c0_9] : memref<6x32xf32, #tpu.memory_space<vmem>>, vector<6x32xf32>
    %17 = vector.extract_strided_slice %16 {offsets = [0, 0], sizes = [1, 32], strides = [1, 1]} : vector<6x32xf32> to vector<1x32xf32>
    %18 = vector.extract_strided_slice %16 {offsets = [1, 0], sizes = [1, 32], strides = [1, 1]} : vector<6x32xf32> to vector<1x32xf32>
    %19 = vector.extract_strided_slice %16 {offsets = [2, 0], sizes = [1, 32], strides = [1, 1]} : vector<6x32xf32> to vector<1x32xf32>
    %20 = vector.extract_strided_slice %16 {offsets = [3, 0], sizes = [1, 32], strides = [1, 1]} : vector<6x32xf32> to vector<1x32xf32>
    %21 = vector.extract_strided_slice %16 {offsets = [4, 0], sizes = [1, 32], strides = [1, 1]} : vector<6x32xf32> to vector<1x32xf32>
    %22 = vector.extract_strided_slice %16 {offsets = [5, 0], sizes = [1, 32], strides = [1, 1]} : vector<6x32xf32> to vector<1x32xf32>
    %c0_10 = arith.constant 0 : index
    %c0_11 = arith.constant 0 : index
    %23 = vector.load %arg32[%c0_10, %c0_11] : memref<32x96xf32, #tpu.memory_space<vmem>>, vector<32x96xf32>
    %cst_12 = arith.constant dense<0.000000e+00> : vector<16x96xf32>
    %24 = tpu.matmul %0, %23, %cst_12 {dimension_numbers = #tpu.dot_dimension_numbers<[1], [0], [0], [1], [0, 0, 1, 1], [], []>} : vector<16x32xf32>, vector<32x96xf32>, vector<16x96xf32> -> vector<16x96xf32>
    %c0_13 = arith.constant 0 : index
    %c0_14 = arith.constant 0 : index
    %25 = vector.load %arg27[%c0_13, %c0_14] : memref<1x96xf32, #tpu.memory_space<vmem>>, vector<1x96xf32>
    %26 = vector.broadcast %25 : vector<1x96xf32> to vector<16x96xf32>
    %27 = arith.addf %24, %26 : vector<16x96xf32>
    %28 = vector.extract_strided_slice %27 {offsets = [0, 0], sizes = [16, 32], strides = [1, 1]} : vector<16x96xf32> to vector<16x32xf32>
    %29 = vector.extract_strided_slice %27 {offsets = [0, 32], sizes = [16, 32], strides = [1, 1]} : vector<16x96xf32> to vector<16x32xf32>
    %30 = vector.extract_strided_slice %27 {offsets = [0, 64], sizes = [16, 32], strides = [1, 1]} : vector<16x96xf32> to vector<16x32xf32>
    %c0_15 = arith.constant 0 : index
    %c0_16 = arith.constant 0 : index
    %31 = vector.load %arg31[%c0_15, %c0_16] : memref<32x32xf32, #tpu.memory_space<vmem>>, vector<32x32xf32>
    %32 = vector.shape_cast %28 : vector<16x32xf32> to vector<2x8x32xf32>
    %33 = vector.shape_cast %29 : vector<16x32xf32> to vector<2x8x32xf32>
    %34 = vector.shape_cast %30 : vector<16x32xf32> to vector<2x8x32xf32>
    %35 = vector.extract_strided_slice %32 {offsets = [0, 0, 0], sizes = [2, 8, 16], strides = [1, 1, 1]} : vector<2x8x32xf32> to vector<2x8x16xf32>
    %36 = vector.extract_strided_slice %33 {offsets = [0, 0, 0], sizes = [2, 8, 16], strides = [1, 1, 1]} : vector<2x8x32xf32> to vector<2x8x16xf32>
    "tpu.trace_start"() <{level = 10 : i32, message = "nqd,nkd->nqk"}> : () -> ()
    %cst_17 = arith.constant dense<0.000000e+00> : vector<2x8x8xf32>
    %37 = tpu.matmul %35, %36, %cst_17 {dimension_numbers = #tpu.dot_dimension_numbers<[2], [2], [1], [1], [0, 0, 0, 1, 1, 1], [0], [0]>} : vector<2x8x16xf32>, vector<2x8x16xf32>, vector<2x8x8xf32> -> vector<2x8x8xf32>
    "tpu.trace_stop"() : () -> ()
    %cst_18 = arith.constant 2.500000e-01 : f32
    %38 = vector.broadcast %cst_18 : f32 to vector<2x8x8xf32>
    %39 = arith.mulf %37, %38 : vector<2x8x8xf32>
    %40 = vector.broadcast %4 : vector<2x1x8xf32> to vector<2x8x8xf32>
    %41 = arith.addf %39, %40 : vector<2x8x8xf32>
    %cst_19 = arith.constant dense<0xFF800000> : vector<2x8xf32>
    %42 = vector.multi_reduction <maximumf>, %41, %cst_19 [2] : vector<2x8x8xf32> to vector<2x8xf32>
    %43 = vector.shape_cast %42 : vector<2x8xf32> to vector<2x8x1xf32>
    %44 = vector.broadcast %43 : vector<2x8x1xf32> to vector<2x8x8xf32>
    %45 = arith.subf %41, %44 : vector<2x8x8xf32>
    %46 = math.exp %45 : vector<2x8x8xf32>
    %cst_20 = arith.constant dense<0.000000e+00> : vector<2x8xf32>
    %47 = vector.multi_reduction <add>, %46, %cst_20 [2] : vector<2x8x8xf32> to vector<2x8xf32>
    %48 = vector.shape_cast %47 : vector<2x8xf32> to vector<2x8x1xf32>
    %49 = tpu.reciprocal %48 {approx = true} : vector<2x8x1xf32> -> vector<2x8x1xf32>
    %50 = vector.broadcast %49 : vector<2x8x1xf32> to vector<2x8x8xf32>
    %51 = arith.mulf %46, %50 : vector<2x8x8xf32>
    %52 = vector.extract_strided_slice %34 {offsets = [0, 0, 0], sizes = [2, 8, 16], strides = [1, 1, 1]} : vector<2x8x32xf32> to vector<2x8x16xf32>
    "tpu.trace_start"() <{level = 10 : i32, message = "nqk,nkd->nqd"}> : () -> ()
    %cst_21 = arith.constant dense<0.000000e+00> : vector<2x8x16xf32>
    %53 = tpu.matmul %51, %52, %cst_21 {dimension_numbers = #tpu.dot_dimension_numbers<[2], [1], [1], [2], [0, 0, 0, 1, 1, 2], [0], [0]>} : vector<2x8x8xf32>, vector<2x8x16xf32>, vector<2x8x16xf32> -> vector<2x8x16xf32>
    "tpu.trace_stop"() : () -> ()
    %54 = vector.shape_cast %53 : vector<2x8x16xf32> to vector<16x16xf32>
    %55 = vector.extract_strided_slice %31 {offsets = [0, 0], sizes = [16, 32], strides = [1, 1]} : vector<32x32xf32> to vector<16x32xf32>
    %cst_22 = arith.constant dense<0.000000e+00> : vector<16x32xf32>
    %56 = tpu.matmul %54, %55, %cst_22 {dimension_numbers = #tpu.dot_dimension_numbers<[1], [0], [0], [1], [0, 0, 1, 1], [], []>} : vector<16x16xf32>, vector<16x32xf32>, vector<16x32xf32> -> vector<16x32xf32>
    %57 = vector.extract_strided_slice %32 {offsets = [0, 0, 16], sizes = [2, 8, 16], strides = [1, 1, 1]} : vector<2x8x32xf32> to vector<2x8x16xf32>
    %58 = vector.extract_strided_slice %33 {offsets = [0, 0, 16], sizes = [2, 8, 16], strides = [1, 1, 1]} : vector<2x8x32xf32> to vector<2x8x16xf32>
    "tpu.trace_start"() <{level = 10 : i32, message = "nqd,nkd->nqk"}> : () -> ()
    %cst_23 = arith.constant dense<0.000000e+00> : vector<2x8x8xf32>
    %59 = tpu.matmul %57, %58, %cst_23 {dimension_numbers = #tpu.dot_dimension_numbers<[2], [2], [1], [1], [0, 0, 0, 1, 1, 1], [0], [0]>} : vector<2x8x16xf32>, vector<2x8x16xf32>, vector<2x8x8xf32> -> vector<2x8x8xf32>
    "tpu.trace_stop"() : () -> ()
    %cst_24 = arith.constant 2.500000e-01 : f32
    %60 = vector.broadcast %cst_24 : f32 to vector<2x8x8xf32>
    %61 = arith.mulf %59, %60 : vector<2x8x8xf32>
    %62 = vector.broadcast %4 : vector<2x1x8xf32> to vector<2x8x8xf32>
    %63 = arith.addf %61, %62 : vector<2x8x8xf32>
    %cst_25 = arith.constant dense<0xFF800000> : vector<2x8xf32>
    %64 = vector.multi_reduction <maximumf>, %63, %cst_25 [2] : vector<2x8x8xf32> to vector<2x8xf32>
    %65 = vector.shape_cast %64 : vector<2x8xf32> to vector<2x8x1xf32>
    %66 = vector.broadcast %65 : vector<2x8x1xf32> to vector<2x8x8xf32>
    %67 = arith.subf %63, %66 : vector<2x8x8xf32>
    %68 = math.exp %67 : vector<2x8x8xf32>
    %cst_26 = arith.constant dense<0.000000e+00> : vector<2x8xf32>
    %69 = vector.multi_reduction <add>, %68, %cst_26 [2] : vector<2x8x8xf32> to vector<2x8xf32>
    %70 = vector.shape_cast %69 : vector<2x8xf32> to vector<2x8x1xf32>
    %71 = tpu.reciprocal %70 {approx = true} : vector<2x8x1xf32> -> vector<2x8x1xf32>
    %72 = vector.broadcast %71 : vector<2x8x1xf32> to vector<2x8x8xf32>
    %73 = arith.mulf %68, %72 : vector<2x8x8xf32>
    %74 = vector.extract_strided_slice %34 {offsets = [0, 0, 16], sizes = [2, 8, 16], strides = [1, 1, 1]} : vector<2x8x32xf32> to vector<2x8x16xf32>
    "tpu.trace_start"() <{level = 10 : i32, message = "nqk,nkd->nqd"}> : () -> ()
    %cst_27 = arith.constant dense<0.000000e+00> : vector<2x8x16xf32>
    %75 = tpu.matmul %73, %74, %cst_27 {dimension_numbers = #tpu.dot_dimension_numbers<[2], [1], [1], [2], [0, 0, 0, 1, 1, 2], [0], [0]>} : vector<2x8x8xf32>, vector<2x8x16xf32>, vector<2x8x16xf32> -> vector<2x8x16xf32>
    "tpu.trace_stop"() : () -> ()
    %76 = vector.shape_cast %75 : vector<2x8x16xf32> to vector<16x16xf32>
    %77 = vector.extract_strided_slice %31 {offsets = [16, 0], sizes = [16, 32], strides = [1, 1]} : vector<32x32xf32> to vector<16x32xf32>
    %cst_28 = arith.constant dense<0.000000e+00> : vector<16x32xf32>
    %78 = tpu.matmul %76, %77, %cst_28 {dimension_numbers = #tpu.dot_dimension_numbers<[1], [0], [0], [1], [0, 0, 1, 1], [], []>} : vector<16x16xf32>, vector<16x32xf32>, vector<16x32xf32> -> vector<16x32xf32>
    %79 = arith.addf %56, %78 : vector<16x32xf32>
    %80 = vector.broadcast %17 : vector<1x32xf32> to vector<16x32xf32>
    %81 = arith.addf %79, %80 : vector<16x32xf32>
    %82 = arith.addf %0, %81 : vector<16x32xf32>
    %cst_29 = arith.constant dense<0.000000e+00> : vector<16xf32>
    %83 = vector.multi_reduction <add>, %82, %cst_29 [1] : vector<16x32xf32> to vector<16xf32>
    %84 = vector.shape_cast %83 : vector<16xf32> to vector<16x1xf32>
    %cst_30 = arith.constant 3.200000e+01 : f32
    %85 = vector.broadcast %cst_30 : f32 to vector<16x1xf32>
    %86 = arith.divf %84, %85 : vector<16x1xf32>
    %87 = vector.broadcast %86 : vector<16x1xf32> to vector<16x32xf32>
    %88 = arith.subf %82, %87 : vector<16x32xf32>
    %89 = arith.mulf %88, %88 : vector<16x32xf32>
    %cst_31 = arith.constant dense<0.000000e+00> : vector<16xf32>
    %90 = vector.multi_reduction <add>, %89, %cst_31 [1] : vector<16x32xf32> to vector<16xf32>
    %91 = vector.shape_cast %90 : vector<16xf32> to vector<16x1xf32>
    %cst_32 = arith.constant 3.200000e+01 : f32
    %92 = vector.broadcast %cst_32 : f32 to vector<16x1xf32>
    %93 = arith.divf %91, %92 : vector<16x1xf32>
    %cst_33 = arith.constant 9.99999974E-6 : f32
    %94 = vector.broadcast %cst_33 : f32 to vector<16x1xf32>
    %95 = arith.addf %93, %94 : vector<16x1xf32>
    %96 = math.rsqrt %95 : vector<16x1xf32>
    %97 = vector.broadcast %96 : vector<16x1xf32> to vector<16x32xf32>
    %98 = arith.mulf %88, %97 : vector<16x32xf32>
    %99 = vector.broadcast %19 : vector<1x32xf32> to vector<16x32xf32>
    %100 = arith.mulf %98, %99 : vector<16x32xf32>
    %101 = vector.broadcast %20 : vector<1x32xf32> to vector<16x32xf32>
    %102 = arith.addf %100, %101 : vector<16x32xf32>
    %c0_34 = arith.constant 0 : index
    %c0_35 = arith.constant 0 : index
    %103 = vector.load %arg29[%c0_34, %c0_35] : memref<32x64xf32, #tpu.memory_space<vmem>>, vector<32x64xf32>
    %cst_36 = arith.constant dense<0.000000e+00> : vector<16x64xf32>
    %104 = tpu.matmul %102, %103, %cst_36 {dimension_numbers = #tpu.dot_dimension_numbers<[1], [0], [0], [1], [0, 0, 1, 1], [], []>} : vector<16x32xf32>, vector<32x64xf32>, vector<16x64xf32> -> vector<16x64xf32>
    %c0_37 = arith.constant 0 : index
    %c0_38 = arith.constant 0 : index
    %105 = vector.load %arg26[%c0_37, %c0_38] : memref<1x64xf32, #tpu.memory_space<vmem>>, vector<1x64xf32>
    %106 = vector.broadcast %105 : vector<1x64xf32> to vector<16x64xf32>
    %107 = arith.addf %104, %106 : vector<16x64xf32>
    %cst_39 = arith.constant 0.000000e+00 : f32
    %108 = vector.broadcast %cst_39 : f32 to vector<16x64xf32>
    %109 = arith.maximumf %107, %108 : vector<16x64xf32>
    %c0_40 = arith.constant 0 : index
    %c0_41 = arith.constant 0 : index
    %110 = vector.load %arg30[%c0_40, %c0_41] : memref<64x32xf32, #tpu.memory_space<vmem>>, vector<64x32xf32>
    %cst_42 = arith.constant dense<0.000000e+00> : vector<16x32xf32>
    %111 = tpu.matmul %109, %110, %cst_42 {dimension_numbers = #tpu.dot_dimension_numbers<[1], [0], [0], [1], [0, 0, 1, 1], [], []>} : vector<16x64xf32>, vector<64x32xf32>, vector<16x32xf32> -> vector<16x32xf32>
    %112 = vector.broadcast %18 : vector<1x32xf32> to vector<16x32xf32>
    %113 = arith.addf %111, %112 : vector<16x32xf32>
    %114 = arith.addf %102, %113 : vector<16x32xf32>
    %cst_43 = arith.constant dense<0.000000e+00> : vector<16xf32>
    %115 = vector.multi_reduction <add>, %114, %cst_43 [1] : vector<16x32xf32> to vector<16xf32>
    %116 = vector.shape_cast %115 : vector<16xf32> to vector<16x1xf32>
    %cst_44 = arith.constant 3.200000e+01 : f32
    %117 = vector.broadcast %cst_44 : f32 to vector<16x1xf32>
    %118 = arith.divf %116, %117 : vector<16x1xf32>
    %119 = vector.broadcast %118 : vector<16x1xf32> to vector<16x32xf32>
    %120 = arith.subf %114, %119 : vector<16x32xf32>
    %121 = arith.mulf %120, %120 : vector<16x32xf32>
    %cst_45 = arith.constant dense<0.000000e+00> : vector<16xf32>
    %122 = vector.multi_reduction <add>, %121, %cst_45 [1] : vector<16x32xf32> to vector<16xf32>
    %123 = vector.shape_cast %122 : vector<16xf32> to vector<16x1xf32>
    %cst_46 = arith.constant 3.200000e+01 : f32
    %124 = vector.broadcast %cst_46 : f32 to vector<16x1xf32>
    %125 = arith.divf %123, %124 : vector<16x1xf32>
    %cst_47 = arith.constant 9.99999974E-6 : f32
    %126 = vector.broadcast %cst_47 : f32 to vector<16x1xf32>
    %127 = arith.addf %125, %126 : vector<16x1xf32>
    %128 = math.rsqrt %127 : vector<16x1xf32>
    %129 = vector.broadcast %128 : vector<16x1xf32> to vector<16x32xf32>
    %130 = arith.mulf %120, %129 : vector<16x32xf32>
    %131 = vector.broadcast %21 : vector<1x32xf32> to vector<16x32xf32>
    %132 = arith.mulf %130, %131 : vector<16x32xf32>
    %133 = vector.broadcast %22 : vector<1x32xf32> to vector<16x32xf32>
    %134 = arith.addf %132, %133 : vector<16x32xf32>
    %c0_48 = arith.constant 0 : index
    %c0_49 = arith.constant 0 : index
    %135 = vector.load %arg35[%c0_48, %c0_49] : memref<6x32xf32, #tpu.memory_space<vmem>>, vector<6x32xf32>
    %136 = vector.extract_strided_slice %135 {offsets = [0, 0], sizes = [1, 32], strides = [1, 1]} : vector<6x32xf32> to vector<1x32xf32>
    %137 = vector.extract_strided_slice %135 {offsets = [1, 0], sizes = [1, 32], strides = [1, 1]} : vector<6x32xf32> to vector<1x32xf32>
    %138 = vector.extract_strided_slice %135 {offsets = [2, 0], sizes = [1, 32], strides = [1, 1]} : vector<6x32xf32> to vector<1x32xf32>
    %139 = vector.extract_strided_slice %135 {offsets = [3, 0], sizes = [1, 32], strides = [1, 1]} : vector<6x32xf32> to vector<1x32xf32>
    %140 = vector.extract_strided_slice %135 {offsets = [4, 0], sizes = [1, 32], strides = [1, 1]} : vector<6x32xf32> to vector<1x32xf32>
    %141 = vector.extract_strided_slice %135 {offsets = [5, 0], sizes = [1, 32], strides = [1, 1]} : vector<6x32xf32> to vector<1x32xf32>
    %c0_50 = arith.constant 0 : index
    %c0_51 = arith.constant 0 : index
    %142 = vector.load %arg39[%c0_50, %c0_51] : memref<32x96xf32, #tpu.memory_space<vmem>>, vector<32x96xf32>
    %cst_52 = arith.constant dense<0.000000e+00> : vector<16x96xf32>
    %143 = tpu.matmul %134, %142, %cst_52 {dimension_numbers = #tpu.dot_dimension_numbers<[1], [0], [0], [1], [0, 0, 1, 1], [], []>} : vector<16x32xf32>, vector<32x96xf32>, vector<16x96xf32> -> vector<16x96xf32>
    %c0_53 = arith.constant 0 : index
    %c0_54 = arith.constant 0 : index
    %144 = vector.load %arg34[%c0_53, %c0_54] : memref<1x96xf32, #tpu.memory_space<vmem>>, vector<1x96xf32>
    %145 = vector.broadcast %144 : vector<1x96xf32> to vector<16x96xf32>
    %146 = arith.addf %143, %145 : vector<16x96xf32>
    %147 = vector.extract_strided_slice %146 {offsets = [0, 0], sizes = [16, 32], strides = [1, 1]} : vector<16x96xf32> to vector<16x32xf32>
    %148 = vector.extract_strided_slice %146 {offsets = [0, 32], sizes = [16, 32], strides = [1, 1]} : vector<16x96xf32> to vector<16x32xf32>
    %149 = vector.extract_strided_slice %146 {offsets = [0, 64], sizes = [16, 32], strides = [1, 1]} : vector<16x96xf32> to vector<16x32xf32>
    %c0_55 = arith.constant 0 : index
    %c0_56 = arith.constant 0 : index
    %150 = vector.load %arg38[%c0_55, %c0_56] : memref<32x32xf32, #tpu.memory_space<vmem>>, vector<32x32xf32>
    %151 = vector.shape_cast %147 : vector<16x32xf32> to vector<2x8x32xf32>
    %152 = vector.shape_cast %148 : vector<16x32xf32> to vector<2x8x32xf32>
    %153 = vector.shape_cast %149 : vector<16x32xf32> to vector<2x8x32xf32>
    %154 = vector.extract_strided_slice %151 {offsets = [0, 0, 0], sizes = [2, 8, 16], strides = [1, 1, 1]} : vector<2x8x32xf32> to vector<2x8x16xf32>
    %155 = vector.extract_strided_slice %152 {offsets = [0, 0, 0], sizes = [2, 8, 16], strides = [1, 1, 1]} : vector<2x8x32xf32> to vector<2x8x16xf32>
    "tpu.trace_start"() <{level = 10 : i32, message = "nqd,nkd->nqk"}> : () -> ()
    %cst_57 = arith.constant dense<0.000000e+00> : vector<2x8x8xf32>
    %156 = tpu.matmul %154, %155, %cst_57 {dimension_numbers = #tpu.dot_dimension_numbers<[2], [2], [1], [1], [0, 0, 0, 1, 1, 1], [0], [0]>} : vector<2x8x16xf32>, vector<2x8x16xf32>, vector<2x8x8xf32> -> vector<2x8x8xf32>
    "tpu.trace_stop"() : () -> ()
    %cst_58 = arith.constant 2.500000e-01 : f32
    %157 = vector.broadcast %cst_58 : f32 to vector<2x8x8xf32>
    %158 = arith.mulf %156, %157 : vector<2x8x8xf32>
    %159 = vector.broadcast %4 : vector<2x1x8xf32> to vector<2x8x8xf32>
    %160 = arith.addf %158, %159 : vector<2x8x8xf32>
    %cst_59 = arith.constant dense<0xFF800000> : vector<2x8xf32>
    %161 = vector.multi_reduction <maximumf>, %160, %cst_59 [2] : vector<2x8x8xf32> to vector<2x8xf32>
    %162 = vector.shape_cast %161 : vector<2x8xf32> to vector<2x8x1xf32>
    %163 = vector.broadcast %162 : vector<2x8x1xf32> to vector<2x8x8xf32>
    %164 = arith.subf %160, %163 : vector<2x8x8xf32>
    %165 = math.exp %164 : vector<2x8x8xf32>
    %cst_60 = arith.constant dense<0.000000e+00> : vector<2x8xf32>
    %166 = vector.multi_reduction <add>, %165, %cst_60 [2] : vector<2x8x8xf32> to vector<2x8xf32>
    %167 = vector.shape_cast %166 : vector<2x8xf32> to vector<2x8x1xf32>
    %168 = tpu.reciprocal %167 {approx = true} : vector<2x8x1xf32> -> vector<2x8x1xf32>
    %169 = vector.broadcast %168 : vector<2x8x1xf32> to vector<2x8x8xf32>
    %170 = arith.mulf %165, %169 : vector<2x8x8xf32>
    %171 = vector.extract_strided_slice %153 {offsets = [0, 0, 0], sizes = [2, 8, 16], strides = [1, 1, 1]} : vector<2x8x32xf32> to vector<2x8x16xf32>
    "tpu.trace_start"() <{level = 10 : i32, message = "nqk,nkd->nqd"}> : () -> ()
    %cst_61 = arith.constant dense<0.000000e+00> : vector<2x8x16xf32>
    %172 = tpu.matmul %170, %171, %cst_61 {dimension_numbers = #tpu.dot_dimension_numbers<[2], [1], [1], [2], [0, 0, 0, 1, 1, 2], [0], [0]>} : vector<2x8x8xf32>, vector<2x8x16xf32>, vector<2x8x16xf32> -> vector<2x8x16xf32>
    "tpu.trace_stop"() : () -> ()
    %173 = vector.shape_cast %172 : vector<2x8x16xf32> to vector<16x16xf32>
    %174 = vector.extract_strided_slice %150 {offsets = [0, 0], sizes = [16, 32], strides = [1, 1]} : vector<32x32xf32> to vector<16x32xf32>
    %cst_62 = arith.constant dense<0.000000e+00> : vector<16x32xf32>
    %175 = tpu.matmul %173, %174, %cst_62 {dimension_numbers = #tpu.dot_dimension_numbers<[1], [0], [0], [1], [0, 0, 1, 1], [], []>} : vector<16x16xf32>, vector<16x32xf32>, vector<16x32xf32> -> vector<16x32xf32>
    %176 = vector.extract_strided_slice %151 {offsets = [0, 0, 16], sizes = [2, 8, 16], strides = [1, 1, 1]} : vector<2x8x32xf32> to vector<2x8x16xf32>
    %177 = vector.extract_strided_slice %152 {offsets = [0, 0, 16], sizes = [2, 8, 16], strides = [1, 1, 1]} : vector<2x8x32xf32> to vector<2x8x16xf32>
    "tpu.trace_start"() <{level = 10 : i32, message = "nqd,nkd->nqk"}> : () -> ()
    %cst_63 = arith.constant dense<0.000000e+00> : vector<2x8x8xf32>
    %178 = tpu.matmul %176, %177, %cst_63 {dimension_numbers = #tpu.dot_dimension_numbers<[2], [2], [1], [1], [0, 0, 0, 1, 1, 1], [0], [0]>} : vector<2x8x16xf32>, vector<2x8x16xf32>, vector<2x8x8xf32> -> vector<2x8x8xf32>
    "tpu.trace_stop"() : () -> ()
    %cst_64 = arith.constant 2.500000e-01 : f32
    %179 = vector.broadcast %cst_64 : f32 to vector<2x8x8xf32>
    %180 = arith.mulf %178, %179 : vector<2x8x8xf32>
    %181 = vector.broadcast %4 : vector<2x1x8xf32> to vector<2x8x8xf32>
    %182 = arith.addf %180, %181 : vector<2x8x8xf32>
    %cst_65 = arith.constant dense<0xFF800000> : vector<2x8xf32>
    %183 = vector.multi_reduction <maximumf>, %182, %cst_65 [2] : vector<2x8x8xf32> to vector<2x8xf32>
    %184 = vector.shape_cast %183 : vector<2x8xf32> to vector<2x8x1xf32>
    %185 = vector.broadcast %184 : vector<2x8x1xf32> to vector<2x8x8xf32>
    %186 = arith.subf %182, %185 : vector<2x8x8xf32>
    %187 = math.exp %186 : vector<2x8x8xf32>
    %cst_66 = arith.constant dense<0.000000e+00> : vector<2x8xf32>
    %188 = vector.multi_reduction <add>, %187, %cst_66 [2] : vector<2x8x8xf32> to vector<2x8xf32>
    %189 = vector.shape_cast %188 : vector<2x8xf32> to vector<2x8x1xf32>
    %190 = tpu.reciprocal %189 {approx = true} : vector<2x8x1xf32> -> vector<2x8x1xf32>
    %191 = vector.broadcast %190 : vector<2x8x1xf32> to vector<2x8x8xf32>
    %192 = arith.mulf %187, %191 : vector<2x8x8xf32>
    %193 = vector.extract_strided_slice %153 {offsets = [0, 0, 16], sizes = [2, 8, 16], strides = [1, 1, 1]} : vector<2x8x32xf32> to vector<2x8x16xf32>
    "tpu.trace_start"() <{level = 10 : i32, message = "nqk,nkd->nqd"}> : () -> ()
    %cst_67 = arith.constant dense<0.000000e+00> : vector<2x8x16xf32>
    %194 = tpu.matmul %192, %193, %cst_67 {dimension_numbers = #tpu.dot_dimension_numbers<[2], [1], [1], [2], [0, 0, 0, 1, 1, 2], [0], [0]>} : vector<2x8x8xf32>, vector<2x8x16xf32>, vector<2x8x16xf32> -> vector<2x8x16xf32>
    "tpu.trace_stop"() : () -> ()
    %195 = vector.shape_cast %194 : vector<2x8x16xf32> to vector<16x16xf32>
    %196 = vector.extract_strided_slice %150 {offsets = [16, 0], sizes = [16, 32], strides = [1, 1]} : vector<32x32xf32> to vector<16x32xf32>
    %cst_68 = arith.constant dense<0.000000e+00> : vector<16x32xf32>
    %197 = tpu.matmul %195, %196, %cst_68 {dimension_numbers = #tpu.dot_dimension_numbers<[1], [0], [0], [1], [0, 0, 1, 1], [], []>} : vector<16x16xf32>, vector<16x32xf32>, vector<16x32xf32> -> vector<16x32xf32>
    %198 = arith.addf %175, %197 : vector<16x32xf32>
    %199 = vector.broadcast %136 : vector<1x32xf32> to vector<16x32xf32>
    %200 = arith.addf %198, %199 : vector<16x32xf32>
    %201 = arith.addf %134, %200 : vector<16x32xf32>
    %cst_69 = arith.constant dense<0.000000e+00> : vector<16xf32>
    %202 = vector.multi_reduction <add>, %201, %cst_69 [1] : vector<16x32xf32> to vector<16xf32>
    %203 = vector.shape_cast %202 : vector<16xf32> to vector<16x1xf32>
    %cst_70 = arith.constant 3.200000e+01 : f32
    %204 = vector.broadcast %cst_70 : f32 to vector<16x1xf32>
    %205 = arith.divf %203, %204 : vector<16x1xf32>
    %206 = vector.broadcast %205 : vector<16x1xf32> to vector<16x32xf32>
    %207 = arith.subf %201, %206 : vector<16x32xf32>
    %208 = arith.mulf %207, %207 : vector<16x32xf32>
    %cst_71 = arith.constant dense<0.000000e+00> : vector<16xf32>
    %209 = vector.multi_reduction <add>, %208, %cst_71 [1] : vector<16x32xf32> to vector<16xf32>
    %210 = vector.shape_cast %209 : vector<16xf32> to vector<16x1xf32>
    %cst_72 = arith.constant 3.200000e+01 : f32
    %211 = vector.broadcast %cst_72 : f32 to vector<16x1xf32>
    %212 = arith.divf %210, %211 : vector<16x1xf32>
    %cst_73 = arith.constant 9.99999974E-6 : f32
    %213 = vector.broadcast %cst_73 : f32 to vector<16x1xf32>
    %214 = arith.addf %212, %213 : vector<16x1xf32>
    %215 = math.rsqrt %214 : vector<16x1xf32>
    %216 = vector.broadcast %215 : vector<16x1xf32> to vector<16x32xf32>
    %217 = arith.mulf %207, %216 : vector<16x32xf32>
    %218 = vector.broadcast %138 : vector<1x32xf32> to vector<16x32xf32>
    %219 = arith.mulf %217, %218 : vector<16x32xf32>
    %220 = vector.broadcast %139 : vector<1x32xf32> to vector<16x32xf32>
    %221 = arith.addf %219, %220 : vector<16x32xf32>
    %c0_74 = arith.constant 0 : index
    %c0_75 = arith.constant 0 : index
    %222 = vector.load %arg36[%c0_74, %c0_75] : memref<32x64xf32, #tpu.memory_space<vmem>>, vector<32x64xf32>
    %cst_76 = arith.constant dense<0.000000e+00> : vector<16x64xf32>
    %223 = tpu.matmul %221, %222, %cst_76 {dimension_numbers = #tpu.dot_dimension_numbers<[1], [0], [0], [1], [0, 0, 1, 1], [], []>} : vector<16x32xf32>, vector<32x64xf32>, vector<16x64xf32> -> vector<16x64xf32>
    %c0_77 = arith.constant 0 : index
    %c0_78 = arith.constant 0 : index
    %224 = vector.load %arg33[%c0_77, %c0_78] : memref<1x64xf32, #tpu.memory_space<vmem>>, vector<1x64xf32>
    %225 = vector.broadcast %224 : vector<1x64xf32> to vector<16x64xf32>
    %226 = arith.addf %223, %225 : vector<16x64xf32>
    %cst_79 = arith.constant 0.000000e+00 : f32
    %227 = vector.broadcast %cst_79 : f32 to vector<16x64xf32>
    %228 = arith.maximumf %226, %227 : vector<16x64xf32>
    %c0_80 = arith.constant 0 : index
    %c0_81 = arith.constant 0 : index
    %229 = vector.load %arg37[%c0_80, %c0_81] : memref<64x32xf32, #tpu.memory_space<vmem>>, vector<64x32xf32>
    %cst_82 = arith.constant dense<0.000000e+00> : vector<16x32xf32>
    %230 = tpu.matmul %228, %229, %cst_82 {dimension_numbers = #tpu.dot_dimension_numbers<[1], [0], [0], [1], [0, 0, 1, 1], [], []>} : vector<16x64xf32>, vector<64x32xf32>, vector<16x32xf32> -> vector<16x32xf32>
    %231 = vector.broadcast %137 : vector<1x32xf32> to vector<16x32xf32>
    %232 = arith.addf %230, %231 : vector<16x32xf32>
    %233 = arith.addf %221, %232 : vector<16x32xf32>
    %cst_83 = arith.constant dense<0.000000e+00> : vector<16xf32>
    %234 = vector.multi_reduction <add>, %233, %cst_83 [1] : vector<16x32xf32> to vector<16xf32>
    %235 = vector.shape_cast %234 : vector<16xf32> to vector<16x1xf32>
    %cst_84 = arith.constant 3.200000e+01 : f32
    %236 = vector.broadcast %cst_84 : f32 to vector<16x1xf32>
    %237 = arith.divf %235, %236 : vector<16x1xf32>
    %238 = vector.broadcast %237 : vector<16x1xf32> to vector<16x32xf32>
    %239 = arith.subf %233, %238 : vector<16x32xf32>
    %240 = arith.mulf %239, %239 : vector<16x32xf32>
    %cst_85 = arith.constant dense<0.000000e+00> : vector<16xf32>
    %241 = vector.multi_reduction <add>, %240, %cst_85 [1] : vector<16x32xf32> to vector<16xf32>
    %242 = vector.shape_cast %241 : vector<16xf32> to vector<16x1xf32>
    %cst_86 = arith.constant 3.200000e+01 : f32
    %243 = vector.broadcast %cst_86 : f32 to vector<16x1xf32>
    %244 = arith.divf %242, %243 : vector<16x1xf32>
    %cst_87 = arith.constant 9.99999974E-6 : f32
    %245 = vector.broadcast %cst_87 : f32 to vector<16x1xf32>
    %246 = arith.addf %244, %245 : vector<16x1xf32>
    %247 = math.rsqrt %246 : vector<16x1xf32>
    %248 = vector.broadcast %247 : vector<16x1xf32> to vector<16x32xf32>
    %249 = arith.mulf %239, %248 : vector<16x32xf32>
    %250 = vector.broadcast %140 : vector<1x32xf32> to vector<16x32xf32>
    %251 = arith.mulf %249, %250 : vector<16x32xf32>
    %252 = vector.broadcast %141 : vector<1x32xf32> to vector<16x32xf32>
    %253 = arith.addf %251, %252 : vector<16x32xf32>
    %c0_88 = arith.constant 0 : index
    %c0_89 = arith.constant 0 : index
    %254 = vector.load %arg42[%c0_88, %c0_89] : memref<4x32xf32, #tpu.memory_space<vmem>>, vector<4x32xf32>
    %255 = vector.extract_strided_slice %254 {offsets = [0, 0], sizes = [1, 32], strides = [1, 1]} : vector<4x32xf32> to vector<1x32xf32>
    %256 = vector.extract_strided_slice %254 {offsets = [1, 0], sizes = [1, 32], strides = [1, 1]} : vector<4x32xf32> to vector<1x32xf32>
    %cst_90 = arith.constant dense<0.000000e+00> : vector<16xf32>
    %257 = vector.multi_reduction <add>, %253, %cst_90 [1] : vector<16x32xf32> to vector<16xf32>
    %258 = vector.shape_cast %257 : vector<16xf32> to vector<16x1xf32>
    %cst_91 = arith.constant 3.200000e+01 : f32
    %259 = vector.broadcast %cst_91 : f32 to vector<16x1xf32>
    %260 = arith.divf %258, %259 : vector<16x1xf32>
    %261 = vector.broadcast %260 : vector<16x1xf32> to vector<16x32xf32>
    %262 = arith.subf %253, %261 : vector<16x32xf32>
    %263 = arith.mulf %262, %262 : vector<16x32xf32>
    %cst_92 = arith.constant dense<0.000000e+00> : vector<16xf32>
    %264 = vector.multi_reduction <add>, %263, %cst_92 [1] : vector<16x32xf32> to vector<16xf32>
    %265 = vector.shape_cast %264 : vector<16xf32> to vector<16x1xf32>
    %cst_93 = arith.constant 3.200000e+01 : f32
    %266 = vector.broadcast %cst_93 : f32 to vector<16x1xf32>
    %267 = arith.divf %265, %266 : vector<16x1xf32>
    %cst_94 = arith.constant 9.99999974E-6 : f32
    %268 = vector.broadcast %cst_94 : f32 to vector<16x1xf32>
    %269 = arith.addf %267, %268 : vector<16x1xf32>
    %270 = math.rsqrt %269 : vector<16x1xf32>
    %271 = vector.broadcast %270 : vector<16x1xf32> to vector<16x32xf32>
    %272 = arith.mulf %262, %271 : vector<16x32xf32>
    %273 = vector.broadcast %255 : vector<1x32xf32> to vector<16x32xf32>
    %274 = arith.mulf %272, %273 : vector<16x32xf32>
    %275 = vector.broadcast %256 : vector<1x32xf32> to vector<16x32xf32>
    %276 = arith.addf %274, %275 : vector<16x32xf32>
    %c0_95 = arith.constant 0 : index
    %c0_96 = arith.constant 0 : index
    %277 = vector.load %arg7[%c0_95, %c0_96] : memref<10x32xf32, #tpu.memory_space<vmem>>, vector<10x32xf32>
    %278 = vector.extract_strided_slice %277 {offsets = [0, 0], sizes = [1, 32], strides = [1, 1]} : vector<10x32xf32> to vector<1x32xf32>
    %279 = vector.extract_strided_slice %277 {offsets = [1, 0], sizes = [1, 32], strides = [1, 1]} : vector<10x32xf32> to vector<1x32xf32>
    %280 = vector.extract_strided_slice %277 {offsets = [2, 0], sizes = [1, 32], strides = [1, 1]} : vector<10x32xf32> to vector<1x32xf32>
    %281 = vector.extract_strided_slice %277 {offsets = [3, 0], sizes = [1, 32], strides = [1, 1]} : vector<10x32xf32> to vector<1x32xf32>
    %282 = vector.extract_strided_slice %277 {offsets = [4, 0], sizes = [1, 32], strides = [1, 1]} : vector<10x32xf32> to vector<1x32xf32>
    %283 = vector.extract_strided_slice %277 {offsets = [5, 0], sizes = [1, 32], strides = [1, 1]} : vector<10x32xf32> to vector<1x32xf32>
    %284 = vector.extract_strided_slice %277 {offsets = [6, 0], sizes = [1, 32], strides = [1, 1]} : vector<10x32xf32> to vector<1x32xf32>
    %285 = vector.extract_strided_slice %277 {offsets = [7, 0], sizes = [1, 32], strides = [1, 1]} : vector<10x32xf32> to vector<1x32xf32>
    %286 = vector.extract_strided_slice %277 {offsets = [8, 0], sizes = [1, 32], strides = [1, 1]} : vector<10x32xf32> to vector<1x32xf32>
    %287 = vector.extract_strided_slice %277 {offsets = [9, 0], sizes = [1, 32], strides = [1, 1]} : vector<10x32xf32> to vector<1x32xf32>
    %c0_97 = arith.constant 0 : index
    %c0_98 = arith.constant 0 : index
    %288 = vector.load %arg14[%c0_97, %c0_98] : memref<32x96xf32, #tpu.memory_space<vmem>>, vector<32x96xf32>
    %cst_99 = arith.constant dense<0.000000e+00> : vector<16x96xf32>
    %289 = tpu.matmul %1, %288, %cst_99 {dimension_numbers = #tpu.dot_dimension_numbers<[1], [0], [0], [1], [0, 0, 1, 1], [], []>} : vector<16x32xf32>, vector<32x96xf32>, vector<16x96xf32> -> vector<16x96xf32>
    %c0_100 = arith.constant 0 : index
    %c0_101 = arith.constant 0 : index
    %290 = vector.load %arg6[%c0_100, %c0_101] : memref<1x96xf32, #tpu.memory_space<vmem>>, vector<1x96xf32>
    %291 = vector.broadcast %290 : vector<1x96xf32> to vector<16x96xf32>
    %292 = arith.addf %289, %291 : vector<16x96xf32>
    %293 = vector.extract_strided_slice %292 {offsets = [0, 0], sizes = [16, 32], strides = [1, 1]} : vector<16x96xf32> to vector<16x32xf32>
    %294 = vector.extract_strided_slice %292 {offsets = [0, 32], sizes = [16, 32], strides = [1, 1]} : vector<16x96xf32> to vector<16x32xf32>
    %295 = vector.extract_strided_slice %292 {offsets = [0, 64], sizes = [16, 32], strides = [1, 1]} : vector<16x96xf32> to vector<16x32xf32>
    %c0_102 = arith.constant 0 : index
    %c0_103 = arith.constant 0 : index
    %296 = vector.load %arg12[%c0_102, %c0_103] : memref<32x32xf32, #tpu.memory_space<vmem>>, vector<32x32xf32>
    %297 = vector.shape_cast %293 : vector<16x32xf32> to vector<2x8x32xf32>
    %298 = vector.shape_cast %294 : vector<16x32xf32> to vector<2x8x32xf32>
    %299 = vector.shape_cast %295 : vector<16x32xf32> to vector<2x8x32xf32>
    %300 = vector.extract_strided_slice %297 {offsets = [0, 0, 0], sizes = [2, 8, 16], strides = [1, 1, 1]} : vector<2x8x32xf32> to vector<2x8x16xf32>
    %301 = vector.extract_strided_slice %298 {offsets = [0, 0, 0], sizes = [2, 8, 16], strides = [1, 1, 1]} : vector<2x8x32xf32> to vector<2x8x16xf32>
    "tpu.trace_start"() <{level = 10 : i32, message = "nqd,nkd->nqk"}> : () -> ()
    %cst_104 = arith.constant dense<0.000000e+00> : vector<2x8x8xf32>
    %302 = tpu.matmul %300, %301, %cst_104 {dimension_numbers = #tpu.dot_dimension_numbers<[2], [2], [1], [1], [0, 0, 0, 1, 1, 1], [0], [0]>} : vector<2x8x16xf32>, vector<2x8x16xf32>, vector<2x8x8xf32> -> vector<2x8x8xf32>
    "tpu.trace_stop"() : () -> ()
    %cst_105 = arith.constant 2.500000e-01 : f32
    %303 = vector.broadcast %cst_105 : f32 to vector<2x8x8xf32>
    %304 = arith.mulf %302, %303 : vector<2x8x8xf32>
    %305 = arith.addf %304, %15 : vector<2x8x8xf32>
    %cst_106 = arith.constant dense<0xFF800000> : vector<2x8xf32>
    %306 = vector.multi_reduction <maximumf>, %305, %cst_106 [2] : vector<2x8x8xf32> to vector<2x8xf32>
    %307 = vector.shape_cast %306 : vector<2x8xf32> to vector<2x8x1xf32>
    %308 = vector.broadcast %307 : vector<2x8x1xf32> to vector<2x8x8xf32>
    %309 = arith.subf %305, %308 : vector<2x8x8xf32>
    %310 = math.exp %309 : vector<2x8x8xf32>
    %cst_107 = arith.constant dense<0.000000e+00> : vector<2x8xf32>
    %311 = vector.multi_reduction <add>, %310, %cst_107 [2] : vector<2x8x8xf32> to vector<2x8xf32>
    %312 = vector.shape_cast %311 : vector<2x8xf32> to vector<2x8x1xf32>
    %313 = tpu.reciprocal %312 {approx = true} : vector<2x8x1xf32> -> vector<2x8x1xf32>
    %314 = vector.broadcast %313 : vector<2x8x1xf32> to vector<2x8x8xf32>
    %315 = arith.mulf %310, %314 : vector<2x8x8xf32>
    %316 = vector.extract_strided_slice %299 {offsets = [0, 0, 0], sizes = [2, 8, 16], strides = [1, 1, 1]} : vector<2x8x32xf32> to vector<2x8x16xf32>
    "tpu.trace_start"() <{level = 10 : i32, message = "nqk,nkd->nqd"}> : () -> ()
    %cst_108 = arith.constant dense<0.000000e+00> : vector<2x8x16xf32>
    %317 = tpu.matmul %315, %316, %cst_108 {dimension_numbers = #tpu.dot_dimension_numbers<[2], [1], [1], [2], [0, 0, 0, 1, 1, 2], [0], [0]>} : vector<2x8x8xf32>, vector<2x8x16xf32>, vector<2x8x16xf32> -> vector<2x8x16xf32>
    "tpu.trace_stop"() : () -> ()
    %318 = vector.shape_cast %317 : vector<2x8x16xf32> to vector<16x16xf32>
    %319 = vector.extract_strided_slice %296 {offsets = [0, 0], sizes = [16, 32], strides = [1, 1]} : vector<32x32xf32> to vector<16x32xf32>
    %cst_109 = arith.constant dense<0.000000e+00> : vector<16x32xf32>
    %320 = tpu.matmul %318, %319, %cst_109 {dimension_numbers = #tpu.dot_dimension_numbers<[1], [0], [0], [1], [0, 0, 1, 1], [], []>} : vector<16x16xf32>, vector<16x32xf32>, vector<16x32xf32> -> vector<16x32xf32>
    %321 = vector.extract_strided_slice %297 {offsets = [0, 0, 16], sizes = [2, 8, 16], strides = [1, 1, 1]} : vector<2x8x32xf32> to vector<2x8x16xf32>
    %322 = vector.extract_strided_slice %298 {offsets = [0, 0, 16], sizes = [2, 8, 16], strides = [1, 1, 1]} : vector<2x8x32xf32> to vector<2x8x16xf32>
    "tpu.trace_start"() <{level = 10 : i32, message = "nqd,nkd->nqk"}> : () -> ()
    %cst_110 = arith.constant dense<0.000000e+00> : vector<2x8x8xf32>
    %323 = tpu.matmul %321, %322, %cst_110 {dimension_numbers = #tpu.dot_dimension_numbers<[2], [2], [1], [1], [0, 0, 0, 1, 1, 1], [0], [0]>} : vector<2x8x16xf32>, vector<2x8x16xf32>, vector<2x8x8xf32> -> vector<2x8x8xf32>
    "tpu.trace_stop"() : () -> ()
    %cst_111 = arith.constant 2.500000e-01 : f32
    %324 = vector.broadcast %cst_111 : f32 to vector<2x8x8xf32>
    %325 = arith.mulf %323, %324 : vector<2x8x8xf32>
    %326 = arith.addf %325, %15 : vector<2x8x8xf32>
    %cst_112 = arith.constant dense<0xFF800000> : vector<2x8xf32>
    %327 = vector.multi_reduction <maximumf>, %326, %cst_112 [2] : vector<2x8x8xf32> to vector<2x8xf32>
    %328 = vector.shape_cast %327 : vector<2x8xf32> to vector<2x8x1xf32>
    %329 = vector.broadcast %328 : vector<2x8x1xf32> to vector<2x8x8xf32>
    %330 = arith.subf %326, %329 : vector<2x8x8xf32>
    %331 = math.exp %330 : vector<2x8x8xf32>
    %cst_113 = arith.constant dense<0.000000e+00> : vector<2x8xf32>
    %332 = vector.multi_reduction <add>, %331, %cst_113 [2] : vector<2x8x8xf32> to vector<2x8xf32>
    %333 = vector.shape_cast %332 : vector<2x8xf32> to vector<2x8x1xf32>
    %334 = tpu.reciprocal %333 {approx = true} : vector<2x8x1xf32> -> vector<2x8x1xf32>
    %335 = vector.broadcast %334 : vector<2x8x1xf32> to vector<2x8x8xf32>
    %336 = arith.mulf %331, %335 : vector<2x8x8xf32>
    %337 = vector.extract_strided_slice %299 {offsets = [0, 0, 16], sizes = [2, 8, 16], strides = [1, 1, 1]} : vector<2x8x32xf32> to vector<2x8x16xf32>
    "tpu.trace_start"() <{level = 10 : i32, message = "nqk,nkd->nqd"}> : () -> ()
    %cst_114 = arith.constant dense<0.000000e+00> : vector<2x8x16xf32>
    %338 = tpu.matmul %336, %337, %cst_114 {dimension_numbers = #tpu.dot_dimension_numbers<[2], [1], [1], [2], [0, 0, 0, 1, 1, 2], [0], [0]>} : vector<2x8x8xf32>, vector<2x8x16xf32>, vector<2x8x16xf32> -> vector<2x8x16xf32>
    "tpu.trace_stop"() : () -> ()
    %339 = vector.shape_cast %338 : vector<2x8x16xf32> to vector<16x16xf32>
    %340 = vector.extract_strided_slice %296 {offsets = [16, 0], sizes = [16, 32], strides = [1, 1]} : vector<32x32xf32> to vector<16x32xf32>
    %cst_115 = arith.constant dense<0.000000e+00> : vector<16x32xf32>
    %341 = tpu.matmul %339, %340, %cst_115 {dimension_numbers = #tpu.dot_dimension_numbers<[1], [0], [0], [1], [0, 0, 1, 1], [], []>} : vector<16x16xf32>, vector<16x32xf32>, vector<16x32xf32> -> vector<16x32xf32>
    %342 = arith.addf %320, %341 : vector<16x32xf32>
    %343 = vector.broadcast %278 : vector<1x32xf32> to vector<16x32xf32>
    %344 = arith.addf %342, %343 : vector<16x32xf32>
    %345 = arith.addf %1, %344 : vector<16x32xf32>
    %cst_116 = arith.constant dense<0.000000e+00> : vector<16xf32>
    %346 = vector.multi_reduction <add>, %345, %cst_116 [1] : vector<16x32xf32> to vector<16xf32>
    %347 = vector.shape_cast %346 : vector<16xf32> to vector<16x1xf32>
    %cst_117 = arith.constant 3.200000e+01 : f32
    %348 = vector.broadcast %cst_117 : f32 to vector<16x1xf32>
    %349 = arith.divf %347, %348 : vector<16x1xf32>
    %350 = vector.broadcast %349 : vector<16x1xf32> to vector<16x32xf32>
    %351 = arith.subf %345, %350 : vector<16x32xf32>
    %352 = arith.mulf %351, %351 : vector<16x32xf32>
    %cst_118 = arith.constant dense<0.000000e+00> : vector<16xf32>
    %353 = vector.multi_reduction <add>, %352, %cst_118 [1] : vector<16x32xf32> to vector<16xf32>
    %354 = vector.shape_cast %353 : vector<16xf32> to vector<16x1xf32>
    %cst_119 = arith.constant 3.200000e+01 : f32
    %355 = vector.broadcast %cst_119 : f32 to vector<16x1xf32>
    %356 = arith.divf %354, %355 : vector<16x1xf32>
    %cst_120 = arith.constant 9.99999974E-6 : f32
    %357 = vector.broadcast %cst_120 : f32 to vector<16x1xf32>
    %358 = arith.addf %356, %357 : vector<16x1xf32>
    %359 = math.rsqrt %358 : vector<16x1xf32>
    %360 = vector.broadcast %359 : vector<16x1xf32> to vector<16x32xf32>
    %361 = arith.mulf %351, %360 : vector<16x32xf32>
    %362 = vector.broadcast %282 : vector<1x32xf32> to vector<16x32xf32>
    %363 = arith.mulf %361, %362 : vector<16x32xf32>
    %364 = vector.broadcast %283 : vector<1x32xf32> to vector<16x32xf32>
    %365 = arith.addf %363, %364 : vector<16x32xf32>
    %c0_121 = arith.constant 0 : index
    %c0_122 = arith.constant 0 : index
    %366 = vector.load %arg13[%c0_121, %c0_122] : memref<32x32xf32, #tpu.memory_space<vmem>>, vector<32x32xf32>
    %cst_123 = arith.constant dense<0.000000e+00> : vector<16x32xf32>
    %367 = tpu.matmul %365, %366, %cst_123 {dimension_numbers = #tpu.dot_dimension_numbers<[1], [0], [0], [1], [0, 0, 1, 1], [], []>} : vector<16x32xf32>, vector<32x32xf32>, vector<16x32xf32> -> vector<16x32xf32>
    %368 = vector.broadcast %279 : vector<1x32xf32> to vector<16x32xf32>
    %369 = arith.addf %367, %368 : vector<16x32xf32>
    %c0_124 = arith.constant 0 : index
    %c0_125 = arith.constant 0 : index
    %370 = vector.load %arg10[%c0_124, %c0_125] : memref<32x64xf32, #tpu.memory_space<vmem>>, vector<32x64xf32>
    %cst_126 = arith.constant dense<0.000000e+00> : vector<16x64xf32>
    %371 = tpu.matmul %276, %370, %cst_126 {dimension_numbers = #tpu.dot_dimension_numbers<[1], [0], [0], [1], [0, 0, 1, 1], [], []>} : vector<16x32xf32>, vector<32x64xf32>, vector<16x64xf32> -> vector<16x64xf32>
    %c0_127 = arith.constant 0 : index
    %c0_128 = arith.constant 0 : index
    %372 = vector.load %arg5[%c0_127, %c0_128] : memref<1x64xf32, #tpu.memory_space<vmem>>, vector<1x64xf32>
    %373 = vector.broadcast %372 : vector<1x64xf32> to vector<16x64xf32>
    %374 = arith.addf %371, %373 : vector<16x64xf32>
    %375 = vector.extract_strided_slice %374 {offsets = [0, 0], sizes = [16, 32], strides = [1, 1]} : vector<16x64xf32> to vector<16x32xf32>
    %376 = vector.extract_strided_slice %374 {offsets = [0, 32], sizes = [16, 32], strides = [1, 1]} : vector<16x64xf32> to vector<16x32xf32>
    %c0_129 = arith.constant 0 : index
    %c0_130 = arith.constant 0 : index
    %377 = vector.load %arg11[%c0_129, %c0_130] : memref<32x32xf32, #tpu.memory_space<vmem>>, vector<32x32xf32>
    %378 = vector.shape_cast %369 : vector<16x32xf32> to vector<2x8x32xf32>
    %379 = vector.shape_cast %375 : vector<16x32xf32> to vector<2x8x32xf32>
    %380 = vector.shape_cast %376 : vector<16x32xf32> to vector<2x8x32xf32>
    %381 = vector.extract_strided_slice %378 {offsets = [0, 0, 0], sizes = [2, 8, 16], strides = [1, 1, 1]} : vector<2x8x32xf32> to vector<2x8x16xf32>
    %382 = vector.extract_strided_slice %379 {offsets = [0, 0, 0], sizes = [2, 8, 16], strides = [1, 1, 1]} : vector<2x8x32xf32> to vector<2x8x16xf32>
    "tpu.trace_start"() <{level = 10 : i32, message = "nqd,nkd->nqk"}> : () -> ()
    %cst_131 = arith.constant dense<0.000000e+00> : vector<2x8x8xf32>
    %383 = tpu.matmul %381, %382, %cst_131 {dimension_numbers = #tpu.dot_dimension_numbers<[2], [2], [1], [1], [0, 0, 0, 1, 1, 1], [0], [0]>} : vector<2x8x16xf32>, vector<2x8x16xf32>, vector<2x8x8xf32> -> vector<2x8x8xf32>
    "tpu.trace_stop"() : () -> ()
    %cst_132 = arith.constant 2.500000e-01 : f32
    %384 = vector.broadcast %cst_132 : f32 to vector<2x8x8xf32>
    %385 = arith.mulf %383, %384 : vector<2x8x8xf32>
    %cst_133 = arith.constant dense<0xFF800000> : vector<2x8xf32>
    %386 = vector.multi_reduction <maximumf>, %385, %cst_133 [2] : vector<2x8x8xf32> to vector<2x8xf32>
    %387 = vector.shape_cast %386 : vector<2x8xf32> to vector<2x8x1xf32>
    %388 = vector.broadcast %387 : vector<2x8x1xf32> to vector<2x8x8xf32>
    %389 = arith.subf %385, %388 : vector<2x8x8xf32>
    %390 = math.exp %389 : vector<2x8x8xf32>
    %cst_134 = arith.constant dense<0.000000e+00> : vector<2x8xf32>
    %391 = vector.multi_reduction <add>, %390, %cst_134 [2] : vector<2x8x8xf32> to vector<2x8xf32>
    %392 = vector.shape_cast %391 : vector<2x8xf32> to vector<2x8x1xf32>
    %393 = tpu.reciprocal %392 {approx = true} : vector<2x8x1xf32> -> vector<2x8x1xf32>
    %394 = vector.broadcast %393 : vector<2x8x1xf32> to vector<2x8x8xf32>
    %395 = arith.mulf %390, %394 : vector<2x8x8xf32>
    %396 = vector.extract_strided_slice %380 {offsets = [0, 0, 0], sizes = [2, 8, 16], strides = [1, 1, 1]} : vector<2x8x32xf32> to vector<2x8x16xf32>
    "tpu.trace_start"() <{level = 10 : i32, message = "nqk,nkd->nqd"}> : () -> ()
    %cst_135 = arith.constant dense<0.000000e+00> : vector<2x8x16xf32>
    %397 = tpu.matmul %395, %396, %cst_135 {dimension_numbers = #tpu.dot_dimension_numbers<[2], [1], [1], [2], [0, 0, 0, 1, 1, 2], [0], [0]>} : vector<2x8x8xf32>, vector<2x8x16xf32>, vector<2x8x16xf32> -> vector<2x8x16xf32>
    "tpu.trace_stop"() : () -> ()
    %398 = vector.shape_cast %397 : vector<2x8x16xf32> to vector<16x16xf32>
    %399 = vector.extract_strided_slice %377 {offsets = [0, 0], sizes = [16, 32], strides = [1, 1]} : vector<32x32xf32> to vector<16x32xf32>
    %cst_136 = arith.constant dense<0.000000e+00> : vector<16x32xf32>
    %400 = tpu.matmul %398, %399, %cst_136 {dimension_numbers = #tpu.dot_dimension_numbers<[1], [0], [0], [1], [0, 0, 1, 1], [], []>} : vector<16x16xf32>, vector<16x32xf32>, vector<16x32xf32> -> vector<16x32xf32>
    %401 = vector.extract_strided_slice %378 {offsets = [0, 0, 16], sizes = [2, 8, 16], strides = [1, 1, 1]} : vector<2x8x32xf32> to vector<2x8x16xf32>
    %402 = vector.extract_strided_slice %379 {offsets = [0, 0, 16], sizes = [2, 8, 16], strides = [1, 1, 1]} : vector<2x8x32xf32> to vector<2x8x16xf32>
    "tpu.trace_start"() <{level = 10 : i32, message = "nqd,nkd->nqk"}> : () -> ()
    %cst_137 = arith.constant dense<0.000000e+00> : vector<2x8x8xf32>
    %403 = tpu.matmul %401, %402, %cst_137 {dimension_numbers = #tpu.dot_dimension_numbers<[2], [2], [1], [1], [0, 0, 0, 1, 1, 1], [0], [0]>} : vector<2x8x16xf32>, vector<2x8x16xf32>, vector<2x8x8xf32> -> vector<2x8x8xf32>
    "tpu.trace_stop"() : () -> ()
    %cst_138 = arith.constant 2.500000e-01 : f32
    %404 = vector.broadcast %cst_138 : f32 to vector<2x8x8xf32>
    %405 = arith.mulf %403, %404 : vector<2x8x8xf32>
    %cst_139 = arith.constant dense<0xFF800000> : vector<2x8xf32>
    %406 = vector.multi_reduction <maximumf>, %405, %cst_139 [2] : vector<2x8x8xf32> to vector<2x8xf32>
    %407 = vector.shape_cast %406 : vector<2x8xf32> to vector<2x8x1xf32>
    %408 = vector.broadcast %407 : vector<2x8x1xf32> to vector<2x8x8xf32>
    %409 = arith.subf %405, %408 : vector<2x8x8xf32>
    %410 = math.exp %409 : vector<2x8x8xf32>
    %cst_140 = arith.constant dense<0.000000e+00> : vector<2x8xf32>
    %411 = vector.multi_reduction <add>, %410, %cst_140 [2] : vector<2x8x8xf32> to vector<2x8xf32>
    %412 = vector.shape_cast %411 : vector<2x8xf32> to vector<2x8x1xf32>
    %413 = tpu.reciprocal %412 {approx = true} : vector<2x8x1xf32> -> vector<2x8x1xf32>
    %414 = vector.broadcast %413 : vector<2x8x1xf32> to vector<2x8x8xf32>
    %415 = arith.mulf %410, %414 : vector<2x8x8xf32>
    %416 = vector.extract_strided_slice %380 {offsets = [0, 0, 16], sizes = [2, 8, 16], strides = [1, 1, 1]} : vector<2x8x32xf32> to vector<2x8x16xf32>
    "tpu.trace_start"() <{level = 10 : i32, message = "nqk,nkd->nqd"}> : () -> ()
    %cst_141 = arith.constant dense<0.000000e+00> : vector<2x8x16xf32>
    %417 = tpu.matmul %415, %416, %cst_141 {dimension_numbers = #tpu.dot_dimension_numbers<[2], [1], [1], [2], [0, 0, 0, 1, 1, 2], [0], [0]>} : vector<2x8x8xf32>, vector<2x8x16xf32>, vector<2x8x16xf32> -> vector<2x8x16xf32>
    "tpu.trace_stop"() : () -> ()
    %418 = vector.shape_cast %417 : vector<2x8x16xf32> to vector<16x16xf32>
    %419 = vector.extract_strided_slice %377 {offsets = [16, 0], sizes = [16, 32], strides = [1, 1]} : vector<32x32xf32> to vector<16x32xf32>
    %cst_142 = arith.constant dense<0.000000e+00> : vector<16x32xf32>
    %420 = tpu.matmul %418, %419, %cst_142 {dimension_numbers = #tpu.dot_dimension_numbers<[1], [0], [0], [1], [0, 0, 1, 1], [], []>} : vector<16x16xf32>, vector<16x32xf32>, vector<16x32xf32> -> vector<16x32xf32>
    %421 = arith.addf %400, %420 : vector<16x32xf32>
    %422 = vector.broadcast %280 : vector<1x32xf32> to vector<16x32xf32>
    %423 = arith.addf %421, %422 : vector<16x32xf32>
    %424 = arith.addf %365, %423 : vector<16x32xf32>
    %cst_143 = arith.constant dense<0.000000e+00> : vector<16xf32>
    %425 = vector.multi_reduction <add>, %424, %cst_143 [1] : vector<16x32xf32> to vector<16xf32>
    %426 = vector.shape_cast %425 : vector<16xf32> to vector<16x1xf32>
    %cst_144 = arith.constant 3.200000e+01 : f32
    %427 = vector.broadcast %cst_144 : f32 to vector<16x1xf32>
    %428 = arith.divf %426, %427 : vector<16x1xf32>
    %429 = vector.broadcast %428 : vector<16x1xf32> to vector<16x32xf32>
    %430 = arith.subf %424, %429 : vector<16x32xf32>
    %431 = arith.mulf %430, %430 : vector<16x32xf32>
    %cst_145 = arith.constant dense<0.000000e+00> : vector<16xf32>
    %432 = vector.multi_reduction <add>, %431, %cst_145 [1] : vector<16x32xf32> to vector<16xf32>
    %433 = vector.shape_cast %432 : vector<16xf32> to vector<16x1xf32>
    %cst_146 = arith.constant 3.200000e+01 : f32
    %434 = vector.broadcast %cst_146 : f32 to vector<16x1xf32>
    %435 = arith.divf %433, %434 : vector<16x1xf32>
    %cst_147 = arith.constant 9.99999974E-6 : f32
    %436 = vector.broadcast %cst_147 : f32 to vector<16x1xf32>
    %437 = arith.addf %435, %436 : vector<16x1xf32>
    %438 = math.rsqrt %437 : vector<16x1xf32>
    %439 = vector.broadcast %438 : vector<16x1xf32> to vector<16x32xf32>
    %440 = arith.mulf %430, %439 : vector<16x32xf32>
    %441 = vector.broadcast %284 : vector<1x32xf32> to vector<16x32xf32>
    %442 = arith.mulf %440, %441 : vector<16x32xf32>
    %443 = vector.broadcast %285 : vector<1x32xf32> to vector<16x32xf32>
    %444 = arith.addf %442, %443 : vector<16x32xf32>
    %c0_148 = arith.constant 0 : index
    %c0_149 = arith.constant 0 : index
    %445 = vector.load %arg8[%c0_148, %c0_149] : memref<32x64xf32, #tpu.memory_space<vmem>>, vector<32x64xf32>
    %cst_150 = arith.constant dense<0.000000e+00> : vector<16x64xf32>
    %446 = tpu.matmul %444, %445, %cst_150 {dimension_numbers = #tpu.dot_dimension_numbers<[1], [0], [0], [1], [0, 0, 1, 1], [], []>} : vector<16x32xf32>, vector<32x64xf32>, vector<16x64xf32> -> vector<16x64xf32>
    %c0_151 = arith.constant 0 : index
    %c0_152 = arith.constant 0 : index
    %447 = vector.load %arg4[%c0_151, %c0_152] : memref<1x64xf32, #tpu.memory_space<vmem>>, vector<1x64xf32>
    %448 = vector.broadcast %447 : vector<1x64xf32> to vector<16x64xf32>
    %449 = arith.addf %446, %448 : vector<16x64xf32>
    %cst_153 = arith.constant 0.000000e+00 : f32
    %450 = vector.broadcast %cst_153 : f32 to vector<16x64xf32>
    %451 = arith.maximumf %449, %450 : vector<16x64xf32>
    %c0_154 = arith.constant 0 : index
    %c0_155 = arith.constant 0 : index
    %452 = vector.load %arg9[%c0_154, %c0_155] : memref<64x32xf32, #tpu.memory_space<vmem>>, vector<64x32xf32>
    %cst_156 = arith.constant dense<0.000000e+00> : vector<16x32xf32>
    %453 = tpu.matmul %451, %452, %cst_156 {dimension_numbers = #tpu.dot_dimension_numbers<[1], [0], [0], [1], [0, 0, 1, 1], [], []>} : vector<16x64xf32>, vector<64x32xf32>, vector<16x32xf32> -> vector<16x32xf32>
    %454 = vector.broadcast %281 : vector<1x32xf32> to vector<16x32xf32>
    %455 = arith.addf %453, %454 : vector<16x32xf32>
    %456 = arith.addf %444, %455 : vector<16x32xf32>
    %cst_157 = arith.constant dense<0.000000e+00> : vector<16xf32>
    %457 = vector.multi_reduction <add>, %456, %cst_157 [1] : vector<16x32xf32> to vector<16xf32>
    %458 = vector.shape_cast %457 : vector<16xf32> to vector<16x1xf32>
    %cst_158 = arith.constant 3.200000e+01 : f32
    %459 = vector.broadcast %cst_158 : f32 to vector<16x1xf32>
    %460 = arith.divf %458, %459 : vector<16x1xf32>
    %461 = vector.broadcast %460 : vector<16x1xf32> to vector<16x32xf32>
    %462 = arith.subf %456, %461 : vector<16x32xf32>
    %463 = arith.mulf %462, %462 : vector<16x32xf32>
    %cst_159 = arith.constant dense<0.000000e+00> : vector<16xf32>
    %464 = vector.multi_reduction <add>, %463, %cst_159 [1] : vector<16x32xf32> to vector<16xf32>
    %465 = vector.shape_cast %464 : vector<16xf32> to vector<16x1xf32>
    %cst_160 = arith.constant 3.200000e+01 : f32
    %466 = vector.broadcast %cst_160 : f32 to vector<16x1xf32>
    %467 = arith.divf %465, %466 : vector<16x1xf32>
    %cst_161 = arith.constant 9.99999974E-6 : f32
    %468 = vector.broadcast %cst_161 : f32 to vector<16x1xf32>
    %469 = arith.addf %467, %468 : vector<16x1xf32>
    %470 = math.rsqrt %469 : vector<16x1xf32>
    %471 = vector.broadcast %470 : vector<16x1xf32> to vector<16x32xf32>
    %472 = arith.mulf %462, %471 : vector<16x32xf32>
    %473 = vector.broadcast %286 : vector<1x32xf32> to vector<16x32xf32>
    %474 = arith.mulf %472, %473 : vector<16x32xf32>
    %475 = vector.broadcast %287 : vector<1x32xf32> to vector<16x32xf32>
    %476 = arith.addf %474, %475 : vector<16x32xf32>
    %c0_162 = arith.constant 0 : index
    %c0_163 = arith.constant 0 : index
    %477 = vector.load %arg18[%c0_162, %c0_163] : memref<10x32xf32, #tpu.memory_space<vmem>>, vector<10x32xf32>
    %478 = vector.extract_strided_slice %477 {offsets = [0, 0], sizes = [1, 32], strides = [1, 1]} : vector<10x32xf32> to vector<1x32xf32>
    %479 = vector.extract_strided_slice %477 {offsets = [1, 0], sizes = [1, 32], strides = [1, 1]} : vector<10x32xf32> to vector<1x32xf32>
    %480 = vector.extract_strided_slice %477 {offsets = [2, 0], sizes = [1, 32], strides = [1, 1]} : vector<10x32xf32> to vector<1x32xf32>
    %481 = vector.extract_strided_slice %477 {offsets = [3, 0], sizes = [1, 32], strides = [1, 1]} : vector<10x32xf32> to vector<1x32xf32>
    %482 = vector.extract_strided_slice %477 {offsets = [4, 0], sizes = [1, 32], strides = [1, 1]} : vector<10x32xf32> to vector<1x32xf32>
    %483 = vector.extract_strided_slice %477 {offsets = [5, 0], sizes = [1, 32], strides = [1, 1]} : vector<10x32xf32> to vector<1x32xf32>
    %484 = vector.extract_strided_slice %477 {offsets = [6, 0], sizes = [1, 32], strides = [1, 1]} : vector<10x32xf32> to vector<1x32xf32>
    %485 = vector.extract_strided_slice %477 {offsets = [7, 0], sizes = [1, 32], strides = [1, 1]} : vector<10x32xf32> to vector<1x32xf32>
    %486 = vector.extract_strided_slice %477 {offsets = [8, 0], sizes = [1, 32], strides = [1, 1]} : vector<10x32xf32> to vector<1x32xf32>
    %487 = vector.extract_strided_slice %477 {offsets = [9, 0], sizes = [1, 32], strides = [1, 1]} : vector<10x32xf32> to vector<1x32xf32>
    %c0_164 = arith.constant 0 : index
    %c0_165 = arith.constant 0 : index
    %488 = vector.load %arg25[%c0_164, %c0_165] : memref<32x96xf32, #tpu.memory_space<vmem>>, vector<32x96xf32>
    %cst_166 = arith.constant dense<0.000000e+00> : vector<16x96xf32>
    %489 = tpu.matmul %476, %488, %cst_166 {dimension_numbers = #tpu.dot_dimension_numbers<[1], [0], [0], [1], [0, 0, 1, 1], [], []>} : vector<16x32xf32>, vector<32x96xf32>, vector<16x96xf32> -> vector<16x96xf32>
    %c0_167 = arith.constant 0 : index
    %c0_168 = arith.constant 0 : index
    %490 = vector.load %arg17[%c0_167, %c0_168] : memref<1x96xf32, #tpu.memory_space<vmem>>, vector<1x96xf32>
    %491 = vector.broadcast %490 : vector<1x96xf32> to vector<16x96xf32>
    %492 = arith.addf %489, %491 : vector<16x96xf32>
    %493 = vector.extract_strided_slice %492 {offsets = [0, 0], sizes = [16, 32], strides = [1, 1]} : vector<16x96xf32> to vector<16x32xf32>
    %494 = vector.extract_strided_slice %492 {offsets = [0, 32], sizes = [16, 32], strides = [1, 1]} : vector<16x96xf32> to vector<16x32xf32>
    %495 = vector.extract_strided_slice %492 {offsets = [0, 64], sizes = [16, 32], strides = [1, 1]} : vector<16x96xf32> to vector<16x32xf32>
    %c0_169 = arith.constant 0 : index
    %c0_170 = arith.constant 0 : index
    %496 = vector.load %arg23[%c0_169, %c0_170] : memref<32x32xf32, #tpu.memory_space<vmem>>, vector<32x32xf32>
    %497 = vector.shape_cast %493 : vector<16x32xf32> to vector<2x8x32xf32>
    %498 = vector.shape_cast %494 : vector<16x32xf32> to vector<2x8x32xf32>
    %499 = vector.shape_cast %495 : vector<16x32xf32> to vector<2x8x32xf32>
    %500 = vector.extract_strided_slice %497 {offsets = [0, 0, 0], sizes = [2, 8, 16], strides = [1, 1, 1]} : vector<2x8x32xf32> to vector<2x8x16xf32>
    %501 = vector.extract_strided_slice %498 {offsets = [0, 0, 0], sizes = [2, 8, 16], strides = [1, 1, 1]} : vector<2x8x32xf32> to vector<2x8x16xf32>
    "tpu.trace_start"() <{level = 10 : i32, message = "nqd,nkd->nqk"}> : () -> ()
    %cst_171 = arith.constant dense<0.000000e+00> : vector<2x8x8xf32>
    %502 = tpu.matmul %500, %501, %cst_171 {dimension_numbers = #tpu.dot_dimension_numbers<[2], [2], [1], [1], [0, 0, 0, 1, 1, 1], [0], [0]>} : vector<2x8x16xf32>, vector<2x8x16xf32>, vector<2x8x8xf32> -> vector<2x8x8xf32>
    "tpu.trace_stop"() : () -> ()
    %cst_172 = arith.constant 2.500000e-01 : f32
    %503 = vector.broadcast %cst_172 : f32 to vector<2x8x8xf32>
    %504 = arith.mulf %502, %503 : vector<2x8x8xf32>
    %505 = arith.addf %504, %15 : vector<2x8x8xf32>
    %cst_173 = arith.constant dense<0xFF800000> : vector<2x8xf32>
    %506 = vector.multi_reduction <maximumf>, %505, %cst_173 [2] : vector<2x8x8xf32> to vector<2x8xf32>
    %507 = vector.shape_cast %506 : vector<2x8xf32> to vector<2x8x1xf32>
    %508 = vector.broadcast %507 : vector<2x8x1xf32> to vector<2x8x8xf32>
    %509 = arith.subf %505, %508 : vector<2x8x8xf32>
    %510 = math.exp %509 : vector<2x8x8xf32>
    %cst_174 = arith.constant dense<0.000000e+00> : vector<2x8xf32>
    %511 = vector.multi_reduction <add>, %510, %cst_174 [2] : vector<2x8x8xf32> to vector<2x8xf32>
    %512 = vector.shape_cast %511 : vector<2x8xf32> to vector<2x8x1xf32>
    %513 = tpu.reciprocal %512 {approx = true} : vector<2x8x1xf32> -> vector<2x8x1xf32>
    %514 = vector.broadcast %513 : vector<2x8x1xf32> to vector<2x8x8xf32>
    %515 = arith.mulf %510, %514 : vector<2x8x8xf32>
    %516 = vector.extract_strided_slice %499 {offsets = [0, 0, 0], sizes = [2, 8, 16], strides = [1, 1, 1]} : vector<2x8x32xf32> to vector<2x8x16xf32>
    "tpu.trace_start"() <{level = 10 : i32, message = "nqk,nkd->nqd"}> : () -> ()
    %cst_175 = arith.constant dense<0.000000e+00> : vector<2x8x16xf32>
    %517 = tpu.matmul %515, %516, %cst_175 {dimension_numbers = #tpu.dot_dimension_numbers<[2], [1], [1], [2], [0, 0, 0, 1, 1, 2], [0], [0]>} : vector<2x8x8xf32>, vector<2x8x16xf32>, vector<2x8x16xf32> -> vector<2x8x16xf32>
    "tpu.trace_stop"() : () -> ()
    %518 = vector.shape_cast %517 : vector<2x8x16xf32> to vector<16x16xf32>
    %519 = vector.extract_strided_slice %496 {offsets = [0, 0], sizes = [16, 32], strides = [1, 1]} : vector<32x32xf32> to vector<16x32xf32>
    %cst_176 = arith.constant dense<0.000000e+00> : vector<16x32xf32>
    %520 = tpu.matmul %518, %519, %cst_176 {dimension_numbers = #tpu.dot_dimension_numbers<[1], [0], [0], [1], [0, 0, 1, 1], [], []>} : vector<16x16xf32>, vector<16x32xf32>, vector<16x32xf32> -> vector<16x32xf32>
    %521 = vector.extract_strided_slice %497 {offsets = [0, 0, 16], sizes = [2, 8, 16], strides = [1, 1, 1]} : vector<2x8x32xf32> to vector<2x8x16xf32>
    %522 = vector.extract_strided_slice %498 {offsets = [0, 0, 16], sizes = [2, 8, 16], strides = [1, 1, 1]} : vector<2x8x32xf32> to vector<2x8x16xf32>
    "tpu.trace_start"() <{level = 10 : i32, message = "nqd,nkd->nqk"}> : () -> ()
    %cst_177 = arith.constant dense<0.000000e+00> : vector<2x8x8xf32>
    %523 = tpu.matmul %521, %522, %cst_177 {dimension_numbers = #tpu.dot_dimension_numbers<[2], [2], [1], [1], [0, 0, 0, 1, 1, 1], [0], [0]>} : vector<2x8x16xf32>, vector<2x8x16xf32>, vector<2x8x8xf32> -> vector<2x8x8xf32>
    "tpu.trace_stop"() : () -> ()
    %cst_178 = arith.constant 2.500000e-01 : f32
    %524 = vector.broadcast %cst_178 : f32 to vector<2x8x8xf32>
    %525 = arith.mulf %523, %524 : vector<2x8x8xf32>
    %526 = arith.addf %525, %15 : vector<2x8x8xf32>
    %cst_179 = arith.constant dense<0xFF800000> : vector<2x8xf32>
    %527 = vector.multi_reduction <maximumf>, %526, %cst_179 [2] : vector<2x8x8xf32> to vector<2x8xf32>
    %528 = vector.shape_cast %527 : vector<2x8xf32> to vector<2x8x1xf32>
    %529 = vector.broadcast %528 : vector<2x8x1xf32> to vector<2x8x8xf32>
    %530 = arith.subf %526, %529 : vector<2x8x8xf32>
    %531 = math.exp %530 : vector<2x8x8xf32>
    %cst_180 = arith.constant dense<0.000000e+00> : vector<2x8xf32>
    %532 = vector.multi_reduction <add>, %531, %cst_180 [2] : vector<2x8x8xf32> to vector<2x8xf32>
    %533 = vector.shape_cast %532 : vector<2x8xf32> to vector<2x8x1xf32>
    %534 = tpu.reciprocal %533 {approx = true} : vector<2x8x1xf32> -> vector<2x8x1xf32>
    %535 = vector.broadcast %534 : vector<2x8x1xf32> to vector<2x8x8xf32>
    %536 = arith.mulf %531, %535 : vector<2x8x8xf32>
    %537 = vector.extract_strided_slice %499 {offsets = [0, 0, 16], sizes = [2, 8, 16], strides = [1, 1, 1]} : vector<2x8x32xf32> to vector<2x8x16xf32>
    "tpu.trace_start"() <{level = 10 : i32, message = "nqk,nkd->nqd"}> : () -> ()
    %cst_181 = arith.constant dense<0.000000e+00> : vector<2x8x16xf32>
    %538 = tpu.matmul %536, %537, %cst_181 {dimension_numbers = #tpu.dot_dimension_numbers<[2], [1], [1], [2], [0, 0, 0, 1, 1, 2], [0], [0]>} : vector<2x8x8xf32>, vector<2x8x16xf32>, vector<2x8x16xf32> -> vector<2x8x16xf32>
    "tpu.trace_stop"() : () -> ()
    %539 = vector.shape_cast %538 : vector<2x8x16xf32> to vector<16x16xf32>
    %540 = vector.extract_strided_slice %496 {offsets = [16, 0], sizes = [16, 32], strides = [1, 1]} : vector<32x32xf32> to vector<16x32xf32>
    %cst_182 = arith.constant dense<0.000000e+00> : vector<16x32xf32>
    %541 = tpu.matmul %539, %540, %cst_182 {dimension_numbers = #tpu.dot_dimension_numbers<[1], [0], [0], [1], [0, 0, 1, 1], [], []>} : vector<16x16xf32>, vector<16x32xf32>, vector<16x32xf32> -> vector<16x32xf32>
    %542 = arith.addf %520, %541 : vector<16x32xf32>
    %543 = vector.broadcast %478 : vector<1x32xf32> to vector<16x32xf32>
    %544 = arith.addf %542, %543 : vector<16x32xf32>
    %545 = arith.addf %476, %544 : vector<16x32xf32>
    %cst_183 = arith.constant dense<0.000000e+00> : vector<16xf32>
    %546 = vector.multi_reduction <add>, %545, %cst_183 [1] : vector<16x32xf32> to vector<16xf32>
    %547 = vector.shape_cast %546 : vector<16xf32> to vector<16x1xf32>
    %cst_184 = arith.constant 3.200000e+01 : f32
    %548 = vector.broadcast %cst_184 : f32 to vector<16x1xf32>
    %549 = arith.divf %547, %548 : vector<16x1xf32>
    %550 = vector.broadcast %549 : vector<16x1xf32> to vector<16x32xf32>
    %551 = arith.subf %545, %550 : vector<16x32xf32>
    %552 = arith.mulf %551, %551 : vector<16x32xf32>
    %cst_185 = arith.constant dense<0.000000e+00> : vector<16xf32>
    %553 = vector.multi_reduction <add>, %552, %cst_185 [1] : vector<16x32xf32> to vector<16xf32>
    %554 = vector.shape_cast %553 : vector<16xf32> to vector<16x1xf32>
    %cst_186 = arith.constant 3.200000e+01 : f32
    %555 = vector.broadcast %cst_186 : f32 to vector<16x1xf32>
    %556 = arith.divf %554, %555 : vector<16x1xf32>
    %cst_187 = arith.constant 9.99999974E-6 : f32
    %557 = vector.broadcast %cst_187 : f32 to vector<16x1xf32>
    %558 = arith.addf %556, %557 : vector<16x1xf32>
    %559 = math.rsqrt %558 : vector<16x1xf32>
    %560 = vector.broadcast %559 : vector<16x1xf32> to vector<16x32xf32>
    %561 = arith.mulf %551, %560 : vector<16x32xf32>
    %562 = vector.broadcast %482 : vector<1x32xf32> to vector<16x32xf32>
    %563 = arith.mulf %561, %562 : vector<16x32xf32>
    %564 = vector.broadcast %483 : vector<1x32xf32> to vector<16x32xf32>
    %565 = arith.addf %563, %564 : vector<16x32xf32>
    %c0_188 = arith.constant 0 : index
    %c0_189 = arith.constant 0 : index
    %566 = vector.load %arg24[%c0_188, %c0_189] : memref<32x32xf32, #tpu.memory_space<vmem>>, vector<32x32xf32>
    %cst_190 = arith.constant dense<0.000000e+00> : vector<16x32xf32>
    %567 = tpu.matmul %565, %566, %cst_190 {dimension_numbers = #tpu.dot_dimension_numbers<[1], [0], [0], [1], [0, 0, 1, 1], [], []>} : vector<16x32xf32>, vector<32x32xf32>, vector<16x32xf32> -> vector<16x32xf32>
    %568 = vector.broadcast %479 : vector<1x32xf32> to vector<16x32xf32>
    %569 = arith.addf %567, %568 : vector<16x32xf32>
    %c0_191 = arith.constant 0 : index
    %c0_192 = arith.constant 0 : index
    %570 = vector.load %arg21[%c0_191, %c0_192] : memref<32x64xf32, #tpu.memory_space<vmem>>, vector<32x64xf32>
    %cst_193 = arith.constant dense<0.000000e+00> : vector<16x64xf32>
    %571 = tpu.matmul %276, %570, %cst_193 {dimension_numbers = #tpu.dot_dimension_numbers<[1], [0], [0], [1], [0, 0, 1, 1], [], []>} : vector<16x32xf32>, vector<32x64xf32>, vector<16x64xf32> -> vector<16x64xf32>
    %c0_194 = arith.constant 0 : index
    %c0_195 = arith.constant 0 : index
    %572 = vector.load %arg16[%c0_194, %c0_195] : memref<1x64xf32, #tpu.memory_space<vmem>>, vector<1x64xf32>
    %573 = vector.broadcast %572 : vector<1x64xf32> to vector<16x64xf32>
    %574 = arith.addf %571, %573 : vector<16x64xf32>
    %575 = vector.extract_strided_slice %574 {offsets = [0, 0], sizes = [16, 32], strides = [1, 1]} : vector<16x64xf32> to vector<16x32xf32>
    %576 = vector.extract_strided_slice %574 {offsets = [0, 32], sizes = [16, 32], strides = [1, 1]} : vector<16x64xf32> to vector<16x32xf32>
    %c0_196 = arith.constant 0 : index
    %c0_197 = arith.constant 0 : index
    %577 = vector.load %arg22[%c0_196, %c0_197] : memref<32x32xf32, #tpu.memory_space<vmem>>, vector<32x32xf32>
    %578 = vector.shape_cast %569 : vector<16x32xf32> to vector<2x8x32xf32>
    %579 = vector.shape_cast %575 : vector<16x32xf32> to vector<2x8x32xf32>
    %580 = vector.shape_cast %576 : vector<16x32xf32> to vector<2x8x32xf32>
    %581 = vector.extract_strided_slice %578 {offsets = [0, 0, 0], sizes = [2, 8, 16], strides = [1, 1, 1]} : vector<2x8x32xf32> to vector<2x8x16xf32>
    %582 = vector.extract_strided_slice %579 {offsets = [0, 0, 0], sizes = [2, 8, 16], strides = [1, 1, 1]} : vector<2x8x32xf32> to vector<2x8x16xf32>
    "tpu.trace_start"() <{level = 10 : i32, message = "nqd,nkd->nqk"}> : () -> ()
    %cst_198 = arith.constant dense<0.000000e+00> : vector<2x8x8xf32>
    %583 = tpu.matmul %581, %582, %cst_198 {dimension_numbers = #tpu.dot_dimension_numbers<[2], [2], [1], [1], [0, 0, 0, 1, 1, 1], [0], [0]>} : vector<2x8x16xf32>, vector<2x8x16xf32>, vector<2x8x8xf32> -> vector<2x8x8xf32>
    "tpu.trace_stop"() : () -> ()
    %cst_199 = arith.constant 2.500000e-01 : f32
    %584 = vector.broadcast %cst_199 : f32 to vector<2x8x8xf32>
    %585 = arith.mulf %583, %584 : vector<2x8x8xf32>
    %cst_200 = arith.constant dense<0xFF800000> : vector<2x8xf32>
    %586 = vector.multi_reduction <maximumf>, %585, %cst_200 [2] : vector<2x8x8xf32> to vector<2x8xf32>
    %587 = vector.shape_cast %586 : vector<2x8xf32> to vector<2x8x1xf32>
    %588 = vector.broadcast %587 : vector<2x8x1xf32> to vector<2x8x8xf32>
    %589 = arith.subf %585, %588 : vector<2x8x8xf32>
    %590 = math.exp %589 : vector<2x8x8xf32>
    %cst_201 = arith.constant dense<0.000000e+00> : vector<2x8xf32>
    %591 = vector.multi_reduction <add>, %590, %cst_201 [2] : vector<2x8x8xf32> to vector<2x8xf32>
    %592 = vector.shape_cast %591 : vector<2x8xf32> to vector<2x8x1xf32>
    %593 = tpu.reciprocal %592 {approx = true} : vector<2x8x1xf32> -> vector<2x8x1xf32>
    %594 = vector.broadcast %593 : vector<2x8x1xf32> to vector<2x8x8xf32>
    %595 = arith.mulf %590, %594 : vector<2x8x8xf32>
    %596 = vector.extract_strided_slice %580 {offsets = [0, 0, 0], sizes = [2, 8, 16], strides = [1, 1, 1]} : vector<2x8x32xf32> to vector<2x8x16xf32>
    "tpu.trace_start"() <{level = 10 : i32, message = "nqk,nkd->nqd"}> : () -> ()
    %cst_202 = arith.constant dense<0.000000e+00> : vector<2x8x16xf32>
    %597 = tpu.matmul %595, %596, %cst_202 {dimension_numbers = #tpu.dot_dimension_numbers<[2], [1], [1], [2], [0, 0, 0, 1, 1, 2], [0], [0]>} : vector<2x8x8xf32>, vector<2x8x16xf32>, vector<2x8x16xf32> -> vector<2x8x16xf32>
    "tpu.trace_stop"() : () -> ()
    %598 = vector.shape_cast %597 : vector<2x8x16xf32> to vector<16x16xf32>
    %599 = vector.extract_strided_slice %577 {offsets = [0, 0], sizes = [16, 32], strides = [1, 1]} : vector<32x32xf32> to vector<16x32xf32>
    %cst_203 = arith.constant dense<0.000000e+00> : vector<16x32xf32>
    %600 = tpu.matmul %598, %599, %cst_203 {dimension_numbers = #tpu.dot_dimension_numbers<[1], [0], [0], [1], [0, 0, 1, 1], [], []>} : vector<16x16xf32>, vector<16x32xf32>, vector<16x32xf32> -> vector<16x32xf32>
    %601 = vector.extract_strided_slice %578 {offsets = [0, 0, 16], sizes = [2, 8, 16], strides = [1, 1, 1]} : vector<2x8x32xf32> to vector<2x8x16xf32>
    %602 = vector.extract_strided_slice %579 {offsets = [0, 0, 16], sizes = [2, 8, 16], strides = [1, 1, 1]} : vector<2x8x32xf32> to vector<2x8x16xf32>
    "tpu.trace_start"() <{level = 10 : i32, message = "nqd,nkd->nqk"}> : () -> ()
    %cst_204 = arith.constant dense<0.000000e+00> : vector<2x8x8xf32>
    %603 = tpu.matmul %601, %602, %cst_204 {dimension_numbers = #tpu.dot_dimension_numbers<[2], [2], [1], [1], [0, 0, 0, 1, 1, 1], [0], [0]>} : vector<2x8x16xf32>, vector<2x8x16xf32>, vector<2x8x8xf32> -> vector<2x8x8xf32>
    "tpu.trace_stop"() : () -> ()
    %cst_205 = arith.constant 2.500000e-01 : f32
    %604 = vector.broadcast %cst_205 : f32 to vector<2x8x8xf32>
    %605 = arith.mulf %603, %604 : vector<2x8x8xf32>
    %cst_206 = arith.constant dense<0xFF800000> : vector<2x8xf32>
    %606 = vector.multi_reduction <maximumf>, %605, %cst_206 [2] : vector<2x8x8xf32> to vector<2x8xf32>
    %607 = vector.shape_cast %606 : vector<2x8xf32> to vector<2x8x1xf32>
    %608 = vector.broadcast %607 : vector<2x8x1xf32> to vector<2x8x8xf32>
    %609 = arith.subf %605, %608 : vector<2x8x8xf32>
    %610 = math.exp %609 : vector<2x8x8xf32>
    %cst_207 = arith.constant dense<0.000000e+00> : vector<2x8xf32>
    %611 = vector.multi_reduction <add>, %610, %cst_207 [2] : vector<2x8x8xf32> to vector<2x8xf32>
    %612 = vector.shape_cast %611 : vector<2x8xf32> to vector<2x8x1xf32>
    %613 = tpu.reciprocal %612 {approx = true} : vector<2x8x1xf32> -> vector<2x8x1xf32>
    %614 = vector.broadcast %613 : vector<2x8x1xf32> to vector<2x8x8xf32>
    %615 = arith.mulf %610, %614 : vector<2x8x8xf32>
    %616 = vector.extract_strided_slice %580 {offsets = [0, 0, 16], sizes = [2, 8, 16], strides = [1, 1, 1]} : vector<2x8x32xf32> to vector<2x8x16xf32>
    "tpu.trace_start"() <{level = 10 : i32, message = "nqk,nkd->nqd"}> : () -> ()
    %cst_208 = arith.constant dense<0.000000e+00> : vector<2x8x16xf32>
    %617 = tpu.matmul %615, %616, %cst_208 {dimension_numbers = #tpu.dot_dimension_numbers<[2], [1], [1], [2], [0, 0, 0, 1, 1, 2], [0], [0]>} : vector<2x8x8xf32>, vector<2x8x16xf32>, vector<2x8x16xf32> -> vector<2x8x16xf32>
    "tpu.trace_stop"() : () -> ()
    %618 = vector.shape_cast %617 : vector<2x8x16xf32> to vector<16x16xf32>
    %619 = vector.extract_strided_slice %577 {offsets = [16, 0], sizes = [16, 32], strides = [1, 1]} : vector<32x32xf32> to vector<16x32xf32>
    %cst_209 = arith.constant dense<0.000000e+00> : vector<16x32xf32>
    %620 = tpu.matmul %618, %619, %cst_209 {dimension_numbers = #tpu.dot_dimension_numbers<[1], [0], [0], [1], [0, 0, 1, 1], [], []>} : vector<16x16xf32>, vector<16x32xf32>, vector<16x32xf32> -> vector<16x32xf32>
    %621 = arith.addf %600, %620 : vector<16x32xf32>
    %622 = vector.broadcast %480 : vector<1x32xf32> to vector<16x32xf32>
    %623 = arith.addf %621, %622 : vector<16x32xf32>
    %624 = arith.addf %565, %623 : vector<16x32xf32>
    %cst_210 = arith.constant dense<0.000000e+00> : vector<16xf32>
    %625 = vector.multi_reduction <add>, %624, %cst_210 [1] : vector<16x32xf32> to vector<16xf32>
    %626 = vector.shape_cast %625 : vector<16xf32> to vector<16x1xf32>
    %cst_211 = arith.constant 3.200000e+01 : f32
    %627 = vector.broadcast %cst_211 : f32 to vector<16x1xf32>
    %628 = arith.divf %626, %627 : vector<16x1xf32>
    %629 = vector.broadcast %628 : vector<16x1xf32> to vector<16x32xf32>
    %630 = arith.subf %624, %629 : vector<16x32xf32>
    %631 = arith.mulf %630, %630 : vector<16x32xf32>
    %cst_212 = arith.constant dense<0.000000e+00> : vector<16xf32>
    %632 = vector.multi_reduction <add>, %631, %cst_212 [1] : vector<16x32xf32> to vector<16xf32>
    %633 = vector.shape_cast %632 : vector<16xf32> to vector<16x1xf32>
    %cst_213 = arith.constant 3.200000e+01 : f32
    %634 = vector.broadcast %cst_213 : f32 to vector<16x1xf32>
    %635 = arith.divf %633, %634 : vector<16x1xf32>
    %cst_214 = arith.constant 9.99999974E-6 : f32
    %636 = vector.broadcast %cst_214 : f32 to vector<16x1xf32>
    %637 = arith.addf %635, %636 : vector<16x1xf32>
    %638 = math.rsqrt %637 : vector<16x1xf32>
    %639 = vector.broadcast %638 : vector<16x1xf32> to vector<16x32xf32>
    %640 = arith.mulf %630, %639 : vector<16x32xf32>
    %641 = vector.broadcast %484 : vector<1x32xf32> to vector<16x32xf32>
    %642 = arith.mulf %640, %641 : vector<16x32xf32>
    %643 = vector.broadcast %485 : vector<1x32xf32> to vector<16x32xf32>
    %644 = arith.addf %642, %643 : vector<16x32xf32>
    %c0_215 = arith.constant 0 : index
    %c0_216 = arith.constant 0 : index
    %645 = vector.load %arg19[%c0_215, %c0_216] : memref<32x64xf32, #tpu.memory_space<vmem>>, vector<32x64xf32>
    %cst_217 = arith.constant dense<0.000000e+00> : vector<16x64xf32>
    %646 = tpu.matmul %644, %645, %cst_217 {dimension_numbers = #tpu.dot_dimension_numbers<[1], [0], [0], [1], [0, 0, 1, 1], [], []>} : vector<16x32xf32>, vector<32x64xf32>, vector<16x64xf32> -> vector<16x64xf32>
    %c0_218 = arith.constant 0 : index
    %c0_219 = arith.constant 0 : index
    %647 = vector.load %arg15[%c0_218, %c0_219] : memref<1x64xf32, #tpu.memory_space<vmem>>, vector<1x64xf32>
    %648 = vector.broadcast %647 : vector<1x64xf32> to vector<16x64xf32>
    %649 = arith.addf %646, %648 : vector<16x64xf32>
    %cst_220 = arith.constant 0.000000e+00 : f32
    %650 = vector.broadcast %cst_220 : f32 to vector<16x64xf32>
    %651 = arith.maximumf %649, %650 : vector<16x64xf32>
    %c0_221 = arith.constant 0 : index
    %c0_222 = arith.constant 0 : index
    %652 = vector.load %arg20[%c0_221, %c0_222] : memref<64x32xf32, #tpu.memory_space<vmem>>, vector<64x32xf32>
    %cst_223 = arith.constant dense<0.000000e+00> : vector<16x32xf32>
    %653 = tpu.matmul %651, %652, %cst_223 {dimension_numbers = #tpu.dot_dimension_numbers<[1], [0], [0], [1], [0, 0, 1, 1], [], []>} : vector<16x64xf32>, vector<64x32xf32>, vector<16x32xf32> -> vector<16x32xf32>
    %654 = vector.broadcast %481 : vector<1x32xf32> to vector<16x32xf32>
    %655 = arith.addf %653, %654 : vector<16x32xf32>
    %656 = arith.addf %644, %655 : vector<16x32xf32>
    %cst_224 = arith.constant dense<0.000000e+00> : vector<16xf32>
    %657 = vector.multi_reduction <add>, %656, %cst_224 [1] : vector<16x32xf32> to vector<16xf32>
    %658 = vector.shape_cast %657 : vector<16xf32> to vector<16x1xf32>
    %cst_225 = arith.constant 3.200000e+01 : f32
    %659 = vector.broadcast %cst_225 : f32 to vector<16x1xf32>
    %660 = arith.divf %658, %659 : vector<16x1xf32>
    %661 = vector.broadcast %660 : vector<16x1xf32> to vector<16x32xf32>
    %662 = arith.subf %656, %661 : vector<16x32xf32>
    %663 = arith.mulf %662, %662 : vector<16x32xf32>
    %cst_226 = arith.constant dense<0.000000e+00> : vector<16xf32>
    %664 = vector.multi_reduction <add>, %663, %cst_226 [1] : vector<16x32xf32> to vector<16xf32>
    %665 = vector.shape_cast %664 : vector<16xf32> to vector<16x1xf32>
    %cst_227 = arith.constant 3.200000e+01 : f32
    %666 = vector.broadcast %cst_227 : f32 to vector<16x1xf32>
    %667 = arith.divf %665, %666 : vector<16x1xf32>
    %cst_228 = arith.constant 9.99999974E-6 : f32
    %668 = vector.broadcast %cst_228 : f32 to vector<16x1xf32>
    %669 = arith.addf %667, %668 : vector<16x1xf32>
    %670 = math.rsqrt %669 : vector<16x1xf32>
    %671 = vector.broadcast %670 : vector<16x1xf32> to vector<16x32xf32>
    %672 = arith.mulf %662, %671 : vector<16x32xf32>
    %673 = vector.broadcast %486 : vector<1x32xf32> to vector<16x32xf32>
    %674 = arith.mulf %672, %673 : vector<16x32xf32>
    %675 = vector.broadcast %487 : vector<1x32xf32> to vector<16x32xf32>
    %676 = arith.addf %674, %675 : vector<16x32xf32>
    %677 = vector.extract_strided_slice %254 {offsets = [2, 0], sizes = [1, 32], strides = [1, 1]} : vector<4x32xf32> to vector<1x32xf32>
    %678 = vector.extract_strided_slice %254 {offsets = [3, 0], sizes = [1, 32], strides = [1, 1]} : vector<4x32xf32> to vector<1x32xf32>
    %cst_229 = arith.constant dense<0.000000e+00> : vector<16xf32>
    %679 = vector.multi_reduction <add>, %676, %cst_229 [1] : vector<16x32xf32> to vector<16xf32>
    %680 = vector.shape_cast %679 : vector<16xf32> to vector<16x1xf32>
    %cst_230 = arith.constant 3.200000e+01 : f32
    %681 = vector.broadcast %cst_230 : f32 to vector<16x1xf32>
    %682 = arith.divf %680, %681 : vector<16x1xf32>
    %683 = vector.broadcast %682 : vector<16x1xf32> to vector<16x32xf32>
    %684 = arith.subf %676, %683 : vector<16x32xf32>
    %685 = arith.mulf %684, %684 : vector<16x32xf32>
    %cst_231 = arith.constant dense<0.000000e+00> : vector<16xf32>
    %686 = vector.multi_reduction <add>, %685, %cst_231 [1] : vector<16x32xf32> to vector<16xf32>
    %687 = vector.shape_cast %686 : vector<16xf32> to vector<16x1xf32>
    %cst_232 = arith.constant 3.200000e+01 : f32
    %688 = vector.broadcast %cst_232 : f32 to vector<16x1xf32>
    %689 = arith.divf %687, %688 : vector<16x1xf32>
    %cst_233 = arith.constant 9.99999974E-6 : f32
    %690 = vector.broadcast %cst_233 : f32 to vector<16x1xf32>
    %691 = arith.addf %689, %690 : vector<16x1xf32>
    %692 = math.rsqrt %691 : vector<16x1xf32>
    %693 = vector.broadcast %692 : vector<16x1xf32> to vector<16x32xf32>
    %694 = arith.mulf %684, %693 : vector<16x32xf32>
    %695 = vector.broadcast %677 : vector<1x32xf32> to vector<16x32xf32>
    %696 = arith.mulf %694, %695 : vector<16x32xf32>
    %697 = vector.broadcast %678 : vector<1x32xf32> to vector<16x32xf32>
    %698 = arith.addf %696, %697 : vector<16x32xf32>
    %c0_234 = arith.constant 0 : index
    %c0_235 = arith.constant 0 : index
    %699 = vector.load %arg41[%c0_234, %c0_235] : memref<32x128xf32, #tpu.memory_space<vmem>>, vector<32x128xf32>
    %cst_236 = arith.constant dense<0.000000e+00> : vector<16x128xf32>
    %700 = tpu.matmul %698, %699, %cst_236 {dimension_numbers = #tpu.dot_dimension_numbers<[1], [0], [0], [1], [0, 0, 1, 1], [], []>} : vector<16x32xf32>, vector<32x128xf32>, vector<16x128xf32> -> vector<16x128xf32>
    %c0_237 = arith.constant 0 : index
    %c0_238 = arith.constant 0 : index
    %701 = vector.load %arg40[%c0_237, %c0_238] : memref<1x128xf32, #tpu.memory_space<vmem>>, vector<1x128xf32>
    %702 = vector.broadcast %701 : vector<1x128xf32> to vector<16x128xf32>
    %703 = arith.addf %700, %702 : vector<16x128xf32>
    %c0_239 = arith.constant 0 : index
    %c0_240 = arith.constant 0 : index
    %704 = vector.load %arg43[%c0_239, %c0_240] : memref<16x128xf32, #tpu.memory_space<vmem>>, vector<16x128xf32>
    tpu.vector_store %arg43[%c0_239, %c0_240], %703 {strides = array<i32>} : memref<16x128xf32, #tpu.memory_space<vmem>>, vector<16x128xf32>,
    return
  }
}

</mosaic_0001>

<llo_original>
// kernel: full_transformer_forward.1
$region0: #{full_transformer_forward.1}
  #allocation0 [shape = 'u32[]', space=smem, size = 0x4, offset = 0x4, fixed_abs, tag = 'smem constant byte address 0x4 - core index']
  #allocation1 [shape = 'u32[144,128]{1,0:T(1,128)}', space=vmem, size = 0x12000, scoped, tag = 'internal scratch']
  %s0 = inlined_call_operand.smem [shape: u32[44], index: -1, kind: input, shape index: {}]
  %s1 = sld [smem:[%s0]]
  %s2 = scalar_lea.smem %s0, 1
  %s3 = sld [smem:[%s2]]
  %s4 = scalar_lea.smem %s0, 2
  %s5 = sld [smem:[%s4]]
  %s6 = scalar_lea.smem %s0, 3
  %s7 = sld [smem:[%s6]]
  %s8 = scalar_lea.smem %s0, 4
  %s9 = sld [smem:[%s8]]
  %s10 = scalar_lea.smem %s0, 5
  %s11 = sld [smem:[%s10]]
  %s12 = scalar_lea.smem %s0, 6
  %s13 = sld [smem:[%s12]]
  %s14 = scalar_lea.smem %s0, 7
  %s15 = sld [smem:[%s14]]
  %s16 = scalar_lea.smem %s0, 8
  %s17 = sld [smem:[%s16]]
  %s18 = scalar_lea.smem %s0, 9
  %s19 = sld [smem:[%s18]]
  %s20 = scalar_lea.smem %s0, 10
  %s21 = sld [smem:[%s20]]
  %s22 = scalar_lea.smem %s0, 11
  %s23 = sld [smem:[%s22]]
  %s24 = scalar_lea.smem %s0, 12
  %s25 = sld [smem:[%s24]]
  %s26 = scalar_lea.smem %s0, 13
  %s27 = sld [smem:[%s26]]
  %s28 = scalar_lea.smem %s0, 14
  %s29 = sld [smem:[%s28]]
  %s30 = scalar_lea.smem %s0, 15
  %s31 = sld [smem:[%s30]]
  %s32 = scalar_lea.smem %s0, 16
  %s33 = sld [smem:[%s32]]
  %s34 = scalar_lea.smem %s0, 17
  %s35 = sld [smem:[%s34]]
  %s36 = scalar_lea.smem %s0, 18
  %s37 = sld [smem:[%s36]]
  %s38 = scalar_lea.smem %s0, 19
  %s39 = sld [smem:[%s38]]
  %s40 = scalar_lea.smem %s0, 20
  %s41 = sld [smem:[%s40]]
  %s42 = scalar_lea.smem %s0, 21
  %s43 = sld [smem:[%s42]]
  %s44 = scalar_lea.smem %s0, 22
  %s45 = sld [smem:[%s44]]
  %s46 = scalar_lea.smem %s0, 23
  %s47 = sld [smem:[%s46]]
  %s48 = scalar_lea.smem %s0, 24
  %s49 = sld [smem:[%s48]]
  %s50 = scalar_lea.smem %s0, 25
  %s51 = sld [smem:[%s50]]
  %s52 = scalar_lea.smem %s0, 26
  %s53 = sld [smem:[%s52]]
  %s54 = scalar_lea.smem %s0, 27
  %s55 = sld [smem:[%s54]]
  %s56 = scalar_lea.smem %s0, 28
  %s57 = sld [smem:[%s56]]
  %s58 = scalar_lea.smem %s0, 29
  %s59 = sld [smem:[%s58]]
  %s60 = scalar_lea.smem %s0, 30
  %s61 = sld [smem:[%s60]]
  %s62 = scalar_lea.smem %s0, 31
  %s63 = sld [smem:[%s62]]
  %s64 = scalar_lea.smem %s0, 32
  %s65 = sld [smem:[%s64]]
  %s66 = scalar_lea.smem %s0, 33
  %s67 = sld [smem:[%s66]]
  %s68 = scalar_lea.smem %s0, 34
  %s69 = sld [smem:[%s68]]
  %s70 = scalar_lea.smem %s0, 35
  %s71 = sld [smem:[%s70]]
  %s72 = scalar_lea.smem %s0, 36
  %s73 = sld [smem:[%s72]]
  %s74 = scalar_lea.smem %s0, 37
  %s75 = sld [smem:[%s74]]
  %s76 = scalar_lea.smem %s0, 38
  %s77 = sld [smem:[%s76]]
  %s78 = scalar_lea.smem %s0, 39
  %s79 = sld [smem:[%s78]]
  %s80 = scalar_lea.smem %s0, 40
  %s81 = sld [smem:[%s80]]
  %s82 = scalar_lea.smem %s0, 41
  %s83 = sld [smem:[%s82]]
  %s84 = scalar_lea.smem %s0, 42
  %s85 = sld [smem:[%s84]]
  %s86 = scalar_lea.smem %s0, 43
  %s87 = sld [smem:[%s86]]
  %s88 = sld [smem:[#allocation0]]
  $region182: #{full_transformer_forward.1} parent=0
    _
  %s90 = ssub.s32 1, %s88
  %s91 = scalar_select 0, %s90, %s88
  $region1: #{full_transformer_forward.1} parent=0
    #allocation2 [shape = 'u8[8192]{0}', space=vmem, size = 0x2000, scoped, tag = 'output window, operand 0, single buffered']
    #allocation3 [shape = 's32[1]{0}', space=sflag, size = 0x4, scoped, tag = 'scoped memory for full_transformer_forward.1']
    %92 = vsyncpa [#allocation3], 0
    // Predicated region
    $region2: #{full_transformer_forward.1} parent=1 // pred_check
      _
    $region3: #{full_transformer_forward.1} parent=1 // pred_check_branch
      %94 = sbr.rel (0) target = $region5
    $region4: #{full_transformer_forward.1} parent=1 // pred_region
      _
    $region5: #{full_transformer_forward.1} parent=1 // pred_fallthru
      _
    // Predicated region
    $region6: #{full_transformer_forward.1} parent=1 // pred_check
      _
    $region7: #{full_transformer_forward.1} parent=1 // pred_check_branch
      %96 = sbr.rel (0) target = $region9
    $region8: #{full_transformer_forward.1} parent=1 // pred_region
      _
    $region9: #{full_transformer_forward.1} parent=1 // pred_fallthru
      _
    // Predicated region
    $region10: #{full_transformer_forward.1} parent=1 // pred_check
      _
    $region11: #{full_transformer_forward.1} parent=1 // pred_check_branch
      %98 = sbr.rel (0) target = $region13
    $region12: #{full_transformer_forward.1} parent=1 // pred_region
      _
    $region13: #{full_transformer_forward.1} parent=1 // pred_fallthru
      _
    // Predicated region
    $region14: #{full_transformer_forward.1} parent=1 // pred_check
      _
    $region15: #{full_transformer_forward.1} parent=1 // pred_check_branch
      %100 = sbr.rel (0) target = $region17
    $region16: #{full_transformer_forward.1} parent=1 // pred_region
      _
    $region17: #{full_transformer_forward.1} parent=1 // pred_fallthru
      _
    // Predicated region
    $region18: #{full_transformer_forward.1} parent=1 // pred_check
      _
    $region19: #{full_transformer_forward.1} parent=1 // pred_check_branch
      %102 = sbr.rel (0) target = $region21
    $region20: #{full_transformer_forward.1} parent=1 // pred_region
      _
    $region21: #{full_transformer_forward.1} parent=1 // pred_fallthru
      _
    // Predicated region
    $region22: #{full_transformer_forward.1} parent=1 // pred_check
      _
    $region23: #{full_transformer_forward.1} parent=1 // pred_check_branch
      %104 = sbr.rel (0) target = $region25
    $region24: #{full_transformer_forward.1} parent=1 // pred_region
      _
    $region25: #{full_transformer_forward.1} parent=1 // pred_fallthru
      _
    // Predicated region
    $region26: #{full_transformer_forward.1} parent=1 // pred_check
      _
    $region27: #{full_transformer_forward.1} parent=1 // pred_check_branch
      %106 = sbr.rel (0) target = $region29
    $region28: #{full_transformer_forward.1} parent=1 // pred_region
      _
    $region29: #{full_transformer_forward.1} parent=1 // pred_fallthru
      _
    // Predicated region
    $region30: #{full_transformer_forward.1} parent=1 // pred_check
      _
    $region31: #{full_transformer_forward.1} parent=1 // pred_check_branch
      %108 = sbr.rel (0) target = $region33
    $region32: #{full_transformer_forward.1} parent=1 // pred_region
      _
    $region33: #{full_transformer_forward.1} parent=1 // pred_fallthru
      _
    // Predicated region
    $region34: #{full_transformer_forward.1} parent=1 // pred_check
      _
    $region35: #{full_transformer_forward.1} parent=1 // pred_check_branch
      %110 = sbr.rel (0) target = $region37
    $region36: #{full_transformer_forward.1} parent=1 // pred_region
      _
    $region37: #{full_transformer_forward.1} parent=1 // pred_fallthru
      _
    // Predicated region
    $region38: #{full_transformer_forward.1} parent=1 // pred_check
      _
    $region39: #{full_transformer_forward.1} parent=1 // pred_check_branch
      %112 = sbr.rel (0) target = $region41
    $region40: #{full_transformer_forward.1} parent=1 // pred_region
      _
    $region41: #{full_transformer_forward.1} parent=1 // pred_fallthru
      _
    // Predicated region
    $region42: #{full_transformer_forward.1} parent=1 // pred_check
      _
    $region43: #{full_transformer_forward.1} parent=1 // pred_check_branch
      %114 = sbr.rel (0) target = $region45
    $region44: #{full_transformer_forward.1} parent=1 // pred_region
      _
    $region45: #{full_transformer_forward.1} parent=1 // pred_fallthru
      _
    // Predicated region
    $region46: #{full_transformer_forward.1} parent=1 // pred_check
      _
    $region47: #{full_transformer_forward.1} parent=1 // pred_check_branch
      %116 = sbr.rel (0) target = $region49
    $region48: #{full_transformer_forward.1} parent=1 // pred_region
      _
    $region49: #{full_transformer_forward.1} parent=1 // pred_fallthru
      _
    // Predicated region
    $region50: #{full_transformer_forward.1} parent=1 // pred_check
      _
    $region51: #{full_transformer_forward.1} parent=1 // pred_check_branch
      %118 = sbr.rel (0) target = $region53
    $region52: #{full_transformer_forward.1} parent=1 // pred_region
      _
    $region53: #{full_transformer_forward.1} parent=1 // pred_fallthru
      _
    // Predicated region
    $region54: #{full_transformer_forward.1} parent=1 // pred_check
      _
    $region55: #{full_transformer_forward.1} parent=1 // pred_check_branch
      %120 = sbr.rel (0) target = $region57
    $region56: #{full_transformer_forward.1} parent=1 // pred_region
      _
    $region57: #{full_transformer_forward.1} parent=1 // pred_fallthru
      _
    // Predicated region
    $region58: #{full_transformer_forward.1} parent=1 // pred_check
      _
    $region59: #{full_transformer_forward.1} parent=1 // pred_check_branch
      %122 = sbr.rel (0) target = $region61
    $region60: #{full_transformer_forward.1} parent=1 // pred_region
      _
    $region61: #{full_transformer_forward.1} parent=1 // pred_fallthru
      _
    // Predicated region
    $region62: #{full_transformer_forward.1} parent=1 // pred_check
      _
    $region63: #{full_transformer_forward.1} parent=1 // pred_check_branch
      %124 = sbr.rel (0) target = $region65
    $region64: #{full_transformer_forward.1} parent=1 // pred_region
      _
    $region65: #{full_transformer_forward.1} parent=1 // pred_fallthru
      _
    // Predicated region
    $region66: #{full_transformer_forward.1} parent=1 // pred_check
      _
    $region67: #{full_transformer_forward.1} parent=1 // pred_check_branch
      %126 = sbr.rel (0) target = $region69
    $region68: #{full_transformer_forward.1} parent=1 // pred_region
      _
    $region69: #{full_transformer_forward.1} parent=1 // pred_fallthru
      _
    // Predicated region
    $region70: #{full_transformer_forward.1} parent=1 // pred_check
      _
    $region71: #{full_transformer_forward.1} parent=1 // pred_check_branch
      %128 = sbr.rel (0) target = $region73
    $region72: #{full_transformer_forward.1} parent=1 // pred_region
      _
    $region73: #{full_transformer_forward.1} parent=1 // pred_fallthru
      _
    // Predicated region
    $region74: #{full_transformer_forward.1} parent=1 // pred_check
      _
    $region75: #{full_transformer_forward.1} parent=1 // pred_check_branch
      %130 = sbr.rel (0) target = $region77
    $region76: #{full_transformer_forward.1} parent=1 // pred_region
      _
    $region77: #{full_transformer_forward.1} parent=1 // pred_fallthru
      _
    // Predicated region
    $region78: #{full_transformer_forward.1} parent=1 // pred_check
      _
    $region79: #{full_transformer_forward.1} parent=1 // pred_check_branch
      %132 = sbr.rel (0) target = $region81
    $region80: #{full_transformer_forward.1} parent=1 // pred_region
      _
    $region81: #{full_transformer_forward.1} parent=1 // pred_fallthru
      _
    // Predicated region
    $region82: #{full_transformer_forward.1} parent=1 // pred_check
      _
    $region83: #{full_transformer_forward.1} parent=1 // pred_check_branch
      %134 = sbr.rel (0) target = $region85
    $region84: #{full_transformer_forward.1} parent=1 // pred_region
      _
    $region85: #{full_transformer_forward.1} parent=1 // pred_fallthru
      _
    // Predicated region
    $region86: #{full_transformer_forward.1} parent=1 // pred_check
      _
    $region87: #{full_transformer_forward.1} parent=1 // pred_check_branch
      %136 = sbr.rel (0) target = $region89
    $region88: #{full_transformer_forward.1} parent=1 // pred_region
      _
    $region89: #{full_transformer_forward.1} parent=1 // pred_fallthru
      _
    // Predicated region
    $region90: #{full_transformer_forward.1} parent=1 // pred_check
      _
    $region91: #{full_transformer_forward.1} parent=1 // pred_check_branch
      %138 = sbr.rel (0) target = $region93
    $region92: #{full_transformer_forward.1} parent=1 // pred_region
      _
    $region93: #{full_transformer_forward.1} parent=1 // pred_fallthru
      _
    // Predicated region
    $region94: #{full_transformer_forward.1} parent=1 // pred_check
      _
    $region95: #{full_transformer_forward.1} parent=1 // pred_check_branch
      %140 = sbr.rel (0) target = $region97
    $region96: #{full_transformer_forward.1} parent=1 // pred_region
      _
    $region97: #{full_transformer_forward.1} parent=1 // pred_fallthru
      _
    // Predicated region
    $region98: #{full_transformer_forward.1} parent=1 // pred_check
      _
    $region99: #{full_transformer_forward.1} parent=1 // pred_check_branch
      %142 = sbr.rel (0) target = $region101
    $region100: #{full_transformer_forward.1} parent=1 // pred_region
      _
    $region101: #{full_transformer_forward.1} parent=1 // pred_fallthru
      _
    // Predicated region
    $region102: #{full_transformer_forward.1} parent=1 // pred_check
      _
    $region103: #{full_transformer_forward.1} parent=1 // pred_check_branch
      %144 = sbr.rel (0) target = $region105
    $region104: #{full_transformer_forward.1} parent=1 // pred_region
      _
    $region105: #{full_transformer_forward.1} parent=1 // pred_fallthru
      _
    // Predicated region
    $region106: #{full_transformer_forward.1} parent=1 // pred_check
      _
    $region107: #{full_transformer_forward.1} parent=1 // pred_check_branch
      %146 = sbr.rel (0) target = $region109
    $region108: #{full_transformer_forward.1} parent=1 // pred_region
      _
    $region109: #{full_transformer_forward.1} parent=1 // pred_fallthru
      _
    // Predicated region
    $region110: #{full_transformer_forward.1} parent=1 // pred_check
      _
    $region111: #{full_transformer_forward.1} parent=1 // pred_check_branch
      %148 = sbr.rel (0) target = $region113
    $region112: #{full_transformer_forward.1} parent=1 // pred_region
      _
    $region113: #{full_transformer_forward.1} parent=1 // pred_fallthru
      _
    // Predicated region
    $region114: #{full_transformer_forward.1} parent=1 // pred_check
      _
    $region115: #{full_transformer_forward.1} parent=1 // pred_check_branch
      %150 = sbr.rel (0) target = $region117
    $region116: #{full_transformer_forward.1} parent=1 // pred_region
      _
    $region117: #{full_transformer_forward.1} parent=1 // pred_fallthru
      _
    // Predicated region
    $region118: #{full_transformer_forward.1} parent=1 // pred_check
      _
    $region119: #{full_transformer_forward.1} parent=1 // pred_check_branch
      %152 = sbr.rel (0) target = $region121
    $region120: #{full_transformer_forward.1} parent=1 // pred_region
      _
    $region121: #{full_transformer_forward.1} parent=1 // pred_fallthru
      _
    // Predicated region
    $region122: #{full_transformer_forward.1} parent=1 // pred_check
      _
    $region123: #{full_transformer_forward.1} parent=1 // pred_check_branch
      %154 = sbr.rel (0) target = $region125
    $region124: #{full_transformer_forward.1} parent=1 // pred_region
      _
    $region125: #{full_transformer_forward.1} parent=1 // pred_fallthru
      _
    // Predicated region
    $region126: #{full_transformer_forward.1} parent=1 // pred_check
      _
    $region127: #{full_transformer_forward.1} parent=1 // pred_check_branch
      %156 = sbr.rel (0) target = $region129
    $region128: #{full_transformer_forward.1} parent=1 // pred_region
      _
    $region129: #{full_transformer_forward.1} parent=1 // pred_fallthru
      _
    // Predicated region
    $region130: #{full_transformer_forward.1} parent=1 // pred_check
      _
    $region131: #{full_transformer_forward.1} parent=1 // pred_check_branch
      %158 = sbr.rel (0) target = $region133
    $region132: #{full_transformer_forward.1} parent=1 // pred_region
      _
    $region133: #{full_transformer_forward.1} parent=1 // pred_fallthru
      _
    // Predicated region
    $region134: #{full_transformer_forward.1} parent=1 // pred_check
      _
    $region135: #{full_transformer_forward.1} parent=1 // pred_check_branch
      %160 = sbr.rel (0) target = $region137
    $region136: #{full_transformer_forward.1} parent=1 // pred_region
      _
    $region137: #{full_transformer_forward.1} parent=1 // pred_fallthru
      _
    // Predicated region
    $region138: #{full_transformer_forward.1} parent=1 // pred_check
      _
    $region139: #{full_transformer_forward.1} parent=1 // pred_check_branch
      %162 = sbr.rel (0) target = $region141
    $region140: #{full_transformer_forward.1} parent=1 // pred_region
      _
    $region141: #{full_transformer_forward.1} parent=1 // pred_fallthru
      _
    // Predicated region
    $region142: #{full_transformer_forward.1} parent=1 // pred_check
      _
    $region143: #{full_transformer_forward.1} parent=1 // pred_check_branch
      %164 = sbr.rel (0) target = $region145
    $region144: #{full_transformer_forward.1} parent=1 // pred_region
      _
    $region145: #{full_transformer_forward.1} parent=1 // pred_fallthru
      _
    // Predicated region
    $region146: #{full_transformer_forward.1} parent=1 // pred_check
      _
    $region147: #{full_transformer_forward.1} parent=1 // pred_check_branch
      %166 = sbr.rel (0) target = $region149
    $region148: #{full_transformer_forward.1} parent=1 // pred_region
      _
    $region149: #{full_transformer_forward.1} parent=1 // pred_fallthru
      _
    // Predicated region
    $region150: #{full_transformer_forward.1} parent=1 // pred_check
      _
    $region151: #{full_transformer_forward.1} parent=1 // pred_check_branch
      %168 = sbr.rel (0) target = $region153
    $region152: #{full_transformer_forward.1} parent=1 // pred_region
      _
    $region153: #{full_transformer_forward.1} parent=1 // pred_fallthru
      _
    // Predicated region
    $region154: #{full_transformer_forward.1} parent=1 // pred_check
      _
    $region155: #{full_transformer_forward.1} parent=1 // pred_check_branch
      %170 = sbr.rel (0) target = $region157
    $region156: #{full_transformer_forward.1} parent=1 // pred_region
      _
    $region157: #{full_transformer_forward.1} parent=1 // pred_fallthru
      _
    // Predicated region
    $region158: #{full_transformer_forward.1} parent=1 // pred_check
      _
    $region159: #{full_transformer_forward.1} parent=1 // pred_check_branch
      %172 = sbr.rel (0) target = $region161
    $region160: #{full_transformer_forward.1} parent=1 // pred_region
      _
    $region161: #{full_transformer_forward.1} parent=1 // pred_fallthru
      _
    // Predicated region
    $region162: #{full_transformer_forward.1} parent=1 // pred_check
      _
    $region163: #{full_transformer_forward.1} parent=1 // pred_check_branch
      %174 = sbr.rel (0) target = $region165
    $region164: #{full_transformer_forward.1} parent=1 // pred_region
      _
    $region165: #{full_transformer_forward.1} parent=1 // pred_fallthru
      _
    // Predicated region
    $region166: #{full_transformer_forward.1} parent=1 // pred_check
      _
    $region167: #{full_transformer_forward.1} parent=1 // pred_check_branch
      %176 = sbr.rel (0) target = $region169
    $region168: #{full_transformer_forward.1} parent=1 // pred_region
      _
    $region169: #{full_transformer_forward.1} parent=1 // pred_fallthru
      _
    // Predicated region
    $region170: #{full_transformer_forward.1} parent=1 // pred_check
      _
    $region171: #{full_transformer_forward.1} parent=1 // pred_check_branch
      %178 = sbr.rel (0) target = $region173
    $region172: #{full_transformer_forward.1} parent=1 // pred_region
      _
    $region173: #{full_transformer_forward.1} parent=1 // pred_fallthru
      _
    %v179 = vld [vmem:[%s1] sm:$0xff]
    %v180 = vld [vmem:[%s1 + $0x8] sm:$0xff]
    %v181 = vld [vmem:[%s3] sm:$0xff]
    %v182 = vld [vmem:[%s3 + $0x8] sm:$0xff]
    %v183 = vld [vmem:[%s5] sm:$0x3]
    %v184 = vld [vmem:[%s7] sm:$0x3]
    %v187 = vunpack.c.l.s4 1966171168
    %v188 = vunpack.c.0.s8 %v187
    %v189 = vlaneseq
    %v190 = vshrl.u32 %v189, 7
    %v191 = vsub.s32 %v188, %v190
    %v192 = vrot.slane %v183, %v191
    %v193 = vcombine.high %v192, %v192
    %v195 = vunpack.c.l.s4 1966171168
    %v196 = vunpack.c.0.s8 %v195
    %v197 = vlaneseq
    %v198 = vshrl.u32 %v197, 7
    %v199 = vsub.s32 %v196, %v198
    %v200 = vrot.slane %v192, %v199
    %v202 = vunpack.c.l.s4 1966171168
    %v203 = vunpack.c.0.s8 %v202
    %v204 = vlaneseq
    %v205 = vshrl.u32 %v204, 7
    %v206 = vsub.s32 %v203, %v205
    %v207 = vrot.slane %v193, %v206
    %v208 = vlaneseq
    %v209 = vshrl.u32 %v208, 7
    %v210 = vlaneseq
    %v211 = vand.u32 %v210, 127
    %vm212 = vcmp.gt.s32.totalorder %v211, %v209
    %v213 = vsel %vm212, -1e+30, 0.0
    %v216 = vunpack.c.l.s4 1966171168
    %v217 = vunpack.c.0.s8 %v216
    %v218 = vlaneseq
    %v219 = vshrl.u32 %v218, 7
    %v220 = vsub.s32 %v217, %v219
    %v221 = vrot.slane %v184, %v220
    %v222 = vcombine.high %v221, %v221
    %v224 = vunpack.c.l.s4 1966171168
    %v225 = vunpack.c.0.s8 %v224
    %v226 = vlaneseq
    %v227 = vshrl.u32 %v226, 7
    %v228 = vsub.s32 %v225, %v227
    %v229 = vrot.slane %v221, %v228
    %v231 = vunpack.c.l.s4 1966171168
    %v232 = vunpack.c.0.s8 %v231
    %v233 = vlaneseq
    %v234 = vshrl.u32 %v233, 7
    %v235 = vsub.s32 %v232, %v234
    %v236 = vrot.slane %v222, %v235
    %v237 = vlaneseq
    %v238 = vshrl.u32 %v237, 7
    %v239 = vsub.s32 0, %v238
    %v240 = vrot.slane %v229, %v239
    %v241 = vlaneseq
    %v242 = vshrl.u32 %v241, 7
    %v243 = vsub.s32 0, %v242
    %v244 = vrot.slane %v236, %v243
    %v247 = vadd.f32 %v213, %v240
    %v248 = vadd.f32 %v213, %v244
    %v249 = vld [vmem:[%s57] sm:$0x3f]
    %v250 = vld [vmem:[%s65] sm:$0xff]
    %v251 = vld [vmem:[%s65 + $0x8] sm:$0xff]
    %v252 = vld [vmem:[%s65 + $0x10] sm:$0xff]
    %v253 = vld [vmem:[%s65 + $0x18] sm:$0xff]
    %v254 = vld [vmem:[%s55] sm:$0x1]
    %v256 = vlaneseq
    %v257 = vshrl.u32 %v256, 7
    %v258 = vsub.s32 0, %v257
    %v259 = vrot.slane %v254, %v258
    %vm261 = vcmask 261120
    %v263 = vsel %vm261, %v179, 0
    %v266 = vsel %vm261, %v180, 0
    %268 = vmatprep.subr.mxu0 0.0
    %269 = vmatpush1.msra.mxu0 0.0
    %270 = vmatprep.subr.mxu0 0.0
    %271 = vmatpush1.msra.mxu0 0.0
    %272 = vmatprep.subr.mxu0 0.0
    %273 = vmatpush1.msra.mxu0 0.0
    %274 = vmatprep.subr.mxu0 0.0
    %275 = vmatpush1.msra.mxu0 0.0
    %276 = vmatprep.subr.mxu0 0.0
    %277 = vmatpush1.msra.mxu0 0.0
    %278 = vmatprep.subr.mxu0 0.0
    %279 = vmatpush1.msra.mxu0 0.0
    %280 = vmatprep.subr.mxu0 0.0
    %281 = vmatpush1.msra.mxu0 0.0
    %282 = vmatprep.subr.mxu0 0.0
    %283 = vmatpush1.msra.mxu0 0.0
    %284 = vmatprep.subr.mxu0 0.0
    %285 = vmatpush1.msra.mxu0 0.0
    %286 = vmatprep.subr.mxu0 0.0
    %287 = vmatpush1.msra.mxu0 0.0
    %288 = vmatprep.subr.mxu0 0.0
    %289 = vmatpush1.msra.mxu0 0.0
    %290 = vmatprep.subr.mxu0 0.0
    %291 = vmatpush1.msra.mxu0 0.0
    %292 = vmatprep.subr.mxu0 0.0
    %293 = vmatpush1.msra.mxu0 %v253
    %294 = vmatprep.subr.mxu0 0.0
    %295 = vmatpush1.msra.mxu0 %v252
    %296 = vmatprep.subr.mxu0 0.0
    %297 = vmatpush1.msra.mxu0 %v251
    %298 = vmatprep.subr.mxu0 0.0
    %299 = vmatpush1.msra.mxu0 %v250
    %300 = vmatprep.subr.mxu0 0.0
    %301 = vmatpush2.msra.mxu0 0.0
    %302 = vmatprep.subr.mxu0 0.0
    %303 = vmatpush2.msra.mxu0 0.0
    %304 = vmatprep.subr.mxu0 0.0
    %305 = vmatpush2.msra.mxu0 0.0
    %306 = vmatprep.subr.mxu0 0.0
    %307 = vmatpush2.msra.mxu0 0.0
    %308 = vmatprep.subr.mxu0 0.0
    %309 = vmatpush2.msra.mxu0 0.0
    %310 = vmatprep.subr.mxu0 0.0
    %311 = vmatpush2.msra.mxu0 0.0
    %312 = vmatprep.subr.mxu0 0.0
    %313 = vmatpush2.msra.mxu0 0.0
    %314 = vmatprep.subr.mxu0 0.0
    %315 = vmatpush2.msra.mxu0 0.0
    %316 = vmatprep.subr.mxu0 0.0
    %317 = vmatpush2.msra.mxu0 0.0
    %318 = vmatprep.subr.mxu0 0.0
    %319 = vmatpush2.msra.mxu0 0.0
    %320 = vmatprep.subr.mxu0 0.0
    %321 = vmatpush2.msra.mxu0 0.0
    %322 = vmatprep.subr.mxu0 0.0
    %323 = vmatpush2.msra.mxu0 0.0
    %324 = vmatprep.subr.mxu0 0.0
    %325 = vmatpush2.msra.mxu0 0.0
    %326 = vmatprep.subr.mxu0 0.0
    %327 = vmatpush2.msra.mxu0 0.0
    %328 = vmatprep.subr.mxu0 0.0
    %329 = vmatpush2.msra.mxu0 0.0
    %330 = vmatprep.subr.mxu0 0.0
    %331 = vmatpush2.msra.mxu0 0.0
    %332 = vmatprep.mubr.f32.mxu0 0.0
    %333 = vmatmul.mubr.f32.gmra.mxu0 %v263
    %v334 = vpop.f32.mrf.mxu0
    %v335 = vadd.f32 %v259, %v334
    %v336 = vpop.f32.mrf.mxu0
    %337 = vmatprep.mubr.f32.mxu0 0.0
    %338 = vmatmul.mubr.f32.gmra.mxu0 %v266
    %v339 = vpop.f32.mrf.mxu0
    %v340 = vadd.f32 %v259, %v339
    %v341 = vpop.f32.mrf.mxu0
    %342 = vdwg.mxu0
    %v343 = vld [vmem:[%s63] sm:$0xff]
    %v344 = vld [vmem:[%s63 + $0x8] sm:$0xff]
    %v345 = vld [vmem:[%s63 + $0x10] sm:$0xff]
    %v346 = vld [vmem:[%s63 + $0x18] sm:$0xff]
    %348 = vrot.lane.b32.xlu0 %v335, 96
    %v349 = vpop.permute.xlu0 %348
    %vm350 = vcmask 130048
    %v351 = vsel %vm350, %v335, 0
    %v353 = vsel %vm350, %v349, 0
    %355 = vmatprep.subr.mxu0 0.0
    %356 = vmatpush1.xpose.msra.mxu0 0.0
    %357 = vmatprep.subr.mxu0 0.0
    %358 = vmatpush1.xpose.msra.mxu0 0.0
    %359 = vmatprep.subr.mxu0 0.0
    %360 = vmatpush1.xpose.msra.mxu0 0.0
    %361 = vmatprep.subr.mxu0 0.0
    %362 = vmatpush1.xpose.msra.mxu0 0.0
    %363 = vmatprep.subr.mxu0 0.0
    %364 = vmatpush1.xpose.msra.mxu0 0.0
    %365 = vmatprep.subr.mxu0 0.0
    %366 = vmatpush1.xpose.msra.mxu0 0.0
    %367 = vmatprep.subr.mxu0 0.0
    %368 = vmatpush1.xpose.msra.mxu0 0.0
    %369 = vmatprep.subr.mxu0 0.0
    %370 = vmatpush1.xpose.msra.mxu0 0.0
    %371 = vmatprep.subr.mxu0 0.0
    %372 = vmatpush1.xpose.msra.mxu0 0.0
    %373 = vmatprep.subr.mxu0 0.0
    %374 = vmatpush1.xpose.msra.mxu0 0.0
    %375 = vmatprep.subr.mxu0 0.0
    %376 = vmatpush1.xpose.msra.mxu0 0.0
    %377 = vmatprep.subr.mxu0 0.0
    %378 = vmatpush1.xpose.msra.mxu0 0.0
    %379 = vmatprep.subr.mxu0 0.0
    %380 = vmatpush1.xpose.msra.mxu0 0.0
    %381 = vmatprep.subr.mxu0 0.0
    %382 = vmatpush1.xpose.msra.mxu0 0.0
    %383 = vmatprep.subr.mxu0 0.0
    %384 = vmatpush1.xpose.msra.mxu0 0.0
    %385 = vmatprep.subr.mxu0 0.0
    %386 = vmatpush1.xpose.msra.mxu0 %v353
    %387 = vmatprep.subr.mxu0 0.0
    %388 = vmatpush2.xpose.msra.mxu0 0.0
    %389 = vmatprep.subr.mxu0 0.0
    %390 = vmatpush2.xpose.msra.mxu0 0.0
    %391 = vmatprep.subr.mxu0 0.0
    %392 = vmatpush2.xpose.msra.mxu0 0.0
    %393 = vmatprep.subr.mxu0 0.0
    %394 = vmatpush2.xpose.msra.mxu0 0.0
    %395 = vmatprep.subr.mxu0 0.0
    %396 = vmatpush2.xpose.msra.mxu0 0.0
    %397 = vmatprep.subr.mxu0 0.0
    %398 = vmatpush2.xpose.msra.mxu0 0.0
    %399 = vmatprep.subr.mxu0 0.0
    %400 = vmatpush2.xpose.msra.mxu0 0.0
    %401 = vmatprep.subr.mxu0 0.0
    %402 = vmatpush2.xpose.msra.mxu0 0.0
    %403 = vmatprep.subr.mxu0 0.0
    %404 = vmatpush2.xpose.msra.mxu0 0.0
    %405 = vmatprep.subr.mxu0 0.0
    %406 = vmatpush2.xpose.msra.mxu0 0.0
    %407 = vmatprep.subr.mxu0 0.0
    %408 = vmatpush2.xpose.msra.mxu0 0.0
    %409 = vmatprep.subr.mxu0 0.0
    %410 = vmatpush2.xpose.msra.mxu0 0.0
    %411 = vmatprep.subr.mxu0 0.0
    %412 = vmatpush2.xpose.msra.mxu0 0.0
    %413 = vmatprep.subr.mxu0 0.0
    %414 = vmatpush2.xpose.msra.mxu0 0.0
    %415 = vmatprep.subr.mxu0 0.0
    %416 = vmatpush2.xpose.msra.mxu0 0.0
    %417 = vmatprep.subr.mxu0 0.0
    %418 = vmatpush2.xpose.msra.mxu0 0.0
    %419 = vmatprep.mubr.f32.mxu0 0.0
    %420 = vmatmul.mubr.f32.gmra.mxu0 %v351
    %v421 = vpop.f32.mrf.mxu0
    %v422 = vadd.f32 0.0, %v421
    %v423 = vpop.f32.mrf.mxu0
    %424 = vdwg.mxu0
    %426 = vrot.lane.b32.xlu0 %v340, 96
    %v427 = vpop.permute.xlu0 %426
    %v428 = vsel %vm350, %v340, 0
    %v430 = vsel %vm350, %v427, 0
    %432 = vmatprep.subr.mxu0 0.0
    %433 = vmatpush1.xpose.msra.mxu0 0.0
    %434 = vmatprep.subr.mxu0 0.0
    %435 = vmatpush1.xpose.msra.mxu0 0.0
    %436 = vmatprep.subr.mxu0 0.0
    %437 = vmatpush1.xpose.msra.mxu0 0.0
    %438 = vmatprep.subr.mxu0 0.0
    %439 = vmatpush1.xpose.msra.mxu0 0.0
    %440 = vmatprep.subr.mxu0 0.0
    %441 = vmatpush1.xpose.msra.mxu0 0.0
    %442 = vmatprep.subr.mxu0 0.0
    %443 = vmatpush1.xpose.msra.mxu0 0.0
    %444 = vmatprep.subr.mxu0 0.0
    %445 = vmatpush1.xpose.msra.mxu0 0.0
    %446 = vmatprep.subr.mxu0 0.0
    %447 = vmatpush1.xpose.msra.mxu0 0.0
    %448 = vmatprep.subr.mxu0 0.0
    %449 = vmatpush1.xpose.msra.mxu0 0.0
    %450 = vmatprep.subr.mxu0 0.0
    %451 = vmatpush1.xpose.msra.mxu0 0.0
    %452 = vmatprep.subr.mxu0 0.0
    %453 = vmatpush1.xpose.msra.mxu0 0.0
    %454 = vmatprep.subr.mxu0 0.0
    %455 = vmatpush1.xpose.msra.mxu0 0.0
    %456 = vmatprep.subr.mxu0 0.0
    %457 = vmatpush1.xpose.msra.mxu0 0.0
    %458 = vmatprep.subr.mxu0 0.0
    %459 = vmatpush1.xpose.msra.mxu0 0.0
    %460 = vmatprep.subr.mxu0 0.0
    %461 = vmatpush1.xpose.msra.mxu0 0.0
    %462 = vmatprep.subr.mxu0 0.0
    %463 = vmatpush1.xpose.msra.mxu0 %v430
    %464 = vmatprep.subr.mxu0 0.0
    %465 = vmatpush2.xpose.msra.mxu0 0.0
    %466 = vmatprep.subr.mxu0 0.0
    %467 = vmatpush2.xpose.msra.mxu0 0.0
    %468 = vmatprep.subr.mxu0 0.0
    %469 = vmatpush2.xpose.msra.mxu0 0.0
    %470 = vmatprep.subr.mxu0 0.0
    %471 = vmatpush2.xpose.msra.mxu0 0.0
    %472 = vmatprep.subr.mxu0 0.0
    %473 = vmatpush2.xpose.msra.mxu0 0.0
    %474 = vmatprep.subr.mxu0 0.0
    %475 = vmatpush2.xpose.msra.mxu0 0.0
    %476 = vmatprep.subr.mxu0 0.0
    %477 = vmatpush2.xpose.msra.mxu0 0.0
    %478 = vmatprep.subr.mxu0 0.0
    %479 = vmatpush2.xpose.msra.mxu0 0.0
    %480 = vmatprep.subr.mxu0 0.0
    %481 = vmatpush2.xpose.msra.mxu0 0.0
    %482 = vmatprep.subr.mxu0 0.0
    %483 = vmatpush2.xpose.msra.mxu0 0.0
    %484 = vmatprep.subr.mxu0 0.0
    %485 = vmatpush2.xpose.msra.mxu0 0.0
    %486 = vmatprep.subr.mxu0 0.0
    %487 = vmatpush2.xpose.msra.mxu0 0.0
    %488 = vmatprep.subr.mxu0 0.0
    %489 = vmatpush2.xpose.msra.mxu0 0.0
    %490 = vmatprep.subr.mxu0 0.0
    %491 = vmatpush2.xpose.msra.mxu0 0.0
    %492 = vmatprep.subr.mxu0 0.0
    %493 = vmatpush2.xpose.msra.mxu0 0.0
    %494 = vmatprep.subr.mxu0 0.0
    %495 = vmatpush2.xpose.msra.mxu0 0.0
    %496 = vmatprep.mubr.f32.mxu0 0.0
    %497 = vmatmul.mubr.f32.gmra.mxu0 %v428
    %v498 = vpop.f32.mrf.mxu0
    %v499 = vadd.f32 0.0, %v498
    %v500 = vpop.f32.mrf.mxu0
    %501 = vdwg.mxu0
    %v502 = vmul.f32 %v422, 0.25
    %v503 = vmul.f32 %v499, 0.25
    %v504 = vlaneseq
    %v505 = vshrl.u32 %v504, 7
    %v506 = vsub.s32 0, %v505
    %v507 = vrot.slane %v200, %v506
    %v508 = vlaneseq
    %v509 = vshrl.u32 %v508, 7
    %v510 = vsub.s32 0, %v509
    %v511 = vrot.slane %v207, %v510
    %v514 = vadd.f32 %v502, %v507
    %v515 = vadd.f32 %v503, %v511
    %vm516 = vcmask 64512
    %v517 = vsel %vm516, %v514, -inf
    %518 = vmax.xlane.f32.xlu0 %v517
    %v519 = vpop.xlane.xlu0 %518
    %v520 = vsel %vm516, %v515, -inf
    %521 = vmax.xlane.f32.xlu0 %v520
    %v522 = vpop.xlane.xlu0 %521
    %v523 = vsub.f32 %v514, %v519
    %v524 = vsub.f32 %v515, %v522
    %v525 = vmul.f32 %v523, 1.442695
    %v526 = vpow.pop %v525
    %v527 = vmul.f32 %v524, 1.442695
    %v528 = vpow.pop %v527
    %v529 = vsel %vm516, %v526, 0.0
    %530 = vadd.xlane.f32.xlu0 %v529
    %v531 = vpop.xlane.xlu0 %530
    %v532 = vsel %vm516, %v528, 0.0
    %533 = vadd.xlane.f32.xlu0 %v532
    %v534 = vpop.xlane.xlu0 %533
    %v535 = vrcp.pop %v531
    %v536 = vrcp.pop %v534
    %v537 = vmul.f32 %v526, %v535
    %v538 = vmul.f32 %v528, %v536
    %539 = vrot.lane.b32.xlu0 %v335, 64
    %v540 = vpop.permute.xlu0 %539
    %v543 = vsel %vm516, %v537, 0
    %545 = vmatprep.subr.mxu0 0.0
    %546 = vmatpush1.msra.mxu0 0.0
    %547 = vmatprep.subr.mxu0 0.0
    %548 = vmatpush1.msra.mxu0 0.0
    %549 = vmatprep.subr.mxu0 0.0
    %550 = vmatpush1.msra.mxu0 0.0
    %551 = vmatprep.subr.mxu0 0.0
    %552 = vmatpush1.msra.mxu0 0.0
    %553 = vmatprep.subr.mxu0 0.0
    %554 = vmatpush1.msra.mxu0 0.0
    %555 = vmatprep.subr.mxu0 0.0
    %556 = vmatpush1.msra.mxu0 0.0
    %557 = vmatprep.subr.mxu0 0.0
    %558 = vmatpush1.msra.mxu0 0.0
    %559 = vmatprep.subr.mxu0 0.0
    %560 = vmatpush1.msra.mxu0 0.0
    %561 = vmatprep.subr.mxu0 0.0
    %562 = vmatpush1.msra.mxu0 0.0
    %563 = vmatprep.subr.mxu0 0.0
    %564 = vmatpush1.msra.mxu0 0.0
    %565 = vmatprep.subr.mxu0 0.0
    %566 = vmatpush1.msra.mxu0 0.0
    %567 = vmatprep.subr.mxu0 0.0
    %568 = vmatpush1.msra.mxu0 0.0
    %569 = vmatprep.subr.mxu0 0.0
    %570 = vmatpush1.msra.mxu0 0.0
    %571 = vmatprep.subr.mxu0 0.0
    %572 = vmatpush1.msra.mxu0 0.0
    %573 = vmatprep.subr.mxu0 0.0
    %574 = vmatpush1.msra.mxu0 0.0
    %575 = vmatprep.subr.mxu0 0.0
    %576 = vmatpush1.msra.mxu0 %v540
    %577 = vmatprep.subr.mxu0 0.0
    %578 = vmatpush2.msra.mxu0 0.0
    %579 = vmatprep.subr.mxu0 0.0
    %580 = vmatpush2.msra.mxu0 0.0
    %581 = vmatprep.subr.mxu0 0.0
    %582 = vmatpush2.msra.mxu0 0.0
    %583 = vmatprep.subr.mxu0 0.0
    %584 = vmatpush2.msra.mxu0 0.0
    %585 = vmatprep.subr.mxu0 0.0
    %586 = vmatpush2.msra.mxu0 0.0
    %587 = vmatprep.subr.mxu0 0.0
    %588 = vmatpush2.msra.mxu0 0.0
    %589 = vmatprep.subr.mxu0 0.0
    %590 = vmatpush2.msra.mxu0 0.0
    %591 = vmatprep.subr.mxu0 0.0
    %592 = vmatpush2.msra.mxu0 0.0
    %593 = vmatprep.subr.mxu0 0.0
    %594 = vmatpush2.msra.mxu0 0.0
    %595 = vmatprep.subr.mxu0 0.0
    %596 = vmatpush2.msra.mxu0 0.0
    %597 = vmatprep.subr.mxu0 0.0
    %598 = vmatpush2.msra.mxu0 0.0
    %599 = vmatprep.subr.mxu0 0.0
    %600 = vmatpush2.msra.mxu0 0.0
    %601 = vmatprep.subr.mxu0 0.0
    %602 = vmatpush2.msra.mxu0 0.0
    %603 = vmatprep.subr.mxu0 0.0
    %604 = vmatpush2.msra.mxu0 0.0
    %605 = vmatprep.subr.mxu0 0.0
    %606 = vmatpush2.msra.mxu0 0.0
    %607 = vmatprep.subr.mxu0 0.0
    %608 = vmatpush2.msra.mxu0 0.0
    %609 = vmatprep.mubr.f32.mxu0 0.0
    %610 = vmatmul.mubr.f32.gmra.mxu0 %v543
    %v611 = vpop.f32.mrf.mxu0
    %v612 = vadd.f32 0.0, %v611
    %v613 = vpop.f32.mrf.mxu0
    %614 = vdwg.mxu0
    %615 = vrot.lane.b32.xlu0 %v340, 64
    %v616 = vpop.permute.xlu0 %615
    %v619 = vsel %vm516, %v538, 0
    %621 = vmatprep.subr.mxu0 0.0
    %622 = vmatpush1.msra.mxu0 0.0
    %623 = vmatprep.subr.mxu0 0.0
    %624 = vmatpush1.msra.mxu0 0.0
    %625 = vmatprep.subr.mxu0 0.0
    %626 = vmatpush1.msra.mxu0 0.0
    %627 = vmatprep.subr.mxu0 0.0
    %628 = vmatpush1.msra.mxu0 0.0
    %629 = vmatprep.subr.mxu0 0.0
    %630 = vmatpush1.msra.mxu0 0.0
    %631 = vmatprep.subr.mxu0 0.0
    %632 = vmatpush1.msra.mxu0 0.0
    %633 = vmatprep.subr.mxu0 0.0
    %634 = vmatpush1.msra.mxu0 0.0
    %635 = vmatprep.subr.mxu0 0.0
    %636 = vmatpush1.msra.mxu0 0.0
    %637 = vmatprep.subr.mxu0 0.0
    %638 = vmatpush1.msra.mxu0 0.0
    %639 = vmatprep.subr.mxu0 0.0
    %640 = vmatpush1.msra.mxu0 0.0
    %641 = vmatprep.subr.mxu0 0.0
    %642 = vmatpush1.msra.mxu0 0.0
    %643 = vmatprep.subr.mxu0 0.0
    %644 = vmatpush1.msra.mxu0 0.0
    %645 = vmatprep.subr.mxu0 0.0
    %646 = vmatpush1.msra.mxu0 0.0
    %647 = vmatprep.subr.mxu0 0.0
    %648 = vmatpush1.msra.mxu0 0.0
    %649 = vmatprep.subr.mxu0 0.0
    %650 = vmatpush1.msra.mxu0 0.0
    %651 = vmatprep.subr.mxu0 0.0
    %652 = vmatpush1.msra.mxu0 %v616
    %653 = vmatprep.subr.mxu0 0.0
    %654 = vmatpush2.msra.mxu0 0.0
    %655 = vmatprep.subr.mxu0 0.0
    %656 = vmatpush2.msra.mxu0 0.0
    %657 = vmatprep.subr.mxu0 0.0
    %658 = vmatpush2.msra.mxu0 0.0
    %659 = vmatprep.subr.mxu0 0.0
    %660 = vmatpush2.msra.mxu0 0.0
    %661 = vmatprep.subr.mxu0 0.0
    %662 = vmatpush2.msra.mxu0 0.0
    %663 = vmatprep.subr.mxu0 0.0
    %664 = vmatpush2.msra.mxu0 0.0
    %665 = vmatprep.subr.mxu0 0.0
    %666 = vmatpush2.msra.mxu0 0.0
    %667 = vmatprep.subr.mxu0 0.0
    %668 = vmatpush2.msra.mxu0 0.0
    %669 = vmatprep.subr.mxu0 0.0
    %670 = vmatpush2.msra.mxu0 0.0
    %671 = vmatprep.subr.mxu0 0.0
    %672 = vmatpush2.msra.mxu0 0.0
    %673 = vmatprep.subr.mxu0 0.0
    %674 = vmatpush2.msra.mxu0 0.0
    %675 = vmatprep.subr.mxu0 0.0
    %676 = vmatpush2.msra.mxu0 0.0
    %677 = vmatprep.subr.mxu0 0.0
    %678 = vmatpush2.msra.mxu0 0.0
    %679 = vmatprep.subr.mxu0 0.0
    %680 = vmatpush2.msra.mxu0 0.0
    %681 = vmatprep.subr.mxu0 0.0
    %682 = vmatpush2.msra.mxu0 0.0
    %683 = vmatprep.subr.mxu0 0.0
    %684 = vmatpush2.msra.mxu0 0.0
    %685 = vmatprep.mubr.f32.mxu0 0.0
    %686 = vmatmul.mubr.f32.gmra.mxu0 %v619
    %v687 = vpop.f32.mrf.mxu0
    %v688 = vadd.f32 0.0, %v687
    %v689 = vpop.f32.mrf.mxu0
    %690 = vdwg.mxu0
    %691 = vrot.lane.b32.xlu0 %v335, 112
    %v692 = vpop.permute.xlu0 %691
    %693 = vrot.lane.b32.xlu0 %v335, 80
    %v694 = vpop.permute.xlu0 %693
    %v695 = vsel %vm350, %v692, 0
    %v697 = vsel %vm350, %v694, 0
    %699 = vmatprep.subr.mxu0 0.0
    %700 = vmatpush1.xpose.msra.mxu0 0.0
    %701 = vmatprep.subr.mxu0 0.0
    %702 = vmatpush1.xpose.msra.mxu0 0.0
    %703 = vmatprep.subr.mxu0 0.0
    %704 = vmatpush1.xpose.msra.mxu0 0.0
    %705 = vmatprep.subr.mxu0 0.0
    %706 = vmatpush1.xpose.msra.mxu0 0.0
    %707 = vmatprep.subr.mxu0 0.0
    %708 = vmatpush1.xpose.msra.mxu0 0.0
    %709 = vmatprep.subr.mxu0 0.0
    %710 = vmatpush1.xpose.msra.mxu0 0.0
    %711 = vmatprep.subr.mxu0 0.0
    %712 = vmatpush1.xpose.msra.mxu0 0.0
    %713 = vmatprep.subr.mxu0 0.0
    %714 = vmatpush1.xpose.msra.mxu0 0.0
    %715 = vmatprep.subr.mxu0 0.0
    %716 = vmatpush1.xpose.msra.mxu0 0.0
    %717 = vmatprep.subr.mxu0 0.0
    %718 = vmatpush1.xpose.msra.mxu0 0.0
    %719 = vmatprep.subr.mxu0 0.0
    %720 = vmatpush1.xpose.msra.mxu0 0.0
    %721 = vmatprep.subr.mxu0 0.0
    %722 = vmatpush1.xpose.msra.mxu0 0.0
    %723 = vmatprep.subr.mxu0 0.0
    %724 = vmatpush1.xpose.msra.mxu0 0.0
    %725 = vmatprep.subr.mxu0 0.0
    %726 = vmatpush1.xpose.msra.mxu0 0.0
    %727 = vmatprep.subr.mxu0 0.0
    %728 = vmatpush1.xpose.msra.mxu0 0.0
    %729 = vmatprep.subr.mxu0 0.0
    %730 = vmatpush1.xpose.msra.mxu0 %v697
    %731 = vmatprep.subr.mxu0 0.0
    %732 = vmatpush2.xpose.msra.mxu0 0.0
    %733 = vmatprep.subr.mxu0 0.0
    %734 = vmatpush2.xpose.msra.mxu0 0.0
    %735 = vmatprep.subr.mxu0 0.0
    %736 = vmatpush2.xpose.msra.mxu0 0.0
    %737 = vmatprep.subr.mxu0 0.0
    %738 = vmatpush2.xpose.msra.mxu0 0.0
    %739 = vmatprep.subr.mxu0 0.0
    %740 = vmatpush2.xpose.msra.mxu0 0.0
    %741 = vmatprep.subr.mxu0 0.0
    %742 = vmatpush2.xpose.msra.mxu0 0.0
    %743 = vmatprep.subr.mxu0 0.0
    %744 = vmatpush2.xpose.msra.mxu0 0.0
    %745 = vmatprep.subr.mxu0 0.0
    %746 = vmatpush2.xpose.msra.mxu0 0.0
    %747 = vmatprep.subr.mxu0 0.0
    %748 = vmatpush2.xpose.msra.mxu0 0.0
    %749 = vmatprep.subr.mxu0 0.0
    %750 = vmatpush2.xpose.msra.mxu0 0.0
    %751 = vmatprep.subr.mxu0 0.0
    %752 = vmatpush2.xpose.msra.mxu0 0.0
    %753 = vmatprep.subr.mxu0 0.0
    %754 = vmatpush2.xpose.msra.mxu0 0.0
    %755 = vmatprep.subr.mxu0 0.0
    %756 = vmatpush2.xpose.msra.mxu0 0.0
    %757 = vmatprep.subr.mxu0 0.0
    %758 = vmatpush2.xpose.msra.mxu0 0.0
    %759 = vmatprep.subr.mxu0 0.0
    %760 = vmatpush2.xpose.msra.mxu0 0.0
    %761 = vmatprep.subr.mxu0 0.0
    %762 = vmatpush2.xpose.msra.mxu0 0.0
    %763 = vmatprep.mubr.f32.mxu0 0.0
    %764 = vmatmul.mubr.f32.gmra.mxu0 %v695
    %v765 = vpop.f32.mrf.mxu0
    %v766 = vadd.f32 0.0, %v765
    %v767 = vpop.f32.mrf.mxu0
    %768 = vdwg.mxu0
    %769 = vrot.lane.b32.xlu0 %v340, 112
    %v770 = vpop.permute.xlu0 %769
    %771 = vrot.lane.b32.xlu0 %v340, 80
    %v772 = vpop.permute.xlu0 %771
    %v773 = vsel %vm350, %v770, 0
    %v775 = vsel %vm350, %v772, 0
    %777 = vmatprep.subr.mxu0 0.0
    %778 = vmatpush1.xpose.msra.mxu0 0.0
    %779 = vmatprep.subr.mxu0 0.0
    %780 = vmatpush1.xpose.msra.mxu0 0.0
    %781 = vmatprep.subr.mxu0 0.0
    %782 = vmatpush1.xpose.msra.mxu0 0.0
    %783 = vmatprep.subr.mxu0 0.0
    %784 = vmatpush1.xpose.msra.mxu0 0.0
    %785 = vmatprep.subr.mxu0 0.0
    %786 = vmatpush1.xpose.msra.mxu0 0.0
    %787 = vmatprep.subr.mxu0 0.0
    %788 = vmatpush1.xpose.msra.mxu0 0.0
    %789 = vmatprep.subr.mxu0 0.0
    %790 = vmatpush1.xpose.msra.mxu0 0.0
    %791 = vmatprep.subr.mxu0 0.0
    %792 = vmatpush1.xpose.msra.mxu0 0.0
    %793 = vmatprep.subr.mxu0 0.0
    %794 = vmatpush1.xpose.msra.mxu0 0.0
    %795 = vmatprep.subr.mxu0 0.0
    %796 = vmatpush1.xpose.msra.mxu0 0.0
    %797 = vmatprep.subr.mxu0 0.0
    %798 = vmatpush1.xpose.msra.mxu0 0.0
    %799 = vmatprep.subr.mxu0 0.0
    %800 = vmatpush1.xpose.msra.mxu0 0.0
    %801 = vmatprep.subr.mxu0 0.0
    %802 = vmatpush1.xpose.msra.mxu0 0.0
    %803 = vmatprep.subr.mxu0 0.0
    %804 = vmatpush1.xpose.msra.mxu0 0.0
    %805 = vmatprep.subr.mxu0 0.0
    %806 = vmatpush1.xpose.msra.mxu0 0.0
    %807 = vmatprep.subr.mxu0 0.0
    %808 = vmatpush1.xpose.msra.mxu0 %v775
    %809 = vmatprep.subr.mxu0 0.0
    %810 = vmatpush2.xpose.msra.mxu0 0.0
    %811 = vmatprep.subr.mxu0 0.0
    %812 = vmatpush2.xpose.msra.mxu0 0.0
    %813 = vmatprep.subr.mxu0 0.0
    %814 = vmatpush2.xpose.msra.mxu0 0.0
    %815 = vmatprep.subr.mxu0 0.0
    %816 = vmatpush2.xpose.msra.mxu0 0.0
    %817 = vmatprep.subr.mxu0 0.0
    %818 = vmatpush2.xpose.msra.mxu0 0.0
    %819 = vmatprep.subr.mxu0 0.0
    %820 = vmatpush2.xpose.msra.mxu0 0.0
    %821 = vmatprep.subr.mxu0 0.0
    %822 = vmatpush2.xpose.msra.mxu0 0.0
    %823 = vmatprep.subr.mxu0 0.0
    %824 = vmatpush2.xpose.msra.mxu0 0.0
    %825 = vmatprep.subr.mxu0 0.0
    %826 = vmatpush2.xpose.msra.mxu0 0.0
    %827 = vmatprep.subr.mxu0 0.0
    %828 = vmatpush2.xpose.msra.mxu0 0.0
    %829 = vmatprep.subr.mxu0 0.0
    %830 = vmatpush2.xpose.msra.mxu0 0.0
    %831 = vmatprep.subr.mxu0 0.0
    %832 = vmatpush2.xpose.msra.mxu0 0.0
    %833 = vmatprep.subr.mxu0 0.0
    %834 = vmatpush2.xpose.msra.mxu0 0.0
    %835 = vmatprep.subr.mxu0 0.0
    %836 = vmatpush2.xpose.msra.mxu0 0.0
    %837 = vmatprep.subr.mxu0 0.0
    %838 = vmatpush2.xpose.msra.mxu0 0.0
    %839 = vmatprep.subr.mxu0 0.0
    %840 = vmatpush2.xpose.msra.mxu0 0.0
    %841 = vmatprep.mubr.f32.mxu0 0.0
    %842 = vmatmul.mubr.f32.gmra.mxu0 %v773
    %v843 = vpop.f32.mrf.mxu0
    %v844 = vadd.f32 0.0, %v843
    %v845 = vpop.f32.mrf.mxu0
    %846 = vdwg.mxu0
    %v847 = vmul.f32 %v766, 0.25
    %v848 = vmul.f32 %v844, 0.25
    %v849 = vadd.f32 %v847, %v507
    %v850 = vadd.f32 %v848, %v511
    %v851 = vsel %vm516, %v849, -inf
    %852 = vmax.xlane.f32.xlu0 %v851
    %v853 = vpop.xlane.xlu0 %852
    %v854 = vsel %vm516, %v850, -inf
    %855 = vmax.xlane.f32.xlu0 %v854
    %v856 = vpop.xlane.xlu0 %855
    %v857 = vsub.f32 %v849, %v853
    %v858 = vsub.f32 %v850, %v856
    %v859 = vmul.f32 %v857, 1.442695
    %v860 = vpow.pop %v859
    %v861 = vmul.f32 %v858, 1.442695
    %v862 = vpow.pop %v861
    %v863 = vsel %vm516, %v860, 0.0
    %864 = vadd.xlane.f32.xlu0 %v863
    %v865 = vpop.xlane.xlu0 %864
    %v866 = vsel %vm516, %v862, 0.0
    %867 = vadd.xlane.f32.xlu0 %v866
    %v868 = vpop.xlane.xlu0 %867
    %v869 = vrcp.pop %v865
    %v870 = vrcp.pop %v868
    %v871 = vmul.f32 %v860, %v869
    %v872 = vmul.f32 %v862, %v870
    %873 = vrot.lane.b32.xlu0 %v335, 48
    %v874 = vpop.permute.xlu0 %873
    %v877 = vsel %vm516, %v871, 0
    %879 = vmatprep.subr.mxu0 0.0
    %880 = vmatpush1.msra.mxu0 0.0
    %881 = vmatprep.subr.mxu0 0.0
    %882 = vmatpush1.msra.mxu0 0.0
    %883 = vmatprep.subr.mxu0 0.0
    %884 = vmatpush1.msra.mxu0 0.0
    %885 = vmatprep.subr.mxu0 0.0
    %886 = vmatpush1.msra.mxu0 0.0
    %887 = vmatprep.subr.mxu0 0.0
    %888 = vmatpush1.msra.mxu0 0.0
    %889 = vmatprep.subr.mxu0 0.0
    %890 = vmatpush1.msra.mxu0 0.0
    %891 = vmatprep.subr.mxu0 0.0
    %892 = vmatpush1.msra.mxu0 0.0
    %893 = vmatprep.subr.mxu0 0.0
    %894 = vmatpush1.msra.mxu0 0.0
    %895 = vmatprep.subr.mxu0 0.0
    %896 = vmatpush1.msra.mxu0 0.0
    %897 = vmatprep.subr.mxu0 0.0
    %898 = vmatpush1.msra.mxu0 0.0
    %899 = vmatprep.subr.mxu0 0.0
    %900 = vmatpush1.msra.mxu0 0.0
    %901 = vmatprep.subr.mxu0 0.0
    %902 = vmatpush1.msra.mxu0 0.0
    %903 = vmatprep.subr.mxu0 0.0
    %904 = vmatpush1.msra.mxu0 0.0
    %905 = vmatprep.subr.mxu0 0.0
    %906 = vmatpush1.msra.mxu0 0.0
    %907 = vmatprep.subr.mxu0 0.0
    %908 = vmatpush1.msra.mxu0 0.0
    %909 = vmatprep.subr.mxu0 0.0
    %910 = vmatpush1.msra.mxu0 %v874
    %911 = vmatprep.subr.mxu0 0.0
    %912 = vmatpush2.msra.mxu0 0.0
    %913 = vmatprep.subr.mxu0 0.0
    %914 = vmatpush2.msra.mxu0 0.0
    %915 = vmatprep.subr.mxu0 0.0
    %916 = vmatpush2.msra.mxu0 0.0
    %917 = vmatprep.subr.mxu0 0.0
    %918 = vmatpush2.msra.mxu0 0.0
    %919 = vmatprep.subr.mxu0 0.0
    %920 = vmatpush2.msra.mxu0 0.0
    %921 = vmatprep.subr.mxu0 0.0
    %922 = vmatpush2.msra.mxu0 0.0
    %923 = vmatprep.subr.mxu0 0.0
    %924 = vmatpush2.msra.mxu0 0.0
    %925 = vmatprep.subr.mxu0 0.0
    %926 = vmatpush2.msra.mxu0 0.0
    %927 = vmatprep.subr.mxu0 0.0
    %928 = vmatpush2.msra.mxu0 0.0
    %929 = vmatprep.subr.mxu0 0.0
    %930 = vmatpush2.msra.mxu0 0.0
    %931 = vmatprep.subr.mxu0 0.0
    %932 = vmatpush2.msra.mxu0 0.0
    %933 = vmatprep.subr.mxu0 0.0
    %934 = vmatpush2.msra.mxu0 0.0
    %935 = vmatprep.subr.mxu0 0.0
    %936 = vmatpush2.msra.mxu0 0.0
    %937 = vmatprep.subr.mxu0 0.0
    %938 = vmatpush2.msra.mxu0 0.0
    %939 = vmatprep.subr.mxu0 0.0
    %940 = vmatpush2.msra.mxu0 0.0
    %941 = vmatprep.subr.mxu0 0.0
    %942 = vmatpush2.msra.mxu0 0.0
    %943 = vmatprep.mubr.f32.mxu0 0.0
    %944 = vmatmul.mubr.f32.gmra.mxu0 %v877
    %v945 = vpop.f32.mrf.mxu0
    %v946 = vadd.f32 0.0, %v945
    %v947 = vpop.f32.mrf.mxu0
    %948 = vdwg.mxu0
    %949 = vrot.lane.b32.xlu0 %v340, 48
    %v950 = vpop.permute.xlu0 %949
    %v953 = vsel %vm516, %v872, 0
    %955 = vmatprep.subr.mxu0 0.0
    %956 = vmatpush1.msra.mxu0 0.0
    %957 = vmatprep.subr.mxu0 0.0
    %958 = vmatpush1.msra.mxu0 0.0
    %959 = vmatprep.subr.mxu0 0.0
    %960 = vmatpush1.msra.mxu0 0.0
    %961 = vmatprep.subr.mxu0 0.0
    %962 = vmatpush1.msra.mxu0 0.0
    %963 = vmatprep.subr.mxu0 0.0
    %964 = vmatpush1.msra.mxu0 0.0
    %965 = vmatprep.subr.mxu0 0.0
    %966 = vmatpush1.msra.mxu0 0.0
    %967 = vmatprep.subr.mxu0 0.0
    %968 = vmatpush1.msra.mxu0 0.0
    %969 = vmatprep.subr.mxu0 0.0
    %970 = vmatpush1.msra.mxu0 0.0
    %971 = vmatprep.subr.mxu0 0.0
    %972 = vmatpush1.msra.mxu0 0.0
    %973 = vmatprep.subr.mxu0 0.0
    %974 = vmatpush1.msra.mxu0 0.0
    %975 = vmatprep.subr.mxu0 0.0
    %976 = vmatpush1.msra.mxu0 0.0
    %977 = vmatprep.subr.mxu0 0.0
    %978 = vmatpush1.msra.mxu0 0.0
    %979 = vmatprep.subr.mxu0 0.0
    %980 = vmatpush1.msra.mxu0 0.0
    %981 = vmatprep.subr.mxu0 0.0
    %982 = vmatpush1.msra.mxu0 0.0
    %983 = vmatprep.subr.mxu0 0.0
    %984 = vmatpush1.msra.mxu0 0.0
    %985 = vmatprep.subr.mxu0 0.0
    %986 = vmatpush1.msra.mxu0 %v950
    %987 = vmatprep.subr.mxu0 0.0
    %988 = vmatpush2.msra.mxu0 0.0
    %989 = vmatprep.subr.mxu0 0.0
    %990 = vmatpush2.msra.mxu0 0.0
    %991 = vmatprep.subr.mxu0 0.0
    %992 = vmatpush2.msra.mxu0 0.0
    %993 = vmatprep.subr.mxu0 0.0
    %994 = vmatpush2.msra.mxu0 0.0
    %995 = vmatprep.subr.mxu0 0.0
    %996 = vmatpush2.msra.mxu0 0.0
    %997 = vmatprep.subr.mxu0 0.0
    %998 = vmatpush2.msra.mxu0 0.0
    %999 = vmatprep.subr.mxu0 0.0
    %1000 = vmatpush2.msra.mxu0 0.0
    %1001 = vmatprep.subr.mxu0 0.0
    %1002 = vmatpush2.msra.mxu0 0.0
    %1003 = vmatprep.subr.mxu0 0.0
    %1004 = vmatpush2.msra.mxu0 0.0
    %1005 = vmatprep.subr.mxu0 0.0
    %1006 = vmatpush2.msra.mxu0 0.0
    %1007 = vmatprep.subr.mxu0 0.0
    %1008 = vmatpush2.msra.mxu0 0.0
    %1009 = vmatprep.subr.mxu0 0.0
    %1010 = vmatpush2.msra.mxu0 0.0
    %1011 = vmatprep.subr.mxu0 0.0
    %1012 = vmatpush2.msra.mxu0 0.0
    %1013 = vmatprep.subr.mxu0 0.0
    %1014 = vmatpush2.msra.mxu0 0.0
    %1015 = vmatprep.subr.mxu0 0.0
    %1016 = vmatpush2.msra.mxu0 0.0
    %1017 = vmatprep.subr.mxu0 0.0
    %1018 = vmatpush2.msra.mxu0 0.0
    %1019 = vmatprep.mubr.f32.mxu0 0.0
    %1020 = vmatmul.mubr.f32.gmra.mxu0 %v953
    %v1021 = vpop.f32.mrf.mxu0
    %v1022 = vadd.f32 0.0, %v1021
    %v1023 = vpop.f32.mrf.mxu0
    %1024 = vdwg.mxu0
    %v1026 = vsel %vm350, %v946, 0
    %v1029 = vsel %vm350, %v1022, 0
    %1031 = vmatprep.subr.mxu0 0.0
    %1032 = vmatpush1.msra.mxu0 0.0
    %1033 = vmatprep.subr.mxu0 0.0
    %1034 = vmatpush1.msra.mxu0 0.0
    %1035 = vmatprep.subr.mxu0 0.0
    %1036 = vmatpush1.msra.mxu0 0.0
    %1037 = vmatprep.subr.mxu0 0.0
    %1038 = vmatpush1.msra.mxu0 0.0
    %1039 = vmatprep.subr.mxu0 0.0
    %1040 = vmatpush1.msra.mxu0 0.0
    %1041 = vmatprep.subr.mxu0 0.0
    %1042 = vmatpush1.msra.mxu0 0.0
    %1043 = vmatprep.subr.mxu0 0.0
    %1044 = vmatpush1.msra.mxu0 0.0
    %1045 = vmatprep.subr.mxu0 0.0
    %1046 = vmatpush1.msra.mxu0 0.0
    %1047 = vmatprep.subr.mxu0 0.0
    %1048 = vmatpush1.msra.mxu0 0.0
    %1049 = vmatprep.subr.mxu0 0.0
    %1050 = vmatpush1.msra.mxu0 0.0
    %1051 = vmatprep.subr.mxu0 0.0
    %1052 = vmatpush1.msra.mxu0 0.0
    %1053 = vmatprep.subr.mxu0 0.0
    %1054 = vmatpush1.msra.mxu0 0.0
    %1055 = vmatprep.subr.mxu0 0.0
    %1056 = vmatpush1.msra.mxu0 0.0
    %1057 = vmatprep.subr.mxu0 0.0
    %1058 = vmatpush1.msra.mxu0 0.0
    %1059 = vmatprep.subr.mxu0 0.0
    %1060 = vmatpush1.msra.mxu0 %v346
    %1061 = vmatprep.subr.mxu0 0.0
    %1062 = vmatpush1.msra.mxu0 %v345
    %1063 = vmatprep.subr.mxu0 0.0
    %1064 = vmatpush2.msra.mxu0 0.0
    %1065 = vmatprep.subr.mxu0 0.0
    %1066 = vmatpush2.msra.mxu0 0.0
    %1067 = vmatprep.subr.mxu0 0.0
    %1068 = vmatpush2.msra.mxu0 0.0
    %1069 = vmatprep.subr.mxu0 0.0
    %1070 = vmatpush2.msra.mxu0 0.0
    %1071 = vmatprep.subr.mxu0 0.0
    %1072 = vmatpush2.msra.mxu0 0.0
    %1073 = vmatprep.subr.mxu0 0.0
    %1074 = vmatpush2.msra.mxu0 0.0
    %1075 = vmatprep.subr.mxu0 0.0
    %1076 = vmatpush2.msra.mxu0 0.0
    %1077 = vmatprep.subr.mxu0 0.0
    %1078 = vmatpush2.msra.mxu0 0.0
    %1079 = vmatprep.subr.mxu0 0.0
    %1080 = vmatpush2.msra.mxu0 0.0
    %1081 = vmatprep.subr.mxu0 0.0
    %1082 = vmatpush2.msra.mxu0 0.0
    %1083 = vmatprep.subr.mxu0 0.0
    %1084 = vmatpush2.msra.mxu0 0.0
    %1085 = vmatprep.subr.mxu0 0.0
    %1086 = vmatpush2.msra.mxu0 0.0
    %1087 = vmatprep.subr.mxu0 0.0
    %1088 = vmatpush2.msra.mxu0 0.0
    %1089 = vmatprep.subr.mxu0 0.0
    %1090 = vmatpush2.msra.mxu0 0.0
    %1091 = vmatprep.subr.mxu0 0.0
    %1092 = vmatpush2.msra.mxu0 0.0
    %1093 = vmatprep.subr.mxu0 0.0
    %1094 = vmatpush2.msra.mxu0 0.0
    %1095 = vmatprep.mubr.f32.mxu0 0.0
    %1096 = vmatmul.mubr.f32.gmra.mxu0 %v1026
    %v1097 = vpop.f32.mrf.mxu0
    %v1098 = vadd.f32 0.0, %v1097
    %v1099 = vpop.f32.mrf.mxu0
    %1100 = vmatprep.mubr.f32.mxu0 0.0
    %1101 = vmatmul.mubr.f32.gmra.mxu0 %v1029
    %v1102 = vpop.f32.mrf.mxu0
    %v1103 = vadd.f32 0.0, %v1102
    %v1104 = vpop.f32.mrf.mxu0
    %1105 = vdwg.mxu0
    %v1107 = vsel %vm350, %v612, 0
    %v1110 = vsel %vm350, %v688, 0
    %1112 = vmatprep.subr.mxu0 0.0
    %1113 = vmatpush1.msra.mxu0 0.0
    %1114 = vmatprep.subr.mxu0 0.0
    %1115 = vmatpush1.msra.mxu0 0.0
    %1116 = vmatprep.subr.mxu0 0.0
    %1117 = vmatpush1.msra.mxu0 0.0
    %1118 = vmatprep.subr.mxu0 0.0
    %1119 = vmatpush1.msra.mxu0 0.0
    %1120 = vmatprep.subr.mxu0 0.0
    %1121 = vmatpush1.msra.mxu0 0.0
    %1122 = vmatprep.subr.mxu0 0.0
    %1123 = vmatpush1.msra.mxu0 0.0
    %1124 = vmatprep.subr.mxu0 0.0
    %1125 = vmatpush1.msra.mxu0 0.0
    %1126 = vmatprep.subr.mxu0 0.0
    %1127 = vmatpush1.msra.mxu0 0.0
    %1128 = vmatprep.subr.mxu0 0.0
    %1129 = vmatpush1.msra.mxu0 0.0
    %1130 = vmatprep.subr.mxu0 0.0
    %1131 = vmatpush1.msra.mxu0 0.0
    %1132 = vmatprep.subr.mxu0 0.0
    %1133 = vmatpush1.msra.mxu0 0.0
    %1134 = vmatprep.subr.mxu0 0.0
    %1135 = vmatpush1.msra.mxu0 0.0
    %1136 = vmatprep.subr.mxu0 0.0
    %1137 = vmatpush1.msra.mxu0 0.0
    %1138 = vmatprep.subr.mxu0 0.0
    %1139 = vmatpush1.msra.mxu0 0.0
    %1140 = vmatprep.subr.mxu0 0.0
    %1141 = vmatpush1.msra.mxu0 %v344
    %1142 = vmatprep.subr.mxu0 0.0
    %1143 = vmatpush1.msra.mxu0 %v343
    %1144 = vmatprep.subr.mxu0 0.0
    %1145 = vmatpush2.msra.mxu0 0.0
    %1146 = vmatprep.subr.mxu0 0.0
    %1147 = vmatpush2.msra.mxu0 0.0
    %1148 = vmatprep.subr.mxu0 0.0
    %1149 = vmatpush2.msra.mxu0 0.0
    %1150 = vmatprep.subr.mxu0 0.0
    %1151 = vmatpush2.msra.mxu0 0.0
    %1152 = vmatprep.subr.mxu0 0.0
    %1153 = vmatpush2.msra.mxu0 0.0
    %1154 = vmatprep.subr.mxu0 0.0
    %1155 = vmatpush2.msra.mxu0 0.0
    %1156 = vmatprep.subr.mxu0 0.0
    %1157 = vmatpush2.msra.mxu0 0.0
    %1158 = vmatprep.subr.mxu0 0.0
    %1159 = vmatpush2.msra.mxu0 0.0
    %1160 = vmatprep.subr.mxu0 0.0
    %1161 = vmatpush2.msra.mxu0 0.0
    %1162 = vmatprep.subr.mxu0 0.0
    %1163 = vmatpush2.msra.mxu0 0.0
    %1164 = vmatprep.subr.mxu0 0.0
    %1165 = vmatpush2.msra.mxu0 0.0
    %1166 = vmatprep.subr.mxu0 0.0
    %1167 = vmatpush2.msra.mxu0 0.0
    %1168 = vmatprep.subr.mxu0 0.0
    %1169 = vmatpush2.msra.mxu0 0.0
    %1170 = vmatprep.subr.mxu0 0.0
    %1171 = vmatpush2.msra.mxu0 0.0
    %1172 = vmatprep.subr.mxu0 0.0
    %1173 = vmatpush2.msra.mxu0 0.0
    %1174 = vmatprep.subr.mxu0 0.0
    %1175 = vmatpush2.msra.mxu0 0.0
    %1176 = vmatprep.mubr.f32.mxu0 0.0
    %1177 = vmatmul.mubr.f32.gmra.mxu0 %v1107
    %v1178 = vpop.f32.mrf.mxu0
    %v1179 = vadd.f32 %v1098, %v1178
    %v1180 = vpop.f32.mrf.mxu0
    %1181 = vmatprep.mubr.f32.mxu0 0.0
    %1182 = vmatmul.mubr.f32.gmra.mxu0 %v1110
    %v1183 = vpop.f32.mrf.mxu0
    %v1184 = vadd.f32 %v1103, %v1183
    %v1185 = vpop.f32.mrf.mxu0
    %1186 = vdwg.mxu0
    %v1187 = vlaneseq
    %v1188 = vshrl.u32 %v1187, 7
    %v1189 = vsub.s32 0, %v1188
    %v1190 = vrot.slane %v249, %v1189
    %v1191 = vadd.f32 %v1179, %v1190
    %v1192 = vadd.f32 %v1184, %v1190
    %v1193 = vadd.f32 %v179, %v1191
    %v1194 = vadd.f32 %v180, %v1192
    %v1195 = vsel %vm261, %v1193, 0.0
    %1196 = vadd.xlane.f32.xlu0 %v1195
    %v1197 = vpop.xlane.xlu0 %1196
    %v1198 = vsel %vm261, %v1194, 0.0
    %1199 = vadd.xlane.f32.xlu0 %v1198
    %v1200 = vpop.xlane.xlu0 %1199
    %v1201 = vrcp.pop 32.0
    %v1202 = vmul.f32 %v1197, %v1201
    %v1203 = vmul.f32 %v1200, %v1201
    %v1204 = vsub.f32 %v1193, %v1202
    %v1205 = vsub.f32 %v1194, %v1203
    %v1206 = vmul.f32 %v1204, %v1204
    %v1207 = vmul.f32 %v1205, %v1205
    %v1208 = vsel %vm261, %v1206, 0.0
    %1209 = vadd.xlane.f32.xlu0 %v1208
    %v1210 = vpop.xlane.xlu0 %1209
    %v1211 = vsel %vm261, %v1207, 0.0
    %1212 = vadd.xlane.f32.xlu0 %v1211
    %v1213 = vpop.xlane.xlu0 %1212
    %v1214 = vmul.f32 %v1210, %v1201
    %v1215 = vmul.f32 %v1213, %v1201
    %v1216 = vadd.f32 %v1214, 1e-05
    %v1217 = vadd.f32 %v1215, 1e-05
    %v1218 = vrsqrt.pop %v1216
    %v1219 = vrsqrt.pop %v1217
    %v1220 = vmul.f32 %v1204, %v1218
    %v1221 = vmul.f32 %v1205, %v1219
    %v1222 = vlaneseq
    %v1223 = vshrl.u32 %v1222, 7
    %v1224 = vsub.s32 2, %v1223
    %v1225 = vrot.slane %v249, %v1224
    %v1226 = vmul.f32 %v1220, %v1225
    %v1227 = vmul.f32 %v1221, %v1225
    %v1228 = vlaneseq
    %v1229 = vshrl.u32 %v1228, 7
    %v1230 = vsub.s32 3, %v1229
    %v1231 = vrot.slane %v249, %v1230
    %v1232 = vadd.f32 %v1226, %v1231
    %v1233 = vadd.f32 %v1227, %v1231
    %v1234 = vld [vmem:[%s59] sm:$0xff]
    %v1235 = vld [vmem:[%s59 + $0x8] sm:$0xff]
    %v1236 = vld [vmem:[%s59 + $0x10] sm:$0xff]
    %v1237 = vld [vmem:[%s59 + $0x18] sm:$0xff]
    %v1238 = vld [vmem:[%s53] sm:$0x1]
    %v1240 = vlaneseq
    %v1241 = vshrl.u32 %v1240, 7
    %v1242 = vsub.s32 0, %v1241
    %v1243 = vrot.slane %v1238, %v1242
    %v1246 = vsel %vm261, %v1232, 0
    %v1249 = vsel %vm261, %v1233, 0
    %1251 = vmatprep.subr.mxu0 0.0
    %1252 = vmatpush1.msra.mxu0 0.0
    %1253 = vmatprep.subr.mxu0 0.0
    %1254 = vmatpush1.msra.mxu0 0.0
    %1255 = vmatprep.subr.mxu0 0.0
    %1256 = vmatpush1.msra.mxu0 0.0
    %1257 = vmatprep.subr.mxu0 0.0
    %1258 = vmatpush1.msra.mxu0 0.0
    %1259 = vmatprep.subr.mxu0 0.0
    %1260 = vmatpush1.msra.mxu0 0.0
    %1261 = vmatprep.subr.mxu0 0.0
    %1262 = vmatpush1.msra.mxu0 0.0
    %1263 = vmatprep.subr.mxu0 0.0
    %1264 = vmatpush1.msra.mxu0 0.0
    %1265 = vmatprep.subr.mxu0 0.0
    %1266 = vmatpush1.msra.mxu0 0.0
    %1267 = vmatprep.subr.mxu0 0.0
    %1268 = vmatpush1.msra.mxu0 0.0
    %1269 = vmatprep.subr.mxu0 0.0
    %1270 = vmatpush1.msra.mxu0 0.0
    %1271 = vmatprep.subr.mxu0 0.0
    %1272 = vmatpush1.msra.mxu0 0.0
    %1273 = vmatprep.subr.mxu0 0.0
    %1274 = vmatpush1.msra.mxu0 0.0
    %1275 = vmatprep.subr.mxu0 0.0
    %1276 = vmatpush1.msra.mxu0 %v1237
    %1277 = vmatprep.subr.mxu0 0.0
    %1278 = vmatpush1.msra.mxu0 %v1236
    %1279 = vmatprep.subr.mxu0 0.0
    %1280 = vmatpush1.msra.mxu0 %v1235
    %1281 = vmatprep.subr.mxu0 0.0
    %1282 = vmatpush1.msra.mxu0 %v1234
    %1283 = vmatprep.subr.mxu0 0.0
    %1284 = vmatpush2.msra.mxu0 0.0
    %1285 = vmatprep.subr.mxu0 0.0
    %1286 = vmatpush2.msra.mxu0 0.0
    %1287 = vmatprep.subr.mxu0 0.0
    %1288 = vmatpush2.msra.mxu0 0.0
    %1289 = vmatprep.subr.mxu0 0.0
    %1290 = vmatpush2.msra.mxu0 0.0
    %1291 = vmatprep.subr.mxu0 0.0
    %1292 = vmatpush2.msra.mxu0 0.0
    %1293 = vmatprep.subr.mxu0 0.0
    %1294 = vmatpush2.msra.mxu0 0.0
    %1295 = vmatprep.subr.mxu0 0.0
    %1296 = vmatpush2.msra.mxu0 0.0
    %1297 = vmatprep.subr.mxu0 0.0
    %1298 = vmatpush2.msra.mxu0 0.0
    %1299 = vmatprep.subr.mxu0 0.0
    %1300 = vmatpush2.msra.mxu0 0.0
    %1301 = vmatprep.subr.mxu0 0.0
    %1302 = vmatpush2.msra.mxu0 0.0
    %1303 = vmatprep.subr.mxu0 0.0
    %1304 = vmatpush2.msra.mxu0 0.0
    %1305 = vmatprep.subr.mxu0 0.0
    %1306 = vmatpush2.msra.mxu0 0.0
    %1307 = vmatprep.subr.mxu0 0.0
    %1308 = vmatpush2.msra.mxu0 0.0
    %1309 = vmatprep.subr.mxu0 0.0
    %1310 = vmatpush2.msra.mxu0 0.0
    %1311 = vmatprep.subr.mxu0 0.0
    %1312 = vmatpush2.msra.mxu0 0.0
    %1313 = vmatprep.subr.mxu0 0.0
    %1314 = vmatpush2.msra.mxu0 0.0
    %1315 = vmatprep.mubr.f32.mxu0 0.0
    %1316 = vmatmul.mubr.f32.gmra.mxu0 %v1246
    %v1317 = vpop.f32.mrf.mxu0
    %v1318 = vadd.f32 %v1243, %v1317
    %v1319 = vpop.f32.mrf.mxu0
    %1320 = vmatprep.mubr.f32.mxu0 0.0
    %1321 = vmatmul.mubr.f32.gmra.mxu0 %v1249
    %v1322 = vpop.f32.mrf.mxu0
    %v1323 = vadd.f32 %v1243, %v1322
    %v1324 = vpop.f32.mrf.mxu0
    %1325 = vdwg.mxu0
    %v1326 = vmax.f32 %v1318, 0.0
    %v1327 = vmax.f32 %v1323, 0.0
    %v1328 = vld [vmem:[%s61] sm:$0xff]
    %v1329 = vld [vmem:[%s61 + $0x8] sm:$0xff]
    %v1330 = vld [vmem:[%s61 + $0x10] sm:$0xff]
    %v1331 = vld [vmem:[%s61 + $0x18] sm:$0xff]
    %v1332 = vld [vmem:[%s61 + $0x20] sm:$0xff]
    %v1333 = vld [vmem:[%s61 + $0x28] sm:$0xff]
    %v1334 = vld [vmem:[%s61 + $0x30] sm:$0xff]
    %v1335 = vld [vmem:[%s61 + $0x38] sm:$0xff]
    %v1336 = vlaneseq
    %v1337 = vshrl.u32 %v1336, 7
    %v1338 = vsub.s32 1, %v1337
    %v1339 = vrot.slane %v249, %v1338
    %vm1340 = vcmask 523264
    %v1342 = vsel %vm1340, %v1326, 0
    %v1345 = vsel %vm1340, %v1327, 0
    %1347 = vmatprep.subr.mxu0 0.0
    %1348 = vmatpush1.msra.mxu0 0.0
    %1349 = vmatprep.subr.mxu0 0.0
    %1350 = vmatpush1.msra.mxu0 0.0
    %1351 = vmatprep.subr.mxu0 0.0
    %1352 = vmatpush1.msra.mxu0 0.0
    %1353 = vmatprep.subr.mxu0 0.0
    %1354 = vmatpush1.msra.mxu0 0.0
    %1355 = vmatprep.subr.mxu0 0.0
    %1356 = vmatpush1.msra.mxu0 0.0
    %1357 = vmatprep.subr.mxu0 0.0
    %1358 = vmatpush1.msra.mxu0 0.0
    %1359 = vmatprep.subr.mxu0 0.0
    %1360 = vmatpush1.msra.mxu0 0.0
    %1361 = vmatprep.subr.mxu0 0.0
    %1362 = vmatpush1.msra.mxu0 0.0
    %1363 = vmatprep.subr.mxu0 0.0
    %1364 = vmatpush1.msra.mxu0 %v1335
    %1365 = vmatprep.subr.mxu0 0.0
    %1366 = vmatpush1.msra.mxu0 %v1334
    %1367 = vmatprep.subr.mxu0 0.0
    %1368 = vmatpush1.msra.mxu0 %v1333
    %1369 = vmatprep.subr.mxu0 0.0
    %1370 = vmatpush1.msra.mxu0 %v1332
    %1371 = vmatprep.subr.mxu0 0.0
    %1372 = vmatpush1.msra.mxu0 %v1331
    %1373 = vmatprep.subr.mxu0 0.0
    %1374 = vmatpush1.msra.mxu0 %v1330
    %1375 = vmatprep.subr.mxu0 0.0
    %1376 = vmatpush1.msra.mxu0 %v1329
    %1377 = vmatprep.subr.mxu0 0.0
    %1378 = vmatpush1.msra.mxu0 %v1328
    %1379 = vmatprep.subr.mxu0 0.0
    %1380 = vmatpush2.msra.mxu0 0.0
    %1381 = vmatprep.subr.mxu0 0.0
    %1382 = vmatpush2.msra.mxu0 0.0
    %1383 = vmatprep.subr.mxu0 0.0
    %1384 = vmatpush2.msra.mxu0 0.0
    %1385 = vmatprep.subr.mxu0 0.0
    %1386 = vmatpush2.msra.mxu0 0.0
    %1387 = vmatprep.subr.mxu0 0.0
    %1388 = vmatpush2.msra.mxu0 0.0
    %1389 = vmatprep.subr.mxu0 0.0
    %1390 = vmatpush2.msra.mxu0 0.0
    %1391 = vmatprep.subr.mxu0 0.0
    %1392 = vmatpush2.msra.mxu0 0.0
    %1393 = vmatprep.subr.mxu0 0.0
    %1394 = vmatpush2.msra.mxu0 0.0
    %1395 = vmatprep.subr.mxu0 0.0
    %1396 = vmatpush2.msra.mxu0 0.0
    %1397 = vmatprep.subr.mxu0 0.0
    %1398 = vmatpush2.msra.mxu0 0.0
    %1399 = vmatprep.subr.mxu0 0.0
    %1400 = vmatpush2.msra.mxu0 0.0
    %1401 = vmatprep.subr.mxu0 0.0
    %1402 = vmatpush2.msra.mxu0 0.0
    %1403 = vmatprep.subr.mxu0 0.0
    %1404 = vmatpush2.msra.mxu0 0.0
    %1405 = vmatprep.subr.mxu0 0.0
    %1406 = vmatpush2.msra.mxu0 0.0
    %1407 = vmatprep.subr.mxu0 0.0
    %1408 = vmatpush2.msra.mxu0 0.0
    %1409 = vmatprep.subr.mxu0 0.0
    %1410 = vmatpush2.msra.mxu0 0.0
    %1411 = vmatprep.mubr.f32.mxu0 0.0
    %1412 = vmatmul.mubr.f32.gmra.mxu0 %v1342
    %v1413 = vpop.f32.mrf.mxu0
    %v1414 = vadd.f32 %v1339, %v1413
    %v1415 = vpop.f32.mrf.mxu0
    %1416 = vmatprep.mubr.f32.mxu0 0.0
    %1417 = vmatmul.mubr.f32.gmra.mxu0 %v1345
    %v1418 = vpop.f32.mrf.mxu0
    %v1419 = vadd.f32 %v1339, %v1418
    %v1420 = vpop.f32.mrf.mxu0
    %1421 = vdwg.mxu0
    %v1422 = vadd.f32 %v1232, %v1414
    %v1423 = vadd.f32 %v1233, %v1419
    %v1424 = vsel %vm261, %v1422, 0.0
    %1425 = vadd.xlane.f32.xlu0 %v1424
    %v1426 = vpop.xlane.xlu0 %1425
    %v1427 = vsel %vm261, %v1423, 0.0
    %1428 = vadd.xlane.f32.xlu0 %v1427
    %v1429 = vpop.xlane.xlu0 %1428
    %v1430 = vmul.f32 %v1426, %v1201
    %v1431 = vmul.f32 %v1429, %v1201
    %v1432 = vsub.f32 %v1422, %v1430
    %v1433 = vsub.f32 %v1423, %v1431
    %v1434 = vmul.f32 %v1432, %v1432
    %v1435 = vmul.f32 %v1433, %v1433
    %v1436 = vsel %vm261, %v1434, 0.0
    %1437 = vadd.xlane.f32.xlu0 %v1436
    %v1438 = vpop.xlane.xlu0 %1437
    %v1439 = vsel %vm261, %v1435, 0.0
    %1440 = vadd.xlane.f32.xlu0 %v1439
    %v1441 = vpop.xlane.xlu0 %1440
    %v1442 = vmul.f32 %v1438, %v1201
    %v1443 = vmul.f32 %v1441, %v1201
    %v1444 = vadd.f32 %v1442, 1e-05
    %v1445 = vadd.f32 %v1443, 1e-05
    %v1446 = vrsqrt.pop %v1444
    %v1447 = vrsqrt.pop %v1445
    %v1448 = vmul.f32 %v1432, %v1446
    %v1449 = vmul.f32 %v1433, %v1447
    %v1450 = vlaneseq
    %v1451 = vshrl.u32 %v1450, 7
    %v1452 = vsub.s32 4, %v1451
    %v1453 = vrot.slane %v249, %v1452
    %v1454 = vmul.f32 %v1448, %v1453
    %v1455 = vmul.f32 %v1449, %v1453
    %v1456 = vlaneseq
    %v1457 = vshrl.u32 %v1456, 7
    %v1458 = vsub.s32 5, %v1457
    %v1459 = vrot.slane %v249, %v1458
    %v1460 = vadd.f32 %v1454, %v1459
    %v1461 = vadd.f32 %v1455, %v1459
    %v1462 = vld [vmem:[%s71] sm:$0x3f]
    %v1463 = vld [vmem:[%s79] sm:$0xff]
    %v1464 = vld [vmem:[%s79 + $0x8] sm:$0xff]
    %v1465 = vld [vmem:[%s79 + $0x10] sm:$0xff]
    %v1466 = vld [vmem:[%s79 + $0x18] sm:$0xff]
    %v1467 = vld [vmem:[%s69] sm:$0x1]
    %v1469 = vlaneseq
    %v1470 = vshrl.u32 %v1469, 7
    %v1471 = vsub.s32 0, %v1470
    %v1472 = vrot.slane %v1467, %v1471
    %v1475 = vsel %vm261, %v1460, 0
    %v1478 = vsel %vm261, %v1461, 0
    %1480 = vmatprep.subr.mxu0 0.0
    %1481 = vmatpush1.msra.mxu0 0.0
    %1482 = vmatprep.subr.mxu0 0.0
    %1483 = vmatpush1.msra.mxu0 0.0
    %1484 = vmatprep.subr.mxu0 0.0
    %1485 = vmatpush1.msra.mxu0 0.0
    %1486 = vmatprep.subr.mxu0 0.0
    %1487 = vmatpush1.msra.mxu0 0.0
    %1488 = vmatprep.subr.mxu0 0.0
    %1489 = vmatpush1.msra.mxu0 0.0
    %1490 = vmatprep.subr.mxu0 0.0
    %1491 = vmatpush1.msra.mxu0 0.0
    %1492 = vmatprep.subr.mxu0 0.0
    %1493 = vmatpush1.msra.mxu0 0.0
    %1494 = vmatprep.subr.mxu0 0.0
    %1495 = vmatpush1.msra.mxu0 0.0
    %1496 = vmatprep.subr.mxu0 0.0
    %1497 = vmatpush1.msra.mxu0 0.0
    %1498 = vmatprep.subr.mxu0 0.0
    %1499 = vmatpush1.msra.mxu0 0.0
    %1500 = vmatprep.subr.mxu0 0.0
    %1501 = vmatpush1.msra.mxu0 0.0
    %1502 = vmatprep.subr.mxu0 0.0
    %1503 = vmatpush1.msra.mxu0 0.0
    %1504 = vmatprep.subr.mxu0 0.0
    %1505 = vmatpush1.msra.mxu0 %v1466
    %1506 = vmatprep.subr.mxu0 0.0
    %1507 = vmatpush1.msra.mxu0 %v1465
    %1508 = vmatprep.subr.mxu0 0.0
    %1509 = vmatpush1.msra.mxu0 %v1464
    %1510 = vmatprep.subr.mxu0 0.0
    %1511 = vmatpush1.msra.mxu0 %v1463
    %1512 = vmatprep.subr.mxu0 0.0
    %1513 = vmatpush2.msra.mxu0 0.0
    %1514 = vmatprep.subr.mxu0 0.0
    %1515 = vmatpush2.msra.mxu0 0.0
    %1516 = vmatprep.subr.mxu0 0.0
    %1517 = vmatpush2.msra.mxu0 0.0
    %1518 = vmatprep.subr.mxu0 0.0
    %1519 = vmatpush2.msra.mxu0 0.0
    %1520 = vmatprep.subr.mxu0 0.0
    %1521 = vmatpush2.msra.mxu0 0.0
    %1522 = vmatprep.subr.mxu0 0.0
    %1523 = vmatpush2.msra.mxu0 0.0
    %1524 = vmatprep.subr.mxu0 0.0
    %1525 = vmatpush2.msra.mxu0 0.0
    %1526 = vmatprep.subr.mxu0 0.0
    %1527 = vmatpush2.msra.mxu0 0.0
    %1528 = vmatprep.subr.mxu0 0.0
    %1529 = vmatpush2.msra.mxu0 0.0
    %1530 = vmatprep.subr.mxu0 0.0
    %1531 = vmatpush2.msra.mxu0 0.0
    %1532 = vmatprep.subr.mxu0 0.0
    %1533 = vmatpush2.msra.mxu0 0.0
    %1534 = vmatprep.subr.mxu0 0.0
    %1535 = vmatpush2.msra.mxu0 0.0
    %1536 = vmatprep.subr.mxu0 0.0
    %1537 = vmatpush2.msra.mxu0 0.0
    %1538 = vmatprep.subr.mxu0 0.0
    %1539 = vmatpush2.msra.mxu0 0.0
    %1540 = vmatprep.subr.mxu0 0.0
    %1541 = vmatpush2.msra.mxu0 0.0
    %1542 = vmatprep.subr.mxu0 0.0
    %1543 = vmatpush2.msra.mxu0 0.0
    %1544 = vmatprep.mubr.f32.mxu0 0.0
    %1545 = vmatmul.mubr.f32.gmra.mxu0 %v1475
    %v1546 = vpop.f32.mrf.mxu0
    %v1547 = vadd.f32 %v1472, %v1546
    %v1548 = vpop.f32.mrf.mxu0
    %1549 = vmatprep.mubr.f32.mxu0 0.0
    %1550 = vmatmul.mubr.f32.gmra.mxu0 %v1478
    %v1551 = vpop.f32.mrf.mxu0
    %v1552 = vadd.f32 %v1472, %v1551
    %v1553 = vpop.f32.mrf.mxu0
    %1554 = vdwg.mxu0
    %v1555 = vld [vmem:[%s77] sm:$0xff]
    %v1556 = vld [vmem:[%s77 + $0x8] sm:$0xff]
    %v1557 = vld [vmem:[%s77 + $0x10] sm:$0xff]
    %v1558 = vld [vmem:[%s77 + $0x18] sm:$0xff]
    %1560 = vrot.lane.b32.xlu0 %v1547, 96
    %v1561 = vpop.permute.xlu0 %1560
    %v1562 = vsel %vm350, %v1547, 0
    %v1564 = vsel %vm350, %v1561, 0
    %1566 = vmatprep.subr.mxu0 0.0
    %1567 = vmatpush1.xpose.msra.mxu0 0.0
    %1568 = vmatprep.subr.mxu0 0.0
    %1569 = vmatpush1.xpose.msra.mxu0 0.0
    %1570 = vmatprep.subr.mxu0 0.0
    %1571 = vmatpush1.xpose.msra.mxu0 0.0
    %1572 = vmatprep.subr.mxu0 0.0
    %1573 = vmatpush1.xpose.msra.mxu0 0.0
    %1574 = vmatprep.subr.mxu0 0.0
    %1575 = vmatpush1.xpose.msra.mxu0 0.0
    %1576 = vmatprep.subr.mxu0 0.0
    %1577 = vmatpush1.xpose.msra.mxu0 0.0
    %1578 = vmatprep.subr.mxu0 0.0
    %1579 = vmatpush1.xpose.msra.mxu0 0.0
    %1580 = vmatprep.subr.mxu0 0.0
    %1581 = vmatpush1.xpose.msra.mxu0 0.0
    %1582 = vmatprep.subr.mxu0 0.0
    %1583 = vmatpush1.xpose.msra.mxu0 0.0
    %1584 = vmatprep.subr.mxu0 0.0
    %1585 = vmatpush1.xpose.msra.mxu0 0.0
    %1586 = vmatprep.subr.mxu0 0.0
    %1587 = vmatpush1.xpose.msra.mxu0 0.0
    %1588 = vmatprep.subr.mxu0 0.0
    %1589 = vmatpush1.xpose.msra.mxu0 0.0
    %1590 = vmatprep.subr.mxu0 0.0
    %1591 = vmatpush1.xpose.msra.mxu0 0.0
    %1592 = vmatprep.subr.mxu0 0.0
    %1593 = vmatpush1.xpose.msra.mxu0 0.0
    %1594 = vmatprep.subr.mxu0 0.0
    %1595 = vmatpush1.xpose.msra.mxu0 0.0
    %1596 = vmatprep.subr.mxu0 0.0
    %1597 = vmatpush1.xpose.msra.mxu0 %v1564
    %1598 = vmatprep.subr.mxu0 0.0
    %1599 = vmatpush2.xpose.msra.mxu0 0.0
    %1600 = vmatprep.subr.mxu0 0.0
    %1601 = vmatpush2.xpose.msra.mxu0 0.0
    %1602 = vmatprep.subr.mxu0 0.0
    %1603 = vmatpush2.xpose.msra.mxu0 0.0
    %1604 = vmatprep.subr.mxu0 0.0
    %1605 = vmatpush2.xpose.msra.mxu0 0.0
    %1606 = vmatprep.subr.mxu0 0.0
    %1607 = vmatpush2.xpose.msra.mxu0 0.0
    %1608 = vmatprep.subr.mxu0 0.0
    %1609 = vmatpush2.xpose.msra.mxu0 0.0
    %1610 = vmatprep.subr.mxu0 0.0
    %1611 = vmatpush2.xpose.msra.mxu0 0.0
    %1612 = vmatprep.subr.mxu0 0.0
    %1613 = vmatpush2.xpose.msra.mxu0 0.0
    %1614 = vmatprep.subr.mxu0 0.0
    %1615 = vmatpush2.xpose.msra.mxu0 0.0
    %1616 = vmatprep.subr.mxu0 0.0
    %1617 = vmatpush2.xpose.msra.mxu0 0.0
    %1618 = vmatprep.subr.mxu0 0.0
    %1619 = vmatpush2.xpose.msra.mxu0 0.0
    %1620 = vmatprep.subr.mxu0 0.0
    %1621 = vmatpush2.xpose.msra.mxu0 0.0
    %1622 = vmatprep.subr.mxu0 0.0
    %1623 = vmatpush2.xpose.msra.mxu0 0.0
    %1624 = vmatprep.subr.mxu0 0.0
    %1625 = vmatpush2.xpose.msra.mxu0 0.0
    %1626 = vmatprep.subr.mxu0 0.0
    %1627 = vmatpush2.xpose.msra.mxu0 0.0
    %1628 = vmatprep.subr.mxu0 0.0
    %1629 = vmatpush2.xpose.msra.mxu0 0.0
    %1630 = vmatprep.mubr.f32.mxu0 0.0
    %1631 = vmatmul.mubr.f32.gmra.mxu0 %v1562
    %v1632 = vpop.f32.mrf.mxu0
    %v1633 = vadd.f32 0.0, %v1632
    %v1634 = vpop.f32.mrf.mxu0
    %1635 = vdwg.mxu0
    %1637 = vrot.lane.b32.xlu0 %v1552, 96
    %v1638 = vpop.permute.xlu0 %1637
    %v1639 = vsel %vm350, %v1552, 0
    %v1641 = vsel %vm350, %v1638, 0
    %1643 = vmatprep.subr.mxu0 0.0
    %1644 = vmatpush1.xpose.msra.mxu0 0.0
    %1645 = vmatprep.subr.mxu0 0.0
    %1646 = vmatpush1.xpose.msra.mxu0 0.0
    %1647 = vmatprep.subr.mxu0 0.0
    %1648 = vmatpush1.xpose.msra.mxu0 0.0
    %1649 = vmatprep.subr.mxu0 0.0
    %1650 = vmatpush1.xpose.msra.mxu0 0.0
    %1651 = vmatprep.subr.mxu0 0.0
    %1652 = vmatpush1.xpose.msra.mxu0 0.0
    %1653 = vmatprep.subr.mxu0 0.0
    %1654 = vmatpush1.xpose.msra.mxu0 0.0
    %1655 = vmatprep.subr.mxu0 0.0
    %1656 = vmatpush1.xpose.msra.mxu0 0.0
    %1657 = vmatprep.subr.mxu0 0.0
    %1658 = vmatpush1.xpose.msra.mxu0 0.0
    %1659 = vmatprep.subr.mxu0 0.0
    %1660 = vmatpush1.xpose.msra.mxu0 0.0
    %1661 = vmatprep.subr.mxu0 0.0
    %1662 = vmatpush1.xpose.msra.mxu0 0.0
    %1663 = vmatprep.subr.mxu0 0.0
    %1664 = vmatpush1.xpose.msra.mxu0 0.0
    %1665 = vmatprep.subr.mxu0 0.0
    %1666 = vmatpush1.xpose.msra.mxu0 0.0
    %1667 = vmatprep.subr.mxu0 0.0
    %1668 = vmatpush1.xpose.msra.mxu0 0.0
    %1669 = vmatprep.subr.mxu0 0.0
    %1670 = vmatpush1.xpose.msra.mxu0 0.0
    %1671 = vmatprep.subr.mxu0 0.0
    %1672 = vmatpush1.xpose.msra.mxu0 0.0
    %1673 = vmatprep.subr.mxu0 0.0
    %1674 = vmatpush1.xpose.msra.mxu0 %v1641
    %1675 = vmatprep.subr.mxu0 0.0
    %1676 = vmatpush2.xpose.msra.mxu0 0.0
    %1677 = vmatprep.subr.mxu0 0.0
    %1678 = vmatpush2.xpose.msra.mxu0 0.0
    %1679 = vmatprep.subr.mxu0 0.0
    %1680 = vmatpush2.xpose.msra.mxu0 0.0
    %1681 = vmatprep.subr.mxu0 0.0
    %1682 = vmatpush2.xpose.msra.mxu0 0.0
    %1683 = vmatprep.subr.mxu0 0.0
    %1684 = vmatpush2.xpose.msra.mxu0 0.0
    %1685 = vmatprep.subr.mxu0 0.0
    %1686 = vmatpush2.xpose.msra.mxu0 0.0
    %1687 = vmatprep.subr.mxu0 0.0
    %1688 = vmatpush2.xpose.msra.mxu0 0.0
    %1689 = vmatprep.subr.mxu0 0.0
    %1690 = vmatpush2.xpose.msra.mxu0 0.0
    %1691 = vmatprep.subr.mxu0 0.0
    %1692 = vmatpush2.xpose.msra.mxu0 0.0
    %1693 = vmatprep.subr.mxu0 0.0
    %1694 = vmatpush2.xpose.msra.mxu0 0.0
    %1695 = vmatprep.subr.mxu0 0.0
    %1696 = vmatpush2.xpose.msra.mxu0 0.0
    %1697 = vmatprep.subr.mxu0 0.0
    %1698 = vmatpush2.xpose.msra.mxu0 0.0
    %1699 = vmatprep.subr.mxu0 0.0
    %1700 = vmatpush2.xpose.msra.mxu0 0.0
    %1701 = vmatprep.subr.mxu0 0.0
    %1702 = vmatpush2.xpose.msra.mxu0 0.0
    %1703 = vmatprep.subr.mxu0 0.0
    %1704 = vmatpush2.xpose.msra.mxu0 0.0
    %1705 = vmatprep.subr.mxu0 0.0
    %1706 = vmatpush2.xpose.msra.mxu0 0.0
    %1707 = vmatprep.mubr.f32.mxu0 0.0
    %1708 = vmatmul.mubr.f32.gmra.mxu0 %v1639
    %v1709 = vpop.f32.mrf.mxu0
    %v1710 = vadd.f32 0.0, %v1709
    %v1711 = vpop.f32.mrf.mxu0
    %1712 = vdwg.mxu0
    %v1713 = vmul.f32 %v1633, 0.25
    %v1714 = vmul.f32 %v1710, 0.25
    %v1715 = vadd.f32 %v1713, %v507
    %v1716 = vadd.f32 %v1714, %v511
    %v1717 = vsel %vm516, %v1715, -inf
    %1718 = vmax.xlane.f32.xlu0 %v1717
    %v1719 = vpop.xlane.xlu0 %1718
    %v1720 = vsel %vm516, %v1716, -inf
    %1721 = vmax.xlane.f32.xlu0 %v1720
    %v1722 = vpop.xlane.xlu0 %1721
    %v1723 = vsub.f32 %v1715, %v1719
    %v1724 = vsub.f32 %v1716, %v1722
    %v1725 = vmul.f32 %v1723, 1.442695
    %v1726 = vpow.pop %v1725
    %v1727 = vmul.f32 %v1724, 1.442695
    %v1728 = vpow.pop %v1727
    %v1729 = vsel %vm516, %v1726, 0.0
    %1730 = vadd.xlane.f32.xlu0 %v1729
    %v1731 = vpop.xlane.xlu0 %1730
    %v1732 = vsel %vm516, %v1728, 0.0
    %1733 = vadd.xlane.f32.xlu0 %v1732
    %v1734 = vpop.xlane.xlu0 %1733
    %v1735 = vrcp.pop %v1731
    %v1736 = vrcp.pop %v1734
    %v1737 = vmul.f32 %v1726, %v1735
    %v1738 = vmul.f32 %v1728, %v1736
    %1739 = vrot.lane.b32.xlu0 %v1547, 64
    %v1740 = vpop.permute.xlu0 %1739
    %v1743 = vsel %vm516, %v1737, 0
    %1745 = vmatprep.subr.mxu0 0.0
    %1746 = vmatpush1.msra.mxu0 0.0
    %1747 = vmatprep.subr.mxu0 0.0
    %1748 = vmatpush1.msra.mxu0 0.0
    %1749 = vmatprep.subr.mxu0 0.0
    %1750 = vmatpush1.msra.mxu0 0.0
    %1751 = vmatprep.subr.mxu0 0.0
    %1752 = vmatpush1.msra.mxu0 0.0
    %1753 = vmatprep.subr.mxu0 0.0
    %1754 = vmatpush1.msra.mxu0 0.0
    %1755 = vmatprep.subr.mxu0 0.0
    %1756 = vmatpush1.msra.mxu0 0.0
    %1757 = vmatprep.subr.mxu0 0.0
    %1758 = vmatpush1.msra.mxu0 0.0
    %1759 = vmatprep.subr.mxu0 0.0
    %1760 = vmatpush1.msra.mxu0 0.0
    %1761 = vmatprep.subr.mxu0 0.0
    %1762 = vmatpush1.msra.mxu0 0.0
    %1763 = vmatprep.subr.mxu0 0.0
    %1764 = vmatpush1.msra.mxu0 0.0
    %1765 = vmatprep.subr.mxu0 0.0
    %1766 = vmatpush1.msra.mxu0 0.0
    %1767 = vmatprep.subr.mxu0 0.0
    %1768 = vmatpush1.msra.mxu0 0.0
    %1769 = vmatprep.subr.mxu0 0.0
    %1770 = vmatpush1.msra.mxu0 0.0
    %1771 = vmatprep.subr.mxu0 0.0
    %1772 = vmatpush1.msra.mxu0 0.0
    %1773 = vmatprep.subr.mxu0 0.0
    %1774 = vmatpush1.msra.mxu0 0.0
    %1775 = vmatprep.subr.mxu0 0.0
    %1776 = vmatpush1.msra.mxu0 %v1740
    %1777 = vmatprep.subr.mxu0 0.0
    %1778 = vmatpush2.msra.mxu0 0.0
    %1779 = vmatprep.subr.mxu0 0.0
    %1780 = vmatpush2.msra.mxu0 0.0
    %1781 = vmatprep.subr.mxu0 0.0
    %1782 = vmatpush2.msra.mxu0 0.0
    %1783 = vmatprep.subr.mxu0 0.0
    %1784 = vmatpush2.msra.mxu0 0.0
    %1785 = vmatprep.subr.mxu0 0.0
    %1786 = vmatpush2.msra.mxu0 0.0
    %1787 = vmatprep.subr.mxu0 0.0
    %1788 = vmatpush2.msra.mxu0 0.0
    %1789 = vmatprep.subr.mxu0 0.0
    %1790 = vmatpush2.msra.mxu0 0.0
    %1791 = vmatprep.subr.mxu0 0.0
    %1792 = vmatpush2.msra.mxu0 0.0
    %1793 = vmatprep.subr.mxu0 0.0
    %1794 = vmatpush2.msra.mxu0 0.0
    %1795 = vmatprep.subr.mxu0 0.0
    %1796 = vmatpush2.msra.mxu0 0.0
    %1797 = vmatprep.subr.mxu0 0.0
    %1798 = vmatpush2.msra.mxu0 0.0
    %1799 = vmatprep.subr.mxu0 0.0
    %1800 = vmatpush2.msra.mxu0 0.0
    %1801 = vmatprep.subr.mxu0 0.0
    %1802 = vmatpush2.msra.mxu0 0.0
    %1803 = vmatprep.subr.mxu0 0.0
    %1804 = vmatpush2.msra.mxu0 0.0
    %1805 = vmatprep.subr.mxu0 0.0
    %1806 = vmatpush2.msra.mxu0 0.0
    %1807 = vmatprep.subr.mxu0 0.0
    %1808 = vmatpush2.msra.mxu0 0.0
    %1809 = vmatprep.mubr.f32.mxu0 0.0
    %1810 = vmatmul.mubr.f32.gmra.mxu0 %v1743
    %v1811 = vpop.f32.mrf.mxu0
    %v1812 = vadd.f32 0.0, %v1811
    %v1813 = vpop.f32.mrf.mxu0
    %1814 = vdwg.mxu0
    %1815 = vrot.lane.b32.xlu0 %v1552, 64
    %v1816 = vpop.permute.xlu0 %1815
    %v1819 = vsel %vm516, %v1738, 0
    %1821 = vmatprep.subr.mxu0 0.0
    %1822 = vmatpush1.msra.mxu0 0.0
    %1823 = vmatprep.subr.mxu0 0.0
    %1824 = vmatpush1.msra.mxu0 0.0
    %1825 = vmatprep.subr.mxu0 0.0
    %1826 = vmatpush1.msra.mxu0 0.0
    %1827 = vmatprep.subr.mxu0 0.0
    %1828 = vmatpush1.msra.mxu0 0.0
    %1829 = vmatprep.subr.mxu0 0.0
    %1830 = vmatpush1.msra.mxu0 0.0
    %1831 = vmatprep.subr.mxu0 0.0
    %1832 = vmatpush1.msra.mxu0 0.0
    %1833 = vmatprep.subr.mxu0 0.0
    %1834 = vmatpush1.msra.mxu0 0.0
    %1835 = vmatprep.subr.mxu0 0.0
    %1836 = vmatpush1.msra.mxu0 0.0
    %1837 = vmatprep.subr.mxu0 0.0
    %1838 = vmatpush1.msra.mxu0 0.0
    %1839 = vmatprep.subr.mxu0 0.0
    %1840 = vmatpush1.msra.mxu0 0.0
    %1841 = vmatprep.subr.mxu0 0.0
    %1842 = vmatpush1.msra.mxu0 0.0
    %1843 = vmatprep.subr.mxu0 0.0
    %1844 = vmatpush1.msra.mxu0 0.0
    %1845 = vmatprep.subr.mxu0 0.0
    %1846 = vmatpush1.msra.mxu0 0.0
    %1847 = vmatprep.subr.mxu0 0.0
    %1848 = vmatpush1.msra.mxu0 0.0
    %1849 = vmatprep.subr.mxu0 0.0
    %1850 = vmatpush1.msra.mxu0 0.0
    %1851 = vmatprep.subr.mxu0 0.0
    %1852 = vmatpush1.msra.mxu0 %v1816
    %1853 = vmatprep.subr.mxu0 0.0
    %1854 = vmatpush2.msra.mxu0 0.0
    %1855 = vmatprep.subr.mxu0 0.0
    %1856 = vmatpush2.msra.mxu0 0.0
    %1857 = vmatprep.subr.mxu0 0.0
    %1858 = vmatpush2.msra.mxu0 0.0
    %1859 = vmatprep.subr.mxu0 0.0
    %1860 = vmatpush2.msra.mxu0 0.0
    %1861 = vmatprep.subr.mxu0 0.0
    %1862 = vmatpush2.msra.mxu0 0.0
    %1863 = vmatprep.subr.mxu0 0.0
    %1864 = vmatpush2.msra.mxu0 0.0
    %1865 = vmatprep.subr.mxu0 0.0
    %1866 = vmatpush2.msra.mxu0 0.0
    %1867 = vmatprep.subr.mxu0 0.0
    %1868 = vmatpush2.msra.mxu0 0.0
    %1869 = vmatprep.subr.mxu0 0.0
    %1870 = vmatpush2.msra.mxu0 0.0
    %1871 = vmatprep.subr.mxu0 0.0
    %1872 = vmatpush2.msra.mxu0 0.0
    %1873 = vmatprep.subr.mxu0 0.0
    %1874 = vmatpush2.msra.mxu0 0.0
    %1875 = vmatprep.subr.mxu0 0.0
    %1876 = vmatpush2.msra.mxu0 0.0
    %1877 = vmatprep.subr.mxu0 0.0
    %1878 = vmatpush2.msra.mxu0 0.0
    %1879 = vmatprep.subr.mxu0 0.0
    %1880 = vmatpush2.msra.mxu0 0.0
    %1881 = vmatprep.subr.mxu0 0.0
    %1882 = vmatpush2.msra.mxu0 0.0
    %1883 = vmatprep.subr.mxu0 0.0
    %1884 = vmatpush2.msra.mxu0 0.0
    %1885 = vmatprep.mubr.f32.mxu0 0.0
    %1886 = vmatmul.mubr.f32.gmra.mxu0 %v1819
    %v1887 = vpop.f32.mrf.mxu0
    %v1888 = vadd.f32 0.0, %v1887
    %v1889 = vpop.f32.mrf.mxu0
    %1890 = vdwg.mxu0
    %1891 = vrot.lane.b32.xlu0 %v1547, 112
    %v1892 = vpop.permute.xlu0 %1891
    %1893 = vrot.lane.b32.xlu0 %v1547, 80
    %v1894 = vpop.permute.xlu0 %1893
    %v1895 = vsel %vm350, %v1892, 0
    %v1897 = vsel %vm350, %v1894, 0
    %1899 = vmatprep.subr.mxu0 0.0
    %1900 = vmatpush1.xpose.msra.mxu0 0.0
    %1901 = vmatprep.subr.mxu0 0.0
    %1902 = vmatpush1.xpose.msra.mxu0 0.0
    %1903 = vmatprep.subr.mxu0 0.0
    %1904 = vmatpush1.xpose.msra.mxu0 0.0
    %1905 = vmatprep.subr.mxu0 0.0
    %1906 = vmatpush1.xpose.msra.mxu0 0.0
    %1907 = vmatprep.subr.mxu0 0.0
    %1908 = vmatpush1.xpose.msra.mxu0 0.0
    %1909 = vmatprep.subr.mxu0 0.0
    %1910 = vmatpush1.xpose.msra.mxu0 0.0
    %1911 = vmatprep.subr.mxu0 0.0
    %1912 = vmatpush1.xpose.msra.mxu0 0.0
    %1913 = vmatprep.subr.mxu0 0.0
    %1914 = vmatpush1.xpose.msra.mxu0 0.0
    %1915 = vmatprep.subr.mxu0 0.0
    %1916 = vmatpush1.xpose.msra.mxu0 0.0
    %1917 = vmatprep.subr.mxu0 0.0
    %1918 = vmatpush1.xpose.msra.mxu0 0.0
    %1919 = vmatprep.subr.mxu0 0.0
    %1920 = vmatpush1.xpose.msra.mxu0 0.0
    %1921 = vmatprep.subr.mxu0 0.0
    %1922 = vmatpush1.xpose.msra.mxu0 0.0
    %1923 = vmatprep.subr.mxu0 0.0
    %1924 = vmatpush1.xpose.msra.mxu0 0.0
    %1925 = vmatprep.subr.mxu0 0.0
    %1926 = vmatpush1.xpose.msra.mxu0 0.0
    %1927 = vmatprep.subr.mxu0 0.0
    %1928 = vmatpush1.xpose.msra.mxu0 0.0
    %1929 = vmatprep.subr.mxu0 0.0
    %1930 = vmatpush1.xpose.msra.mxu0 %v1897
    %1931 = vmatprep.subr.mxu0 0.0
    %1932 = vmatpush2.xpose.msra.mxu0 0.0
    %1933 = vmatprep.subr.mxu0 0.0
    %1934 = vmatpush2.xpose.msra.mxu0 0.0
    %1935 = vmatprep.subr.mxu0 0.0
    %1936 = vmatpush2.xpose.msra.mxu0 0.0
    %1937 = vmatprep.subr.mxu0 0.0
    %1938 = vmatpush2.xpose.msra.mxu0 0.0
    %1939 = vmatprep.subr.mxu0 0.0
    %1940 = vmatpush2.xpose.msra.mxu0 0.0
    %1941 = vmatprep.subr.mxu0 0.0
    %1942 = vmatpush2.xpose.msra.mxu0 0.0
    %1943 = vmatprep.subr.mxu0 0.0
    %1944 = vmatpush2.xpose.msra.mxu0 0.0
    %1945 = vmatprep.subr.mxu0 0.0
    %1946 = vmatpush2.xpose.msra.mxu0 0.0
    %1947 = vmatprep.subr.mxu0 0.0
    %1948 = vmatpush2.xpose.msra.mxu0 0.0
    %1949 = vmatprep.subr.mxu0 0.0
    %1950 = vmatpush2.xpose.msra.mxu0 0.0
    %1951 = vmatprep.subr.mxu0 0.0
    %1952 = vmatpush2.xpose.msra.mxu0 0.0
    %1953 = vmatprep.subr.mxu0 0.0
    %1954 = vmatpush2.xpose.msra.mxu0 0.0
    %1955 = vmatprep.subr.mxu0 0.0
    %1956 = vmatpush2.xpose.msra.mxu0 0.0
    %1957 = vmatprep.subr.mxu0 0.0
    %1958 = vmatpush2.xpose.msra.mxu0 0.0
    %1959 = vmatprep.subr.mxu0 0.0
    %1960 = vmatpush2.xpose.msra.mxu0 0.0
    %1961 = vmatprep.subr.mxu0 0.0
    %1962 = vmatpush2.xpose.msra.mxu0 0.0
    %1963 = vmatprep.mubr.f32.mxu0 0.0
    %1964 = vmatmul.mubr.f32.gmra.mxu0 %v1895
    %v1965 = vpop.f32.mrf.mxu0
    %v1966 = vadd.f32 0.0, %v1965
    %v1967 = vpop.f32.mrf.mxu0
    %1968 = vdwg.mxu0
    %1969 = vrot.lane.b32.xlu0 %v1552, 112
    %v1970 = vpop.permute.xlu0 %1969
    %1971 = vrot.lane.b32.xlu0 %v1552, 80
    %v1972 = vpop.permute.xlu0 %1971
    %v1973 = vsel %vm350, %v1970, 0
    %v1975 = vsel %vm350, %v1972, 0
    %1977 = vmatprep.subr.mxu0 0.0
    %1978 = vmatpush1.xpose.msra.mxu0 0.0
    %1979 = vmatprep.subr.mxu0 0.0
    %1980 = vmatpush1.xpose.msra.mxu0 0.0
    %1981 = vmatprep.subr.mxu0 0.0
    %1982 = vmatpush1.xpose.msra.mxu0 0.0
    %1983 = vmatprep.subr.mxu0 0.0
    %1984 = vmatpush1.xpose.msra.mxu0 0.0
    %1985 = vmatprep.subr.mxu0 0.0
    %1986 = vmatpush1.xpose.msra.mxu0 0.0
    %1987 = vmatprep.subr.mxu0 0.0
    %1988 = vmatpush1.xpose.msra.mxu0 0.0
    %1989 = vmatprep.subr.mxu0 0.0
    %1990 = vmatpush1.xpose.msra.mxu0 0.0
    %1991 = vmatprep.subr.mxu0 0.0
    %1992 = vmatpush1.xpose.msra.mxu0 0.0
    %1993 = vmatprep.subr.mxu0 0.0
    %1994 = vmatpush1.xpose.msra.mxu0 0.0
    %1995 = vmatprep.subr.mxu0 0.0
    %1996 = vmatpush1.xpose.msra.mxu0 0.0
    %1997 = vmatprep.subr.mxu0 0.0
    %1998 = vmatpush1.xpose.msra.mxu0 0.0
    %1999 = vmatprep.subr.mxu0 0.0
    %2000 = vmatpush1.xpose.msra.mxu0 0.0
    %2001 = vmatprep.subr.mxu0 0.0
    %2002 = vmatpush1.xpose.msra.mxu0 0.0
    %2003 = vmatprep.subr.mxu0 0.0
    %2004 = vmatpush1.xpose.msra.mxu0 0.0
    %2005 = vmatprep.subr.mxu0 0.0
    %2006 = vmatpush1.xpose.msra.mxu0 0.0
    %2007 = vmatprep.subr.mxu0 0.0
    %2008 = vmatpush1.xpose.msra.mxu0 %v1975
    %2009 = vmatprep.subr.mxu0 0.0
    %2010 = vmatpush2.xpose.msra.mxu0 0.0
    %2011 = vmatprep.subr.mxu0 0.0
    %2012 = vmatpush2.xpose.msra.mxu0 0.0
    %2013 = vmatprep.subr.mxu0 0.0
    %2014 = vmatpush2.xpose.msra.mxu0 0.0
    %2015 = vmatprep.subr.mxu0 0.0
    %2016 = vmatpush2.xpose.msra.mxu0 0.0
    %2017 = vmatprep.subr.mxu0 0.0
    %2018 = vmatpush2.xpose.msra.mxu0 0.0
    %2019 = vmatprep.subr.mxu0 0.0
    %2020 = vmatpush2.xpose.msra.mxu0 0.0
    %2021 = vmatprep.subr.mxu0 0.0
    %2022 = vmatpush2.xpose.msra.mxu0 0.0
    %2023 = vmatprep.subr.mxu0 0.0
    %2024 = vmatpush2.xpose.msra.mxu0 0.0
    %2025 = vmatprep.subr.mxu0 0.0
    %2026 = vmatpush2.xpose.msra.mxu0 0.0
    %2027 = vmatprep.subr.mxu0 0.0
    %2028 = vmatpush2.xpose.msra.mxu0 0.0
    %2029 = vmatprep.subr.mxu0 0.0
    %2030 = vmatpush2.xpose.msra.mxu0 0.0
    %2031 = vmatprep.subr.mxu0 0.0
    %2032 = vmatpush2.xpose.msra.mxu0 0.0
    %2033 = vmatprep.subr.mxu0 0.0
    %2034 = vmatpush2.xpose.msra.mxu0 0.0
    %2035 = vmatprep.subr.mxu0 0.0
    %2036 = vmatpush2.xpose.msra.mxu0 0.0
    %2037 = vmatprep.subr.mxu0 0.0
    %2038 = vmatpush2.xpose.msra.mxu0 0.0
    %2039 = vmatprep.subr.mxu0 0.0
    %2040 = vmatpush2.xpose.msra.mxu0 0.0
    %2041 = vmatprep.mubr.f32.mxu0 0.0
    %2042 = vmatmul.mubr.f32.gmra.mxu0 %v1973
    %v2043 = vpop.f32.mrf.mxu0
    %v2044 = vadd.f32 0.0, %v2043
    %v2045 = vpop.f32.mrf.mxu0
    %2046 = vdwg.mxu0
    %v2047 = vmul.f32 %v1966, 0.25
    %v2048 = vmul.f32 %v2044, 0.25
    %v2049 = vadd.f32 %v2047, %v507
    %v2050 = vadd.f32 %v2048, %v511
    %v2051 = vsel %vm516, %v2049, -inf
    %2052 = vmax.xlane.f32.xlu0 %v2051
    %v2053 = vpop.xlane.xlu0 %2052
    %v2054 = vsel %vm516, %v2050, -inf
    %2055 = vmax.xlane.f32.xlu0 %v2054
    %v2056 = vpop.xlane.xlu0 %2055
    %v2057 = vsub.f32 %v2049, %v2053
    %v2058 = vsub.f32 %v2050, %v2056
    %v2059 = vmul.f32 %v2057, 1.442695
    %v2060 = vpow.pop %v2059
    %v2061 = vmul.f32 %v2058, 1.442695
    %v2062 = vpow.pop %v2061
    %v2063 = vsel %vm516, %v2060, 0.0
    %2064 = vadd.xlane.f32.xlu0 %v2063
    %v2065 = vpop.xlane.xlu0 %2064
    %v2066 = vsel %vm516, %v2062, 0.0
    %2067 = vadd.xlane.f32.xlu0 %v2066
    %v2068 = vpop.xlane.xlu0 %2067
    %v2069 = vrcp.pop %v2065
    %v2070 = vrcp.pop %v2068
    %v2071 = vmul.f32 %v2060, %v2069
    %v2072 = vmul.f32 %v2062, %v2070
    %2073 = vrot.lane.b32.xlu0 %v1547, 48
    %v2074 = vpop.permute.xlu0 %2073
    %v2077 = vsel %vm516, %v2071, 0
    %2079 = vmatprep.subr.mxu0 0.0
    %2080 = vmatpush1.msra.mxu0 0.0
    %2081 = vmatprep.subr.mxu0 0.0
    %2082 = vmatpush1.msra.mxu0 0.0
    %2083 = vmatprep.subr.mxu0 0.0
    %2084 = vmatpush1.msra.mxu0 0.0
    %2085 = vmatprep.subr.mxu0 0.0
    %2086 = vmatpush1.msra.mxu0 0.0
    %2087 = vmatprep.subr.mxu0 0.0
    %2088 = vmatpush1.msra.mxu0 0.0
    %2089 = vmatprep.subr.mxu0 0.0
    %2090 = vmatpush1.msra.mxu0 0.0
    %2091 = vmatprep.subr.mxu0 0.0
    %2092 = vmatpush1.msra.mxu0 0.0
    %2093 = vmatprep.subr.mxu0 0.0
    %2094 = vmatpush1.msra.mxu0 0.0
    %2095 = vmatprep.subr.mxu0 0.0
    %2096 = vmatpush1.msra.mxu0 0.0
    %2097 = vmatprep.subr.mxu0 0.0
    %2098 = vmatpush1.msra.mxu0 0.0
    %2099 = vmatprep.subr.mxu0 0.0
    %2100 = vmatpush1.msra.mxu0 0.0
    %2101 = vmatprep.subr.mxu0 0.0
    %2102 = vmatpush1.msra.mxu0 0.0
    %2103 = vmatprep.subr.mxu0 0.0
    %2104 = vmatpush1.msra.mxu0 0.0
    %2105 = vmatprep.subr.mxu0 0.0
    %2106 = vmatpush1.msra.mxu0 0.0
    %2107 = vmatprep.subr.mxu0 0.0
    %2108 = vmatpush1.msra.mxu0 0.0
    %2109 = vmatprep.subr.mxu0 0.0
    %2110 = vmatpush1.msra.mxu0 %v2074
    %2111 = vmatprep.subr.mxu0 0.0
    %2112 = vmatpush2.msra.mxu0 0.0
    %2113 = vmatprep.subr.mxu0 0.0
    %2114 = vmatpush2.msra.mxu0 0.0
    %2115 = vmatprep.subr.mxu0 0.0
    %2116 = vmatpush2.msra.mxu0 0.0
    %2117 = vmatprep.subr.mxu0 0.0
    %2118 = vmatpush2.msra.mxu0 0.0
    %2119 = vmatprep.subr.mxu0 0.0
    %2120 = vmatpush2.msra.mxu0 0.0
    %2121 = vmatprep.subr.mxu0 0.0
    %2122 = vmatpush2.msra.mxu0 0.0
    %2123 = vmatprep.subr.mxu0 0.0
    %2124 = vmatpush2.msra.mxu0 0.0
    %2125 = vmatprep.subr.mxu0 0.0
    %2126 = vmatpush2.msra.mxu0 0.0
    %2127 = vmatprep.subr.mxu0 0.0
    %2128 = vmatpush2.msra.mxu0 0.0
    %2129 = vmatprep.subr.mxu0 0.0
    %2130 = vmatpush2.msra.mxu0 0.0
    %2131 = vmatprep.subr.mxu0 0.0
    %2132 = vmatpush2.msra.mxu0 0.0
    %2133 = vmatprep.subr.mxu0 0.0
    %2134 = vmatpush2.msra.mxu0 0.0
    %2135 = vmatprep.subr.mxu0 0.0
    %2136 = vmatpush2.msra.mxu0 0.0
    %2137 = vmatprep.subr.mxu0 0.0
    %2138 = vmatpush2.msra.mxu0 0.0
    %2139 = vmatprep.subr.mxu0 0.0
    %2140 = vmatpush2.msra.mxu0 0.0
    %2141 = vmatprep.subr.mxu0 0.0
    %2142 = vmatpush2.msra.mxu0 0.0
    %2143 = vmatprep.mubr.f32.mxu0 0.0
    %2144 = vmatmul.mubr.f32.gmra.mxu0 %v2077
    %v2145 = vpop.f32.mrf.mxu0
    %v2146 = vadd.f32 0.0, %v2145
    %v2147 = vpop.f32.mrf.mxu0
    %2148 = vdwg.mxu0
    %2149 = vrot.lane.b32.xlu0 %v1552, 48
    %v2150 = vpop.permute.xlu0 %2149
    %v2153 = vsel %vm516, %v2072, 0
    %2155 = vmatprep.subr.mxu0 0.0
    %2156 = vmatpush1.msra.mxu0 0.0
    %2157 = vmatprep.subr.mxu0 0.0
    %2158 = vmatpush1.msra.mxu0 0.0
    %2159 = vmatprep.subr.mxu0 0.0
    %2160 = vmatpush1.msra.mxu0 0.0
    %2161 = vmatprep.subr.mxu0 0.0
    %2162 = vmatpush1.msra.mxu0 0.0
    %2163 = vmatprep.subr.mxu0 0.0
    %2164 = vmatpush1.msra.mxu0 0.0
    %2165 = vmatprep.subr.mxu0 0.0
    %2166 = vmatpush1.msra.mxu0 0.0
    %2167 = vmatprep.subr.mxu0 0.0
    %2168 = vmatpush1.msra.mxu0 0.0
    %2169 = vmatprep.subr.mxu0 0.0
    %2170 = vmatpush1.msra.mxu0 0.0
    %2171 = vmatprep.subr.mxu0 0.0
    %2172 = vmatpush1.msra.mxu0 0.0
    %2173 = vmatprep.subr.mxu0 0.0
    %2174 = vmatpush1.msra.mxu0 0.0
    %2175 = vmatprep.subr.mxu0 0.0
    %2176 = vmatpush1.msra.mxu0 0.0
    %2177 = vmatprep.subr.mxu0 0.0
    %2178 = vmatpush1.msra.mxu0 0.0
    %2179 = vmatprep.subr.mxu0 0.0
    %2180 = vmatpush1.msra.mxu0 0.0
    %2181 = vmatprep.subr.mxu0 0.0
    %2182 = vmatpush1.msra.mxu0 0.0
    %2183 = vmatprep.subr.mxu0 0.0
    %2184 = vmatpush1.msra.mxu0 0.0
    %2185 = vmatprep.subr.mxu0 0.0
    %2186 = vmatpush1.msra.mxu0 %v2150
    %2187 = vmatprep.subr.mxu0 0.0
    %2188 = vmatpush2.msra.mxu0 0.0
    %2189 = vmatprep.subr.mxu0 0.0
    %2190 = vmatpush2.msra.mxu0 0.0
    %2191 = vmatprep.subr.mxu0 0.0
    %2192 = vmatpush2.msra.mxu0 0.0
    %2193 = vmatprep.subr.mxu0 0.0
    %2194 = vmatpush2.msra.mxu0 0.0
    %2195 = vmatprep.subr.mxu0 0.0
    %2196 = vmatpush2.msra.mxu0 0.0
    %2197 = vmatprep.subr.mxu0 0.0
    %2198 = vmatpush2.msra.mxu0 0.0
    %2199 = vmatprep.subr.mxu0 0.0
    %2200 = vmatpush2.msra.mxu0 0.0
    %2201 = vmatprep.subr.mxu0 0.0
    %2202 = vmatpush2.msra.mxu0 0.0
    %2203 = vmatprep.subr.mxu0 0.0
    %2204 = vmatpush2.msra.mxu0 0.0
    %2205 = vmatprep.subr.mxu0 0.0
    %2206 = vmatpush2.msra.mxu0 0.0
    %2207 = vmatprep.subr.mxu0 0.0
    %2208 = vmatpush2.msra.mxu0 0.0
    %2209 = vmatprep.subr.mxu0 0.0
    %2210 = vmatpush2.msra.mxu0 0.0
    %2211 = vmatprep.subr.mxu0 0.0
    %2212 = vmatpush2.msra.mxu0 0.0
    %2213 = vmatprep.subr.mxu0 0.0
    %2214 = vmatpush2.msra.mxu0 0.0
    %2215 = vmatprep.subr.mxu0 0.0
    %2216 = vmatpush2.msra.mxu0 0.0
    %2217 = vmatprep.subr.mxu0 0.0
    %2218 = vmatpush2.msra.mxu0 0.0
    %2219 = vmatprep.mubr.f32.mxu0 0.0
    %2220 = vmatmul.mubr.f32.gmra.mxu0 %v2153
    %v2221 = vpop.f32.mrf.mxu0
    %v2222 = vadd.f32 0.0, %v2221
    %v2223 = vpop.f32.mrf.mxu0
    %2224 = vdwg.mxu0
    %v2226 = vsel %vm350, %v2146, 0
    %v2229 = vsel %vm350, %v2222, 0
    %2231 = vmatprep.subr.mxu0 0.0
    %2232 = vmatpush1.msra.mxu0 0.0
    %2233 = vmatprep.subr.mxu0 0.0
    %2234 = vmatpush1.msra.mxu0 0.0
    %2235 = vmatprep.subr.mxu0 0.0
    %2236 = vmatpush1.msra.mxu0 0.0
    %2237 = vmatprep.subr.mxu0 0.0
    %2238 = vmatpush1.msra.mxu0 0.0
    %2239 = vmatprep.subr.mxu0 0.0
    %2240 = vmatpush1.msra.mxu0 0.0
    %2241 = vmatprep.subr.mxu0 0.0
    %2242 = vmatpush1.msra.mxu0 0.0
    %2243 = vmatprep.subr.mxu0 0.0
    %2244 = vmatpush1.msra.mxu0 0.0
    %2245 = vmatprep.subr.mxu0 0.0
    %2246 = vmatpush1.msra.mxu0 0.0
    %2247 = vmatprep.subr.mxu0 0.0
    %2248 = vmatpush1.msra.mxu0 0.0
    %2249 = vmatprep.subr.mxu0 0.0
    %2250 = vmatpush1.msra.mxu0 0.0
    %2251 = vmatprep.subr.mxu0 0.0
    %2252 = vmatpush1.msra.mxu0 0.0
    %2253 = vmatprep.subr.mxu0 0.0
    %2254 = vmatpush1.msra.mxu0 0.0
    %2255 = vmatprep.subr.mxu0 0.0
    %2256 = vmatpush1.msra.mxu0 0.0
    %2257 = vmatprep.subr.mxu0 0.0
    %2258 = vmatpush1.msra.mxu0 0.0
    %2259 = vmatprep.subr.mxu0 0.0
    %2260 = vmatpush1.msra.mxu0 %v1558
    %2261 = vmatprep.subr.mxu0 0.0
    %2262 = vmatpush1.msra.mxu0 %v1557
    %2263 = vmatprep.subr.mxu0 0.0
    %2264 = vmatpush2.msra.mxu0 0.0
    %2265 = vmatprep.subr.mxu0 0.0
    %2266 = vmatpush2.msra.mxu0 0.0
    %2267 = vmatprep.subr.mxu0 0.0
    %2268 = vmatpush2.msra.mxu0 0.0
    %2269 = vmatprep.subr.mxu0 0.0
    %2270 = vmatpush2.msra.mxu0 0.0
    %2271 = vmatprep.subr.mxu0 0.0
    %2272 = vmatpush2.msra.mxu0 0.0
    %2273 = vmatprep.subr.mxu0 0.0
    %2274 = vmatpush2.msra.mxu0 0.0
    %2275 = vmatprep.subr.mxu0 0.0
    %2276 = vmatpush2.msra.mxu0 0.0
    %2277 = vmatprep.subr.mxu0 0.0
    %2278 = vmatpush2.msra.mxu0 0.0
    %2279 = vmatprep.subr.mxu0 0.0
    %2280 = vmatpush2.msra.mxu0 0.0
    %2281 = vmatprep.subr.mxu0 0.0
    %2282 = vmatpush2.msra.mxu0 0.0
    %2283 = vmatprep.subr.mxu0 0.0
    %2284 = vmatpush2.msra.mxu0 0.0
    %2285 = vmatprep.subr.mxu0 0.0
    %2286 = vmatpush2.msra.mxu0 0.0
    %2287 = vmatprep.subr.mxu0 0.0
    %2288 = vmatpush2.msra.mxu0 0.0
    %2289 = vmatprep.subr.mxu0 0.0
    %2290 = vmatpush2.msra.mxu0 0.0
    %2291 = vmatprep.subr.mxu0 0.0
    %2292 = vmatpush2.msra.mxu0 0.0
    %2293 = vmatprep.subr.mxu0 0.0
    %2294 = vmatpush2.msra.mxu0 0.0
    %2295 = vmatprep.mubr.f32.mxu0 0.0
    %2296 = vmatmul.mubr.f32.gmra.mxu0 %v2226
    %v2297 = vpop.f32.mrf.mxu0
    %v2298 = vadd.f32 0.0, %v2297
    %v2299 = vpop.f32.mrf.mxu0
    %2300 = vmatprep.mubr.f32.mxu0 0.0
    %2301 = vmatmul.mubr.f32.gmra.mxu0 %v2229
    %v2302 = vpop.f32.mrf.mxu0
    %v2303 = vadd.f32 0.0, %v2302
    %v2304 = vpop.f32.mrf.mxu0
    %2305 = vdwg.mxu0
    %v2307 = vsel %vm350, %v1812, 0
    %v2310 = vsel %vm350, %v1888, 0
    %2312 = vmatprep.subr.mxu0 0.0
    %2313 = vmatpush1.msra.mxu0 0.0
    %2314 = vmatprep.subr.mxu0 0.0
    %2315 = vmatpush1.msra.mxu0 0.0
    %2316 = vmatprep.subr.mxu0 0.0
    %2317 = vmatpush1.msra.mxu0 0.0
    %2318 = vmatprep.subr.mxu0 0.0
    %2319 = vmatpush1.msra.mxu0 0.0
    %2320 = vmatprep.subr.mxu0 0.0
    %2321 = vmatpush1.msra.mxu0 0.0
    %2322 = vmatprep.subr.mxu0 0.0
    %2323 = vmatpush1.msra.mxu0 0.0
    %2324 = vmatprep.subr.mxu0 0.0
    %2325 = vmatpush1.msra.mxu0 0.0
    %2326 = vmatprep.subr.mxu0 0.0
    %2327 = vmatpush1.msra.mxu0 0.0
    %2328 = vmatprep.subr.mxu0 0.0
    %2329 = vmatpush1.msra.mxu0 0.0
    %2330 = vmatprep.subr.mxu0 0.0
    %2331 = vmatpush1.msra.mxu0 0.0
    %2332 = vmatprep.subr.mxu0 0.0
    %2333 = vmatpush1.msra.mxu0 0.0
    %2334 = vmatprep.subr.mxu0 0.0
    %2335 = vmatpush1.msra.mxu0 0.0
    %2336 = vmatprep.subr.mxu0 0.0
    %2337 = vmatpush1.msra.mxu0 0.0
    %2338 = vmatprep.subr.mxu0 0.0
    %2339 = vmatpush1.msra.mxu0 0.0
    %2340 = vmatprep.subr.mxu0 0.0
    %2341 = vmatpush1.msra.mxu0 %v1556
    %2342 = vmatprep.subr.mxu0 0.0
    %2343 = vmatpush1.msra.mxu0 %v1555
    %2344 = vmatprep.subr.mxu0 0.0
    %2345 = vmatpush2.msra.mxu0 0.0
    %2346 = vmatprep.subr.mxu0 0.0
    %2347 = vmatpush2.msra.mxu0 0.0
    %2348 = vmatprep.subr.mxu0 0.0
    %2349 = vmatpush2.msra.mxu0 0.0
    %2350 = vmatprep.subr.mxu0 0.0
    %2351 = vmatpush2.msra.mxu0 0.0
    %2352 = vmatprep.subr.mxu0 0.0
    %2353 = vmatpush2.msra.mxu0 0.0
    %2354 = vmatprep.subr.mxu0 0.0
    %2355 = vmatpush2.msra.mxu0 0.0
    %2356 = vmatprep.subr.mxu0 0.0
    %2357 = vmatpush2.msra.mxu0 0.0
    %2358 = vmatprep.subr.mxu0 0.0
    %2359 = vmatpush2.msra.mxu0 0.0
    %2360 = vmatprep.subr.mxu0 0.0
    %2361 = vmatpush2.msra.mxu0 0.0
    %2362 = vmatprep.subr.mxu0 0.0
    %2363 = vmatpush2.msra.mxu0 0.0
    %2364 = vmatprep.subr.mxu0 0.0
    %2365 = vmatpush2.msra.mxu0 0.0
    %2366 = vmatprep.subr.mxu0 0.0
    %2367 = vmatpush2.msra.mxu0 0.0
    %2368 = vmatprep.subr.mxu0 0.0
    %2369 = vmatpush2.msra.mxu0 0.0
    %2370 = vmatprep.subr.mxu0 0.0
    %2371 = vmatpush2.msra.mxu0 0.0
    %2372 = vmatprep.subr.mxu0 0.0
    %2373 = vmatpush2.msra.mxu0 0.0
    %2374 = vmatprep.subr.mxu0 0.0
    %2375 = vmatpush2.msra.mxu0 0.0
    %2376 = vmatprep.mubr.f32.mxu0 0.0
    %2377 = vmatmul.mubr.f32.gmra.mxu0 %v2307
    %v2378 = vpop.f32.mrf.mxu0
    %v2379 = vadd.f32 %v2298, %v2378
    %v2380 = vpop.f32.mrf.mxu0
    %2381 = vmatprep.mubr.f32.mxu0 0.0
    %2382 = vmatmul.mubr.f32.gmra.mxu0 %v2310
    %v2383 = vpop.f32.mrf.mxu0
    %v2384 = vadd.f32 %v2303, %v2383
    %v2385 = vpop.f32.mrf.mxu0
    %2386 = vdwg.mxu0
    %v2387 = vlaneseq
    %v2388 = vshrl.u32 %v2387, 7
    %v2389 = vsub.s32 0, %v2388
    %v2390 = vrot.slane %v1462, %v2389
    %v2391 = vadd.f32 %v2379, %v2390
    %v2392 = vadd.f32 %v2384, %v2390
    %v2393 = vadd.f32 %v1460, %v2391
    %v2394 = vadd.f32 %v1461, %v2392
    %v2395 = vsel %vm261, %v2393, 0.0
    %2396 = vadd.xlane.f32.xlu0 %v2395
    %v2397 = vpop.xlane.xlu0 %2396
    %v2398 = vsel %vm261, %v2394, 0.0
    %2399 = vadd.xlane.f32.xlu0 %v2398
    %v2400 = vpop.xlane.xlu0 %2399
    %v2401 = vmul.f32 %v2397, %v1201
    %v2402 = vmul.f32 %v2400, %v1201
    %v2403 = vsub.f32 %v2393, %v2401
    %v2404 = vsub.f32 %v2394, %v2402
    %v2405 = vmul.f32 %v2403, %v2403
    %v2406 = vmul.f32 %v2404, %v2404
    %v2407 = vsel %vm261, %v2405, 0.0
    %2408 = vadd.xlane.f32.xlu0 %v2407
    %v2409 = vpop.xlane.xlu0 %2408
    %v2410 = vsel %vm261, %v2406, 0.0
    %2411 = vadd.xlane.f32.xlu0 %v2410
    %v2412 = vpop.xlane.xlu0 %2411
    %v2413 = vmul.f32 %v2409, %v1201
    %v2414 = vmul.f32 %v2412, %v1201
    %v2415 = vadd.f32 %v2413, 1e-05
    %v2416 = vadd.f32 %v2414, 1e-05
    %v2417 = vrsqrt.pop %v2415
    %v2418 = vrsqrt.pop %v2416
    %v2419 = vmul.f32 %v2403, %v2417
    %v2420 = vmul.f32 %v2404, %v2418
    %v2421 = vlaneseq
    %v2422 = vshrl.u32 %v2421, 7
    %v2423 = vsub.s32 2, %v2422
    %v2424 = vrot.slane %v1462, %v2423
    %v2425 = vmul.f32 %v2419, %v2424
    %v2426 = vmul.f32 %v2420, %v2424
    %v2427 = vlaneseq
    %v2428 = vshrl.u32 %v2427, 7
    %v2429 = vsub.s32 3, %v2428
    %v2430 = vrot.slane %v1462, %v2429
    %v2431 = vadd.f32 %v2425, %v2430
    %v2432 = vadd.f32 %v2426, %v2430
    %v2433 = vld [vmem:[%s73] sm:$0xff]
    %v2434 = vld [vmem:[%s73 + $0x8] sm:$0xff]
    %v2435 = vld [vmem:[%s73 + $0x10] sm:$0xff]
    %v2436 = vld [vmem:[%s73 + $0x18] sm:$0xff]
    %v2437 = vld [vmem:[%s67] sm:$0x1]
    %v2439 = vlaneseq
    %v2440 = vshrl.u32 %v2439, 7
    %v2441 = vsub.s32 0, %v2440
    %v2442 = vrot.slane %v2437, %v2441
    %v2445 = vsel %vm261, %v2431, 0
    %v2448 = vsel %vm261, %v2432, 0
    %2450 = vmatprep.subr.mxu0 0.0
    %2451 = vmatpush1.msra.mxu0 0.0
    %2452 = vmatprep.subr.mxu0 0.0
    %2453 = vmatpush1.msra.mxu0 0.0
    %2454 = vmatprep.subr.mxu0 0.0
    %2455 = vmatpush1.msra.mxu0 0.0
    %2456 = vmatprep.subr.mxu0 0.0
    %2457 = vmatpush1.msra.mxu0 0.0
    %2458 = vmatprep.subr.mxu0 0.0
    %2459 = vmatpush1.msra.mxu0 0.0
    %2460 = vmatprep.subr.mxu0 0.0
    %2461 = vmatpush1.msra.mxu0 0.0
    %2462 = vmatprep.subr.mxu0 0.0
    %2463 = vmatpush1.msra.mxu0 0.0
    %2464 = vmatprep.subr.mxu0 0.0
    %2465 = vmatpush1.msra.mxu0 0.0
    %2466 = vmatprep.subr.mxu0 0.0
    %2467 = vmatpush1.msra.mxu0 0.0
    %2468 = vmatprep.subr.mxu0 0.0
    %2469 = vmatpush1.msra.mxu0 0.0
    %2470 = vmatprep.subr.mxu0 0.0
    %2471 = vmatpush1.msra.mxu0 0.0
    %2472 = vmatprep.subr.mxu0 0.0
    %2473 = vmatpush1.msra.mxu0 0.0
    %2474 = vmatprep.subr.mxu0 0.0
    %2475 = vmatpush1.msra.mxu0 %v2436
    %2476 = vmatprep.subr.mxu0 0.0
    %2477 = vmatpush1.msra.mxu0 %v2435
    %2478 = vmatprep.subr.mxu0 0.0
    %2479 = vmatpush1.msra.mxu0 %v2434
    %2480 = vmatprep.subr.mxu0 0.0
    %2481 = vmatpush1.msra.mxu0 %v2433
    %2482 = vmatprep.subr.mxu0 0.0
    %2483 = vmatpush2.msra.mxu0 0.0
    %2484 = vmatprep.subr.mxu0 0.0
    %2485 = vmatpush2.msra.mxu0 0.0
    %2486 = vmatprep.subr.mxu0 0.0
    %2487 = vmatpush2.msra.mxu0 0.0
    %2488 = vmatprep.subr.mxu0 0.0
    %2489 = vmatpush2.msra.mxu0 0.0
    %2490 = vmatprep.subr.mxu0 0.0
    %2491 = vmatpush2.msra.mxu0 0.0
    %2492 = vmatprep.subr.mxu0 0.0
    %2493 = vmatpush2.msra.mxu0 0.0
    %2494 = vmatprep.subr.mxu0 0.0
    %2495 = vmatpush2.msra.mxu0 0.0
    %2496 = vmatprep.subr.mxu0 0.0
    %2497 = vmatpush2.msra.mxu0 0.0
    %2498 = vmatprep.subr.mxu0 0.0
    %2499 = vmatpush2.msra.mxu0 0.0
    %2500 = vmatprep.subr.mxu0 0.0
    %2501 = vmatpush2.msra.mxu0 0.0
    %2502 = vmatprep.subr.mxu0 0.0
    %2503 = vmatpush2.msra.mxu0 0.0
    %2504 = vmatprep.subr.mxu0 0.0
    %2505 = vmatpush2.msra.mxu0 0.0
    %2506 = vmatprep.subr.mxu0 0.0
    %2507 = vmatpush2.msra.mxu0 0.0
    %2508 = vmatprep.subr.mxu0 0.0
    %2509 = vmatpush2.msra.mxu0 0.0
    %2510 = vmatprep.subr.mxu0 0.0
    %2511 = vmatpush2.msra.mxu0 0.0
    %2512 = vmatprep.subr.mxu0 0.0
    %2513 = vmatpush2.msra.mxu0 0.0
    %2514 = vmatprep.mubr.f32.mxu0 0.0
    %2515 = vmatmul.mubr.f32.gmra.mxu0 %v2445
    %v2516 = vpop.f32.mrf.mxu0
    %v2517 = vadd.f32 %v2442, %v2516
    %v2518 = vpop.f32.mrf.mxu0
    %2519 = vmatprep.mubr.f32.mxu0 0.0
    %2520 = vmatmul.mubr.f32.gmra.mxu0 %v2448
    %v2521 = vpop.f32.mrf.mxu0
    %v2522 = vadd.f32 %v2442, %v2521
    %v2523 = vpop.f32.mrf.mxu0
    %2524 = vdwg.mxu0
    %v2525 = vmax.f32 %v2517, 0.0
    %v2526 = vmax.f32 %v2522, 0.0
    %v2527 = vld [vmem:[%s75] sm:$0xff]
    %v2528 = vld [vmem:[%s75 + $0x8] sm:$0xff]
    %v2529 = vld [vmem:[%s75 + $0x10] sm:$0xff]
    %v2530 = vld [vmem:[%s75 + $0x18] sm:$0xff]
    %v2531 = vld [vmem:[%s75 + $0x20] sm:$0xff]
    %v2532 = vld [vmem:[%s75 + $0x28] sm:$0xff]
    %v2533 = vld [vmem:[%s75 + $0x30] sm:$0xff]
    %v2534 = vld [vmem:[%s75 + $0x38] sm:$0xff]
    %v2535 = vlaneseq
    %v2536 = vshrl.u32 %v2535, 7
    %v2537 = vsub.s32 1, %v2536
    %v2538 = vrot.slane %v1462, %v2537
    %v2540 = vsel %vm1340, %v2525, 0
    %v2543 = vsel %vm1340, %v2526, 0
    %2545 = vmatprep.subr.mxu0 0.0
    %2546 = vmatpush1.msra.mxu0 0.0
    %2547 = vmatprep.subr.mxu0 0.0
    %2548 = vmatpush1.msra.mxu0 0.0
    %2549 = vmatprep.subr.mxu0 0.0
    %2550 = vmatpush1.msra.mxu0 0.0
    %2551 = vmatprep.subr.mxu0 0.0
    %2552 = vmatpush1.msra.mxu0 0.0
    %2553 = vmatprep.subr.mxu0 0.0
    %2554 = vmatpush1.msra.mxu0 0.0
    %2555 = vmatprep.subr.mxu0 0.0
    %2556 = vmatpush1.msra.mxu0 0.0
    %2557 = vmatprep.subr.mxu0 0.0
    %2558 = vmatpush1.msra.mxu0 0.0
    %2559 = vmatprep.subr.mxu0 0.0
    %2560 = vmatpush1.msra.mxu0 0.0
    %2561 = vmatprep.subr.mxu0 0.0
    %2562 = vmatpush1.msra.mxu0 %v2534
    %2563 = vmatprep.subr.mxu0 0.0
    %2564 = vmatpush1.msra.mxu0 %v2533
    %2565 = vmatprep.subr.mxu0 0.0
    %2566 = vmatpush1.msra.mxu0 %v2532
    %2567 = vmatprep.subr.mxu0 0.0
    %2568 = vmatpush1.msra.mxu0 %v2531
    %2569 = vmatprep.subr.mxu0 0.0
    %2570 = vmatpush1.msra.mxu0 %v2530
    %2571 = vmatprep.subr.mxu0 0.0
    %2572 = vmatpush1.msra.mxu0 %v2529
    %2573 = vmatprep.subr.mxu0 0.0
    %2574 = vmatpush1.msra.mxu0 %v2528
    %2575 = vmatprep.subr.mxu0 0.0
    %2576 = vmatpush1.msra.mxu0 %v2527
    %2577 = vmatprep.subr.mxu0 0.0
    %2578 = vmatpush2.msra.mxu0 0.0
    %2579 = vmatprep.subr.mxu0 0.0
    %2580 = vmatpush2.msra.mxu0 0.0
    %2581 = vmatprep.subr.mxu0 0.0
    %2582 = vmatpush2.msra.mxu0 0.0
    %2583 = vmatprep.subr.mxu0 0.0
    %2584 = vmatpush2.msra.mxu0 0.0
    %2585 = vmatprep.subr.mxu0 0.0
    %2586 = vmatpush2.msra.mxu0 0.0
    %2587 = vmatprep.subr.mxu0 0.0
    %2588 = vmatpush2.msra.mxu0 0.0
    %2589 = vmatprep.subr.mxu0 0.0
    %2590 = vmatpush2.msra.mxu0 0.0
    %2591 = vmatprep.subr.mxu0 0.0
    %2592 = vmatpush2.msra.mxu0 0.0
    %2593 = vmatprep.subr.mxu0 0.0
    %2594 = vmatpush2.msra.mxu0 0.0
    %2595 = vmatprep.subr.mxu0 0.0
    %2596 = vmatpush2.msra.mxu0 0.0
    %2597 = vmatprep.subr.mxu0 0.0
    %2598 = vmatpush2.msra.mxu0 0.0
    %2599 = vmatprep.subr.mxu0 0.0
    %2600 = vmatpush2.msra.mxu0 0.0
    %2601 = vmatprep.subr.mxu0 0.0
    %2602 = vmatpush2.msra.mxu0 0.0
    %2603 = vmatprep.subr.mxu0 0.0
    %2604 = vmatpush2.msra.mxu0 0.0
    %2605 = vmatprep.subr.mxu0 0.0
    %2606 = vmatpush2.msra.mxu0 0.0
    %2607 = vmatprep.subr.mxu0 0.0
    %2608 = vmatpush2.msra.mxu0 0.0
    %2609 = vmatprep.mubr.f32.mxu0 0.0
    %2610 = vmatmul.mubr.f32.gmra.mxu0 %v2540
    %v2611 = vpop.f32.mrf.mxu0
    %v2612 = vadd.f32 %v2538, %v2611
    %v2613 = vpop.f32.mrf.mxu0
    %2614 = vmatprep.mubr.f32.mxu0 0.0
    %2615 = vmatmul.mubr.f32.gmra.mxu0 %v2543
    %v2616 = vpop.f32.mrf.mxu0
    %v2617 = vadd.f32 %v2538, %v2616
    %v2618 = vpop.f32.mrf.mxu0
    %2619 = vdwg.mxu0
    %v2620 = vadd.f32 %v2431, %v2612
    %v2621 = vadd.f32 %v2432, %v2617
    %v2622 = vsel %vm261, %v2620, 0.0
    %2623 = vadd.xlane.f32.xlu0 %v2622
    %v2624 = vpop.xlane.xlu0 %2623
    %v2625 = vsel %vm261, %v2621, 0.0
    %2626 = vadd.xlane.f32.xlu0 %v2625
    %v2627 = vpop.xlane.xlu0 %2626
    %v2628 = vmul.f32 %v2624, %v1201
    %v2629 = vmul.f32 %v2627, %v1201
    %v2630 = vsub.f32 %v2620, %v2628
    %v2631 = vsub.f32 %v2621, %v2629
    %v2632 = vmul.f32 %v2630, %v2630
    %v2633 = vmul.f32 %v2631, %v2631
    %v2634 = vsel %vm261, %v2632, 0.0
    %2635 = vadd.xlane.f32.xlu0 %v2634
    %v2636 = vpop.xlane.xlu0 %2635
    %v2637 = vsel %vm261, %v2633, 0.0
    %2638 = vadd.xlane.f32.xlu0 %v2637
    %v2639 = vpop.xlane.xlu0 %2638
    %v2640 = vmul.f32 %v2636, %v1201
    %v2641 = vmul.f32 %v2639, %v1201
    %v2642 = vadd.f32 %v2640, 1e-05
    %v2643 = vadd.f32 %v2641, 1e-05
    %v2644 = vrsqrt.pop %v2642
    %v2645 = vrsqrt.pop %v2643
    %v2646 = vmul.f32 %v2630, %v2644
    %v2647 = vmul.f32 %v2631, %v2645
    %v2648 = vlaneseq
    %v2649 = vshrl.u32 %v2648, 7
    %v2650 = vsub.s32 4, %v2649
    %v2651 = vrot.slane %v1462, %v2650
    %v2652 = vmul.f32 %v2646, %v2651
    %v2653 = vmul.f32 %v2647, %v2651
    %v2654 = vlaneseq
    %v2655 = vshrl.u32 %v2654, 7
    %v2656 = vsub.s32 5, %v2655
    %v2657 = vrot.slane %v1462, %v2656
    %v2658 = vadd.f32 %v2652, %v2657
    %v2659 = vadd.f32 %v2653, %v2657
    %v2660 = vld [vmem:[%s85] sm:$0xf]
    %v2661 = vsel %vm261, %v2658, 0.0
    %2662 = vadd.xlane.f32.xlu0 %v2661
    %v2663 = vpop.xlane.xlu0 %2662
    %v2664 = vsel %vm261, %v2659, 0.0
    %2665 = vadd.xlane.f32.xlu0 %v2664
    %v2666 = vpop.xlane.xlu0 %2665
    %v2667 = vmul.f32 %v2663, %v1201
    %v2668 = vmul.f32 %v2666, %v1201
    %v2669 = vsub.f32 %v2658, %v2667
    %v2670 = vsub.f32 %v2659, %v2668
    %v2671 = vmul.f32 %v2669, %v2669
    %v2672 = vmul.f32 %v2670, %v2670
    %v2673 = vsel %vm261, %v2671, 0.0
    %2674 = vadd.xlane.f32.xlu0 %v2673
    %v2675 = vpop.xlane.xlu0 %2674
    %v2676 = vsel %vm261, %v2672, 0.0
    %2677 = vadd.xlane.f32.xlu0 %v2676
    %v2678 = vpop.xlane.xlu0 %2677
    %v2679 = vmul.f32 %v2675, %v1201
    %v2680 = vmul.f32 %v2678, %v1201
    %v2681 = vadd.f32 %v2679, 1e-05
    %v2682 = vadd.f32 %v2680, 1e-05
    %v2683 = vrsqrt.pop %v2681
    %v2684 = vrsqrt.pop %v2682
    %v2685 = vmul.f32 %v2669, %v2683
    %v2686 = vmul.f32 %v2670, %v2684
    %v2687 = vlaneseq
    %v2688 = vshrl.u32 %v2687, 7
    %v2689 = vsub.s32 0, %v2688
    %v2690 = vrot.slane %v2660, %v2689
    %v2691 = vmul.f32 %v2685, %v2690
    %v2692 = vmul.f32 %v2686, %v2690
    %v2693 = vlaneseq
    %v2694 = vshrl.u32 %v2693, 7
    %v2695 = vsub.s32 1, %v2694
    %v2696 = vrot.slane %v2660, %v2695
    %v2697 = vadd.f32 %v2691, %v2696
    %v2698 = vadd.f32 %v2692, %v2696
    %v2699 = vld [vmem:[%s15] sm:$0xff]
    %v2700 = vld [vmem:[%s15 + $0x8] sm:$0x3]
    %v2701 = vld [vmem:[%s29] sm:$0xff]
    %v2702 = vld [vmem:[%s29 + $0x8] sm:$0xff]
    %v2703 = vld [vmem:[%s29 + $0x10] sm:$0xff]
    %v2704 = vld [vmem:[%s29 + $0x18] sm:$0xff]
    %v2705 = vld [vmem:[%s13] sm:$0x1]
    %v2707 = vlaneseq
    %v2708 = vshrl.u32 %v2707, 7
    %v2709 = vsub.s32 0, %v2708
    %v2710 = vrot.slane %v2705, %v2709
    %v2713 = vsel %vm261, %v181, 0
    %v2716 = vsel %vm261, %v182, 0
    %2718 = vmatprep.subr.mxu0 0.0
    %2719 = vmatpush1.msra.mxu0 0.0
    %2720 = vmatprep.subr.mxu0 0.0
    %2721 = vmatpush1.msra.mxu0 0.0
    %2722 = vmatprep.subr.mxu0 0.0
    %2723 = vmatpush1.msra.mxu0 0.0
    %2724 = vmatprep.subr.mxu0 0.0
    %2725 = vmatpush1.msra.mxu0 0.0
    %2726 = vmatprep.subr.mxu0 0.0
    %2727 = vmatpush1.msra.mxu0 0.0
    %2728 = vmatprep.subr.mxu0 0.0
    %2729 = vmatpush1.msra.mxu0 0.0
    %2730 = vmatprep.subr.mxu0 0.0
    %2731 = vmatpush1.msra.mxu0 0.0
    %2732 = vmatprep.subr.mxu0 0.0
    %2733 = vmatpush1.msra.mxu0 0.0
    %2734 = vmatprep.subr.mxu0 0.0
    %2735 = vmatpush1.msra.mxu0 0.0
    %2736 = vmatprep.subr.mxu0 0.0
    %2737 = vmatpush1.msra.mxu0 0.0
    %2738 = vmatprep.subr.mxu0 0.0
    %2739 = vmatpush1.msra.mxu0 0.0
    %2740 = vmatprep.subr.mxu0 0.0
    %2741 = vmatpush1.msra.mxu0 0.0
    %2742 = vmatprep.subr.mxu0 0.0
    %2743 = vmatpush1.msra.mxu0 %v2704
    %2744 = vmatprep.subr.mxu0 0.0
    %2745 = vmatpush1.msra.mxu0 %v2703
    %2746 = vmatprep.subr.mxu0 0.0
    %2747 = vmatpush1.msra.mxu0 %v2702
    %2748 = vmatprep.subr.mxu0 0.0
    %2749 = vmatpush1.msra.mxu0 %v2701
    %2750 = vmatprep.subr.mxu0 0.0
    %2751 = vmatpush2.msra.mxu0 0.0
    %2752 = vmatprep.subr.mxu0 0.0
    %2753 = vmatpush2.msra.mxu0 0.0
    %2754 = vmatprep.subr.mxu0 0.0
    %2755 = vmatpush2.msra.mxu0 0.0
    %2756 = vmatprep.subr.mxu0 0.0
    %2757 = vmatpush2.msra.mxu0 0.0
    %2758 = vmatprep.subr.mxu0 0.0
    %2759 = vmatpush2.msra.mxu0 0.0
    %2760 = vmatprep.subr.mxu0 0.0
    %2761 = vmatpush2.msra.mxu0 0.0
    %2762 = vmatprep.subr.mxu0 0.0
    %2763 = vmatpush2.msra.mxu0 0.0
    %2764 = vmatprep.subr.mxu0 0.0
    %2765 = vmatpush2.msra.mxu0 0.0
    %2766 = vmatprep.subr.mxu0 0.0
    %2767 = vmatpush2.msra.mxu0 0.0
    %2768 = vmatprep.subr.mxu0 0.0
    %2769 = vmatpush2.msra.mxu0 0.0
    %2770 = vmatprep.subr.mxu0 0.0
    %2771 = vmatpush2.msra.mxu0 0.0
    %2772 = vmatprep.subr.mxu0 0.0
    %2773 = vmatpush2.msra.mxu0 0.0
    %2774 = vmatprep.subr.mxu0 0.0
    %2775 = vmatpush2.msra.mxu0 0.0
    %2776 = vmatprep.subr.mxu0 0.0
    %2777 = vmatpush2.msra.mxu0 0.0
    %2778 = vmatprep.subr.mxu0 0.0
    %2779 = vmatpush2.msra.mxu0 0.0
    %2780 = vmatprep.subr.mxu0 0.0
    %2781 = vmatpush2.msra.mxu0 0.0
    %2782 = vmatprep.mubr.f32.mxu0 0.0
    %2783 = vmatmul.mubr.f32.gmra.mxu0 %v2713
    %v2784 = vpop.f32.mrf.mxu0
    %v2785 = vadd.f32 %v2710, %v2784
    %v2786 = vpop.f32.mrf.mxu0
    %2787 = vmatprep.mubr.f32.mxu0 0.0
    %2788 = vmatmul.mubr.f32.gmra.mxu0 %v2716
    %v2789 = vpop.f32.mrf.mxu0
    %v2790 = vadd.f32 %v2710, %v2789
    %v2791 = vpop.f32.mrf.mxu0
    %2792 = vdwg.mxu0
    %v2793 = vld [vmem:[%s25] sm:$0xff]
    %v2794 = vld [vmem:[%s25 + $0x8] sm:$0xff]
    %v2795 = vld [vmem:[%s25 + $0x10] sm:$0xff]
    %v2796 = vld [vmem:[%s25 + $0x18] sm:$0xff]
    %2798 = vrot.lane.b32.xlu0 %v2785, 96
    %v2799 = vpop.permute.xlu0 %2798
    %v2800 = vsel %vm350, %v2785, 0
    %v2802 = vsel %vm350, %v2799, 0
    %2804 = vmatprep.subr.mxu0 0.0
    %2805 = vmatpush1.xpose.msra.mxu0 0.0
    %2806 = vmatprep.subr.mxu0 0.0
    %2807 = vmatpush1.xpose.msra.mxu0 0.0
    %2808 = vmatprep.subr.mxu0 0.0
    %2809 = vmatpush1.xpose.msra.mxu0 0.0
    %2810 = vmatprep.subr.mxu0 0.0
    %2811 = vmatpush1.xpose.msra.mxu0 0.0
    %2812 = vmatprep.subr.mxu0 0.0
    %2813 = vmatpush1.xpose.msra.mxu0 0.0
    %2814 = vmatprep.subr.mxu0 0.0
    %2815 = vmatpush1.xpose.msra.mxu0 0.0
    %2816 = vmatprep.subr.mxu0 0.0
    %2817 = vmatpush1.xpose.msra.mxu0 0.0
    %2818 = vmatprep.subr.mxu0 0.0
    %2819 = vmatpush1.xpose.msra.mxu0 0.0
    %2820 = vmatprep.subr.mxu0 0.0
    %2821 = vmatpush1.xpose.msra.mxu0 0.0
    %2822 = vmatprep.subr.mxu0 0.0
    %2823 = vmatpush1.xpose.msra.mxu0 0.0
    %2824 = vmatprep.subr.mxu0 0.0
    %2825 = vmatpush1.xpose.msra.mxu0 0.0
    %2826 = vmatprep.subr.mxu0 0.0
    %2827 = vmatpush1.xpose.msra.mxu0 0.0
    %2828 = vmatprep.subr.mxu0 0.0
    %2829 = vmatpush1.xpose.msra.mxu0 0.0
    %2830 = vmatprep.subr.mxu0 0.0
    %2831 = vmatpush1.xpose.msra.mxu0 0.0
    %2832 = vmatprep.subr.mxu0 0.0
    %2833 = vmatpush1.xpose.msra.mxu0 0.0
    %2834 = vmatprep.subr.mxu0 0.0
    %2835 = vmatpush1.xpose.msra.mxu0 %v2802
    %2836 = vmatprep.subr.mxu0 0.0
    %2837 = vmatpush2.xpose.msra.mxu0 0.0
    %2838 = vmatprep.subr.mxu0 0.0
    %2839 = vmatpush2.xpose.msra.mxu0 0.0
    %2840 = vmatprep.subr.mxu0 0.0
    %2841 = vmatpush2.xpose.msra.mxu0 0.0
    %2842 = vmatprep.subr.mxu0 0.0
    %2843 = vmatpush2.xpose.msra.mxu0 0.0
    %2844 = vmatprep.subr.mxu0 0.0
    %2845 = vmatpush2.xpose.msra.mxu0 0.0
    %2846 = vmatprep.subr.mxu0 0.0
    %2847 = vmatpush2.xpose.msra.mxu0 0.0
    %2848 = vmatprep.subr.mxu0 0.0
    %2849 = vmatpush2.xpose.msra.mxu0 0.0
    %2850 = vmatprep.subr.mxu0 0.0
    %2851 = vmatpush2.xpose.msra.mxu0 0.0
    %2852 = vmatprep.subr.mxu0 0.0
    %2853 = vmatpush2.xpose.msra.mxu0 0.0
    %2854 = vmatprep.subr.mxu0 0.0
    %2855 = vmatpush2.xpose.msra.mxu0 0.0
    %2856 = vmatprep.subr.mxu0 0.0
    %2857 = vmatpush2.xpose.msra.mxu0 0.0
    %2858 = vmatprep.subr.mxu0 0.0
    %2859 = vmatpush2.xpose.msra.mxu0 0.0
    %2860 = vmatprep.subr.mxu0 0.0
    %2861 = vmatpush2.xpose.msra.mxu0 0.0
    %2862 = vmatprep.subr.mxu0 0.0
    %2863 = vmatpush2.xpose.msra.mxu0 0.0
    %2864 = vmatprep.subr.mxu0 0.0
    %2865 = vmatpush2.xpose.msra.mxu0 0.0
    %2866 = vmatprep.subr.mxu0 0.0
    %2867 = vmatpush2.xpose.msra.mxu0 0.0
    %2868 = vmatprep.mubr.f32.mxu0 0.0
    %2869 = vmatmul.mubr.f32.gmra.mxu0 %v2800
    %v2870 = vpop.f32.mrf.mxu0
    %v2871 = vadd.f32 0.0, %v2870
    %v2872 = vpop.f32.mrf.mxu0
    %2873 = vdwg.mxu0
    %2875 = vrot.lane.b32.xlu0 %v2790, 96
    %v2876 = vpop.permute.xlu0 %2875
    %v2877 = vsel %vm350, %v2790, 0
    %v2879 = vsel %vm350, %v2876, 0
    %2881 = vmatprep.subr.mxu0 0.0
    %2882 = vmatpush1.xpose.msra.mxu0 0.0
    %2883 = vmatprep.subr.mxu0 0.0
    %2884 = vmatpush1.xpose.msra.mxu0 0.0
    %2885 = vmatprep.subr.mxu0 0.0
    %2886 = vmatpush1.xpose.msra.mxu0 0.0
    %2887 = vmatprep.subr.mxu0 0.0
    %2888 = vmatpush1.xpose.msra.mxu0 0.0
    %2889 = vmatprep.subr.mxu0 0.0
    %2890 = vmatpush1.xpose.msra.mxu0 0.0
    %2891 = vmatprep.subr.mxu0 0.0
    %2892 = vmatpush1.xpose.msra.mxu0 0.0
    %2893 = vmatprep.subr.mxu0 0.0
    %2894 = vmatpush1.xpose.msra.mxu0 0.0
    %2895 = vmatprep.subr.mxu0 0.0
    %2896 = vmatpush1.xpose.msra.mxu0 0.0
    %2897 = vmatprep.subr.mxu0 0.0
    %2898 = vmatpush1.xpose.msra.mxu0 0.0
    %2899 = vmatprep.subr.mxu0 0.0
    %2900 = vmatpush1.xpose.msra.mxu0 0.0
    %2901 = vmatprep.subr.mxu0 0.0
    %2902 = vmatpush1.xpose.msra.mxu0 0.0
    %2903 = vmatprep.subr.mxu0 0.0
    %2904 = vmatpush1.xpose.msra.mxu0 0.0
    %2905 = vmatprep.subr.mxu0 0.0
    %2906 = vmatpush1.xpose.msra.mxu0 0.0
    %2907 = vmatprep.subr.mxu0 0.0
    %2908 = vmatpush1.xpose.msra.mxu0 0.0
    %2909 = vmatprep.subr.mxu0 0.0
    %2910 = vmatpush1.xpose.msra.mxu0 0.0
    %2911 = vmatprep.subr.mxu0 0.0
    %2912 = vmatpush1.xpose.msra.mxu0 %v2879
    %2913 = vmatprep.subr.mxu0 0.0
    %2914 = vmatpush2.xpose.msra.mxu0 0.0
    %2915 = vmatprep.subr.mxu0 0.0
    %2916 = vmatpush2.xpose.msra.mxu0 0.0
    %2917 = vmatprep.subr.mxu0 0.0
    %2918 = vmatpush2.xpose.msra.mxu0 0.0
    %2919 = vmatprep.subr.mxu0 0.0
    %2920 = vmatpush2.xpose.msra.mxu0 0.0
    %2921 = vmatprep.subr.mxu0 0.0
    %2922 = vmatpush2.xpose.msra.mxu0 0.0
    %2923 = vmatprep.subr.mxu0 0.0
    %2924 = vmatpush2.xpose.msra.mxu0 0.0
    %2925 = vmatprep.subr.mxu0 0.0
    %2926 = vmatpush2.xpose.msra.mxu0 0.0
    %2927 = vmatprep.subr.mxu0 0.0
    %2928 = vmatpush2.xpose.msra.mxu0 0.0
    %2929 = vmatprep.subr.mxu0 0.0
    %2930 = vmatpush2.xpose.msra.mxu0 0.0
    %2931 = vmatprep.subr.mxu0 0.0
    %2932 = vmatpush2.xpose.msra.mxu0 0.0
    %2933 = vmatprep.subr.mxu0 0.0
    %2934 = vmatpush2.xpose.msra.mxu0 0.0
    %2935 = vmatprep.subr.mxu0 0.0
    %2936 = vmatpush2.xpose.msra.mxu0 0.0
    %2937 = vmatprep.subr.mxu0 0.0
    %2938 = vmatpush2.xpose.msra.mxu0 0.0
    %2939 = vmatprep.subr.mxu0 0.0
    %2940 = vmatpush2.xpose.msra.mxu0 0.0
    %2941 = vmatprep.subr.mxu0 0.0
    %2942 = vmatpush2.xpose.msra.mxu0 0.0
    %2943 = vmatprep.subr.mxu0 0.0
    %2944 = vmatpush2.xpose.msra.mxu0 0.0
    %2945 = vmatprep.mubr.f32.mxu0 0.0
    %2946 = vmatmul.mubr.f32.gmra.mxu0 %v2877
    %v2947 = vpop.f32.mrf.mxu0
    %v2948 = vadd.f32 0.0, %v2947
    %v2949 = vpop.f32.mrf.mxu0
    %2950 = vdwg.mxu0
    %v2951 = vmul.f32 %v2871, 0.25
    %v2952 = vmul.f32 %v2948, 0.25
    %v2953 = vadd.f32 %v2951, %v247
    %v2954 = vadd.f32 %v2952, %v248
    %v2955 = vsel %vm516, %v2953, -inf
    %2956 = vmax.xlane.f32.xlu0 %v2955
    %v2957 = vpop.xlane.xlu0 %2956
    %v2958 = vsel %vm516, %v2954, -inf
    %2959 = vmax.xlane.f32.xlu0 %v2958
    %v2960 = vpop.xlane.xlu0 %2959
    %v2961 = vsub.f32 %v2953, %v2957
    %v2962 = vsub.f32 %v2954, %v2960
    %v2963 = vmul.f32 %v2961, 1.442695
    %v2964 = vpow.pop %v2963
    %v2965 = vmul.f32 %v2962, 1.442695
    %v2966 = vpow.pop %v2965
    %v2967 = vsel %vm516, %v2964, 0.0
    %2968 = vadd.xlane.f32.xlu0 %v2967
    %v2969 = vpop.xlane.xlu0 %2968
    %v2970 = vsel %vm516, %v2966, 0.0
    %2971 = vadd.xlane.f32.xlu0 %v2970
    %v2972 = vpop.xlane.xlu0 %2971
    %v2973 = vrcp.pop %v2969
    %v2974 = vrcp.pop %v2972
    %v2975 = vmul.f32 %v2964, %v2973
    %v2976 = vmul.f32 %v2966, %v2974
    %2977 = vrot.lane.b32.xlu0 %v2785, 64
    %v2978 = vpop.permute.xlu0 %2977
    %v2981 = vsel %vm516, %v2975, 0
    %2983 = vmatprep.subr.mxu0 0.0
    %2984 = vmatpush1.msra.mxu0 0.0
    %2985 = vmatprep.subr.mxu0 0.0
    %2986 = vmatpush1.msra.mxu0 0.0
    %2987 = vmatprep.subr.mxu0 0.0
    %2988 = vmatpush1.msra.mxu0 0.0
    %2989 = vmatprep.subr.mxu0 0.0
    %2990 = vmatpush1.msra.mxu0 0.0
    %2991 = vmatprep.subr.mxu0 0.0
    %2992 = vmatpush1.msra.mxu0 0.0
    %2993 = vmatprep.subr.mxu0 0.0
    %2994 = vmatpush1.msra.mxu0 0.0
    %2995 = vmatprep.subr.mxu0 0.0
    %2996 = vmatpush1.msra.mxu0 0.0
    %2997 = vmatprep.subr.mxu0 0.0
    %2998 = vmatpush1.msra.mxu0 0.0
    %2999 = vmatprep.subr.mxu0 0.0
    %3000 = vmatpush1.msra.mxu0 0.0
    %3001 = vmatprep.subr.mxu0 0.0
    %3002 = vmatpush1.msra.mxu0 0.0
    %3003 = vmatprep.subr.mxu0 0.0
    %3004 = vmatpush1.msra.mxu0 0.0
    %3005 = vmatprep.subr.mxu0 0.0
    %3006 = vmatpush1.msra.mxu0 0.0
    %3007 = vmatprep.subr.mxu0 0.0
    %3008 = vmatpush1.msra.mxu0 0.0
    %3009 = vmatprep.subr.mxu0 0.0
    %3010 = vmatpush1.msra.mxu0 0.0
    %3011 = vmatprep.subr.mxu0 0.0
    %3012 = vmatpush1.msra.mxu0 0.0
    %3013 = vmatprep.subr.mxu0 0.0
    %3014 = vmatpush1.msra.mxu0 %v2978
    %3015 = vmatprep.subr.mxu0 0.0
    %3016 = vmatpush2.msra.mxu0 0.0
    %3017 = vmatprep.subr.mxu0 0.0
    %3018 = vmatpush2.msra.mxu0 0.0
    %3019 = vmatprep.subr.mxu0 0.0
    %3020 = vmatpush2.msra.mxu0 0.0
    %3021 = vmatprep.subr.mxu0 0.0
    %3022 = vmatpush2.msra.mxu0 0.0
    %3023 = vmatprep.subr.mxu0 0.0
    %3024 = vmatpush2.msra.mxu0 0.0
    %3025 = vmatprep.subr.mxu0 0.0
    %3026 = vmatpush2.msra.mxu0 0.0
    %3027 = vmatprep.subr.mxu0 0.0
    %3028 = vmatpush2.msra.mxu0 0.0
    %3029 = vmatprep.subr.mxu0 0.0
    %3030 = vmatpush2.msra.mxu0 0.0
    %3031 = vmatprep.subr.mxu0 0.0
    %3032 = vmatpush2.msra.mxu0 0.0
    %3033 = vmatprep.subr.mxu0 0.0
    %3034 = vmatpush2.msra.mxu0 0.0
    %3035 = vmatprep.subr.mxu0 0.0
    %3036 = vmatpush2.msra.mxu0 0.0
    %3037 = vmatprep.subr.mxu0 0.0
    %3038 = vmatpush2.msra.mxu0 0.0
    %3039 = vmatprep.subr.mxu0 0.0
    %3040 = vmatpush2.msra.mxu0 0.0
    %3041 = vmatprep.subr.mxu0 0.0
    %3042 = vmatpush2.msra.mxu0 0.0
    %3043 = vmatprep.subr.mxu0 0.0
    %3044 = vmatpush2.msra.mxu0 0.0
    %3045 = vmatprep.subr.mxu0 0.0
    %3046 = vmatpush2.msra.mxu0 0.0
    %3047 = vmatprep.mubr.f32.mxu0 0.0
    %3048 = vmatmul.mubr.f32.gmra.mxu0 %v2981
    %v3049 = vpop.f32.mrf.mxu0
    %v3050 = vadd.f32 0.0, %v3049
    %v3051 = vpop.f32.mrf.mxu0
    %3052 = vdwg.mxu0
    %3053 = vrot.lane.b32.xlu0 %v2790, 64
    %v3054 = vpop.permute.xlu0 %3053
    %v3057 = vsel %vm516, %v2976, 0
    %3059 = vmatprep.subr.mxu0 0.0
    %3060 = vmatpush1.msra.mxu0 0.0
    %3061 = vmatprep.subr.mxu0 0.0
    %3062 = vmatpush1.msra.mxu0 0.0
    %3063 = vmatprep.subr.mxu0 0.0
    %3064 = vmatpush1.msra.mxu0 0.0
    %3065 = vmatprep.subr.mxu0 0.0
    %3066 = vmatpush1.msra.mxu0 0.0
    %3067 = vmatprep.subr.mxu0 0.0
    %3068 = vmatpush1.msra.mxu0 0.0
    %3069 = vmatprep.subr.mxu0 0.0
    %3070 = vmatpush1.msra.mxu0 0.0
    %3071 = vmatprep.subr.mxu0 0.0
    %3072 = vmatpush1.msra.mxu0 0.0
    %3073 = vmatprep.subr.mxu0 0.0
    %3074 = vmatpush1.msra.mxu0 0.0
    %3075 = vmatprep.subr.mxu0 0.0
    %3076 = vmatpush1.msra.mxu0 0.0
    %3077 = vmatprep.subr.mxu0 0.0
    %3078 = vmatpush1.msra.mxu0 0.0
    %3079 = vmatprep.subr.mxu0 0.0
    %3080 = vmatpush1.msra.mxu0 0.0
    %3081 = vmatprep.subr.mxu0 0.0
    %3082 = vmatpush1.msra.mxu0 0.0
    %3083 = vmatprep.subr.mxu0 0.0
    %3084 = vmatpush1.msra.mxu0 0.0
    %3085 = vmatprep.subr.mxu0 0.0
    %3086 = vmatpush1.msra.mxu0 0.0
    %3087 = vmatprep.subr.mxu0 0.0
    %3088 = vmatpush1.msra.mxu0 0.0
    %3089 = vmatprep.subr.mxu0 0.0
    %3090 = vmatpush1.msra.mxu0 %v3054
    %3091 = vmatprep.subr.mxu0 0.0
    %3092 = vmatpush2.msra.mxu0 0.0
    %3093 = vmatprep.subr.mxu0 0.0
    %3094 = vmatpush2.msra.mxu0 0.0
    %3095 = vmatprep.subr.mxu0 0.0
    %3096 = vmatpush2.msra.mxu0 0.0
    %3097 = vmatprep.subr.mxu0 0.0
    %3098 = vmatpush2.msra.mxu0 0.0
    %3099 = vmatprep.subr.mxu0 0.0
    %3100 = vmatpush2.msra.mxu0 0.0
    %3101 = vmatprep.subr.mxu0 0.0
    %3102 = vmatpush2.msra.mxu0 0.0
    %3103 = vmatprep.subr.mxu0 0.0
    %3104 = vmatpush2.msra.mxu0 0.0
    %3105 = vmatprep.subr.mxu0 0.0
    %3106 = vmatpush2.msra.mxu0 0.0
    %3107 = vmatprep.subr.mxu0 0.0
    %3108 = vmatpush2.msra.mxu0 0.0
    %3109 = vmatprep.subr.mxu0 0.0
    %3110 = vmatpush2.msra.mxu0 0.0
    %3111 = vmatprep.subr.mxu0 0.0
    %3112 = vmatpush2.msra.mxu0 0.0
    %3113 = vmatprep.subr.mxu0 0.0
    %3114 = vmatpush2.msra.mxu0 0.0
    %3115 = vmatprep.subr.mxu0 0.0
    %3116 = vmatpush2.msra.mxu0 0.0
    %3117 = vmatprep.subr.mxu0 0.0
    %3118 = vmatpush2.msra.mxu0 0.0
    %3119 = vmatprep.subr.mxu0 0.0
    %3120 = vmatpush2.msra.mxu0 0.0
    %3121 = vmatprep.subr.mxu0 0.0
    %3122 = vmatpush2.msra.mxu0 0.0
    %3123 = vmatprep.mubr.f32.mxu0 0.0
    %3124 = vmatmul.mubr.f32.gmra.mxu0 %v3057
    %v3125 = vpop.f32.mrf.mxu0
    %v3126 = vadd.f32 0.0, %v3125
    %v3127 = vpop.f32.mrf.mxu0
    %3128 = vdwg.mxu0
    %3129 = vrot.lane.b32.xlu0 %v2785, 112
    %v3130 = vpop.permute.xlu0 %3129
    %3131 = vrot.lane.b32.xlu0 %v2785, 80
    %v3132 = vpop.permute.xlu0 %3131
    %v3133 = vsel %vm350, %v3130, 0
    %v3135 = vsel %vm350, %v3132, 0
    %3137 = vmatprep.subr.mxu0 0.0
    %3138 = vmatpush1.xpose.msra.mxu0 0.0
    %3139 = vmatprep.subr.mxu0 0.0
    %3140 = vmatpush1.xpose.msra.mxu0 0.0
    %3141 = vmatprep.subr.mxu0 0.0
    %3142 = vmatpush1.xpose.msra.mxu0 0.0
    %3143 = vmatprep.subr.mxu0 0.0
    %3144 = vmatpush1.xpose.msra.mxu0 0.0
    %3145 = vmatprep.subr.mxu0 0.0
    %3146 = vmatpush1.xpose.msra.mxu0 0.0
    %3147 = vmatprep.subr.mxu0 0.0
    %3148 = vmatpush1.xpose.msra.mxu0 0.0
    %3149 = vmatprep.subr.mxu0 0.0
    %3150 = vmatpush1.xpose.msra.mxu0 0.0
    %3151 = vmatprep.subr.mxu0 0.0
    %3152 = vmatpush1.xpose.msra.mxu0 0.0
    %3153 = vmatprep.subr.mxu0 0.0
    %3154 = vmatpush1.xpose.msra.mxu0 0.0
    %3155 = vmatprep.subr.mxu0 0.0
    %3156 = vmatpush1.xpose.msra.mxu0 0.0
    %3157 = vmatprep.subr.mxu0 0.0
    %3158 = vmatpush1.xpose.msra.mxu0 0.0
    %3159 = vmatprep.subr.mxu0 0.0
    %3160 = vmatpush1.xpose.msra.mxu0 0.0
    %3161 = vmatprep.subr.mxu0 0.0
    %3162 = vmatpush1.xpose.msra.mxu0 0.0
    %3163 = vmatprep.subr.mxu0 0.0
    %3164 = vmatpush1.xpose.msra.mxu0 0.0
    %3165 = vmatprep.subr.mxu0 0.0
    %3166 = vmatpush1.xpose.msra.mxu0 0.0
    %3167 = vmatprep.subr.mxu0 0.0
    %3168 = vmatpush1.xpose.msra.mxu0 %v3135
    %3169 = vmatprep.subr.mxu0 0.0
    %3170 = vmatpush2.xpose.msra.mxu0 0.0
    %3171 = vmatprep.subr.mxu0 0.0
    %3172 = vmatpush2.xpose.msra.mxu0 0.0
    %3173 = vmatprep.subr.mxu0 0.0
    %3174 = vmatpush2.xpose.msra.mxu0 0.0
    %3175 = vmatprep.subr.mxu0 0.0
    %3176 = vmatpush2.xpose.msra.mxu0 0.0
    %3177 = vmatprep.subr.mxu0 0.0
    %3178 = vmatpush2.xpose.msra.mxu0 0.0
    %3179 = vmatprep.subr.mxu0 0.0
    %3180 = vmatpush2.xpose.msra.mxu0 0.0
    %3181 = vmatprep.subr.mxu0 0.0
    %3182 = vmatpush2.xpose.msra.mxu0 0.0
    %3183 = vmatprep.subr.mxu0 0.0
    %3184 = vmatpush2.xpose.msra.mxu0 0.0
    %3185 = vmatprep.subr.mxu0 0.0
    %3186 = vmatpush2.xpose.msra.mxu0 0.0
    %3187 = vmatprep.subr.mxu0 0.0
    %3188 = vmatpush2.xpose.msra.mxu0 0.0
    %3189 = vmatprep.subr.mxu0 0.0
    %3190 = vmatpush2.xpose.msra.mxu0 0.0
    %3191 = vmatprep.subr.mxu0 0.0
    %3192 = vmatpush2.xpose.msra.mxu0 0.0
    %3193 = vmatprep.subr.mxu0 0.0
    %3194 = vmatpush2.xpose.msra.mxu0 0.0
    %3195 = vmatprep.subr.mxu0 0.0
    %3196 = vmatpush2.xpose.msra.mxu0 0.0
    %3197 = vmatprep.subr.mxu0 0.0
    %3198 = vmatpush2.xpose.msra.mxu0 0.0
    %3199 = vmatprep.subr.mxu0 0.0
    %3200 = vmatpush2.xpose.msra.mxu0 0.0
    %3201 = vmatprep.mubr.f32.mxu0 0.0
    %3202 = vmatmul.mubr.f32.gmra.mxu0 %v3133
    %v3203 = vpop.f32.mrf.mxu0
    %v3204 = vadd.f32 0.0, %v3203
    %v3205 = vpop.f32.mrf.mxu0
    %3206 = vdwg.mxu0
    %3207 = vrot.lane.b32.xlu0 %v2790, 112
    %v3208 = vpop.permute.xlu0 %3207
    %3209 = vrot.lane.b32.xlu0 %v2790, 80
    %v3210 = vpop.permute.xlu0 %3209
    %v3211 = vsel %vm350, %v3208, 0
    %v3213 = vsel %vm350, %v3210, 0
    %3215 = vmatprep.subr.mxu0 0.0
    %3216 = vmatpush1.xpose.msra.mxu0 0.0
    %3217 = vmatprep.subr.mxu0 0.0
    %3218 = vmatpush1.xpose.msra.mxu0 0.0
    %3219 = vmatprep.subr.mxu0 0.0
    %3220 = vmatpush1.xpose.msra.mxu0 0.0
    %3221 = vmatprep.subr.mxu0 0.0
    %3222 = vmatpush1.xpose.msra.mxu0 0.0
    %3223 = vmatprep.subr.mxu0 0.0
    %3224 = vmatpush1.xpose.msra.mxu0 0.0
    %3225 = vmatprep.subr.mxu0 0.0
    %3226 = vmatpush1.xpose.msra.mxu0 0.0
    %3227 = vmatprep.subr.mxu0 0.0
    %3228 = vmatpush1.xpose.msra.mxu0 0.0
    %3229 = vmatprep.subr.mxu0 0.0
    %3230 = vmatpush1.xpose.msra.mxu0 0.0
    %3231 = vmatprep.subr.mxu0 0.0
    %3232 = vmatpush1.xpose.msra.mxu0 0.0
    %3233 = vmatprep.subr.mxu0 0.0
    %3234 = vmatpush1.xpose.msra.mxu0 0.0
    %3235 = vmatprep.subr.mxu0 0.0
    %3236 = vmatpush1.xpose.msra.mxu0 0.0
    %3237 = vmatprep.subr.mxu0 0.0
    %3238 = vmatpush1.xpose.msra.mxu0 0.0
    %3239 = vmatprep.subr.mxu0 0.0
    %3240 = vmatpush1.xpose.msra.mxu0 0.0
    %3241 = vmatprep.subr.mxu0 0.0
    %3242 = vmatpush1.xpose.msra.mxu0 0.0
    %3243 = vmatprep.subr.mxu0 0.0
    %3244 = vmatpush1.xpose.msra.mxu0 0.0
    %3245 = vmatprep.subr.mxu0 0.0
    %3246 = vmatpush1.xpose.msra.mxu0 %v3213
    %3247 = vmatprep.subr.mxu0 0.0
    %3248 = vmatpush2.xpose.msra.mxu0 0.0
    %3249 = vmatprep.subr.mxu0 0.0
    %3250 = vmatpush2.xpose.msra.mxu0 0.0
    %3251 = vmatprep.subr.mxu0 0.0
    %3252 = vmatpush2.xpose.msra.mxu0 0.0
    %3253 = vmatprep.subr.mxu0 0.0
    %3254 = vmatpush2.xpose.msra.mxu0 0.0
    %3255 = vmatprep.subr.mxu0 0.0
    %3256 = vmatpush2.xpose.msra.mxu0 0.0
    %3257 = vmatprep.subr.mxu0 0.0
    %3258 = vmatpush2.xpose.msra.mxu0 0.0
    %3259 = vmatprep.subr.mxu0 0.0
    %3260 = vmatpush2.xpose.msra.mxu0 0.0
    %3261 = vmatprep.subr.mxu0 0.0
    %3262 = vmatpush2.xpose.msra.mxu0 0.0
    %3263 = vmatprep.subr.mxu0 0.0
    %3264 = vmatpush2.xpose.msra.mxu0 0.0
    %3265 = vmatprep.subr.mxu0 0.0
    %3266 = vmatpush2.xpose.msra.mxu0 0.0
    %3267 = vmatprep.subr.mxu0 0.0
    %3268 = vmatpush2.xpose.msra.mxu0 0.0
    %3269 = vmatprep.subr.mxu0 0.0
    %3270 = vmatpush2.xpose.msra.mxu0 0.0
    %3271 = vmatprep.subr.mxu0 0.0
    %3272 = vmatpush2.xpose.msra.mxu0 0.0
    %3273 = vmatprep.subr.mxu0 0.0
    %3274 = vmatpush2.xpose.msra.mxu0 0.0
    %3275 = vmatprep.subr.mxu0 0.0
    %3276 = vmatpush2.xpose.msra.mxu0 0.0
    %3277 = vmatprep.subr.mxu0 0.0
    %3278 = vmatpush2.xpose.msra.mxu0 0.0
    %3279 = vmatprep.mubr.f32.mxu0 0.0
    %3280 = vmatmul.mubr.f32.gmra.mxu0 %v3211
    %v3281 = vpop.f32.mrf.mxu0
    %v3282 = vadd.f32 0.0, %v3281
    %v3283 = vpop.f32.mrf.mxu0
    %3284 = vdwg.mxu0
    %v3285 = vmul.f32 %v3204, 0.25
    %v3286 = vmul.f32 %v3282, 0.25
    %v3287 = vadd.f32 %v3285, %v247
    %v3288 = vadd.f32 %v3286, %v248
    %v3289 = vsel %vm516, %v3287, -inf
    %3290 = vmax.xlane.f32.xlu0 %v3289
    %v3291 = vpop.xlane.xlu0 %3290
    %v3292 = vsel %vm516, %v3288, -inf
    %3293 = vmax.xlane.f32.xlu0 %v3292
    %v3294 = vpop.xlane.xlu0 %3293
    %v3295 = vsub.f32 %v3287, %v3291
    %v3296 = vsub.f32 %v3288, %v3294
    %v3297 = vmul.f32 %v3295, 1.442695
    %v3298 = vpow.pop %v3297
    %v3299 = vmul.f32 %v3296, 1.442695
    %v3300 = vpow.pop %v3299
    %v3301 = vsel %vm516, %v3298, 0.0
    %3302 = vadd.xlane.f32.xlu0 %v3301
    %v3303 = vpop.xlane.xlu0 %3302
    %v3304 = vsel %vm516, %v3300, 0.0
    %3305 = vadd.xlane.f32.xlu0 %v3304
    %v3306 = vpop.xlane.xlu0 %3305
    %v3307 = vrcp.pop %v3303
    %v3308 = vrcp.pop %v3306
    %v3309 = vmul.f32 %v3298, %v3307
    %v3310 = vmul.f32 %v3300, %v3308
    %3311 = vrot.lane.b32.xlu0 %v2785, 48
    %v3312 = vpop.permute.xlu0 %3311
    %v3315 = vsel %vm516, %v3309, 0
    %3317 = vmatprep.subr.mxu0 0.0
    %3318 = vmatpush1.msra.mxu0 0.0
    %3319 = vmatprep.subr.mxu0 0.0
    %3320 = vmatpush1.msra.mxu0 0.0
    %3321 = vmatprep.subr.mxu0 0.0
    %3322 = vmatpush1.msra.mxu0 0.0
    %3323 = vmatprep.subr.mxu0 0.0
    %3324 = vmatpush1.msra.mxu0 0.0
    %3325 = vmatprep.subr.mxu0 0.0
    %3326 = vmatpush1.msra.mxu0 0.0
    %3327 = vmatprep.subr.mxu0 0.0
    %3328 = vmatpush1.msra.mxu0 0.0
    %3329 = vmatprep.subr.mxu0 0.0
    %3330 = vmatpush1.msra.mxu0 0.0
    %3331 = vmatprep.subr.mxu0 0.0
    %3332 = vmatpush1.msra.mxu0 0.0
    %3333 = vmatprep.subr.mxu0 0.0
    %3334 = vmatpush1.msra.mxu0 0.0
    %3335 = vmatprep.subr.mxu0 0.0
    %3336 = vmatpush1.msra.mxu0 0.0
    %3337 = vmatprep.subr.mxu0 0.0
    %3338 = vmatpush1.msra.mxu0 0.0
    %3339 = vmatprep.subr.mxu0 0.0
    %3340 = vmatpush1.msra.mxu0 0.0
    %3341 = vmatprep.subr.mxu0 0.0
    %3342 = vmatpush1.msra.mxu0 0.0
    %3343 = vmatprep.subr.mxu0 0.0
    %3344 = vmatpush1.msra.mxu0 0.0
    %3345 = vmatprep.subr.mxu0 0.0
    %3346 = vmatpush1.msra.mxu0 0.0
    %3347 = vmatprep.subr.mxu0 0.0
    %3348 = vmatpush1.msra.mxu0 %v3312
    %3349 = vmatprep.subr.mxu0 0.0
    %3350 = vmatpush2.msra.mxu0 0.0
    %3351 = vmatprep.subr.mxu0 0.0
    %3352 = vmatpush2.msra.mxu0 0.0
    %3353 = vmatprep.subr.mxu0 0.0
    %3354 = vmatpush2.msra.mxu0 0.0
    %3355 = vmatprep.subr.mxu0 0.0
    %3356 = vmatpush2.msra.mxu0 0.0
    %3357 = vmatprep.subr.mxu0 0.0
    %3358 = vmatpush2.msra.mxu0 0.0
    %3359 = vmatprep.subr.mxu0 0.0
    %3360 = vmatpush2.msra.mxu0 0.0
    %3361 = vmatprep.subr.mxu0 0.0
    %3362 = vmatpush2.msra.mxu0 0.0
    %3363 = vmatprep.subr.mxu0 0.0
    %3364 = vmatpush2.msra.mxu0 0.0
    %3365 = vmatprep.subr.mxu0 0.0
    %3366 = vmatpush2.msra.mxu0 0.0
    %3367 = vmatprep.subr.mxu0 0.0
    %3368 = vmatpush2.msra.mxu0 0.0
    %3369 = vmatprep.subr.mxu0 0.0
    %3370 = vmatpush2.msra.mxu0 0.0
    %3371 = vmatprep.subr.mxu0 0.0
    %3372 = vmatpush2.msra.mxu0 0.0
    %3373 = vmatprep.subr.mxu0 0.0
    %3374 = vmatpush2.msra.mxu0 0.0
    %3375 = vmatprep.subr.mxu0 0.0
    %3376 = vmatpush2.msra.mxu0 0.0
    %3377 = vmatprep.subr.mxu0 0.0
    %3378 = vmatpush2.msra.mxu0 0.0
    %3379 = vmatprep.subr.mxu0 0.0
    %3380 = vmatpush2.msra.mxu0 0.0
    %3381 = vmatprep.mubr.f32.mxu0 0.0
    %3382 = vmatmul.mubr.f32.gmra.mxu0 %v3315
    %v3383 = vpop.f32.mrf.mxu0
    %v3384 = vadd.f32 0.0, %v3383
    %v3385 = vpop.f32.mrf.mxu0
    %3386 = vdwg.mxu0
    %3387 = vrot.lane.b32.xlu0 %v2790, 48
    %v3388 = vpop.permute.xlu0 %3387
    %v3391 = vsel %vm516, %v3310, 0
    %3393 = vmatprep.subr.mxu0 0.0
    %3394 = vmatpush1.msra.mxu0 0.0
    %3395 = vmatprep.subr.mxu0 0.0
    %3396 = vmatpush1.msra.mxu0 0.0
    %3397 = vmatprep.subr.mxu0 0.0
    %3398 = vmatpush1.msra.mxu0 0.0
    %3399 = vmatprep.subr.mxu0 0.0
    %3400 = vmatpush1.msra.mxu0 0.0
    %3401 = vmatprep.subr.mxu0 0.0
    %3402 = vmatpush1.msra.mxu0 0.0
    %3403 = vmatprep.subr.mxu0 0.0
    %3404 = vmatpush1.msra.mxu0 0.0
    %3405 = vmatprep.subr.mxu0 0.0
    %3406 = vmatpush1.msra.mxu0 0.0
    %3407 = vmatprep.subr.mxu0 0.0
    %3408 = vmatpush1.msra.mxu0 0.0
    %3409 = vmatprep.subr.mxu0 0.0
    %3410 = vmatpush1.msra.mxu0 0.0
    %3411 = vmatprep.subr.mxu0 0.0
    %3412 = vmatpush1.msra.mxu0 0.0
    %3413 = vmatprep.subr.mxu0 0.0
    %3414 = vmatpush1.msra.mxu0 0.0
    %3415 = vmatprep.subr.mxu0 0.0
    %3416 = vmatpush1.msra.mxu0 0.0
    %3417 = vmatprep.subr.mxu0 0.0
    %3418 = vmatpush1.msra.mxu0 0.0
    %3419 = vmatprep.subr.mxu0 0.0
    %3420 = vmatpush1.msra.mxu0 0.0
    %3421 = vmatprep.subr.mxu0 0.0
    %3422 = vmatpush1.msra.mxu0 0.0
    %3423 = vmatprep.subr.mxu0 0.0
    %3424 = vmatpush1.msra.mxu0 %v3388
    %3425 = vmatprep.subr.mxu0 0.0
    %3426 = vmatpush2.msra.mxu0 0.0
    %3427 = vmatprep.subr.mxu0 0.0
    %3428 = vmatpush2.msra.mxu0 0.0
    %3429 = vmatprep.subr.mxu0 0.0
    %3430 = vmatpush2.msra.mxu0 0.0
    %3431 = vmatprep.subr.mxu0 0.0
    %3432 = vmatpush2.msra.mxu0 0.0
    %3433 = vmatprep.subr.mxu0 0.0
    %3434 = vmatpush2.msra.mxu0 0.0
    %3435 = vmatprep.subr.mxu0 0.0
    %3436 = vmatpush2.msra.mxu0 0.0
    %3437 = vmatprep.subr.mxu0 0.0
    %3438 = vmatpush2.msra.mxu0 0.0
    %3439 = vmatprep.subr.mxu0 0.0
    %3440 = vmatpush2.msra.mxu0 0.0
    %3441 = vmatprep.subr.mxu0 0.0
    %3442 = vmatpush2.msra.mxu0 0.0
    %3443 = vmatprep.subr.mxu0 0.0
    %3444 = vmatpush2.msra.mxu0 0.0
    %3445 = vmatprep.subr.mxu0 0.0
    %3446 = vmatpush2.msra.mxu0 0.0
    %3447 = vmatprep.subr.mxu0 0.0
    %3448 = vmatpush2.msra.mxu0 0.0
    %3449 = vmatprep.subr.mxu0 0.0
    %3450 = vmatpush2.msra.mxu0 0.0
    %3451 = vmatprep.subr.mxu0 0.0
    %3452 = vmatpush2.msra.mxu0 0.0
    %3453 = vmatprep.subr.mxu0 0.0
    %3454 = vmatpush2.msra.mxu0 0.0
    %3455 = vmatprep.subr.mxu0 0.0
    %3456 = vmatpush2.msra.mxu0 0.0
    %3457 = vmatprep.mubr.f32.mxu0 0.0
    %3458 = vmatmul.mubr.f32.gmra.mxu0 %v3391
    %v3459 = vpop.f32.mrf.mxu0
    %v3460 = vadd.f32 0.0, %v3459
    %v3461 = vpop.f32.mrf.mxu0
    %3462 = vdwg.mxu0
    %v3464 = vsel %vm350, %v3384, 0
    %v3467 = vsel %vm350, %v3460, 0
    %3469 = vmatprep.subr.mxu0 0.0
    %3470 = vmatpush1.msra.mxu0 0.0
    %3471 = vmatprep.subr.mxu0 0.0
    %3472 = vmatpush1.msra.mxu0 0.0
    %3473 = vmatprep.subr.mxu0 0.0
    %3474 = vmatpush1.msra.mxu0 0.0
    %3475 = vmatprep.subr.mxu0 0.0
    %3476 = vmatpush1.msra.mxu0 0.0
    %3477 = vmatprep.subr.mxu0 0.0
    %3478 = vmatpush1.msra.mxu0 0.0
    %3479 = vmatprep.subr.mxu0 0.0
    %3480 = vmatpush1.msra.mxu0 0.0
    %3481 = vmatprep.subr.mxu0 0.0
    %3482 = vmatpush1.msra.mxu0 0.0
    %3483 = vmatprep.subr.mxu0 0.0
    %3484 = vmatpush1.msra.mxu0 0.0
    %3485 = vmatprep.subr.mxu0 0.0
    %3486 = vmatpush1.msra.mxu0 0.0
    %3487 = vmatprep.subr.mxu0 0.0
    %3488 = vmatpush1.msra.mxu0 0.0
    %3489 = vmatprep.subr.mxu0 0.0
    %3490 = vmatpush1.msra.mxu0 0.0
    %3491 = vmatprep.subr.mxu0 0.0
    %3492 = vmatpush1.msra.mxu0 0.0
    %3493 = vmatprep.subr.mxu0 0.0
    %3494 = vmatpush1.msra.mxu0 0.0
    %3495 = vmatprep.subr.mxu0 0.0
    %3496 = vmatpush1.msra.mxu0 0.0
    %3497 = vmatprep.subr.mxu0 0.0
    %3498 = vmatpush1.msra.mxu0 %v2796
    %3499 = vmatprep.subr.mxu0 0.0
    %3500 = vmatpush1.msra.mxu0 %v2795
    %3501 = vmatprep.subr.mxu0 0.0
    %3502 = vmatpush2.msra.mxu0 0.0
    %3503 = vmatprep.subr.mxu0 0.0
    %3504 = vmatpush2.msra.mxu0 0.0
    %3505 = vmatprep.subr.mxu0 0.0
    %3506 = vmatpush2.msra.mxu0 0.0
    %3507 = vmatprep.subr.mxu0 0.0
    %3508 = vmatpush2.msra.mxu0 0.0
    %3509 = vmatprep.subr.mxu0 0.0
    %3510 = vmatpush2.msra.mxu0 0.0
    %3511 = vmatprep.subr.mxu0 0.0
    %3512 = vmatpush2.msra.mxu0 0.0
    %3513 = vmatprep.subr.mxu0 0.0
    %3514 = vmatpush2.msra.mxu0 0.0
    %3515 = vmatprep.subr.mxu0 0.0
    %3516 = vmatpush2.msra.mxu0 0.0
    %3517 = vmatprep.subr.mxu0 0.0
    %3518 = vmatpush2.msra.mxu0 0.0
    %3519 = vmatprep.subr.mxu0 0.0
    %3520 = vmatpush2.msra.mxu0 0.0
    %3521 = vmatprep.subr.mxu0 0.0
    %3522 = vmatpush2.msra.mxu0 0.0
    %3523 = vmatprep.subr.mxu0 0.0
    %3524 = vmatpush2.msra.mxu0 0.0
    %3525 = vmatprep.subr.mxu0 0.0
    %3526 = vmatpush2.msra.mxu0 0.0
    %3527 = vmatprep.subr.mxu0 0.0
    %3528 = vmatpush2.msra.mxu0 0.0
    %3529 = vmatprep.subr.mxu0 0.0
    %3530 = vmatpush2.msra.mxu0 0.0
    %3531 = vmatprep.subr.mxu0 0.0
    %3532 = vmatpush2.msra.mxu0 0.0
    %3533 = vmatprep.mubr.f32.mxu0 0.0
    %3534 = vmatmul.mubr.f32.gmra.mxu0 %v3464
    %v3535 = vpop.f32.mrf.mxu0
    %v3536 = vadd.f32 0.0, %v3535
    %v3537 = vpop.f32.mrf.mxu0
    %3538 = vmatprep.mubr.f32.mxu0 0.0
    %3539 = vmatmul.mubr.f32.gmra.mxu0 %v3467
    %v3540 = vpop.f32.mrf.mxu0
    %v3541 = vadd.f32 0.0, %v3540
    %v3542 = vpop.f32.mrf.mxu0
    %3543 = vdwg.mxu0
    %v3545 = vsel %vm350, %v3050, 0
    %v3548 = vsel %vm350, %v3126, 0
    %3550 = vmatprep.subr.mxu0 0.0
    %3551 = vmatpush1.msra.mxu0 0.0
    %3552 = vmatprep.subr.mxu0 0.0
    %3553 = vmatpush1.msra.mxu0 0.0
    %3554 = vmatprep.subr.mxu0 0.0
    %3555 = vmatpush1.msra.mxu0 0.0
    %3556 = vmatprep.subr.mxu0 0.0
    %3557 = vmatpush1.msra.mxu0 0.0
    %3558 = vmatprep.subr.mxu0 0.0
    %3559 = vmatpush1.msra.mxu0 0.0
    %3560 = vmatprep.subr.mxu0 0.0
    %3561 = vmatpush1.msra.mxu0 0.0
    %3562 = vmatprep.subr.mxu0 0.0
    %3563 = vmatpush1.msra.mxu0 0.0
    %3564 = vmatprep.subr.mxu0 0.0
    %3565 = vmatpush1.msra.mxu0 0.0
    %3566 = vmatprep.subr.mxu0 0.0
    %3567 = vmatpush1.msra.mxu0 0.0
    %3568 = vmatprep.subr.mxu0 0.0
    %3569 = vmatpush1.msra.mxu0 0.0
    %3570 = vmatprep.subr.mxu0 0.0
    %3571 = vmatpush1.msra.mxu0 0.0
    %3572 = vmatprep.subr.mxu0 0.0
    %3573 = vmatpush1.msra.mxu0 0.0
    %3574 = vmatprep.subr.mxu0 0.0
    %3575 = vmatpush1.msra.mxu0 0.0
    %3576 = vmatprep.subr.mxu0 0.0
    %3577 = vmatpush1.msra.mxu0 0.0
    %3578 = vmatprep.subr.mxu0 0.0
    %3579 = vmatpush1.msra.mxu0 %v2794
    %3580 = vmatprep.subr.mxu0 0.0
    %3581 = vmatpush1.msra.mxu0 %v2793
    %3582 = vmatprep.subr.mxu0 0.0
    %3583 = vmatpush2.msra.mxu0 0.0
    %3584 = vmatprep.subr.mxu0 0.0
    %3585 = vmatpush2.msra.mxu0 0.0
    %3586 = vmatprep.subr.mxu0 0.0
    %3587 = vmatpush2.msra.mxu0 0.0
    %3588 = vmatprep.subr.mxu0 0.0
    %3589 = vmatpush2.msra.mxu0 0.0
    %3590 = vmatprep.subr.mxu0 0.0
    %3591 = vmatpush2.msra.mxu0 0.0
    %3592 = vmatprep.subr.mxu0 0.0
    %3593 = vmatpush2.msra.mxu0 0.0
    %3594 = vmatprep.subr.mxu0 0.0
    %3595 = vmatpush2.msra.mxu0 0.0
    %3596 = vmatprep.subr.mxu0 0.0
    %3597 = vmatpush2.msra.mxu0 0.0
    %3598 = vmatprep.subr.mxu0 0.0
    %3599 = vmatpush2.msra.mxu0 0.0
    %3600 = vmatprep.subr.mxu0 0.0
    %3601 = vmatpush2.msra.mxu0 0.0
    %3602 = vmatprep.subr.mxu0 0.0
    %3603 = vmatpush2.msra.mxu0 0.0
    %3604 = vmatprep.subr.mxu0 0.0
    %3605 = vmatpush2.msra.mxu0 0.0
    %3606 = vmatprep.subr.mxu0 0.0
    %3607 = vmatpush2.msra.mxu0 0.0
    %3608 = vmatprep.subr.mxu0 0.0
    %3609 = vmatpush2.msra.mxu0 0.0
    %3610 = vmatprep.subr.mxu0 0.0
    %3611 = vmatpush2.msra.mxu0 0.0
    %3612 = vmatprep.subr.mxu0 0.0
    %3613 = vmatpush2.msra.mxu0 0.0
    %3614 = vmatprep.mubr.f32.mxu0 0.0
    %3615 = vmatmul.mubr.f32.gmra.mxu0 %v3545
    %v3616 = vpop.f32.mrf.mxu0
    %v3617 = vadd.f32 %v3536, %v3616
    %v3618 = vpop.f32.mrf.mxu0
    %3619 = vmatprep.mubr.f32.mxu0 0.0
    %3620 = vmatmul.mubr.f32.gmra.mxu0 %v3548
    %v3621 = vpop.f32.mrf.mxu0
    %v3622 = vadd.f32 %v3541, %v3621
    %v3623 = vpop.f32.mrf.mxu0
    %3624 = vdwg.mxu0
    %v3625 = vlaneseq
    %v3626 = vshrl.u32 %v3625, 7
    %v3627 = vsub.s32 0, %v3626
    %v3628 = vrot.slane %v2699, %v3627
    %v3629 = vadd.f32 %v3617, %v3628
    %v3630 = vadd.f32 %v3622, %v3628
    %v3631 = vadd.f32 %v181, %v3629
    %v3632 = vadd.f32 %v182, %v3630
    %v3633 = vsel %vm261, %v3631, 0.0
    %3634 = vadd.xlane.f32.xlu0 %v3633
    %v3635 = vpop.xlane.xlu0 %3634
    %v3636 = vsel %vm261, %v3632, 0.0
    %3637 = vadd.xlane.f32.xlu0 %v3636
    %v3638 = vpop.xlane.xlu0 %3637
    %v3639 = vmul.f32 %v3635, %v1201
    %v3640 = vmul.f32 %v3638, %v1201
    %v3641 = vsub.f32 %v3631, %v3639
    %v3642 = vsub.f32 %v3632, %v3640
    %v3643 = vmul.f32 %v3641, %v3641
    %v3644 = vmul.f32 %v3642, %v3642
    %v3645 = vsel %vm261, %v3643, 0.0
    %3646 = vadd.xlane.f32.xlu0 %v3645
    %v3647 = vpop.xlane.xlu0 %3646
    %v3648 = vsel %vm261, %v3644, 0.0
    %3649 = vadd.xlane.f32.xlu0 %v3648
    %v3650 = vpop.xlane.xlu0 %3649
    %v3651 = vmul.f32 %v3647, %v1201
    %v3652 = vmul.f32 %v3650, %v1201
    %v3653 = vadd.f32 %v3651, 1e-05
    %v3654 = vadd.f32 %v3652, 1e-05
    %v3655 = vrsqrt.pop %v3653
    %v3656 = vrsqrt.pop %v3654
    %v3657 = vmul.f32 %v3641, %v3655
    %v3658 = vmul.f32 %v3642, %v3656
    %v3659 = vlaneseq
    %v3660 = vshrl.u32 %v3659, 7
    %v3661 = vsub.s32 4, %v3660
    %v3662 = vrot.slane %v2699, %v3661
    %v3663 = vmul.f32 %v3657, %v3662
    %v3664 = vmul.f32 %v3658, %v3662
    %v3665 = vlaneseq
    %v3666 = vshrl.u32 %v3665, 7
    %v3667 = vsub.s32 5, %v3666
    %v3668 = vrot.slane %v2699, %v3667
    %v3669 = vadd.f32 %v3663, %v3668
    %v3670 = vadd.f32 %v3664, %v3668
    %v3671 = vld [vmem:[%s27] sm:$0xff]
    %v3672 = vld [vmem:[%s27 + $0x8] sm:$0xff]
    %v3673 = vld [vmem:[%s27 + $0x10] sm:$0xff]
    %v3674 = vld [vmem:[%s27 + $0x18] sm:$0xff]
    %v3675 = vlaneseq
    %v3676 = vshrl.u32 %v3675, 7
    %v3677 = vsub.s32 1, %v3676
    %v3678 = vrot.slane %v2699, %v3677
    %v3680 = vsel %vm261, %v3669, 0
    %v3683 = vsel %vm261, %v3670, 0
    %3685 = vmatprep.subr.mxu0 0.0
    %3686 = vmatpush1.msra.mxu0 0.0
    %3687 = vmatprep.subr.mxu0 0.0
    %3688 = vmatpush1.msra.mxu0 0.0
    %3689 = vmatprep.subr.mxu0 0.0
    %3690 = vmatpush1.msra.mxu0 0.0
    %3691 = vmatprep.subr.mxu0 0.0
    %3692 = vmatpush1.msra.mxu0 0.0
    %3693 = vmatprep.subr.mxu0 0.0
    %3694 = vmatpush1.msra.mxu0 0.0
    %3695 = vmatprep.subr.mxu0 0.0
    %3696 = vmatpush1.msra.mxu0 0.0
    %3697 = vmatprep.subr.mxu0 0.0
    %3698 = vmatpush1.msra.mxu0 0.0
    %3699 = vmatprep.subr.mxu0 0.0
    %3700 = vmatpush1.msra.mxu0 0.0
    %3701 = vmatprep.subr.mxu0 0.0
    %3702 = vmatpush1.msra.mxu0 0.0
    %3703 = vmatprep.subr.mxu0 0.0
    %3704 = vmatpush1.msra.mxu0 0.0
    %3705 = vmatprep.subr.mxu0 0.0
    %3706 = vmatpush1.msra.mxu0 0.0
    %3707 = vmatprep.subr.mxu0 0.0
    %3708 = vmatpush1.msra.mxu0 0.0
    %3709 = vmatprep.subr.mxu0 0.0
    %3710 = vmatpush1.msra.mxu0 %v3674
    %3711 = vmatprep.subr.mxu0 0.0
    %3712 = vmatpush1.msra.mxu0 %v3673
    %3713 = vmatprep.subr.mxu0 0.0
    %3714 = vmatpush1.msra.mxu0 %v3672
    %3715 = vmatprep.subr.mxu0 0.0
    %3716 = vmatpush1.msra.mxu0 %v3671
    %3717 = vmatprep.subr.mxu0 0.0
    %3718 = vmatpush2.msra.mxu0 0.0
    %3719 = vmatprep.subr.mxu0 0.0
    %3720 = vmatpush2.msra.mxu0 0.0
    %3721 = vmatprep.subr.mxu0 0.0
    %3722 = vmatpush2.msra.mxu0 0.0
    %3723 = vmatprep.subr.mxu0 0.0
    %3724 = vmatpush2.msra.mxu0 0.0
    %3725 = vmatprep.subr.mxu0 0.0
    %3726 = vmatpush2.msra.mxu0 0.0
    %3727 = vmatprep.subr.mxu0 0.0
    %3728 = vmatpush2.msra.mxu0 0.0
    %3729 = vmatprep.subr.mxu0 0.0
    %3730 = vmatpush2.msra.mxu0 0.0
    %3731 = vmatprep.subr.mxu0 0.0
    %3732 = vmatpush2.msra.mxu0 0.0
    %3733 = vmatprep.subr.mxu0 0.0
    %3734 = vmatpush2.msra.mxu0 0.0
    %3735 = vmatprep.subr.mxu0 0.0
    %3736 = vmatpush2.msra.mxu0 0.0
    %3737 = vmatprep.subr.mxu0 0.0
    %3738 = vmatpush2.msra.mxu0 0.0
    %3739 = vmatprep.subr.mxu0 0.0
    %3740 = vmatpush2.msra.mxu0 0.0
    %3741 = vmatprep.subr.mxu0 0.0
    %3742 = vmatpush2.msra.mxu0 0.0
    %3743 = vmatprep.subr.mxu0 0.0
    %3744 = vmatpush2.msra.mxu0 0.0
    %3745 = vmatprep.subr.mxu0 0.0
    %3746 = vmatpush2.msra.mxu0 0.0
    %3747 = vmatprep.subr.mxu0 0.0
    %3748 = vmatpush2.msra.mxu0 0.0
    %3749 = vmatprep.mubr.f32.mxu0 0.0
    %3750 = vmatmul.mubr.f32.gmra.mxu0 %v3680
    %v3751 = vpop.f32.mrf.mxu0
    %v3752 = vadd.f32 %v3678, %v3751
    %v3753 = vpop.f32.mrf.mxu0
    %3754 = vmatprep.mubr.f32.mxu0 0.0
    %3755 = vmatmul.mubr.f32.gmra.mxu0 %v3683
    %v3756 = vpop.f32.mrf.mxu0
    %v3757 = vadd.f32 %v3678, %v3756
    %v3758 = vpop.f32.mrf.mxu0
    %3759 = vdwg.mxu0
    %v3760 = vld [vmem:[%s21] sm:$0xff]
    %v3761 = vld [vmem:[%s21 + $0x8] sm:$0xff]
    %v3762 = vld [vmem:[%s21 + $0x10] sm:$0xff]
    %v3763 = vld [vmem:[%s21 + $0x18] sm:$0xff]
    %v3764 = vld [vmem:[%s11] sm:$0x1]
    %v3766 = vlaneseq
    %v3767 = vshrl.u32 %v3766, 7
    %v3768 = vsub.s32 0, %v3767
    %v3769 = vrot.slane %v3764, %v3768
    %v3772 = vsel %vm261, %v2697, 0
    %v3775 = vsel %vm261, %v2698, 0
    %3777 = vmatprep.subr.mxu0 0.0
    %3778 = vmatpush1.msra.mxu0 0.0
    %3779 = vmatprep.subr.mxu0 0.0
    %3780 = vmatpush1.msra.mxu0 0.0
    %3781 = vmatprep.subr.mxu0 0.0
    %3782 = vmatpush1.msra.mxu0 0.0
    %3783 = vmatprep.subr.mxu0 0.0
    %3784 = vmatpush1.msra.mxu0 0.0
    %3785 = vmatprep.subr.mxu0 0.0
    %3786 = vmatpush1.msra.mxu0 0.0
    %3787 = vmatprep.subr.mxu0 0.0
    %3788 = vmatpush1.msra.mxu0 0.0
    %3789 = vmatprep.subr.mxu0 0.0
    %3790 = vmatpush1.msra.mxu0 0.0
    %3791 = vmatprep.subr.mxu0 0.0
    %3792 = vmatpush1.msra.mxu0 0.0
    %3793 = vmatprep.subr.mxu0 0.0
    %3794 = vmatpush1.msra.mxu0 0.0
    %3795 = vmatprep.subr.mxu0 0.0
    %3796 = vmatpush1.msra.mxu0 0.0
    %3797 = vmatprep.subr.mxu0 0.0
    %3798 = vmatpush1.msra.mxu0 0.0
    %3799 = vmatprep.subr.mxu0 0.0
    %3800 = vmatpush1.msra.mxu0 0.0
    %3801 = vmatprep.subr.mxu0 0.0
    %3802 = vmatpush1.msra.mxu0 %v3763
    %3803 = vmatprep.subr.mxu0 0.0
    %3804 = vmatpush1.msra.mxu0 %v3762
    %3805 = vmatprep.subr.mxu0 0.0
    %3806 = vmatpush1.msra.mxu0 %v3761
    %3807 = vmatprep.subr.mxu0 0.0
    %3808 = vmatpush1.msra.mxu0 %v3760
    %3809 = vmatprep.subr.mxu0 0.0
    %3810 = vmatpush2.msra.mxu0 0.0
    %3811 = vmatprep.subr.mxu0 0.0
    %3812 = vmatpush2.msra.mxu0 0.0
    %3813 = vmatprep.subr.mxu0 0.0
    %3814 = vmatpush2.msra.mxu0 0.0
    %3815 = vmatprep.subr.mxu0 0.0
    %3816 = vmatpush2.msra.mxu0 0.0
    %3817 = vmatprep.subr.mxu0 0.0
    %3818 = vmatpush2.msra.mxu0 0.0
    %3819 = vmatprep.subr.mxu0 0.0
    %3820 = vmatpush2.msra.mxu0 0.0
    %3821 = vmatprep.subr.mxu0 0.0
    %3822 = vmatpush2.msra.mxu0 0.0
    %3823 = vmatprep.subr.mxu0 0.0
    %3824 = vmatpush2.msra.mxu0 0.0
    %3825 = vmatprep.subr.mxu0 0.0
    %3826 = vmatpush2.msra.mxu0 0.0
    %3827 = vmatprep.subr.mxu0 0.0
    %3828 = vmatpush2.msra.mxu0 0.0
    %3829 = vmatprep.subr.mxu0 0.0
    %3830 = vmatpush2.msra.mxu0 0.0
    %3831 = vmatprep.subr.mxu0 0.0
    %3832 = vmatpush2.msra.mxu0 0.0
    %3833 = vmatprep.subr.mxu0 0.0
    %3834 = vmatpush2.msra.mxu0 0.0
    %3835 = vmatprep.subr.mxu0 0.0
    %3836 = vmatpush2.msra.mxu0 0.0
    %3837 = vmatprep.subr.mxu0 0.0
    %3838 = vmatpush2.msra.mxu0 0.0
    %3839 = vmatprep.subr.mxu0 0.0
    %3840 = vmatpush2.msra.mxu0 0.0
    %3841 = vmatprep.mubr.f32.mxu0 0.0
    %3842 = vmatmul.mubr.f32.gmra.mxu0 %v3772
    %v3843 = vpop.f32.mrf.mxu0
    %v3844 = vadd.f32 %v3769, %v3843
    %v3845 = vpop.f32.mrf.mxu0
    %3846 = vmatprep.mubr.f32.mxu0 0.0
    %3847 = vmatmul.mubr.f32.gmra.mxu0 %v3775
    %v3848 = vpop.f32.mrf.mxu0
    %v3849 = vadd.f32 %v3769, %v3848
    %v3850 = vpop.f32.mrf.mxu0
    %3851 = vdwg.mxu0
    %v3852 = vld [vmem:[%s23] sm:$0xff]
    %v3853 = vld [vmem:[%s23 + $0x8] sm:$0xff]
    %v3854 = vld [vmem:[%s23 + $0x10] sm:$0xff]
    %v3855 = vld [vmem:[%s23 + $0x18] sm:$0xff]
    %v3857 = vsel %vm350, %v3752, 0
    %v3860 = vsel %vm350, %v3844, 0
    %3862 = vmatprep.subr.mxu0 0.0
    %3863 = vmatpush1.xpose.msra.mxu0 0.0
    %3864 = vmatprep.subr.mxu0 0.0
    %3865 = vmatpush1.xpose.msra.mxu0 0.0
    %3866 = vmatprep.subr.mxu0 0.0
    %3867 = vmatpush1.xpose.msra.mxu0 0.0
    %3868 = vmatprep.subr.mxu0 0.0
    %3869 = vmatpush1.xpose.msra.mxu0 0.0
    %3870 = vmatprep.subr.mxu0 0.0
    %3871 = vmatpush1.xpose.msra.mxu0 0.0
    %3872 = vmatprep.subr.mxu0 0.0
    %3873 = vmatpush1.xpose.msra.mxu0 0.0
    %3874 = vmatprep.subr.mxu0 0.0
    %3875 = vmatpush1.xpose.msra.mxu0 0.0
    %3876 = vmatprep.subr.mxu0 0.0
    %3877 = vmatpush1.xpose.msra.mxu0 0.0
    %3878 = vmatprep.subr.mxu0 0.0
    %3879 = vmatpush1.xpose.msra.mxu0 0.0
    %3880 = vmatprep.subr.mxu0 0.0
    %3881 = vmatpush1.xpose.msra.mxu0 0.0
    %3882 = vmatprep.subr.mxu0 0.0
    %3883 = vmatpush1.xpose.msra.mxu0 0.0
    %3884 = vmatprep.subr.mxu0 0.0
    %3885 = vmatpush1.xpose.msra.mxu0 0.0
    %3886 = vmatprep.subr.mxu0 0.0
    %3887 = vmatpush1.xpose.msra.mxu0 0.0
    %3888 = vmatprep.subr.mxu0 0.0
    %3889 = vmatpush1.xpose.msra.mxu0 0.0
    %3890 = vmatprep.subr.mxu0 0.0
    %3891 = vmatpush1.xpose.msra.mxu0 0.0
    %3892 = vmatprep.subr.mxu0 0.0
    %3893 = vmatpush1.xpose.msra.mxu0 %v3860
    %3894 = vmatprep.subr.mxu0 0.0
    %3895 = vmatpush2.xpose.msra.mxu0 0.0
    %3896 = vmatprep.subr.mxu0 0.0
    %3897 = vmatpush2.xpose.msra.mxu0 0.0
    %3898 = vmatprep.subr.mxu0 0.0
    %3899 = vmatpush2.xpose.msra.mxu0 0.0
    %3900 = vmatprep.subr.mxu0 0.0
    %3901 = vmatpush2.xpose.msra.mxu0 0.0
    %3902 = vmatprep.subr.mxu0 0.0
    %3903 = vmatpush2.xpose.msra.mxu0 0.0
    %3904 = vmatprep.subr.mxu0 0.0
    %3905 = vmatpush2.xpose.msra.mxu0 0.0
    %3906 = vmatprep.subr.mxu0 0.0
    %3907 = vmatpush2.xpose.msra.mxu0 0.0
    %3908 = vmatprep.subr.mxu0 0.0
    %3909 = vmatpush2.xpose.msra.mxu0 0.0
    %3910 = vmatprep.subr.mxu0 0.0
    %3911 = vmatpush2.xpose.msra.mxu0 0.0
    %3912 = vmatprep.subr.mxu0 0.0
    %3913 = vmatpush2.xpose.msra.mxu0 0.0
    %3914 = vmatprep.subr.mxu0 0.0
    %3915 = vmatpush2.xpose.msra.mxu0 0.0
    %3916 = vmatprep.subr.mxu0 0.0
    %3917 = vmatpush2.xpose.msra.mxu0 0.0
    %3918 = vmatprep.subr.mxu0 0.0
    %3919 = vmatpush2.xpose.msra.mxu0 0.0
    %3920 = vmatprep.subr.mxu0 0.0
    %3921 = vmatpush2.xpose.msra.mxu0 0.0
    %3922 = vmatprep.subr.mxu0 0.0
    %3923 = vmatpush2.xpose.msra.mxu0 0.0
    %3924 = vmatprep.subr.mxu0 0.0
    %3925 = vmatpush2.xpose.msra.mxu0 0.0
    %3926 = vmatprep.mubr.f32.mxu0 0.0
    %3927 = vmatmul.mubr.f32.gmra.mxu0 %v3857
    %v3928 = vpop.f32.mrf.mxu0
    %v3929 = vadd.f32 0.0, %v3928
    %v3930 = vpop.f32.mrf.mxu0
    %3931 = vdwg.mxu0
    %v3933 = vsel %vm350, %v3757, 0
    %v3936 = vsel %vm350, %v3849, 0
    %3938 = vmatprep.subr.mxu0 0.0
    %3939 = vmatpush1.xpose.msra.mxu0 0.0
    %3940 = vmatprep.subr.mxu0 0.0
    %3941 = vmatpush1.xpose.msra.mxu0 0.0
    %3942 = vmatprep.subr.mxu0 0.0
    %3943 = vmatpush1.xpose.msra.mxu0 0.0
    %3944 = vmatprep.subr.mxu0 0.0
    %3945 = vmatpush1.xpose.msra.mxu0 0.0
    %3946 = vmatprep.subr.mxu0 0.0
    %3947 = vmatpush1.xpose.msra.mxu0 0.0
    %3948 = vmatprep.subr.mxu0 0.0
    %3949 = vmatpush1.xpose.msra.mxu0 0.0
    %3950 = vmatprep.subr.mxu0 0.0
    %3951 = vmatpush1.xpose.msra.mxu0 0.0
    %3952 = vmatprep.subr.mxu0 0.0
    %3953 = vmatpush1.xpose.msra.mxu0 0.0
    %3954 = vmatprep.subr.mxu0 0.0
    %3955 = vmatpush1.xpose.msra.mxu0 0.0
    %3956 = vmatprep.subr.mxu0 0.0
    %3957 = vmatpush1.xpose.msra.mxu0 0.0
    %3958 = vmatprep.subr.mxu0 0.0
    %3959 = vmatpush1.xpose.msra.mxu0 0.0
    %3960 = vmatprep.subr.mxu0 0.0
    %3961 = vmatpush1.xpose.msra.mxu0 0.0
    %3962 = vmatprep.subr.mxu0 0.0
    %3963 = vmatpush1.xpose.msra.mxu0 0.0
    %3964 = vmatprep.subr.mxu0 0.0
    %3965 = vmatpush1.xpose.msra.mxu0 0.0
    %3966 = vmatprep.subr.mxu0 0.0
    %3967 = vmatpush1.xpose.msra.mxu0 0.0
    %3968 = vmatprep.subr.mxu0 0.0
    %3969 = vmatpush1.xpose.msra.mxu0 %v3936
    %3970 = vmatprep.subr.mxu0 0.0
    %3971 = vmatpush2.xpose.msra.mxu0 0.0
    %3972 = vmatprep.subr.mxu0 0.0
    %3973 = vmatpush2.xpose.msra.mxu0 0.0
    %3974 = vmatprep.subr.mxu0 0.0
    %3975 = vmatpush2.xpose.msra.mxu0 0.0
    %3976 = vmatprep.subr.mxu0 0.0
    %3977 = vmatpush2.xpose.msra.mxu0 0.0
    %3978 = vmatprep.subr.mxu0 0.0
    %3979 = vmatpush2.xpose.msra.mxu0 0.0
    %3980 = vmatprep.subr.mxu0 0.0
    %3981 = vmatpush2.xpose.msra.mxu0 0.0
    %3982 = vmatprep.subr.mxu0 0.0
    %3983 = vmatpush2.xpose.msra.mxu0 0.0
    %3984 = vmatprep.subr.mxu0 0.0
    %3985 = vmatpush2.xpose.msra.mxu0 0.0
    %3986 = vmatprep.subr.mxu0 0.0
    %3987 = vmatpush2.xpose.msra.mxu0 0.0
    %3988 = vmatprep.subr.mxu0 0.0
    %3989 = vmatpush2.xpose.msra.mxu0 0.0
    %3990 = vmatprep.subr.mxu0 0.0
    %3991 = vmatpush2.xpose.msra.mxu0 0.0
    %3992 = vmatprep.subr.mxu0 0.0
    %3993 = vmatpush2.xpose.msra.mxu0 0.0
    %3994 = vmatprep.subr.mxu0 0.0
    %3995 = vmatpush2.xpose.msra.mxu0 0.0
    %3996 = vmatprep.subr.mxu0 0.0
    %3997 = vmatpush2.xpose.msra.mxu0 0.0
    %3998 = vmatprep.subr.mxu0 0.0
    %3999 = vmatpush2.xpose.msra.mxu0 0.0
    %4000 = vmatprep.subr.mxu0 0.0
    %4001 = vmatpush2.xpose.msra.mxu0 0.0
    %4002 = vmatprep.mubr.f32.mxu0 0.0
    %4003 = vmatmul.mubr.f32.gmra.mxu0 %v3933
    %v4004 = vpop.f32.mrf.mxu0
    %v4005 = vadd.f32 0.0, %v4004
    %v4006 = vpop.f32.mrf.mxu0
    %4007 = vdwg.mxu0
    %v4008 = vmul.f32 %v3929, 0.25
    %v4009 = vmul.f32 %v4005, 0.25
    %v4010 = vsel %vm516, %v4008, -inf
    %4011 = vmax.xlane.f32.xlu0 %v4010
    %v4012 = vpop.xlane.xlu0 %4011
    %v4013 = vsel %vm516, %v4009, -inf
    %4014 = vmax.xlane.f32.xlu0 %v4013
    %v4015 = vpop.xlane.xlu0 %4014
    %v4016 = vsub.f32 %v4008, %v4012
    %v4017 = vsub.f32 %v4009, %v4015
    %v4018 = vmul.f32 %v4016, 1.442695
    %v4019 = vpow.pop %v4018
    %v4020 = vmul.f32 %v4017, 1.442695
    %v4021 = vpow.pop %v4020
    %v4022 = vsel %vm516, %v4019, 0.0
    %4023 = vadd.xlane.f32.xlu0 %v4022
    %v4024 = vpop.xlane.xlu0 %4023
    %v4025 = vsel %vm516, %v4021, 0.0
    %4026 = vadd.xlane.f32.xlu0 %v4025
    %v4027 = vpop.xlane.xlu0 %4026
    %v4028 = vrcp.pop %v4024
    %v4029 = vrcp.pop %v4027
    %v4030 = vmul.f32 %v4019, %v4028
    %v4031 = vmul.f32 %v4021, %v4029
    %4032 = vrot.lane.b32.xlu0 %v3844, 96
    %v4033 = vpop.permute.xlu0 %4032
    %v4036 = vsel %vm516, %v4030, 0
    %4038 = vmatprep.subr.mxu0 0.0
    %4039 = vmatpush1.msra.mxu0 0.0
    %4040 = vmatprep.subr.mxu0 0.0
    %4041 = vmatpush1.msra.mxu0 0.0
    %4042 = vmatprep.subr.mxu0 0.0
    %4043 = vmatpush1.msra.mxu0 0.0
    %4044 = vmatprep.subr.mxu0 0.0
    %4045 = vmatpush1.msra.mxu0 0.0
    %4046 = vmatprep.subr.mxu0 0.0
    %4047 = vmatpush1.msra.mxu0 0.0
    %4048 = vmatprep.subr.mxu0 0.0
    %4049 = vmatpush1.msra.mxu0 0.0
    %4050 = vmatprep.subr.mxu0 0.0
    %4051 = vmatpush1.msra.mxu0 0.0
    %4052 = vmatprep.subr.mxu0 0.0
    %4053 = vmatpush1.msra.mxu0 0.0
    %4054 = vmatprep.subr.mxu0 0.0
    %4055 = vmatpush1.msra.mxu0 0.0
    %4056 = vmatprep.subr.mxu0 0.0
    %4057 = vmatpush1.msra.mxu0 0.0
    %4058 = vmatprep.subr.mxu0 0.0
    %4059 = vmatpush1.msra.mxu0 0.0
    %4060 = vmatprep.subr.mxu0 0.0
    %4061 = vmatpush1.msra.mxu0 0.0
    %4062 = vmatprep.subr.mxu0 0.0
    %4063 = vmatpush1.msra.mxu0 0.0
    %4064 = vmatprep.subr.mxu0 0.0
    %4065 = vmatpush1.msra.mxu0 0.0
    %4066 = vmatprep.subr.mxu0 0.0
    %4067 = vmatpush1.msra.mxu0 0.0
    %4068 = vmatprep.subr.mxu0 0.0
    %4069 = vmatpush1.msra.mxu0 %v4033
    %4070 = vmatprep.subr.mxu0 0.0
    %4071 = vmatpush2.msra.mxu0 0.0
    %4072 = vmatprep.subr.mxu0 0.0
    %4073 = vmatpush2.msra.mxu0 0.0
    %4074 = vmatprep.subr.mxu0 0.0
    %4075 = vmatpush2.msra.mxu0 0.0
    %4076 = vmatprep.subr.mxu0 0.0
    %4077 = vmatpush2.msra.mxu0 0.0
    %4078 = vmatprep.subr.mxu0 0.0
    %4079 = vmatpush2.msra.mxu0 0.0
    %4080 = vmatprep.subr.mxu0 0.0
    %4081 = vmatpush2.msra.mxu0 0.0
    %4082 = vmatprep.subr.mxu0 0.0
    %4083 = vmatpush2.msra.mxu0 0.0
    %4084 = vmatprep.subr.mxu0 0.0
    %4085 = vmatpush2.msra.mxu0 0.0
    %4086 = vmatprep.subr.mxu0 0.0
    %4087 = vmatpush2.msra.mxu0 0.0
    %4088 = vmatprep.subr.mxu0 0.0
    %4089 = vmatpush2.msra.mxu0 0.0
    %4090 = vmatprep.subr.mxu0 0.0
    %4091 = vmatpush2.msra.mxu0 0.0
    %4092 = vmatprep.subr.mxu0 0.0
    %4093 = vmatpush2.msra.mxu0 0.0
    %4094 = vmatprep.subr.mxu0 0.0
    %4095 = vmatpush2.msra.mxu0 0.0
    %4096 = vmatprep.subr.mxu0 0.0
    %4097 = vmatpush2.msra.mxu0 0.0
    %4098 = vmatprep.subr.mxu0 0.0
    %4099 = vmatpush2.msra.mxu0 0.0
    %4100 = vmatprep.subr.mxu0 0.0
    %4101 = vmatpush2.msra.mxu0 0.0
    %4102 = vmatprep.mubr.f32.mxu0 0.0
    %4103 = vmatmul.mubr.f32.gmra.mxu0 %v4036
    %v4104 = vpop.f32.mrf.mxu0
    %v4105 = vadd.f32 0.0, %v4104
    %v4106 = vpop.f32.mrf.mxu0
    %4107 = vdwg.mxu0
    %4108 = vrot.lane.b32.xlu0 %v3849, 96
    %v4109 = vpop.permute.xlu0 %4108
    %v4112 = vsel %vm516, %v4031, 0
    %4114 = vmatprep.subr.mxu0 0.0
    %4115 = vmatpush1.msra.mxu0 0.0
    %4116 = vmatprep.subr.mxu0 0.0
    %4117 = vmatpush1.msra.mxu0 0.0
    %4118 = vmatprep.subr.mxu0 0.0
    %4119 = vmatpush1.msra.mxu0 0.0
    %4120 = vmatprep.subr.mxu0 0.0
    %4121 = vmatpush1.msra.mxu0 0.0
    %4122 = vmatprep.subr.mxu0 0.0
    %4123 = vmatpush1.msra.mxu0 0.0
    %4124 = vmatprep.subr.mxu0 0.0
    %4125 = vmatpush1.msra.mxu0 0.0
    %4126 = vmatprep.subr.mxu0 0.0
    %4127 = vmatpush1.msra.mxu0 0.0
    %4128 = vmatprep.subr.mxu0 0.0
    %4129 = vmatpush1.msra.mxu0 0.0
    %4130 = vmatprep.subr.mxu0 0.0
    %4131 = vmatpush1.msra.mxu0 0.0
    %4132 = vmatprep.subr.mxu0 0.0
    %4133 = vmatpush1.msra.mxu0 0.0
    %4134 = vmatprep.subr.mxu0 0.0
    %4135 = vmatpush1.msra.mxu0 0.0
    %4136 = vmatprep.subr.mxu0 0.0
    %4137 = vmatpush1.msra.mxu0 0.0
    %4138 = vmatprep.subr.mxu0 0.0
    %4139 = vmatpush1.msra.mxu0 0.0
    %4140 = vmatprep.subr.mxu0 0.0
    %4141 = vmatpush1.msra.mxu0 0.0
    %4142 = vmatprep.subr.mxu0 0.0
    %4143 = vmatpush1.msra.mxu0 0.0
    %4144 = vmatprep.subr.mxu0 0.0
    %4145 = vmatpush1.msra.mxu0 %v4109
    %4146 = vmatprep.subr.mxu0 0.0
    %4147 = vmatpush2.msra.mxu0 0.0
    %4148 = vmatprep.subr.mxu0 0.0
    %4149 = vmatpush2.msra.mxu0 0.0
    %4150 = vmatprep.subr.mxu0 0.0
    %4151 = vmatpush2.msra.mxu0 0.0
    %4152 = vmatprep.subr.mxu0 0.0
    %4153 = vmatpush2.msra.mxu0 0.0
    %4154 = vmatprep.subr.mxu0 0.0
    %4155 = vmatpush2.msra.mxu0 0.0
    %4156 = vmatprep.subr.mxu0 0.0
    %4157 = vmatpush2.msra.mxu0 0.0
    %4158 = vmatprep.subr.mxu0 0.0
    %4159 = vmatpush2.msra.mxu0 0.0
    %4160 = vmatprep.subr.mxu0 0.0
    %4161 = vmatpush2.msra.mxu0 0.0
    %4162 = vmatprep.subr.mxu0 0.0
    %4163 = vmatpush2.msra.mxu0 0.0
    %4164 = vmatprep.subr.mxu0 0.0
    %4165 = vmatpush2.msra.mxu0 0.0
    %4166 = vmatprep.subr.mxu0 0.0
    %4167 = vmatpush2.msra.mxu0 0.0
    %4168 = vmatprep.subr.mxu0 0.0
    %4169 = vmatpush2.msra.mxu0 0.0
    %4170 = vmatprep.subr.mxu0 0.0
    %4171 = vmatpush2.msra.mxu0 0.0
    %4172 = vmatprep.subr.mxu0 0.0
    %4173 = vmatpush2.msra.mxu0 0.0
    %4174 = vmatprep.subr.mxu0 0.0
    %4175 = vmatpush2.msra.mxu0 0.0
    %4176 = vmatprep.subr.mxu0 0.0
    %4177 = vmatpush2.msra.mxu0 0.0
    %4178 = vmatprep.mubr.f32.mxu0 0.0
    %4179 = vmatmul.mubr.f32.gmra.mxu0 %v4112
    %v4180 = vpop.f32.mrf.mxu0
    %v4181 = vadd.f32 0.0, %v4180
    %v4182 = vpop.f32.mrf.mxu0
    %4183 = vdwg.mxu0
    %4184 = vrot.lane.b32.xlu0 %v3752, 112
    %v4185 = vpop.permute.xlu0 %4184
    %4186 = vrot.lane.b32.xlu0 %v3844, 112
    %v4187 = vpop.permute.xlu0 %4186
    %v4188 = vsel %vm350, %v4185, 0
    %v4190 = vsel %vm350, %v4187, 0
    %4192 = vmatprep.subr.mxu0 0.0
    %4193 = vmatpush1.xpose.msra.mxu0 0.0
    %4194 = vmatprep.subr.mxu0 0.0
    %4195 = vmatpush1.xpose.msra.mxu0 0.0
    %4196 = vmatprep.subr.mxu0 0.0
    %4197 = vmatpush1.xpose.msra.mxu0 0.0
    %4198 = vmatprep.subr.mxu0 0.0
    %4199 = vmatpush1.xpose.msra.mxu0 0.0
    %4200 = vmatprep.subr.mxu0 0.0
    %4201 = vmatpush1.xpose.msra.mxu0 0.0
    %4202 = vmatprep.subr.mxu0 0.0
    %4203 = vmatpush1.xpose.msra.mxu0 0.0
    %4204 = vmatprep.subr.mxu0 0.0
    %4205 = vmatpush1.xpose.msra.mxu0 0.0
    %4206 = vmatprep.subr.mxu0 0.0
    %4207 = vmatpush1.xpose.msra.mxu0 0.0
    %4208 = vmatprep.subr.mxu0 0.0
    %4209 = vmatpush1.xpose.msra.mxu0 0.0
    %4210 = vmatprep.subr.mxu0 0.0
    %4211 = vmatpush1.xpose.msra.mxu0 0.0
    %4212 = vmatprep.subr.mxu0 0.0
    %4213 = vmatpush1.xpose.msra.mxu0 0.0
    %4214 = vmatprep.subr.mxu0 0.0
    %4215 = vmatpush1.xpose.msra.mxu0 0.0
    %4216 = vmatprep.subr.mxu0 0.0
    %4217 = vmatpush1.xpose.msra.mxu0 0.0
    %4218 = vmatprep.subr.mxu0 0.0
    %4219 = vmatpush1.xpose.msra.mxu0 0.0
    %4220 = vmatprep.subr.mxu0 0.0
    %4221 = vmatpush1.xpose.msra.mxu0 0.0
    %4222 = vmatprep.subr.mxu0 0.0
    %4223 = vmatpush1.xpose.msra.mxu0 %v4190
    %4224 = vmatprep.subr.mxu0 0.0
    %4225 = vmatpush2.xpose.msra.mxu0 0.0
    %4226 = vmatprep.subr.mxu0 0.0
    %4227 = vmatpush2.xpose.msra.mxu0 0.0
    %4228 = vmatprep.subr.mxu0 0.0
    %4229 = vmatpush2.xpose.msra.mxu0 0.0
    %4230 = vmatprep.subr.mxu0 0.0
    %4231 = vmatpush2.xpose.msra.mxu0 0.0
    %4232 = vmatprep.subr.mxu0 0.0
    %4233 = vmatpush2.xpose.msra.mxu0 0.0
    %4234 = vmatprep.subr.mxu0 0.0
    %4235 = vmatpush2.xpose.msra.mxu0 0.0
    %4236 = vmatprep.subr.mxu0 0.0
    %4237 = vmatpush2.xpose.msra.mxu0 0.0
    %4238 = vmatprep.subr.mxu0 0.0
    %4239 = vmatpush2.xpose.msra.mxu0 0.0
    %4240 = vmatprep.subr.mxu0 0.0
    %4241 = vmatpush2.xpose.msra.mxu0 0.0
    %4242 = vmatprep.subr.mxu0 0.0
    %4243 = vmatpush2.xpose.msra.mxu0 0.0
    %4244 = vmatprep.subr.mxu0 0.0
    %4245 = vmatpush2.xpose.msra.mxu0 0.0
    %4246 = vmatprep.subr.mxu0 0.0
    %4247 = vmatpush2.xpose.msra.mxu0 0.0
    %4248 = vmatprep.subr.mxu0 0.0
    %4249 = vmatpush2.xpose.msra.mxu0 0.0
    %4250 = vmatprep.subr.mxu0 0.0
    %4251 = vmatpush2.xpose.msra.mxu0 0.0
    %4252 = vmatprep.subr.mxu0 0.0
    %4253 = vmatpush2.xpose.msra.mxu0 0.0
    %4254 = vmatprep.subr.mxu0 0.0
    %4255 = vmatpush2.xpose.msra.mxu0 0.0
    %4256 = vmatprep.mubr.f32.mxu0 0.0
    %4257 = vmatmul.mubr.f32.gmra.mxu0 %v4188
    %v4258 = vpop.f32.mrf.mxu0
    %v4259 = vadd.f32 0.0, %v4258
    %v4260 = vpop.f32.mrf.mxu0
    %4261 = vdwg.mxu0
    %4262 = vrot.lane.b32.xlu0 %v3757, 112
    %v4263 = vpop.permute.xlu0 %4262
    %4264 = vrot.lane.b32.xlu0 %v3849, 112
    %v4265 = vpop.permute.xlu0 %4264
    %v4266 = vsel %vm350, %v4263, 0
    %v4268 = vsel %vm350, %v4265, 0
    %4270 = vmatprep.subr.mxu0 0.0
    %4271 = vmatpush1.xpose.msra.mxu0 0.0
    %4272 = vmatprep.subr.mxu0 0.0
    %4273 = vmatpush1.xpose.msra.mxu0 0.0
    %4274 = vmatprep.subr.mxu0 0.0
    %4275 = vmatpush1.xpose.msra.mxu0 0.0
    %4276 = vmatprep.subr.mxu0 0.0
    %4277 = vmatpush1.xpose.msra.mxu0 0.0
    %4278 = vmatprep.subr.mxu0 0.0
    %4279 = vmatpush1.xpose.msra.mxu0 0.0
    %4280 = vmatprep.subr.mxu0 0.0
    %4281 = vmatpush1.xpose.msra.mxu0 0.0
    %4282 = vmatprep.subr.mxu0 0.0
    %4283 = vmatpush1.xpose.msra.mxu0 0.0
    %4284 = vmatprep.subr.mxu0 0.0
    %4285 = vmatpush1.xpose.msra.mxu0 0.0
    %4286 = vmatprep.subr.mxu0 0.0
    %4287 = vmatpush1.xpose.msra.mxu0 0.0
    %4288 = vmatprep.subr.mxu0 0.0
    %4289 = vmatpush1.xpose.msra.mxu0 0.0
    %4290 = vmatprep.subr.mxu0 0.0
    %4291 = vmatpush1.xpose.msra.mxu0 0.0
    %4292 = vmatprep.subr.mxu0 0.0
    %4293 = vmatpush1.xpose.msra.mxu0 0.0
    %4294 = vmatprep.subr.mxu0 0.0
    %4295 = vmatpush1.xpose.msra.mxu0 0.0
    %4296 = vmatprep.subr.mxu0 0.0
    %4297 = vmatpush1.xpose.msra.mxu0 0.0
    %4298 = vmatprep.subr.mxu0 0.0
    %4299 = vmatpush1.xpose.msra.mxu0 0.0
    %4300 = vmatprep.subr.mxu0 0.0
    %4301 = vmatpush1.xpose.msra.mxu0 %v4268
    %4302 = vmatprep.subr.mxu0 0.0
    %4303 = vmatpush2.xpose.msra.mxu0 0.0
    %4304 = vmatprep.subr.mxu0 0.0
    %4305 = vmatpush2.xpose.msra.mxu0 0.0
    %4306 = vmatprep.subr.mxu0 0.0
    %4307 = vmatpush2.xpose.msra.mxu0 0.0
    %4308 = vmatprep.subr.mxu0 0.0
    %4309 = vmatpush2.xpose.msra.mxu0 0.0
    %4310 = vmatprep.subr.mxu0 0.0
    %4311 = vmatpush2.xpose.msra.mxu0 0.0
    %4312 = vmatprep.subr.mxu0 0.0
    %4313 = vmatpush2.xpose.msra.mxu0 0.0
    %4314 = vmatprep.subr.mxu0 0.0
    %4315 = vmatpush2.xpose.msra.mxu0 0.0
    %4316 = vmatprep.subr.mxu0 0.0
    %4317 = vmatpush2.xpose.msra.mxu0 0.0
    %4318 = vmatprep.subr.mxu0 0.0
    %4319 = vmatpush2.xpose.msra.mxu0 0.0
    %4320 = vmatprep.subr.mxu0 0.0
    %4321 = vmatpush2.xpose.msra.mxu0 0.0
    %4322 = vmatprep.subr.mxu0 0.0
    %4323 = vmatpush2.xpose.msra.mxu0 0.0
    %4324 = vmatprep.subr.mxu0 0.0
    %4325 = vmatpush2.xpose.msra.mxu0 0.0
    %4326 = vmatprep.subr.mxu0 0.0
    %4327 = vmatpush2.xpose.msra.mxu0 0.0
    %4328 = vmatprep.subr.mxu0 0.0
    %4329 = vmatpush2.xpose.msra.mxu0 0.0
    %4330 = vmatprep.subr.mxu0 0.0
    %4331 = vmatpush2.xpose.msra.mxu0 0.0
    %4332 = vmatprep.subr.mxu0 0.0
    %4333 = vmatpush2.xpose.msra.mxu0 0.0
    %4334 = vmatprep.mubr.f32.mxu0 0.0
    %4335 = vmatmul.mubr.f32.gmra.mxu0 %v4266
    %v4336 = vpop.f32.mrf.mxu0
    %v4337 = vadd.f32 0.0, %v4336
    %v4338 = vpop.f32.mrf.mxu0
    %4339 = vdwg.mxu0
    %v4340 = vmul.f32 %v4259, 0.25
    %v4341 = vmul.f32 %v4337, 0.25
    %v4342 = vsel %vm516, %v4340, -inf
    %4343 = vmax.xlane.f32.xlu0 %v4342
    %v4344 = vpop.xlane.xlu0 %4343
    %v4345 = vsel %vm516, %v4341, -inf
    %4346 = vmax.xlane.f32.xlu0 %v4345
    %v4347 = vpop.xlane.xlu0 %4346
    %v4348 = vsub.f32 %v4340, %v4344
    %v4349 = vsub.f32 %v4341, %v4347
    %v4350 = vmul.f32 %v4348, 1.442695
    %v4351 = vpow.pop %v4350
    %v4352 = vmul.f32 %v4349, 1.442695
    %v4353 = vpow.pop %v4352
    %v4354 = vsel %vm516, %v4351, 0.0
    %4355 = vadd.xlane.f32.xlu0 %v4354
    %v4356 = vpop.xlane.xlu0 %4355
    %v4357 = vsel %vm516, %v4353, 0.0
    %4358 = vadd.xlane.f32.xlu0 %v4357
    %v4359 = vpop.xlane.xlu0 %4358
    %v4360 = vrcp.pop %v4356
    %v4361 = vrcp.pop %v4359
    %v4362 = vmul.f32 %v4351, %v4360
    %v4363 = vmul.f32 %v4353, %v4361
    %4364 = vrot.lane.b32.xlu0 %v3844, 80
    %v4365 = vpop.permute.xlu0 %4364
    %v4368 = vsel %vm516, %v4362, 0
    %4370 = vmatprep.subr.mxu0 0.0
    %4371 = vmatpush1.msra.mxu0 0.0
    %4372 = vmatprep.subr.mxu0 0.0
    %4373 = vmatpush1.msra.mxu0 0.0
    %4374 = vmatprep.subr.mxu0 0.0
    %4375 = vmatpush1.msra.mxu0 0.0
    %4376 = vmatprep.subr.mxu0 0.0
    %4377 = vmatpush1.msra.mxu0 0.0
    %4378 = vmatprep.subr.mxu0 0.0
    %4379 = vmatpush1.msra.mxu0 0.0
    %4380 = vmatprep.subr.mxu0 0.0
    %4381 = vmatpush1.msra.mxu0 0.0
    %4382 = vmatprep.subr.mxu0 0.0
    %4383 = vmatpush1.msra.mxu0 0.0
    %4384 = vmatprep.subr.mxu0 0.0
    %4385 = vmatpush1.msra.mxu0 0.0
    %4386 = vmatprep.subr.mxu0 0.0
    %4387 = vmatpush1.msra.mxu0 0.0
    %4388 = vmatprep.subr.mxu0 0.0
    %4389 = vmatpush1.msra.mxu0 0.0
    %4390 = vmatprep.subr.mxu0 0.0
    %4391 = vmatpush1.msra.mxu0 0.0
    %4392 = vmatprep.subr.mxu0 0.0
    %4393 = vmatpush1.msra.mxu0 0.0
    %4394 = vmatprep.subr.mxu0 0.0
    %4395 = vmatpush1.msra.mxu0 0.0
    %4396 = vmatprep.subr.mxu0 0.0
    %4397 = vmatpush1.msra.mxu0 0.0
    %4398 = vmatprep.subr.mxu0 0.0
    %4399 = vmatpush1.msra.mxu0 0.0
    %4400 = vmatprep.subr.mxu0 0.0
    %4401 = vmatpush1.msra.mxu0 %v4365
    %4402 = vmatprep.subr.mxu0 0.0
    %4403 = vmatpush2.msra.mxu0 0.0
    %4404 = vmatprep.subr.mxu0 0.0
    %4405 = vmatpush2.msra.mxu0 0.0
    %4406 = vmatprep.subr.mxu0 0.0
    %4407 = vmatpush2.msra.mxu0 0.0
    %4408 = vmatprep.subr.mxu0 0.0
    %4409 = vmatpush2.msra.mxu0 0.0
    %4410 = vmatprep.subr.mxu0 0.0
    %4411 = vmatpush2.msra.mxu0 0.0
    %4412 = vmatprep.subr.mxu0 0.0
    %4413 = vmatpush2.msra.mxu0 0.0
    %4414 = vmatprep.subr.mxu0 0.0
    %4415 = vmatpush2.msra.mxu0 0.0
    %4416 = vmatprep.subr.mxu0 0.0
    %4417 = vmatpush2.msra.mxu0 0.0
    %4418 = vmatprep.subr.mxu0 0.0
    %4419 = vmatpush2.msra.mxu0 0.0
    %4420 = vmatprep.subr.mxu0 0.0
    %4421 = vmatpush2.msra.mxu0 0.0
    %4422 = vmatprep.subr.mxu0 0.0
    %4423 = vmatpush2.msra.mxu0 0.0
    %4424 = vmatprep.subr.mxu0 0.0
    %4425 = vmatpush2.msra.mxu0 0.0
    %4426 = vmatprep.subr.mxu0 0.0
    %4427 = vmatpush2.msra.mxu0 0.0
    %4428 = vmatprep.subr.mxu0 0.0
    %4429 = vmatpush2.msra.mxu0 0.0
    %4430 = vmatprep.subr.mxu0 0.0
    %4431 = vmatpush2.msra.mxu0 0.0
    %4432 = vmatprep.subr.mxu0 0.0
    %4433 = vmatpush2.msra.mxu0 0.0
    %4434 = vmatprep.mubr.f32.mxu0 0.0
    %4435 = vmatmul.mubr.f32.gmra.mxu0 %v4368
    %v4436 = vpop.f32.mrf.mxu0
    %v4437 = vadd.f32 0.0, %v4436
    %v4438 = vpop.f32.mrf.mxu0
    %4439 = vdwg.mxu0
    %4440 = vrot.lane.b32.xlu0 %v3849, 80
    %v4441 = vpop.permute.xlu0 %4440
    %v4444 = vsel %vm516, %v4363, 0
    %4446 = vmatprep.subr.mxu0 0.0
    %4447 = vmatpush1.msra.mxu0 0.0
    %4448 = vmatprep.subr.mxu0 0.0
    %4449 = vmatpush1.msra.mxu0 0.0
    %4450 = vmatprep.subr.mxu0 0.0
    %4451 = vmatpush1.msra.mxu0 0.0
    %4452 = vmatprep.subr.mxu0 0.0
    %4453 = vmatpush1.msra.mxu0 0.0
    %4454 = vmatprep.subr.mxu0 0.0
    %4455 = vmatpush1.msra.mxu0 0.0
    %4456 = vmatprep.subr.mxu0 0.0
    %4457 = vmatpush1.msra.mxu0 0.0
    %4458 = vmatprep.subr.mxu0 0.0
    %4459 = vmatpush1.msra.mxu0 0.0
    %4460 = vmatprep.subr.mxu0 0.0
    %4461 = vmatpush1.msra.mxu0 0.0
    %4462 = vmatprep.subr.mxu0 0.0
    %4463 = vmatpush1.msra.mxu0 0.0
    %4464 = vmatprep.subr.mxu0 0.0
    %4465 = vmatpush1.msra.mxu0 0.0
    %4466 = vmatprep.subr.mxu0 0.0
    %4467 = vmatpush1.msra.mxu0 0.0
    %4468 = vmatprep.subr.mxu0 0.0
    %4469 = vmatpush1.msra.mxu0 0.0
    %4470 = vmatprep.subr.mxu0 0.0
    %4471 = vmatpush1.msra.mxu0 0.0
    %4472 = vmatprep.subr.mxu0 0.0
    %4473 = vmatpush1.msra.mxu0 0.0
    %4474 = vmatprep.subr.mxu0 0.0
    %4475 = vmatpush1.msra.mxu0 0.0
    %4476 = vmatprep.subr.mxu0 0.0
    %4477 = vmatpush1.msra.mxu0 %v4441
    %4478 = vmatprep.subr.mxu0 0.0
    %4479 = vmatpush2.msra.mxu0 0.0
    %4480 = vmatprep.subr.mxu0 0.0
    %4481 = vmatpush2.msra.mxu0 0.0
    %4482 = vmatprep.subr.mxu0 0.0
    %4483 = vmatpush2.msra.mxu0 0.0
    %4484 = vmatprep.subr.mxu0 0.0
    %4485 = vmatpush2.msra.mxu0 0.0
    %4486 = vmatprep.subr.mxu0 0.0
    %4487 = vmatpush2.msra.mxu0 0.0
    %4488 = vmatprep.subr.mxu0 0.0
    %4489 = vmatpush2.msra.mxu0 0.0
    %4490 = vmatprep.subr.mxu0 0.0
    %4491 = vmatpush2.msra.mxu0 0.0
    %4492 = vmatprep.subr.mxu0 0.0
    %4493 = vmatpush2.msra.mxu0 0.0
    %4494 = vmatprep.subr.mxu0 0.0
    %4495 = vmatpush2.msra.mxu0 0.0
    %4496 = vmatprep.subr.mxu0 0.0
    %4497 = vmatpush2.msra.mxu0 0.0
    %4498 = vmatprep.subr.mxu0 0.0
    %4499 = vmatpush2.msra.mxu0 0.0
    %4500 = vmatprep.subr.mxu0 0.0
    %4501 = vmatpush2.msra.mxu0 0.0
    %4502 = vmatprep.subr.mxu0 0.0
    %4503 = vmatpush2.msra.mxu0 0.0
    %4504 = vmatprep.subr.mxu0 0.0
    %4505 = vmatpush2.msra.mxu0 0.0
    %4506 = vmatprep.subr.mxu0 0.0
    %4507 = vmatpush2.msra.mxu0 0.0
    %4508 = vmatprep.subr.mxu0 0.0
    %4509 = vmatpush2.msra.mxu0 0.0
    %4510 = vmatprep.mubr.f32.mxu0 0.0
    %4511 = vmatmul.mubr.f32.gmra.mxu0 %v4444
    %v4512 = vpop.f32.mrf.mxu0
    %v4513 = vadd.f32 0.0, %v4512
    %v4514 = vpop.f32.mrf.mxu0
    %4515 = vdwg.mxu0
    %v4517 = vsel %vm350, %v4437, 0
    %v4520 = vsel %vm350, %v4513, 0
    %4522 = vmatprep.subr.mxu0 0.0
    %4523 = vmatpush1.msra.mxu0 0.0
    %4524 = vmatprep.subr.mxu0 0.0
    %4525 = vmatpush1.msra.mxu0 0.0
    %4526 = vmatprep.subr.mxu0 0.0
    %4527 = vmatpush1.msra.mxu0 0.0
    %4528 = vmatprep.subr.mxu0 0.0
    %4529 = vmatpush1.msra.mxu0 0.0
    %4530 = vmatprep.subr.mxu0 0.0
    %4531 = vmatpush1.msra.mxu0 0.0
    %4532 = vmatprep.subr.mxu0 0.0
    %4533 = vmatpush1.msra.mxu0 0.0
    %4534 = vmatprep.subr.mxu0 0.0
    %4535 = vmatpush1.msra.mxu0 0.0
    %4536 = vmatprep.subr.mxu0 0.0
    %4537 = vmatpush1.msra.mxu0 0.0
    %4538 = vmatprep.subr.mxu0 0.0
    %4539 = vmatpush1.msra.mxu0 0.0
    %4540 = vmatprep.subr.mxu0 0.0
    %4541 = vmatpush1.msra.mxu0 0.0
    %4542 = vmatprep.subr.mxu0 0.0
    %4543 = vmatpush1.msra.mxu0 0.0
    %4544 = vmatprep.subr.mxu0 0.0
    %4545 = vmatpush1.msra.mxu0 0.0
    %4546 = vmatprep.subr.mxu0 0.0
    %4547 = vmatpush1.msra.mxu0 0.0
    %4548 = vmatprep.subr.mxu0 0.0
    %4549 = vmatpush1.msra.mxu0 0.0
    %4550 = vmatprep.subr.mxu0 0.0
    %4551 = vmatpush1.msra.mxu0 %v3855
    %4552 = vmatprep.subr.mxu0 0.0
    %4553 = vmatpush1.msra.mxu0 %v3854
    %4554 = vmatprep.subr.mxu0 0.0
    %4555 = vmatpush2.msra.mxu0 0.0
    %4556 = vmatprep.subr.mxu0 0.0
    %4557 = vmatpush2.msra.mxu0 0.0
    %4558 = vmatprep.subr.mxu0 0.0
    %4559 = vmatpush2.msra.mxu0 0.0
    %4560 = vmatprep.subr.mxu0 0.0
    %4561 = vmatpush2.msra.mxu0 0.0
    %4562 = vmatprep.subr.mxu0 0.0
    %4563 = vmatpush2.msra.mxu0 0.0
    %4564 = vmatprep.subr.mxu0 0.0
    %4565 = vmatpush2.msra.mxu0 0.0
    %4566 = vmatprep.subr.mxu0 0.0
    %4567 = vmatpush2.msra.mxu0 0.0
    %4568 = vmatprep.subr.mxu0 0.0
    %4569 = vmatpush2.msra.mxu0 0.0
    %4570 = vmatprep.subr.mxu0 0.0
    %4571 = vmatpush2.msra.mxu0 0.0
    %4572 = vmatprep.subr.mxu0 0.0
    %4573 = vmatpush2.msra.mxu0 0.0
    %4574 = vmatprep.subr.mxu0 0.0
    %4575 = vmatpush2.msra.mxu0 0.0
    %4576 = vmatprep.subr.mxu0 0.0
    %4577 = vmatpush2.msra.mxu0 0.0
    %4578 = vmatprep.subr.mxu0 0.0
    %4579 = vmatpush2.msra.mxu0 0.0
    %4580 = vmatprep.subr.mxu0 0.0
    %4581 = vmatpush2.msra.mxu0 0.0
    %4582 = vmatprep.subr.mxu0 0.0
    %4583 = vmatpush2.msra.mxu0 0.0
    %4584 = vmatprep.subr.mxu0 0.0
    %4585 = vmatpush2.msra.mxu0 0.0
    %4586 = vmatprep.mubr.f32.mxu0 0.0
    %4587 = vmatmul.mubr.f32.gmra.mxu0 %v4517
    %v4588 = vpop.f32.mrf.mxu0
    %v4589 = vadd.f32 0.0, %v4588
    %v4590 = vpop.f32.mrf.mxu0
    %4591 = vmatprep.mubr.f32.mxu0 0.0
    %4592 = vmatmul.mubr.f32.gmra.mxu0 %v4520
    %v4593 = vpop.f32.mrf.mxu0
    %v4594 = vadd.f32 0.0, %v4593
    %v4595 = vpop.f32.mrf.mxu0
    %4596 = vdwg.mxu0
    %v4598 = vsel %vm350, %v4105, 0
    %v4601 = vsel %vm350, %v4181, 0
    %4603 = vmatprep.subr.mxu0 0.0
    %4604 = vmatpush1.msra.mxu0 0.0
    %4605 = vmatprep.subr.mxu0 0.0
    %4606 = vmatpush1.msra.mxu0 0.0
    %4607 = vmatprep.subr.mxu0 0.0
    %4608 = vmatpush1.msra.mxu0 0.0
    %4609 = vmatprep.subr.mxu0 0.0
    %4610 = vmatpush1.msra.mxu0 0.0
    %4611 = vmatprep.subr.mxu0 0.0
    %4612 = vmatpush1.msra.mxu0 0.0
    %4613 = vmatprep.subr.mxu0 0.0
    %4614 = vmatpush1.msra.mxu0 0.0
    %4615 = vmatprep.subr.mxu0 0.0
    %4616 = vmatpush1.msra.mxu0 0.0
    %4617 = vmatprep.subr.mxu0 0.0
    %4618 = vmatpush1.msra.mxu0 0.0
    %4619 = vmatprep.subr.mxu0 0.0
    %4620 = vmatpush1.msra.mxu0 0.0
    %4621 = vmatprep.subr.mxu0 0.0
    %4622 = vmatpush1.msra.mxu0 0.0
    %4623 = vmatprep.subr.mxu0 0.0
    %4624 = vmatpush1.msra.mxu0 0.0
    %4625 = vmatprep.subr.mxu0 0.0
    %4626 = vmatpush1.msra.mxu0 0.0
    %4627 = vmatprep.subr.mxu0 0.0
    %4628 = vmatpush1.msra.mxu0 0.0
    %4629 = vmatprep.subr.mxu0 0.0
    %4630 = vmatpush1.msra.mxu0 0.0
    %4631 = vmatprep.subr.mxu0 0.0
    %4632 = vmatpush1.msra.mxu0 %v3853
    %4633 = vmatprep.subr.mxu0 0.0
    %4634 = vmatpush1.msra.mxu0 %v3852
    %4635 = vmatprep.subr.mxu0 0.0
    %4636 = vmatpush2.msra.mxu0 0.0
    %4637 = vmatprep.subr.mxu0 0.0
    %4638 = vmatpush2.msra.mxu0 0.0
    %4639 = vmatprep.subr.mxu0 0.0
    %4640 = vmatpush2.msra.mxu0 0.0
    %4641 = vmatprep.subr.mxu0 0.0
    %4642 = vmatpush2.msra.mxu0 0.0
    %4643 = vmatprep.subr.mxu0 0.0
    %4644 = vmatpush2.msra.mxu0 0.0
    %4645 = vmatprep.subr.mxu0 0.0
    %4646 = vmatpush2.msra.mxu0 0.0
    %4647 = vmatprep.subr.mxu0 0.0
    %4648 = vmatpush2.msra.mxu0 0.0
    %4649 = vmatprep.subr.mxu0 0.0
    %4650 = vmatpush2.msra.mxu0 0.0
    %4651 = vmatprep.subr.mxu0 0.0
    %4652 = vmatpush2.msra.mxu0 0.0
    %4653 = vmatprep.subr.mxu0 0.0
    %4654 = vmatpush2.msra.mxu0 0.0
    %4655 = vmatprep.subr.mxu0 0.0
    %4656 = vmatpush2.msra.mxu0 0.0
    %4657 = vmatprep.subr.mxu0 0.0
    %4658 = vmatpush2.msra.mxu0 0.0
    %4659 = vmatprep.subr.mxu0 0.0
    %4660 = vmatpush2.msra.mxu0 0.0
    %4661 = vmatprep.subr.mxu0 0.0
    %4662 = vmatpush2.msra.mxu0 0.0
    %4663 = vmatprep.subr.mxu0 0.0
    %4664 = vmatpush2.msra.mxu0 0.0
    %4665 = vmatprep.subr.mxu0 0.0
    %4666 = vmatpush2.msra.mxu0 0.0
    %4667 = vmatprep.mubr.f32.mxu0 0.0
    %4668 = vmatmul.mubr.f32.gmra.mxu0 %v4598
    %v4669 = vpop.f32.mrf.mxu0
    %v4670 = vadd.f32 %v4589, %v4669
    %v4671 = vpop.f32.mrf.mxu0
    %4672 = vmatprep.mubr.f32.mxu0 0.0
    %4673 = vmatmul.mubr.f32.gmra.mxu0 %v4601
    %v4674 = vpop.f32.mrf.mxu0
    %v4675 = vadd.f32 %v4594, %v4674
    %v4676 = vpop.f32.mrf.mxu0
    %4677 = vdwg.mxu0
    %v4678 = vlaneseq
    %v4679 = vshrl.u32 %v4678, 7
    %v4680 = vsub.s32 2, %v4679
    %v4681 = vrot.slane %v2699, %v4680
    %v4682 = vadd.f32 %v4670, %v4681
    %v4683 = vadd.f32 %v4675, %v4681
    %v4684 = vadd.f32 %v3669, %v4682
    %v4685 = vadd.f32 %v3670, %v4683
    %v4686 = vsel %vm261, %v4684, 0.0
    %4687 = vadd.xlane.f32.xlu0 %v4686
    %v4688 = vpop.xlane.xlu0 %4687
    %v4689 = vsel %vm261, %v4685, 0.0
    %4690 = vadd.xlane.f32.xlu0 %v4689
    %v4691 = vpop.xlane.xlu0 %4690
    %v4692 = vmul.f32 %v4688, %v1201
    %v4693 = vmul.f32 %v4691, %v1201
    %v4694 = vsub.f32 %v4684, %v4692
    %v4695 = vsub.f32 %v4685, %v4693
    %v4696 = vmul.f32 %v4694, %v4694
    %v4697 = vmul.f32 %v4695, %v4695
    %v4698 = vsel %vm261, %v4696, 0.0
    %4699 = vadd.xlane.f32.xlu0 %v4698
    %v4700 = vpop.xlane.xlu0 %4699
    %v4701 = vsel %vm261, %v4697, 0.0
    %4702 = vadd.xlane.f32.xlu0 %v4701
    %v4703 = vpop.xlane.xlu0 %4702
    %v4704 = vmul.f32 %v4700, %v1201
    %v4705 = vmul.f32 %v4703, %v1201
    %v4706 = vadd.f32 %v4704, 1e-05
    %v4707 = vadd.f32 %v4705, 1e-05
    %v4708 = vrsqrt.pop %v4706
    %v4709 = vrsqrt.pop %v4707
    %v4710 = vmul.f32 %v4694, %v4708
    %v4711 = vmul.f32 %v4695, %v4709
    %v4712 = vlaneseq
    %v4713 = vshrl.u32 %v4712, 7
    %v4714 = vsub.s32 6, %v4713
    %v4715 = vrot.slane %v2699, %v4714
    %v4716 = vmul.f32 %v4710, %v4715
    %v4717 = vmul.f32 %v4711, %v4715
    %v4718 = vlaneseq
    %v4719 = vshrl.u32 %v4718, 7
    %v4720 = vsub.s32 7, %v4719
    %v4721 = vrot.slane %v2699, %v4720
    %v4722 = vadd.f32 %v4716, %v4721
    %v4723 = vadd.f32 %v4717, %v4721
    %v4724 = vld [vmem:[%s17] sm:$0xff]
    %v4725 = vld [vmem:[%s17 + $0x8] sm:$0xff]
    %v4726 = vld [vmem:[%s17 + $0x10] sm:$0xff]
    %v4727 = vld [vmem:[%s17 + $0x18] sm:$0xff]
    %v4728 = vld [vmem:[%s9] sm:$0x1]
    %v4730 = vlaneseq
    %v4731 = vshrl.u32 %v4730, 7
    %v4732 = vsub.s32 0, %v4731
    %v4733 = vrot.slane %v4728, %v4732
    %v4736 = vsel %vm261, %v4722, 0
    %v4739 = vsel %vm261, %v4723, 0
    %4741 = vmatprep.subr.mxu0 0.0
    %4742 = vmatpush1.msra.mxu0 0.0
    %4743 = vmatprep.subr.mxu0 0.0
    %4744 = vmatpush1.msra.mxu0 0.0
    %4745 = vmatprep.subr.mxu0 0.0
    %4746 = vmatpush1.msra.mxu0 0.0
    %4747 = vmatprep.subr.mxu0 0.0
    %4748 = vmatpush1.msra.mxu0 0.0
    %4749 = vmatprep.subr.mxu0 0.0
    %4750 = vmatpush1.msra.mxu0 0.0
    %4751 = vmatprep.subr.mxu0 0.0
    %4752 = vmatpush1.msra.mxu0 0.0
    %4753 = vmatprep.subr.mxu0 0.0
    %4754 = vmatpush1.msra.mxu0 0.0
    %4755 = vmatprep.subr.mxu0 0.0
    %4756 = vmatpush1.msra.mxu0 0.0
    %4757 = vmatprep.subr.mxu0 0.0
    %4758 = vmatpush1.msra.mxu0 0.0
    %4759 = vmatprep.subr.mxu0 0.0
    %4760 = vmatpush1.msra.mxu0 0.0
    %4761 = vmatprep.subr.mxu0 0.0
    %4762 = vmatpush1.msra.mxu0 0.0
    %4763 = vmatprep.subr.mxu0 0.0
    %4764 = vmatpush1.msra.mxu0 0.0
    %4765 = vmatprep.subr.mxu0 0.0
    %4766 = vmatpush1.msra.mxu0 %v4727
    %4767 = vmatprep.subr.mxu0 0.0
    %4768 = vmatpush1.msra.mxu0 %v4726
    %4769 = vmatprep.subr.mxu0 0.0
    %4770 = vmatpush1.msra.mxu0 %v4725
    %4771 = vmatprep.subr.mxu0 0.0
    %4772 = vmatpush1.msra.mxu0 %v4724
    %4773 = vmatprep.subr.mxu0 0.0
    %4774 = vmatpush2.msra.mxu0 0.0
    %4775 = vmatprep.subr.mxu0 0.0
    %4776 = vmatpush2.msra.mxu0 0.0
    %4777 = vmatprep.subr.mxu0 0.0
    %4778 = vmatpush2.msra.mxu0 0.0
    %4779 = vmatprep.subr.mxu0 0.0
    %4780 = vmatpush2.msra.mxu0 0.0
    %4781 = vmatprep.subr.mxu0 0.0
    %4782 = vmatpush2.msra.mxu0 0.0
    %4783 = vmatprep.subr.mxu0 0.0
    %4784 = vmatpush2.msra.mxu0 0.0
    %4785 = vmatprep.subr.mxu0 0.0
    %4786 = vmatpush2.msra.mxu0 0.0
    %4787 = vmatprep.subr.mxu0 0.0
    %4788 = vmatpush2.msra.mxu0 0.0
    %4789 = vmatprep.subr.mxu0 0.0
    %4790 = vmatpush2.msra.mxu0 0.0
    %4791 = vmatprep.subr.mxu0 0.0
    %4792 = vmatpush2.msra.mxu0 0.0
    %4793 = vmatprep.subr.mxu0 0.0
    %4794 = vmatpush2.msra.mxu0 0.0
    %4795 = vmatprep.subr.mxu0 0.0
    %4796 = vmatpush2.msra.mxu0 0.0
    %4797 = vmatprep.subr.mxu0 0.0
    %4798 = vmatpush2.msra.mxu0 0.0
    %4799 = vmatprep.subr.mxu0 0.0
    %4800 = vmatpush2.msra.mxu0 0.0
    %4801 = vmatprep.subr.mxu0 0.0
    %4802 = vmatpush2.msra.mxu0 0.0
    %4803 = vmatprep.subr.mxu0 0.0
    %4804 = vmatpush2.msra.mxu0 0.0
    %4805 = vmatprep.mubr.f32.mxu0 0.0
    %4806 = vmatmul.mubr.f32.gmra.mxu0 %v4736
    %v4807 = vpop.f32.mrf.mxu0
    %v4808 = vadd.f32 %v4733, %v4807
    %v4809 = vpop.f32.mrf.mxu0
    %4810 = vmatprep.mubr.f32.mxu0 0.0
    %4811 = vmatmul.mubr.f32.gmra.mxu0 %v4739
    %v4812 = vpop.f32.mrf.mxu0
    %v4813 = vadd.f32 %v4733, %v4812
    %v4814 = vpop.f32.mrf.mxu0
    %4815 = vdwg.mxu0
    %v4816 = vmax.f32 %v4808, 0.0
    %v4817 = vmax.f32 %v4813, 0.0
    %v4818 = vld [vmem:[%s19] sm:$0xff]
    %v4819 = vld [vmem:[%s19 + $0x8] sm:$0xff]
    %v4820 = vld [vmem:[%s19 + $0x10] sm:$0xff]
    %v4821 = vld [vmem:[%s19 + $0x18] sm:$0xff]
    %v4822 = vld [vmem:[%s19 + $0x20] sm:$0xff]
    %v4823 = vld [vmem:[%s19 + $0x28] sm:$0xff]
    %v4824 = vld [vmem:[%s19 + $0x30] sm:$0xff]
    %v4825 = vld [vmem:[%s19 + $0x38] sm:$0xff]
    %v4826 = vlaneseq
    %v4827 = vshrl.u32 %v4826, 7
    %v4828 = vsub.s32 3, %v4827
    %v4829 = vrot.slane %v2699, %v4828
    %v4831 = vsel %vm1340, %v4816, 0
    %v4834 = vsel %vm1340, %v4817, 0
    %4836 = vmatprep.subr.mxu0 0.0
    %4837 = vmatpush1.msra.mxu0 0.0
    %4838 = vmatprep.subr.mxu0 0.0
    %4839 = vmatpush1.msra.mxu0 0.0
    %4840 = vmatprep.subr.mxu0 0.0
    %4841 = vmatpush1.msra.mxu0 0.0
    %4842 = vmatprep.subr.mxu0 0.0
    %4843 = vmatpush1.msra.mxu0 0.0
    %4844 = vmatprep.subr.mxu0 0.0
    %4845 = vmatpush1.msra.mxu0 0.0
    %4846 = vmatprep.subr.mxu0 0.0
    %4847 = vmatpush1.msra.mxu0 0.0
    %4848 = vmatprep.subr.mxu0 0.0
    %4849 = vmatpush1.msra.mxu0 0.0
    %4850 = vmatprep.subr.mxu0 0.0
    %4851 = vmatpush1.msra.mxu0 0.0
    %4852 = vmatprep.subr.mxu0 0.0
    %4853 = vmatpush1.msra.mxu0 %v4825
    %4854 = vmatprep.subr.mxu0 0.0
    %4855 = vmatpush1.msra.mxu0 %v4824
    %4856 = vmatprep.subr.mxu0 0.0
    %4857 = vmatpush1.msra.mxu0 %v4823
    %4858 = vmatprep.subr.mxu0 0.0
    %4859 = vmatpush1.msra.mxu0 %v4822
    %4860 = vmatprep.subr.mxu0 0.0
    %4861 = vmatpush1.msra.mxu0 %v4821
    %4862 = vmatprep.subr.mxu0 0.0
    %4863 = vmatpush1.msra.mxu0 %v4820
    %4864 = vmatprep.subr.mxu0 0.0
    %4865 = vmatpush1.msra.mxu0 %v4819
    %4866 = vmatprep.subr.mxu0 0.0
    %4867 = vmatpush1.msra.mxu0 %v4818
    %4868 = vmatprep.subr.mxu0 0.0
    %4869 = vmatpush2.msra.mxu0 0.0
    %4870 = vmatprep.subr.mxu0 0.0
    %4871 = vmatpush2.msra.mxu0 0.0
    %4872 = vmatprep.subr.mxu0 0.0
    %4873 = vmatpush2.msra.mxu0 0.0
    %4874 = vmatprep.subr.mxu0 0.0
    %4875 = vmatpush2.msra.mxu0 0.0
    %4876 = vmatprep.subr.mxu0 0.0
    %4877 = vmatpush2.msra.mxu0 0.0
    %4878 = vmatprep.subr.mxu0 0.0
    %4879 = vmatpush2.msra.mxu0 0.0
    %4880 = vmatprep.subr.mxu0 0.0
    %4881 = vmatpush2.msra.mxu0 0.0
    %4882 = vmatprep.subr.mxu0 0.0
    %4883 = vmatpush2.msra.mxu0 0.0
    %4884 = vmatprep.subr.mxu0 0.0
    %4885 = vmatpush2.msra.mxu0 0.0
    %4886 = vmatprep.subr.mxu0 0.0
    %4887 = vmatpush2.msra.mxu0 0.0
    %4888 = vmatprep.subr.mxu0 0.0
    %4889 = vmatpush2.msra.mxu0 0.0
    %4890 = vmatprep.subr.mxu0 0.0
    %4891 = vmatpush2.msra.mxu0 0.0
    %4892 = vmatprep.subr.mxu0 0.0
    %4893 = vmatpush2.msra.mxu0 0.0
    %4894 = vmatprep.subr.mxu0 0.0
    %4895 = vmatpush2.msra.mxu0 0.0
    %4896 = vmatprep.subr.mxu0 0.0
    %4897 = vmatpush2.msra.mxu0 0.0
    %4898 = vmatprep.subr.mxu0 0.0
    %4899 = vmatpush2.msra.mxu0 0.0
    %4900 = vmatprep.mubr.f32.mxu0 0.0
    %4901 = vmatmul.mubr.f32.gmra.mxu0 %v4831
    %v4902 = vpop.f32.mrf.mxu0
    %v4903 = vadd.f32 %v4829, %v4902
    %v4904 = vpop.f32.mrf.mxu0
    %4905 = vmatprep.mubr.f32.mxu0 0.0
    %4906 = vmatmul.mubr.f32.gmra.mxu0 %v4834
    %v4907 = vpop.f32.mrf.mxu0
    %v4908 = vadd.f32 %v4829, %v4907
    %v4909 = vpop.f32.mrf.mxu0
    %4910 = vdwg.mxu0
    %v4911 = vadd.f32 %v4722, %v4903
    %v4912 = vadd.f32 %v4723, %v4908
    %v4913 = vsel %vm261, %v4911, 0.0
    %4914 = vadd.xlane.f32.xlu0 %v4913
    %v4915 = vpop.xlane.xlu0 %4914
    %v4916 = vsel %vm261, %v4912, 0.0
    %4917 = vadd.xlane.f32.xlu0 %v4916
    %v4918 = vpop.xlane.xlu0 %4917
    %v4919 = vmul.f32 %v4915, %v1201
    %v4920 = vmul.f32 %v4918, %v1201
    %v4921 = vsub.f32 %v4911, %v4919
    %v4922 = vsub.f32 %v4912, %v4920
    %v4923 = vmul.f32 %v4921, %v4921
    %v4924 = vmul.f32 %v4922, %v4922
    %v4925 = vsel %vm261, %v4923, 0.0
    %4926 = vadd.xlane.f32.xlu0 %v4925
    %v4927 = vpop.xlane.xlu0 %4926
    %v4928 = vsel %vm261, %v4924, 0.0
    %4929 = vadd.xlane.f32.xlu0 %v4928
    %v4930 = vpop.xlane.xlu0 %4929
    %v4931 = vmul.f32 %v4927, %v1201
    %v4932 = vmul.f32 %v4930, %v1201
    %v4933 = vadd.f32 %v4931, 1e-05
    %v4934 = vadd.f32 %v4932, 1e-05
    %v4935 = vrsqrt.pop %v4933
    %v4936 = vrsqrt.pop %v4934
    %v4937 = vmul.f32 %v4921, %v4935
    %v4938 = vmul.f32 %v4922, %v4936
    %v4939 = vlaneseq
    %v4940 = vshrl.u32 %v4939, 7
    %v4941 = vsub.s32 0, %v4940
    %v4942 = vrot.slane %v2700, %v4941
    %v4943 = vmul.f32 %v4937, %v4942
    %v4944 = vmul.f32 %v4938, %v4942
    %v4945 = vlaneseq
    %v4946 = vshrl.u32 %v4945, 7
    %v4947 = vsub.s32 1, %v4946
    %v4948 = vrot.slane %v2700, %v4947
    %v4949 = vadd.f32 %v4943, %v4948
    %v4950 = vadd.f32 %v4944, %v4948
    %v4951 = vld [vmem:[%s37] sm:$0xff]
    %v4952 = vld [vmem:[%s37 + $0x8] sm:$0x3]
    %v4953 = vld [vmem:[%s51] sm:$0xff]
    %v4954 = vld [vmem:[%s51 + $0x8] sm:$0xff]
    %v4955 = vld [vmem:[%s51 + $0x10] sm:$0xff]
    %v4956 = vld [vmem:[%s51 + $0x18] sm:$0xff]
    %v4957 = vld [vmem:[%s35] sm:$0x1]
    %v4959 = vlaneseq
    %v4960 = vshrl.u32 %v4959, 7
    %v4961 = vsub.s32 0, %v4960
    %v4962 = vrot.slane %v4957, %v4961
    %v4965 = vsel %vm261, %v4949, 0
    %v4968 = vsel %vm261, %v4950, 0
    %4970 = vmatprep.subr.mxu0 0.0
    %4971 = vmatpush1.msra.mxu0 0.0
    %4972 = vmatprep.subr.mxu0 0.0
    %4973 = vmatpush1.msra.mxu0 0.0
    %4974 = vmatprep.subr.mxu0 0.0
    %4975 = vmatpush1.msra.mxu0 0.0
    %4976 = vmatprep.subr.mxu0 0.0
    %4977 = vmatpush1.msra.mxu0 0.0
    %4978 = vmatprep.subr.mxu0 0.0
    %4979 = vmatpush1.msra.mxu0 0.0
    %4980 = vmatprep.subr.mxu0 0.0
    %4981 = vmatpush1.msra.mxu0 0.0
    %4982 = vmatprep.subr.mxu0 0.0
    %4983 = vmatpush1.msra.mxu0 0.0
    %4984 = vmatprep.subr.mxu0 0.0
    %4985 = vmatpush1.msra.mxu0 0.0
    %4986 = vmatprep.subr.mxu0 0.0
    %4987 = vmatpush1.msra.mxu0 0.0
    %4988 = vmatprep.subr.mxu0 0.0
    %4989 = vmatpush1.msra.mxu0 0.0
    %4990 = vmatprep.subr.mxu0 0.0
    %4991 = vmatpush1.msra.mxu0 0.0
    %4992 = vmatprep.subr.mxu0 0.0
    %4993 = vmatpush1.msra.mxu0 0.0
    %4994 = vmatprep.subr.mxu0 0.0
    %4995 = vmatpush1.msra.mxu0 %v4956
    %4996 = vmatprep.subr.mxu0 0.0
    %4997 = vmatpush1.msra.mxu0 %v4955
    %4998 = vmatprep.subr.mxu0 0.0
    %4999 = vmatpush1.msra.mxu0 %v4954
    %5000 = vmatprep.subr.mxu0 0.0
    %5001 = vmatpush1.msra.mxu0 %v4953
    %5002 = vmatprep.subr.mxu0 0.0
    %5003 = vmatpush2.msra.mxu0 0.0
    %5004 = vmatprep.subr.mxu0 0.0
    %5005 = vmatpush2.msra.mxu0 0.0
    %5006 = vmatprep.subr.mxu0 0.0
    %5007 = vmatpush2.msra.mxu0 0.0
    %5008 = vmatprep.subr.mxu0 0.0
    %5009 = vmatpush2.msra.mxu0 0.0
    %5010 = vmatprep.subr.mxu0 0.0
    %5011 = vmatpush2.msra.mxu0 0.0
    %5012 = vmatprep.subr.mxu0 0.0
    %5013 = vmatpush2.msra.mxu0 0.0
    %5014 = vmatprep.subr.mxu0 0.0
    %5015 = vmatpush2.msra.mxu0 0.0
    %5016 = vmatprep.subr.mxu0 0.0
    %5017 = vmatpush2.msra.mxu0 0.0
    %5018 = vmatprep.subr.mxu0 0.0
    %5019 = vmatpush2.msra.mxu0 0.0
    %5020 = vmatprep.subr.mxu0 0.0
    %5021 = vmatpush2.msra.mxu0 0.0
    %5022 = vmatprep.subr.mxu0 0.0
    %5023 = vmatpush2.msra.mxu0 0.0
    %5024 = vmatprep.subr.mxu0 0.0
    %5025 = vmatpush2.msra.mxu0 0.0
    %5026 = vmatprep.subr.mxu0 0.0
    %5027 = vmatpush2.msra.mxu0 0.0
    %5028 = vmatprep.subr.mxu0 0.0
    %5029 = vmatpush2.msra.mxu0 0.0
    %5030 = vmatprep.subr.mxu0 0.0
    %5031 = vmatpush2.msra.mxu0 0.0
    %5032 = vmatprep.subr.mxu0 0.0
    %5033 = vmatpush2.msra.mxu0 0.0
    %5034 = vmatprep.mubr.f32.mxu0 0.0
    %5035 = vmatmul.mubr.f32.gmra.mxu0 %v4965
    %v5036 = vpop.f32.mrf.mxu0
    %v5037 = vadd.f32 %v4962, %v5036
    %v5038 = vpop.f32.mrf.mxu0
    %5039 = vmatprep.mubr.f32.mxu0 0.0
    %5040 = vmatmul.mubr.f32.gmra.mxu0 %v4968
    %v5041 = vpop.f32.mrf.mxu0
    %v5042 = vadd.f32 %v4962, %v5041
    %v5043 = vpop.f32.mrf.mxu0
    %5044 = vdwg.mxu0
    %v5045 = vld [vmem:[%s47] sm:$0xff]
    %v5046 = vld [vmem:[%s47 + $0x8] sm:$0xff]
    %v5047 = vld [vmem:[%s47 + $0x10] sm:$0xff]
    %v5048 = vld [vmem:[%s47 + $0x18] sm:$0xff]
    %5050 = vrot.lane.b32.xlu0 %v5037, 96
    %v5051 = vpop.permute.xlu0 %5050
    %v5052 = vsel %vm350, %v5037, 0
    %v5054 = vsel %vm350, %v5051, 0
    %5056 = vmatprep.subr.mxu0 0.0
    %5057 = vmatpush1.xpose.msra.mxu0 0.0
    %5058 = vmatprep.subr.mxu0 0.0
    %5059 = vmatpush1.xpose.msra.mxu0 0.0
    %5060 = vmatprep.subr.mxu0 0.0
    %5061 = vmatpush1.xpose.msra.mxu0 0.0
    %5062 = vmatprep.subr.mxu0 0.0
    %5063 = vmatpush1.xpose.msra.mxu0 0.0
    %5064 = vmatprep.subr.mxu0 0.0
    %5065 = vmatpush1.xpose.msra.mxu0 0.0
    %5066 = vmatprep.subr.mxu0 0.0
    %5067 = vmatpush1.xpose.msra.mxu0 0.0
    %5068 = vmatprep.subr.mxu0 0.0
    %5069 = vmatpush1.xpose.msra.mxu0 0.0
    %5070 = vmatprep.subr.mxu0 0.0
    %5071 = vmatpush1.xpose.msra.mxu0 0.0
    %5072 = vmatprep.subr.mxu0 0.0
    %5073 = vmatpush1.xpose.msra.mxu0 0.0
    %5074 = vmatprep.subr.mxu0 0.0
    %5075 = vmatpush1.xpose.msra.mxu0 0.0
    %5076 = vmatprep.subr.mxu0 0.0
    %5077 = vmatpush1.xpose.msra.mxu0 0.0
    %5078 = vmatprep.subr.mxu0 0.0
    %5079 = vmatpush1.xpose.msra.mxu0 0.0
    %5080 = vmatprep.subr.mxu0 0.0
    %5081 = vmatpush1.xpose.msra.mxu0 0.0
    %5082 = vmatprep.subr.mxu0 0.0
    %5083 = vmatpush1.xpose.msra.mxu0 0.0
    %5084 = vmatprep.subr.mxu0 0.0
    %5085 = vmatpush1.xpose.msra.mxu0 0.0
    %5086 = vmatprep.subr.mxu0 0.0
    %5087 = vmatpush1.xpose.msra.mxu0 %v5054
    %5088 = vmatprep.subr.mxu0 0.0
    %5089 = vmatpush2.xpose.msra.mxu0 0.0
    %5090 = vmatprep.subr.mxu0 0.0
    %5091 = vmatpush2.xpose.msra.mxu0 0.0
    %5092 = vmatprep.subr.mxu0 0.0
    %5093 = vmatpush2.xpose.msra.mxu0 0.0
    %5094 = vmatprep.subr.mxu0 0.0
    %5095 = vmatpush2.xpose.msra.mxu0 0.0
    %5096 = vmatprep.subr.mxu0 0.0
    %5097 = vmatpush2.xpose.msra.mxu0 0.0
    %5098 = vmatprep.subr.mxu0 0.0
    %5099 = vmatpush2.xpose.msra.mxu0 0.0
    %5100 = vmatprep.subr.mxu0 0.0
    %5101 = vmatpush2.xpose.msra.mxu0 0.0
    %5102 = vmatprep.subr.mxu0 0.0
    %5103 = vmatpush2.xpose.msra.mxu0 0.0
    %5104 = vmatprep.subr.mxu0 0.0
    %5105 = vmatpush2.xpose.msra.mxu0 0.0
    %5106 = vmatprep.subr.mxu0 0.0
    %5107 = vmatpush2.xpose.msra.mxu0 0.0
    %5108 = vmatprep.subr.mxu0 0.0
    %5109 = vmatpush2.xpose.msra.mxu0 0.0
    %5110 = vmatprep.subr.mxu0 0.0
    %5111 = vmatpush2.xpose.msra.mxu0 0.0
    %5112 = vmatprep.subr.mxu0 0.0
    %5113 = vmatpush2.xpose.msra.mxu0 0.0
    %5114 = vmatprep.subr.mxu0 0.0
    %5115 = vmatpush2.xpose.msra.mxu0 0.0
    %5116 = vmatprep.subr.mxu0 0.0
    %5117 = vmatpush2.xpose.msra.mxu0 0.0
    %5118 = vmatprep.subr.mxu0 0.0
    %5119 = vmatpush2.xpose.msra.mxu0 0.0
    %5120 = vmatprep.mubr.f32.mxu0 0.0
    %5121 = vmatmul.mubr.f32.gmra.mxu0 %v5052
    %v5122 = vpop.f32.mrf.mxu0
    %v5123 = vadd.f32 0.0, %v5122
    %v5124 = vpop.f32.mrf.mxu0
    %5125 = vdwg.mxu0
    %5127 = vrot.lane.b32.xlu0 %v5042, 96
    %v5128 = vpop.permute.xlu0 %5127
    %v5129 = vsel %vm350, %v5042, 0
    %v5131 = vsel %vm350, %v5128, 0
    %5133 = vmatprep.subr.mxu0 0.0
    %5134 = vmatpush1.xpose.msra.mxu0 0.0
    %5135 = vmatprep.subr.mxu0 0.0
    %5136 = vmatpush1.xpose.msra.mxu0 0.0
    %5137 = vmatprep.subr.mxu0 0.0
    %5138 = vmatpush1.xpose.msra.mxu0 0.0
    %5139 = vmatprep.subr.mxu0 0.0
    %5140 = vmatpush1.xpose.msra.mxu0 0.0
    %5141 = vmatprep.subr.mxu0 0.0
    %5142 = vmatpush1.xpose.msra.mxu0 0.0
    %5143 = vmatprep.subr.mxu0 0.0
    %5144 = vmatpush1.xpose.msra.mxu0 0.0
    %5145 = vmatprep.subr.mxu0 0.0
    %5146 = vmatpush1.xpose.msra.mxu0 0.0
    %5147 = vmatprep.subr.mxu0 0.0
    %5148 = vmatpush1.xpose.msra.mxu0 0.0
    %5149 = vmatprep.subr.mxu0 0.0
    %5150 = vmatpush1.xpose.msra.mxu0 0.0
    %5151 = vmatprep.subr.mxu0 0.0
    %5152 = vmatpush1.xpose.msra.mxu0 0.0
    %5153 = vmatprep.subr.mxu0 0.0
    %5154 = vmatpush1.xpose.msra.mxu0 0.0
    %5155 = vmatprep.subr.mxu0 0.0
    %5156 = vmatpush1.xpose.msra.mxu0 0.0
    %5157 = vmatprep.subr.mxu0 0.0
    %5158 = vmatpush1.xpose.msra.mxu0 0.0
    %5159 = vmatprep.subr.mxu0 0.0
    %5160 = vmatpush1.xpose.msra.mxu0 0.0
    %5161 = vmatprep.subr.mxu0 0.0
    %5162 = vmatpush1.xpose.msra.mxu0 0.0
    %5163 = vmatprep.subr.mxu0 0.0
    %5164 = vmatpush1.xpose.msra.mxu0 %v5131
    %5165 = vmatprep.subr.mxu0 0.0
    %5166 = vmatpush2.xpose.msra.mxu0 0.0
    %5167 = vmatprep.subr.mxu0 0.0
    %5168 = vmatpush2.xpose.msra.mxu0 0.0
    %5169 = vmatprep.subr.mxu0 0.0
    %5170 = vmatpush2.xpose.msra.mxu0 0.0
    %5171 = vmatprep.subr.mxu0 0.0
    %5172 = vmatpush2.xpose.msra.mxu0 0.0
    %5173 = vmatprep.subr.mxu0 0.0
    %5174 = vmatpush2.xpose.msra.mxu0 0.0
    %5175 = vmatprep.subr.mxu0 0.0
    %5176 = vmatpush2.xpose.msra.mxu0 0.0
    %5177 = vmatprep.subr.mxu0 0.0
    %5178 = vmatpush2.xpose.msra.mxu0 0.0
    %5179 = vmatprep.subr.mxu0 0.0
    %5180 = vmatpush2.xpose.msra.mxu0 0.0
    %5181 = vmatprep.subr.mxu0 0.0
    %5182 = vmatpush2.xpose.msra.mxu0 0.0
    %5183 = vmatprep.subr.mxu0 0.0
    %5184 = vmatpush2.xpose.msra.mxu0 0.0
    %5185 = vmatprep.subr.mxu0 0.0
    %5186 = vmatpush2.xpose.msra.mxu0 0.0
    %5187 = vmatprep.subr.mxu0 0.0
    %5188 = vmatpush2.xpose.msra.mxu0 0.0
    %5189 = vmatprep.subr.mxu0 0.0
    %5190 = vmatpush2.xpose.msra.mxu0 0.0
    %5191 = vmatprep.subr.mxu0 0.0
    %5192 = vmatpush2.xpose.msra.mxu0 0.0
    %5193 = vmatprep.subr.mxu0 0.0
    %5194 = vmatpush2.xpose.msra.mxu0 0.0
    %5195 = vmatprep.subr.mxu0 0.0
    %5196 = vmatpush2.xpose.msra.mxu0 0.0
    %5197 = vmatprep.mubr.f32.mxu0 0.0
    %5198 = vmatmul.mubr.f32.gmra.mxu0 %v5129
    %v5199 = vpop.f32.mrf.mxu0
    %v5200 = vadd.f32 0.0, %v5199
    %v5201 = vpop.f32.mrf.mxu0
    %5202 = vdwg.mxu0
    %v5203 = vmul.f32 %v5123, 0.25
    %v5204 = vmul.f32 %v5200, 0.25
    %v5205 = vadd.f32 %v5203, %v247
    %v5206 = vadd.f32 %v5204, %v248
    %v5207 = vsel %vm516, %v5205, -inf
    %5208 = vmax.xlane.f32.xlu0 %v5207
    %v5209 = vpop.xlane.xlu0 %5208
    %v5210 = vsel %vm516, %v5206, -inf
    %5211 = vmax.xlane.f32.xlu0 %v5210
    %v5212 = vpop.xlane.xlu0 %5211
    %v5213 = vsub.f32 %v5205, %v5209
    %v5214 = vsub.f32 %v5206, %v5212
    %v5215 = vmul.f32 %v5213, 1.442695
    %v5216 = vpow.pop %v5215
    %v5217 = vmul.f32 %v5214, 1.442695
    %v5218 = vpow.pop %v5217
    %v5219 = vsel %vm516, %v5216, 0.0
    %5220 = vadd.xlane.f32.xlu0 %v5219
    %v5221 = vpop.xlane.xlu0 %5220
    %v5222 = vsel %vm516, %v5218, 0.0
    %5223 = vadd.xlane.f32.xlu0 %v5222
    %v5224 = vpop.xlane.xlu0 %5223
    %v5225 = vrcp.pop %v5221
    %v5226 = vrcp.pop %v5224
    %v5227 = vmul.f32 %v5216, %v5225
    %v5228 = vmul.f32 %v5218, %v5226
    %5229 = vrot.lane.b32.xlu0 %v5037, 64
    %v5230 = vpop.permute.xlu0 %5229
    %v5233 = vsel %vm516, %v5227, 0
    %5235 = vmatprep.subr.mxu0 0.0
    %5236 = vmatpush1.msra.mxu0 0.0
    %5237 = vmatprep.subr.mxu0 0.0
    %5238 = vmatpush1.msra.mxu0 0.0
    %5239 = vmatprep.subr.mxu0 0.0
    %5240 = vmatpush1.msra.mxu0 0.0
    %5241 = vmatprep.subr.mxu0 0.0
    %5242 = vmatpush1.msra.mxu0 0.0
    %5243 = vmatprep.subr.mxu0 0.0
    %5244 = vmatpush1.msra.mxu0 0.0
    %5245 = vmatprep.subr.mxu0 0.0
    %5246 = vmatpush1.msra.mxu0 0.0
    %5247 = vmatprep.subr.mxu0 0.0
    %5248 = vmatpush1.msra.mxu0 0.0
    %5249 = vmatprep.subr.mxu0 0.0
    %5250 = vmatpush1.msra.mxu0 0.0
    %5251 = vmatprep.subr.mxu0 0.0
    %5252 = vmatpush1.msra.mxu0 0.0
    %5253 = vmatprep.subr.mxu0 0.0
    %5254 = vmatpush1.msra.mxu0 0.0
    %5255 = vmatprep.subr.mxu0 0.0
    %5256 = vmatpush1.msra.mxu0 0.0
    %5257 = vmatprep.subr.mxu0 0.0
    %5258 = vmatpush1.msra.mxu0 0.0
    %5259 = vmatprep.subr.mxu0 0.0
    %5260 = vmatpush1.msra.mxu0 0.0
    %5261 = vmatprep.subr.mxu0 0.0
    %5262 = vmatpush1.msra.mxu0 0.0
    %5263 = vmatprep.subr.mxu0 0.0
    %5264 = vmatpush1.msra.mxu0 0.0
    %5265 = vmatprep.subr.mxu0 0.0
    %5266 = vmatpush1.msra.mxu0 %v5230
    %5267 = vmatprep.subr.mxu0 0.0
    %5268 = vmatpush2.msra.mxu0 0.0
    %5269 = vmatprep.subr.mxu0 0.0
    %5270 = vmatpush2.msra.mxu0 0.0
    %5271 = vmatprep.subr.mxu0 0.0
    %5272 = vmatpush2.msra.mxu0 0.0
    %5273 = vmatprep.subr.mxu0 0.0
    %5274 = vmatpush2.msra.mxu0 0.0
    %5275 = vmatprep.subr.mxu0 0.0
    %5276 = vmatpush2.msra.mxu0 0.0
    %5277 = vmatprep.subr.mxu0 0.0
    %5278 = vmatpush2.msra.mxu0 0.0
    %5279 = vmatprep.subr.mxu0 0.0
    %5280 = vmatpush2.msra.mxu0 0.0
    %5281 = vmatprep.subr.mxu0 0.0
    %5282 = vmatpush2.msra.mxu0 0.0
    %5283 = vmatprep.subr.mxu0 0.0
    %5284 = vmatpush2.msra.mxu0 0.0
    %5285 = vmatprep.subr.mxu0 0.0
    %5286 = vmatpush2.msra.mxu0 0.0
    %5287 = vmatprep.subr.mxu0 0.0
    %5288 = vmatpush2.msra.mxu0 0.0
    %5289 = vmatprep.subr.mxu0 0.0
    %5290 = vmatpush2.msra.mxu0 0.0
    %5291 = vmatprep.subr.mxu0 0.0
    %5292 = vmatpush2.msra.mxu0 0.0
    %5293 = vmatprep.subr.mxu0 0.0
    %5294 = vmatpush2.msra.mxu0 0.0
    %5295 = vmatprep.subr.mxu0 0.0
    %5296 = vmatpush2.msra.mxu0 0.0
    %5297 = vmatprep.subr.mxu0 0.0
    %5298 = vmatpush2.msra.mxu0 0.0
    %5299 = vmatprep.mubr.f32.mxu0 0.0
    %5300 = vmatmul.mubr.f32.gmra.mxu0 %v5233
    %v5301 = vpop.f32.mrf.mxu0
    %v5302 = vadd.f32 0.0, %v5301
    %v5303 = vpop.f32.mrf.mxu0
    %5304 = vdwg.mxu0
    %5305 = vrot.lane.b32.xlu0 %v5042, 64
    %v5306 = vpop.permute.xlu0 %5305
    %v5309 = vsel %vm516, %v5228, 0
    %5311 = vmatprep.subr.mxu0 0.0
    %5312 = vmatpush1.msra.mxu0 0.0
    %5313 = vmatprep.subr.mxu0 0.0
    %5314 = vmatpush1.msra.mxu0 0.0
    %5315 = vmatprep.subr.mxu0 0.0
    %5316 = vmatpush1.msra.mxu0 0.0
    %5317 = vmatprep.subr.mxu0 0.0
    %5318 = vmatpush1.msra.mxu0 0.0
    %5319 = vmatprep.subr.mxu0 0.0
    %5320 = vmatpush1.msra.mxu0 0.0
    %5321 = vmatprep.subr.mxu0 0.0
    %5322 = vmatpush1.msra.mxu0 0.0
    %5323 = vmatprep.subr.mxu0 0.0
    %5324 = vmatpush1.msra.mxu0 0.0
    %5325 = vmatprep.subr.mxu0 0.0
    %5326 = vmatpush1.msra.mxu0 0.0
    %5327 = vmatprep.subr.mxu0 0.0
    %5328 = vmatpush1.msra.mxu0 0.0
    %5329 = vmatprep.subr.mxu0 0.0
    %5330 = vmatpush1.msra.mxu0 0.0
    %5331 = vmatprep.subr.mxu0 0.0
    %5332 = vmatpush1.msra.mxu0 0.0
    %5333 = vmatprep.subr.mxu0 0.0
    %5334 = vmatpush1.msra.mxu0 0.0
    %5335 = vmatprep.subr.mxu0 0.0
    %5336 = vmatpush1.msra.mxu0 0.0
    %5337 = vmatprep.subr.mxu0 0.0
    %5338 = vmatpush1.msra.mxu0 0.0
    %5339 = vmatprep.subr.mxu0 0.0
    %5340 = vmatpush1.msra.mxu0 0.0
    %5341 = vmatprep.subr.mxu0 0.0
    %5342 = vmatpush1.msra.mxu0 %v5306
    %5343 = vmatprep.subr.mxu0 0.0
    %5344 = vmatpush2.msra.mxu0 0.0
    %5345 = vmatprep.subr.mxu0 0.0
    %5346 = vmatpush2.msra.mxu0 0.0
    %5347 = vmatprep.subr.mxu0 0.0
    %5348 = vmatpush2.msra.mxu0 0.0
    %5349 = vmatprep.subr.mxu0 0.0
    %5350 = vmatpush2.msra.mxu0 0.0
    %5351 = vmatprep.subr.mxu0 0.0
    %5352 = vmatpush2.msra.mxu0 0.0
    %5353 = vmatprep.subr.mxu0 0.0
    %5354 = vmatpush2.msra.mxu0 0.0
    %5355 = vmatprep.subr.mxu0 0.0
    %5356 = vmatpush2.msra.mxu0 0.0
    %5357 = vmatprep.subr.mxu0 0.0
    %5358 = vmatpush2.msra.mxu0 0.0
    %5359 = vmatprep.subr.mxu0 0.0
    %5360 = vmatpush2.msra.mxu0 0.0
    %5361 = vmatprep.subr.mxu0 0.0
    %5362 = vmatpush2.msra.mxu0 0.0
    %5363 = vmatprep.subr.mxu0 0.0
    %5364 = vmatpush2.msra.mxu0 0.0
    %5365 = vmatprep.subr.mxu0 0.0
    %5366 = vmatpush2.msra.mxu0 0.0
    %5367 = vmatprep.subr.mxu0 0.0
    %5368 = vmatpush2.msra.mxu0 0.0
    %5369 = vmatprep.subr.mxu0 0.0
    %5370 = vmatpush2.msra.mxu0 0.0
    %5371 = vmatprep.subr.mxu0 0.0
    %5372 = vmatpush2.msra.mxu0 0.0
    %5373 = vmatprep.subr.mxu0 0.0
    %5374 = vmatpush2.msra.mxu0 0.0
    %5375 = vmatprep.mubr.f32.mxu0 0.0
    %5376 = vmatmul.mubr.f32.gmra.mxu0 %v5309
    %v5377 = vpop.f32.mrf.mxu0
    %v5378 = vadd.f32 0.0, %v5377
    %v5379 = vpop.f32.mrf.mxu0
    %5380 = vdwg.mxu0
    %5381 = vrot.lane.b32.xlu0 %v5037, 112
    %v5382 = vpop.permute.xlu0 %5381
    %5383 = vrot.lane.b32.xlu0 %v5037, 80
    %v5384 = vpop.permute.xlu0 %5383
    %v5385 = vsel %vm350, %v5382, 0
    %v5387 = vsel %vm350, %v5384, 0
    %5389 = vmatprep.subr.mxu0 0.0
    %5390 = vmatpush1.xpose.msra.mxu0 0.0
    %5391 = vmatprep.subr.mxu0 0.0
    %5392 = vmatpush1.xpose.msra.mxu0 0.0
    %5393 = vmatprep.subr.mxu0 0.0
    %5394 = vmatpush1.xpose.msra.mxu0 0.0
    %5395 = vmatprep.subr.mxu0 0.0
    %5396 = vmatpush1.xpose.msra.mxu0 0.0
    %5397 = vmatprep.subr.mxu0 0.0
    %5398 = vmatpush1.xpose.msra.mxu0 0.0
    %5399 = vmatprep.subr.mxu0 0.0
    %5400 = vmatpush1.xpose.msra.mxu0 0.0
    %5401 = vmatprep.subr.mxu0 0.0
    %5402 = vmatpush1.xpose.msra.mxu0 0.0
    %5403 = vmatprep.subr.mxu0 0.0
    %5404 = vmatpush1.xpose.msra.mxu0 0.0
    %5405 = vmatprep.subr.mxu0 0.0
    %5406 = vmatpush1.xpose.msra.mxu0 0.0
    %5407 = vmatprep.subr.mxu0 0.0
    %5408 = vmatpush1.xpose.msra.mxu0 0.0
    %5409 = vmatprep.subr.mxu0 0.0
    %5410 = vmatpush1.xpose.msra.mxu0 0.0
    %5411 = vmatprep.subr.mxu0 0.0
    %5412 = vmatpush1.xpose.msra.mxu0 0.0
    %5413 = vmatprep.subr.mxu0 0.0
    %5414 = vmatpush1.xpose.msra.mxu0 0.0
    %5415 = vmatprep.subr.mxu0 0.0
    %5416 = vmatpush1.xpose.msra.mxu0 0.0
    %5417 = vmatprep.subr.mxu0 0.0
    %5418 = vmatpush1.xpose.msra.mxu0 0.0
    %5419 = vmatprep.subr.mxu0 0.0
    %5420 = vmatpush1.xpose.msra.mxu0 %v5387
    %5421 = vmatprep.subr.mxu0 0.0
    %5422 = vmatpush2.xpose.msra.mxu0 0.0
    %5423 = vmatprep.subr.mxu0 0.0
    %5424 = vmatpush2.xpose.msra.mxu0 0.0
    %5425 = vmatprep.subr.mxu0 0.0
    %5426 = vmatpush2.xpose.msra.mxu0 0.0
    %5427 = vmatprep.subr.mxu0 0.0
    %5428 = vmatpush2.xpose.msra.mxu0 0.0
    %5429 = vmatprep.subr.mxu0 0.0
    %5430 = vmatpush2.xpose.msra.mxu0 0.0
    %5431 = vmatprep.subr.mxu0 0.0
    %5432 = vmatpush2.xpose.msra.mxu0 0.0
    %5433 = vmatprep.subr.mxu0 0.0
    %5434 = vmatpush2.xpose.msra.mxu0 0.0
    %5435 = vmatprep.subr.mxu0 0.0
    %5436 = vmatpush2.xpose.msra.mxu0 0.0
    %5437 = vmatprep.subr.mxu0 0.0
    %5438 = vmatpush2.xpose.msra.mxu0 0.0
    %5439 = vmatprep.subr.mxu0 0.0
    %5440 = vmatpush2.xpose.msra.mxu0 0.0
    %5441 = vmatprep.subr.mxu0 0.0
    %5442 = vmatpush2.xpose.msra.mxu0 0.0
    %5443 = vmatprep.subr.mxu0 0.0
    %5444 = vmatpush2.xpose.msra.mxu0 0.0
    %5445 = vmatprep.subr.mxu0 0.0
    %5446 = vmatpush2.xpose.msra.mxu0 0.0
    %5447 = vmatprep.subr.mxu0 0.0
    %5448 = vmatpush2.xpose.msra.mxu0 0.0
    %5449 = vmatprep.subr.mxu0 0.0
    %5450 = vmatpush2.xpose.msra.mxu0 0.0
    %5451 = vmatprep.subr.mxu0 0.0
    %5452 = vmatpush2.xpose.msra.mxu0 0.0
    %5453 = vmatprep.mubr.f32.mxu0 0.0
    %5454 = vmatmul.mubr.f32.gmra.mxu0 %v5385
    %v5455 = vpop.f32.mrf.mxu0
    %v5456 = vadd.f32 0.0, %v5455
    %v5457 = vpop.f32.mrf.mxu0
    %5458 = vdwg.mxu0
    %5459 = vrot.lane.b32.xlu0 %v5042, 112
    %v5460 = vpop.permute.xlu0 %5459
    %5461 = vrot.lane.b32.xlu0 %v5042, 80
    %v5462 = vpop.permute.xlu0 %5461
    %v5463 = vsel %vm350, %v5460, 0
    %v5465 = vsel %vm350, %v5462, 0
    %5467 = vmatprep.subr.mxu0 0.0
    %5468 = vmatpush1.xpose.msra.mxu0 0.0
    %5469 = vmatprep.subr.mxu0 0.0
    %5470 = vmatpush1.xpose.msra.mxu0 0.0
    %5471 = vmatprep.subr.mxu0 0.0
    %5472 = vmatpush1.xpose.msra.mxu0 0.0
    %5473 = vmatprep.subr.mxu0 0.0
    %5474 = vmatpush1.xpose.msra.mxu0 0.0
    %5475 = vmatprep.subr.mxu0 0.0
    %5476 = vmatpush1.xpose.msra.mxu0 0.0
    %5477 = vmatprep.subr.mxu0 0.0
    %5478 = vmatpush1.xpose.msra.mxu0 0.0
    %5479 = vmatprep.subr.mxu0 0.0
    %5480 = vmatpush1.xpose.msra.mxu0 0.0
    %5481 = vmatprep.subr.mxu0 0.0
    %5482 = vmatpush1.xpose.msra.mxu0 0.0
    %5483 = vmatprep.subr.mxu0 0.0
    %5484 = vmatpush1.xpose.msra.mxu0 0.0
    %5485 = vmatprep.subr.mxu0 0.0
    %5486 = vmatpush1.xpose.msra.mxu0 0.0
    %5487 = vmatprep.subr.mxu0 0.0
    %5488 = vmatpush1.xpose.msra.mxu0 0.0
    %5489 = vmatprep.subr.mxu0 0.0
    %5490 = vmatpush1.xpose.msra.mxu0 0.0
    %5491 = vmatprep.subr.mxu0 0.0
    %5492 = vmatpush1.xpose.msra.mxu0 0.0
    %5493 = vmatprep.subr.mxu0 0.0
    %5494 = vmatpush1.xpose.msra.mxu0 0.0
    %5495 = vmatprep.subr.mxu0 0.0
    %5496 = vmatpush1.xpose.msra.mxu0 0.0
    %5497 = vmatprep.subr.mxu0 0.0
    %5498 = vmatpush1.xpose.msra.mxu0 %v5465
    %5499 = vmatprep.subr.mxu0 0.0
    %5500 = vmatpush2.xpose.msra.mxu0 0.0
    %5501 = vmatprep.subr.mxu0 0.0
    %5502 = vmatpush2.xpose.msra.mxu0 0.0
    %5503 = vmatprep.subr.mxu0 0.0
    %5504 = vmatpush2.xpose.msra.mxu0 0.0
    %5505 = vmatprep.subr.mxu0 0.0
    %5506 = vmatpush2.xpose.msra.mxu0 0.0
    %5507 = vmatprep.subr.mxu0 0.0
    %5508 = vmatpush2.xpose.msra.mxu0 0.0
    %5509 = vmatprep.subr.mxu0 0.0
    %5510 = vmatpush2.xpose.msra.mxu0 0.0
    %5511 = vmatprep.subr.mxu0 0.0
    %5512 = vmatpush2.xpose.msra.mxu0 0.0
    %5513 = vmatprep.subr.mxu0 0.0
    %5514 = vmatpush2.xpose.msra.mxu0 0.0
    %5515 = vmatprep.subr.mxu0 0.0
    %5516 = vmatpush2.xpose.msra.mxu0 0.0
    %5517 = vmatprep.subr.mxu0 0.0
    %5518 = vmatpush2.xpose.msra.mxu0 0.0
    %5519 = vmatprep.subr.mxu0 0.0
    %5520 = vmatpush2.xpose.msra.mxu0 0.0
    %5521 = vmatprep.subr.mxu0 0.0
    %5522 = vmatpush2.xpose.msra.mxu0 0.0
    %5523 = vmatprep.subr.mxu0 0.0
    %5524 = vmatpush2.xpose.msra.mxu0 0.0
    %5525 = vmatprep.subr.mxu0 0.0
    %5526 = vmatpush2.xpose.msra.mxu0 0.0
    %5527 = vmatprep.subr.mxu0 0.0
    %5528 = vmatpush2.xpose.msra.mxu0 0.0
    %5529 = vmatprep.subr.mxu0 0.0
    %5530 = vmatpush2.xpose.msra.mxu0 0.0
    %5531 = vmatprep.mubr.f32.mxu0 0.0
    %5532 = vmatmul.mubr.f32.gmra.mxu0 %v5463
    %v5533 = vpop.f32.mrf.mxu0
    %v5534 = vadd.f32 0.0, %v5533
    %v5535 = vpop.f32.mrf.mxu0
    %5536 = vdwg.mxu0
    %v5537 = vmul.f32 %v5456, 0.25
    %v5538 = vmul.f32 %v5534, 0.25
    %v5539 = vadd.f32 %v5537, %v247
    %v5540 = vadd.f32 %v5538, %v248
    %v5541 = vsel %vm516, %v5539, -inf
    %5542 = vmax.xlane.f32.xlu0 %v5541
    %v5543 = vpop.xlane.xlu0 %5542
    %v5544 = vsel %vm516, %v5540, -inf
    %5545 = vmax.xlane.f32.xlu0 %v5544
    %v5546 = vpop.xlane.xlu0 %5545
    %v5547 = vsub.f32 %v5539, %v5543
    %v5548 = vsub.f32 %v5540, %v5546
    %v5549 = vmul.f32 %v5547, 1.442695
    %v5550 = vpow.pop %v5549
    %v5551 = vmul.f32 %v5548, 1.442695
    %v5552 = vpow.pop %v5551
    %v5553 = vsel %vm516, %v5550, 0.0
    %5554 = vadd.xlane.f32.xlu0 %v5553
    %v5555 = vpop.xlane.xlu0 %5554
    %v5556 = vsel %vm516, %v5552, 0.0
    %5557 = vadd.xlane.f32.xlu0 %v5556
    %v5558 = vpop.xlane.xlu0 %5557
    %v5559 = vrcp.pop %v5555
    %v5560 = vrcp.pop %v5558
    %v5561 = vmul.f32 %v5550, %v5559
    %v5562 = vmul.f32 %v5552, %v5560
    %5563 = vrot.lane.b32.xlu0 %v5037, 48
    %v5564 = vpop.permute.xlu0 %5563
    %v5567 = vsel %vm516, %v5561, 0
    %5569 = vmatprep.subr.mxu0 0.0
    %5570 = vmatpush1.msra.mxu0 0.0
    %5571 = vmatprep.subr.mxu0 0.0
    %5572 = vmatpush1.msra.mxu0 0.0
    %5573 = vmatprep.subr.mxu0 0.0
    %5574 = vmatpush1.msra.mxu0 0.0
    %5575 = vmatprep.subr.mxu0 0.0
    %5576 = vmatpush1.msra.mxu0 0.0
    %5577 = vmatprep.subr.mxu0 0.0
    %5578 = vmatpush1.msra.mxu0 0.0
    %5579 = vmatprep.subr.mxu0 0.0
    %5580 = vmatpush1.msra.mxu0 0.0
    %5581 = vmatprep.subr.mxu0 0.0
    %5582 = vmatpush1.msra.mxu0 0.0
    %5583 = vmatprep.subr.mxu0 0.0
    %5584 = vmatpush1.msra.mxu0 0.0
    %5585 = vmatprep.subr.mxu0 0.0
    %5586 = vmatpush1.msra.mxu0 0.0
    %5587 = vmatprep.subr.mxu0 0.0
    %5588 = vmatpush1.msra.mxu0 0.0
    %5589 = vmatprep.subr.mxu0 0.0
    %5590 = vmatpush1.msra.mxu0 0.0
    %5591 = vmatprep.subr.mxu0 0.0
    %5592 = vmatpush1.msra.mxu0 0.0
    %5593 = vmatprep.subr.mxu0 0.0
    %5594 = vmatpush1.msra.mxu0 0.0
    %5595 = vmatprep.subr.mxu0 0.0
    %5596 = vmatpush1.msra.mxu0 0.0
    %5597 = vmatprep.subr.mxu0 0.0
    %5598 = vmatpush1.msra.mxu0 0.0
    %5599 = vmatprep.subr.mxu0 0.0
    %5600 = vmatpush1.msra.mxu0 %v5564
    %5601 = vmatprep.subr.mxu0 0.0
    %5602 = vmatpush2.msra.mxu0 0.0
    %5603 = vmatprep.subr.mxu0 0.0
    %5604 = vmatpush2.msra.mxu0 0.0
    %5605 = vmatprep.subr.mxu0 0.0
    %5606 = vmatpush2.msra.mxu0 0.0
    %5607 = vmatprep.subr.mxu0 0.0
    %5608 = vmatpush2.msra.mxu0 0.0
    %5609 = vmatprep.subr.mxu0 0.0
    %5610 = vmatpush2.msra.mxu0 0.0
    %5611 = vmatprep.subr.mxu0 0.0
    %5612 = vmatpush2.msra.mxu0 0.0
    %5613 = vmatprep.subr.mxu0 0.0
    %5614 = vmatpush2.msra.mxu0 0.0
    %5615 = vmatprep.subr.mxu0 0.0
    %5616 = vmatpush2.msra.mxu0 0.0
    %5617 = vmatprep.subr.mxu0 0.0
    %5618 = vmatpush2.msra.mxu0 0.0
    %5619 = vmatprep.subr.mxu0 0.0
    %5620 = vmatpush2.msra.mxu0 0.0
    %5621 = vmatprep.subr.mxu0 0.0
    %5622 = vmatpush2.msra.mxu0 0.0
    %5623 = vmatprep.subr.mxu0 0.0
    %5624 = vmatpush2.msra.mxu0 0.0
    %5625 = vmatprep.subr.mxu0 0.0
    %5626 = vmatpush2.msra.mxu0 0.0
    %5627 = vmatprep.subr.mxu0 0.0
    %5628 = vmatpush2.msra.mxu0 0.0
    %5629 = vmatprep.subr.mxu0 0.0
    %5630 = vmatpush2.msra.mxu0 0.0
    %5631 = vmatprep.subr.mxu0 0.0
    %5632 = vmatpush2.msra.mxu0 0.0
    %5633 = vmatprep.mubr.f32.mxu0 0.0
    %5634 = vmatmul.mubr.f32.gmra.mxu0 %v5567
    %v5635 = vpop.f32.mrf.mxu0
    %v5636 = vadd.f32 0.0, %v5635
    %v5637 = vpop.f32.mrf.mxu0
    %5638 = vdwg.mxu0
    %5639 = vrot.lane.b32.xlu0 %v5042, 48
    %v5640 = vpop.permute.xlu0 %5639
    %v5643 = vsel %vm516, %v5562, 0
    %5645 = vmatprep.subr.mxu0 0.0
    %5646 = vmatpush1.msra.mxu0 0.0
    %5647 = vmatprep.subr.mxu0 0.0
    %5648 = vmatpush1.msra.mxu0 0.0
    %5649 = vmatprep.subr.mxu0 0.0
    %5650 = vmatpush1.msra.mxu0 0.0
    %5651 = vmatprep.subr.mxu0 0.0
    %5652 = vmatpush1.msra.mxu0 0.0
    %5653 = vmatprep.subr.mxu0 0.0
    %5654 = vmatpush1.msra.mxu0 0.0
    %5655 = vmatprep.subr.mxu0 0.0
    %5656 = vmatpush1.msra.mxu0 0.0
    %5657 = vmatprep.subr.mxu0 0.0
    %5658 = vmatpush1.msra.mxu0 0.0
    %5659 = vmatprep.subr.mxu0 0.0
    %5660 = vmatpush1.msra.mxu0 0.0
    %5661 = vmatprep.subr.mxu0 0.0
    %5662 = vmatpush1.msra.mxu0 0.0
    %5663 = vmatprep.subr.mxu0 0.0
    %5664 = vmatpush1.msra.mxu0 0.0
    %5665 = vmatprep.subr.mxu0 0.0
    %5666 = vmatpush1.msra.mxu0 0.0
    %5667 = vmatprep.subr.mxu0 0.0
    %5668 = vmatpush1.msra.mxu0 0.0
    %5669 = vmatprep.subr.mxu0 0.0
    %5670 = vmatpush1.msra.mxu0 0.0
    %5671 = vmatprep.subr.mxu0 0.0
    %5672 = vmatpush1.msra.mxu0 0.0
    %5673 = vmatprep.subr.mxu0 0.0
    %5674 = vmatpush1.msra.mxu0 0.0
    %5675 = vmatprep.subr.mxu0 0.0
    %5676 = vmatpush1.msra.mxu0 %v5640
    %5677 = vmatprep.subr.mxu0 0.0
    %5678 = vmatpush2.msra.mxu0 0.0
    %5679 = vmatprep.subr.mxu0 0.0
    %5680 = vmatpush2.msra.mxu0 0.0
    %5681 = vmatprep.subr.mxu0 0.0
    %5682 = vmatpush2.msra.mxu0 0.0
    %5683 = vmatprep.subr.mxu0 0.0
    %5684 = vmatpush2.msra.mxu0 0.0
    %5685 = vmatprep.subr.mxu0 0.0
    %5686 = vmatpush2.msra.mxu0 0.0
    %5687 = vmatprep.subr.mxu0 0.0
    %5688 = vmatpush2.msra.mxu0 0.0
    %5689 = vmatprep.subr.mxu0 0.0
    %5690 = vmatpush2.msra.mxu0 0.0
    %5691 = vmatprep.subr.mxu0 0.0
    %5692 = vmatpush2.msra.mxu0 0.0
    %5693 = vmatprep.subr.mxu0 0.0
    %5694 = vmatpush2.msra.mxu0 0.0
    %5695 = vmatprep.subr.mxu0 0.0
    %5696 = vmatpush2.msra.mxu0 0.0
    %5697 = vmatprep.subr.mxu0 0.0
    %5698 = vmatpush2.msra.mxu0 0.0
    %5699 = vmatprep.subr.mxu0 0.0
    %5700 = vmatpush2.msra.mxu0 0.0
    %5701 = vmatprep.subr.mxu0 0.0
    %5702 = vmatpush2.msra.mxu0 0.0
    %5703 = vmatprep.subr.mxu0 0.0
    %5704 = vmatpush2.msra.mxu0 0.0
    %5705 = vmatprep.subr.mxu0 0.0
    %5706 = vmatpush2.msra.mxu0 0.0
    %5707 = vmatprep.subr.mxu0 0.0
    %5708 = vmatpush2.msra.mxu0 0.0
    %5709 = vmatprep.mubr.f32.mxu0 0.0
    %5710 = vmatmul.mubr.f32.gmra.mxu0 %v5643
    %v5711 = vpop.f32.mrf.mxu0
    %v5712 = vadd.f32 0.0, %v5711
    %v5713 = vpop.f32.mrf.mxu0
    %5714 = vdwg.mxu0
    %v5716 = vsel %vm350, %v5636, 0
    %v5719 = vsel %vm350, %v5712, 0
    %5721 = vmatprep.subr.mxu0 0.0
    %5722 = vmatpush1.msra.mxu0 0.0
    %5723 = vmatprep.subr.mxu0 0.0
    %5724 = vmatpush1.msra.mxu0 0.0
    %5725 = vmatprep.subr.mxu0 0.0
    %5726 = vmatpush1.msra.mxu0 0.0
    %5727 = vmatprep.subr.mxu0 0.0
    %5728 = vmatpush1.msra.mxu0 0.0
    %5729 = vmatprep.subr.mxu0 0.0
    %5730 = vmatpush1.msra.mxu0 0.0
    %5731 = vmatprep.subr.mxu0 0.0
    %5732 = vmatpush1.msra.mxu0 0.0
    %5733 = vmatprep.subr.mxu0 0.0
    %5734 = vmatpush1.msra.mxu0 0.0
    %5735 = vmatprep.subr.mxu0 0.0
    %5736 = vmatpush1.msra.mxu0 0.0
    %5737 = vmatprep.subr.mxu0 0.0
    %5738 = vmatpush1.msra.mxu0 0.0
    %5739 = vmatprep.subr.mxu0 0.0
    %5740 = vmatpush1.msra.mxu0 0.0
    %5741 = vmatprep.subr.mxu0 0.0
    %5742 = vmatpush1.msra.mxu0 0.0
    %5743 = vmatprep.subr.mxu0 0.0
    %5744 = vmatpush1.msra.mxu0 0.0
    %5745 = vmatprep.subr.mxu0 0.0
    %5746 = vmatpush1.msra.mxu0 0.0
    %5747 = vmatprep.subr.mxu0 0.0
    %5748 = vmatpush1.msra.mxu0 0.0
    %5749 = vmatprep.subr.mxu0 0.0
    %5750 = vmatpush1.msra.mxu0 %v5048
    %5751 = vmatprep.subr.mxu0 0.0
    %5752 = vmatpush1.msra.mxu0 %v5047
    %5753 = vmatprep.subr.mxu0 0.0
    %5754 = vmatpush2.msra.mxu0 0.0
    %5755 = vmatprep.subr.mxu0 0.0
    %5756 = vmatpush2.msra.mxu0 0.0
    %5757 = vmatprep.subr.mxu0 0.0
    %5758 = vmatpush2.msra.mxu0 0.0
    %5759 = vmatprep.subr.mxu0 0.0
    %5760 = vmatpush2.msra.mxu0 0.0
    %5761 = vmatprep.subr.mxu0 0.0
    %5762 = vmatpush2.msra.mxu0 0.0
    %5763 = vmatprep.subr.mxu0 0.0
    %5764 = vmatpush2.msra.mxu0 0.0
    %5765 = vmatprep.subr.mxu0 0.0
    %5766 = vmatpush2.msra.mxu0 0.0
    %5767 = vmatprep.subr.mxu0 0.0
    %5768 = vmatpush2.msra.mxu0 0.0
    %5769 = vmatprep.subr.mxu0 0.0
    %5770 = vmatpush2.msra.mxu0 0.0
    %5771 = vmatprep.subr.mxu0 0.0
    %5772 = vmatpush2.msra.mxu0 0.0
    %5773 = vmatprep.subr.mxu0 0.0
    %5774 = vmatpush2.msra.mxu0 0.0
    %5775 = vmatprep.subr.mxu0 0.0
    %5776 = vmatpush2.msra.mxu0 0.0
    %5777 = vmatprep.subr.mxu0 0.0
    %5778 = vmatpush2.msra.mxu0 0.0
    %5779 = vmatprep.subr.mxu0 0.0
    %5780 = vmatpush2.msra.mxu0 0.0
    %5781 = vmatprep.subr.mxu0 0.0
    %5782 = vmatpush2.msra.mxu0 0.0
    %5783 = vmatprep.subr.mxu0 0.0
    %5784 = vmatpush2.msra.mxu0 0.0
    %5785 = vmatprep.mubr.f32.mxu0 0.0
    %5786 = vmatmul.mubr.f32.gmra.mxu0 %v5716
    %v5787 = vpop.f32.mrf.mxu0
    %v5788 = vadd.f32 0.0, %v5787
    %v5789 = vpop.f32.mrf.mxu0
    %5790 = vmatprep.mubr.f32.mxu0 0.0
    %5791 = vmatmul.mubr.f32.gmra.mxu0 %v5719
    %v5792 = vpop.f32.mrf.mxu0
    %v5793 = vadd.f32 0.0, %v5792
    %v5794 = vpop.f32.mrf.mxu0
    %5795 = vdwg.mxu0
    %v5797 = vsel %vm350, %v5302, 0
    %v5800 = vsel %vm350, %v5378, 0
    %5802 = vmatprep.subr.mxu0 0.0
    %5803 = vmatpush1.msra.mxu0 0.0
    %5804 = vmatprep.subr.mxu0 0.0
    %5805 = vmatpush1.msra.mxu0 0.0
    %5806 = vmatprep.subr.mxu0 0.0
    %5807 = vmatpush1.msra.mxu0 0.0
    %5808 = vmatprep.subr.mxu0 0.0
    %5809 = vmatpush1.msra.mxu0 0.0
    %5810 = vmatprep.subr.mxu0 0.0
    %5811 = vmatpush1.msra.mxu0 0.0
    %5812 = vmatprep.subr.mxu0 0.0
    %5813 = vmatpush1.msra.mxu0 0.0
    %5814 = vmatprep.subr.mxu0 0.0
    %5815 = vmatpush1.msra.mxu0 0.0
    %5816 = vmatprep.subr.mxu0 0.0
    %5817 = vmatpush1.msra.mxu0 0.0
    %5818 = vmatprep.subr.mxu0 0.0
    %5819 = vmatpush1.msra.mxu0 0.0
    %5820 = vmatprep.subr.mxu0 0.0
    %5821 = vmatpush1.msra.mxu0 0.0
    %5822 = vmatprep.subr.mxu0 0.0
    %5823 = vmatpush1.msra.mxu0 0.0
    %5824 = vmatprep.subr.mxu0 0.0
    %5825 = vmatpush1.msra.mxu0 0.0
    %5826 = vmatprep.subr.mxu0 0.0
    %5827 = vmatpush1.msra.mxu0 0.0
    %5828 = vmatprep.subr.mxu0 0.0
    %5829 = vmatpush1.msra.mxu0 0.0
    %5830 = vmatprep.subr.mxu0 0.0
    %5831 = vmatpush1.msra.mxu0 %v5046
    %5832 = vmatprep.subr.mxu0 0.0
    %5833 = vmatpush1.msra.mxu0 %v5045
    %5834 = vmatprep.subr.mxu0 0.0
    %5835 = vmatpush2.msra.mxu0 0.0
    %5836 = vmatprep.subr.mxu0 0.0
    %5837 = vmatpush2.msra.mxu0 0.0
    %5838 = vmatprep.subr.mxu0 0.0
    %5839 = vmatpush2.msra.mxu0 0.0
    %5840 = vmatprep.subr.mxu0 0.0
    %5841 = vmatpush2.msra.mxu0 0.0
    %5842 = vmatprep.subr.mxu0 0.0
    %5843 = vmatpush2.msra.mxu0 0.0
    %5844 = vmatprep.subr.mxu0 0.0
    %5845 = vmatpush2.msra.mxu0 0.0
    %5846 = vmatprep.subr.mxu0 0.0
    %5847 = vmatpush2.msra.mxu0 0.0
    %5848 = vmatprep.subr.mxu0 0.0
    %5849 = vmatpush2.msra.mxu0 0.0
    %5850 = vmatprep.subr.mxu0 0.0
    %5851 = vmatpush2.msra.mxu0 0.0
    %5852 = vmatprep.subr.mxu0 0.0
    %5853 = vmatpush2.msra.mxu0 0.0
    %5854 = vmatprep.subr.mxu0 0.0
    %5855 = vmatpush2.msra.mxu0 0.0
    %5856 = vmatprep.subr.mxu0 0.0
    %5857 = vmatpush2.msra.mxu0 0.0
    %5858 = vmatprep.subr.mxu0 0.0
    %5859 = vmatpush2.msra.mxu0 0.0
    %5860 = vmatprep.subr.mxu0 0.0
    %5861 = vmatpush2.msra.mxu0 0.0
    %5862 = vmatprep.subr.mxu0 0.0
    %5863 = vmatpush2.msra.mxu0 0.0
    %5864 = vmatprep.subr.mxu0 0.0
    %5865 = vmatpush2.msra.mxu0 0.0
    %5866 = vmatprep.mubr.f32.mxu0 0.0
    %5867 = vmatmul.mubr.f32.gmra.mxu0 %v5797
    %v5868 = vpop.f32.mrf.mxu0
    %v5869 = vadd.f32 %v5788, %v5868
    %v5870 = vpop.f32.mrf.mxu0
    %5871 = vmatprep.mubr.f32.mxu0 0.0
    %5872 = vmatmul.mubr.f32.gmra.mxu0 %v5800
    %v5873 = vpop.f32.mrf.mxu0
    %v5874 = vadd.f32 %v5793, %v5873
    %v5875 = vpop.f32.mrf.mxu0
    %5876 = vdwg.mxu0
    %v5877 = vlaneseq
    %v5878 = vshrl.u32 %v5877, 7
    %v5879 = vsub.s32 0, %v5878
    %v5880 = vrot.slane %v4951, %v5879
    %v5881 = vadd.f32 %v5869, %v5880
    %v5882 = vadd.f32 %v5874, %v5880
    %v5883 = vadd.f32 %v4949, %v5881
    %v5884 = vadd.f32 %v4950, %v5882
    %v5885 = vsel %vm261, %v5883, 0.0
    %5886 = vadd.xlane.f32.xlu0 %v5885
    %v5887 = vpop.xlane.xlu0 %5886
    %v5888 = vsel %vm261, %v5884, 0.0
    %5889 = vadd.xlane.f32.xlu0 %v5888
    %v5890 = vpop.xlane.xlu0 %5889
    %v5891 = vmul.f32 %v5887, %v1201
    %v5892 = vmul.f32 %v5890, %v1201
    %v5893 = vsub.f32 %v5883, %v5891
    %v5894 = vsub.f32 %v5884, %v5892
    %v5895 = vmul.f32 %v5893, %v5893
    %v5896 = vmul.f32 %v5894, %v5894
    %v5897 = vsel %vm261, %v5895, 0.0
    %5898 = vadd.xlane.f32.xlu0 %v5897
    %v5899 = vpop.xlane.xlu0 %5898
    %v5900 = vsel %vm261, %v5896, 0.0
    %5901 = vadd.xlane.f32.xlu0 %v5900
    %v5902 = vpop.xlane.xlu0 %5901
    %v5903 = vmul.f32 %v5899, %v1201
    %v5904 = vmul.f32 %v5902, %v1201
    %v5905 = vadd.f32 %v5903, 1e-05
    %v5906 = vadd.f32 %v5904, 1e-05
    %v5907 = vrsqrt.pop %v5905
    %v5908 = vrsqrt.pop %v5906
    %v5909 = vmul.f32 %v5893, %v5907
    %v5910 = vmul.f32 %v5894, %v5908
    %v5911 = vlaneseq
    %v5912 = vshrl.u32 %v5911, 7
    %v5913 = vsub.s32 4, %v5912
    %v5914 = vrot.slane %v4951, %v5913
    %v5915 = vmul.f32 %v5909, %v5914
    %v5916 = vmul.f32 %v5910, %v5914
    %v5917 = vlaneseq
    %v5918 = vshrl.u32 %v5917, 7
    %v5919 = vsub.s32 5, %v5918
    %v5920 = vrot.slane %v4951, %v5919
    %v5921 = vadd.f32 %v5915, %v5920
    %v5922 = vadd.f32 %v5916, %v5920
    %v5923 = vld [vmem:[%s49] sm:$0xff]
    %v5924 = vld [vmem:[%s49 + $0x8] sm:$0xff]
    %v5925 = vld [vmem:[%s49 + $0x10] sm:$0xff]
    %v5926 = vld [vmem:[%s49 + $0x18] sm:$0xff]
    %v5927 = vlaneseq
    %v5928 = vshrl.u32 %v5927, 7
    %v5929 = vsub.s32 1, %v5928
    %v5930 = vrot.slane %v4951, %v5929
    %v5932 = vsel %vm261, %v5921, 0
    %v5935 = vsel %vm261, %v5922, 0
    %5937 = vmatprep.subr.mxu0 0.0
    %5938 = vmatpush1.msra.mxu0 0.0
    %5939 = vmatprep.subr.mxu0 0.0
    %5940 = vmatpush1.msra.mxu0 0.0
    %5941 = vmatprep.subr.mxu0 0.0
    %5942 = vmatpush1.msra.mxu0 0.0
    %5943 = vmatprep.subr.mxu0 0.0
    %5944 = vmatpush1.msra.mxu0 0.0
    %5945 = vmatprep.subr.mxu0 0.0
    %5946 = vmatpush1.msra.mxu0 0.0
    %5947 = vmatprep.subr.mxu0 0.0
    %5948 = vmatpush1.msra.mxu0 0.0
    %5949 = vmatprep.subr.mxu0 0.0
    %5950 = vmatpush1.msra.mxu0 0.0
    %5951 = vmatprep.subr.mxu0 0.0
    %5952 = vmatpush1.msra.mxu0 0.0
    %5953 = vmatprep.subr.mxu0 0.0
    %5954 = vmatpush1.msra.mxu0 0.0
    %5955 = vmatprep.subr.mxu0 0.0
    %5956 = vmatpush1.msra.mxu0 0.0
    %5957 = vmatprep.subr.mxu0 0.0
    %5958 = vmatpush1.msra.mxu0 0.0
    %5959 = vmatprep.subr.mxu0 0.0
    %5960 = vmatpush1.msra.mxu0 0.0
    %5961 = vmatprep.subr.mxu0 0.0
    %5962 = vmatpush1.msra.mxu0 %v5926
    %5963 = vmatprep.subr.mxu0 0.0
    %5964 = vmatpush1.msra.mxu0 %v5925
    %5965 = vmatprep.subr.mxu0 0.0
    %5966 = vmatpush1.msra.mxu0 %v5924
    %5967 = vmatprep.subr.mxu0 0.0
    %5968 = vmatpush1.msra.mxu0 %v5923
    %5969 = vmatprep.subr.mxu0 0.0
    %5970 = vmatpush2.msra.mxu0 0.0
    %5971 = vmatprep.subr.mxu0 0.0
    %5972 = vmatpush2.msra.mxu0 0.0
    %5973 = vmatprep.subr.mxu0 0.0
    %5974 = vmatpush2.msra.mxu0 0.0
    %5975 = vmatprep.subr.mxu0 0.0
    %5976 = vmatpush2.msra.mxu0 0.0
    %5977 = vmatprep.subr.mxu0 0.0
    %5978 = vmatpush2.msra.mxu0 0.0
    %5979 = vmatprep.subr.mxu0 0.0
    %5980 = vmatpush2.msra.mxu0 0.0
    %5981 = vmatprep.subr.mxu0 0.0
    %5982 = vmatpush2.msra.mxu0 0.0
    %5983 = vmatprep.subr.mxu0 0.0
    %5984 = vmatpush2.msra.mxu0 0.0
    %5985 = vmatprep.subr.mxu0 0.0
    %5986 = vmatpush2.msra.mxu0 0.0
    %5987 = vmatprep.subr.mxu0 0.0
    %5988 = vmatpush2.msra.mxu0 0.0
    %5989 = vmatprep.subr.mxu0 0.0
    %5990 = vmatpush2.msra.mxu0 0.0
    %5991 = vmatprep.subr.mxu0 0.0
    %5992 = vmatpush2.msra.mxu0 0.0
    %5993 = vmatprep.subr.mxu0 0.0
    %5994 = vmatpush2.msra.mxu0 0.0
    %5995 = vmatprep.subr.mxu0 0.0
    %5996 = vmatpush2.msra.mxu0 0.0
    %5997 = vmatprep.subr.mxu0 0.0
    %5998 = vmatpush2.msra.mxu0 0.0
    %5999 = vmatprep.subr.mxu0 0.0
    %6000 = vmatpush2.msra.mxu0 0.0
    %6001 = vmatprep.mubr.f32.mxu0 0.0
    %6002 = vmatmul.mubr.f32.gmra.mxu0 %v5932
    %v6003 = vpop.f32.mrf.mxu0
    %v6004 = vadd.f32 %v5930, %v6003
    %v6005 = vpop.f32.mrf.mxu0
    %6006 = vmatprep.mubr.f32.mxu0 0.0
    %6007 = vmatmul.mubr.f32.gmra.mxu0 %v5935
    %v6008 = vpop.f32.mrf.mxu0
    %v6009 = vadd.f32 %v5930, %v6008
    %v6010 = vpop.f32.mrf.mxu0
    %6011 = vdwg.mxu0
    %v6012 = vld [vmem:[%s43] sm:$0xff]
    %v6013 = vld [vmem:[%s43 + $0x8] sm:$0xff]
    %v6014 = vld [vmem:[%s43 + $0x10] sm:$0xff]
    %v6015 = vld [vmem:[%s43 + $0x18] sm:$0xff]
    %v6016 = vld [vmem:[%s33] sm:$0x1]
    %v6018 = vlaneseq
    %v6019 = vshrl.u32 %v6018, 7
    %v6020 = vsub.s32 0, %v6019
    %v6021 = vrot.slane %v6016, %v6020
    %6023 = vmatprep.subr.mxu0 0.0
    %6024 = vmatpush1.msra.mxu0 0.0
    %6025 = vmatprep.subr.mxu0 0.0
    %6026 = vmatpush1.msra.mxu0 0.0
    %6027 = vmatprep.subr.mxu0 0.0
    %6028 = vmatpush1.msra.mxu0 0.0
    %6029 = vmatprep.subr.mxu0 0.0
    %6030 = vmatpush1.msra.mxu0 0.0
    %6031 = vmatprep.subr.mxu0 0.0
    %6032 = vmatpush1.msra.mxu0 0.0
    %6033 = vmatprep.subr.mxu0 0.0
    %6034 = vmatpush1.msra.mxu0 0.0
    %6035 = vmatprep.subr.mxu0 0.0
    %6036 = vmatpush1.msra.mxu0 0.0
    %6037 = vmatprep.subr.mxu0 0.0
    %6038 = vmatpush1.msra.mxu0 0.0
    %6039 = vmatprep.subr.mxu0 0.0
    %6040 = vmatpush1.msra.mxu0 0.0
    %6041 = vmatprep.subr.mxu0 0.0
    %6042 = vmatpush1.msra.mxu0 0.0
    %6043 = vmatprep.subr.mxu0 0.0
    %6044 = vmatpush1.msra.mxu0 0.0
    %6045 = vmatprep.subr.mxu0 0.0
    %6046 = vmatpush1.msra.mxu0 0.0
    %6047 = vmatprep.subr.mxu0 0.0
    %6048 = vmatpush1.msra.mxu0 %v6015
    %6049 = vmatprep.subr.mxu0 0.0
    %6050 = vmatpush1.msra.mxu0 %v6014
    %6051 = vmatprep.subr.mxu0 0.0
    %6052 = vmatpush1.msra.mxu0 %v6013
    %6053 = vmatprep.subr.mxu0 0.0
    %6054 = vmatpush1.msra.mxu0 %v6012
    %6055 = vmatprep.subr.mxu0 0.0
    %6056 = vmatpush2.msra.mxu0 0.0
    %6057 = vmatprep.subr.mxu0 0.0
    %6058 = vmatpush2.msra.mxu0 0.0
    %6059 = vmatprep.subr.mxu0 0.0
    %6060 = vmatpush2.msra.mxu0 0.0
    %6061 = vmatprep.subr.mxu0 0.0
    %6062 = vmatpush2.msra.mxu0 0.0
    %6063 = vmatprep.subr.mxu0 0.0
    %6064 = vmatpush2.msra.mxu0 0.0
    %6065 = vmatprep.subr.mxu0 0.0
    %6066 = vmatpush2.msra.mxu0 0.0
    %6067 = vmatprep.subr.mxu0 0.0
    %6068 = vmatpush2.msra.mxu0 0.0
    %6069 = vmatprep.subr.mxu0 0.0
    %6070 = vmatpush2.msra.mxu0 0.0
    %6071 = vmatprep.subr.mxu0 0.0
    %6072 = vmatpush2.msra.mxu0 0.0
    %6073 = vmatprep.subr.mxu0 0.0
    %6074 = vmatpush2.msra.mxu0 0.0
    %6075 = vmatprep.subr.mxu0 0.0
    %6076 = vmatpush2.msra.mxu0 0.0
    %6077 = vmatprep.subr.mxu0 0.0
    %6078 = vmatpush2.msra.mxu0 0.0
    %6079 = vmatprep.subr.mxu0 0.0
    %6080 = vmatpush2.msra.mxu0 0.0
    %6081 = vmatprep.subr.mxu0 0.0
    %6082 = vmatpush2.msra.mxu0 0.0
    %6083 = vmatprep.subr.mxu0 0.0
    %6084 = vmatpush2.msra.mxu0 0.0
    %6085 = vmatprep.subr.mxu0 0.0
    %6086 = vmatpush2.msra.mxu0 0.0
    %6087 = vmatprep.mubr.f32.mxu0 0.0
    %6088 = vmatmul.mubr.f32.gmra.mxu0 %v3772
    %v6089 = vpop.f32.mrf.mxu0
    %v6090 = vadd.f32 %v6021, %v6089
    %v6091 = vpop.f32.mrf.mxu0
    %6092 = vmatprep.mubr.f32.mxu0 0.0
    %6093 = vmatmul.mubr.f32.gmra.mxu0 %v3775
    %v6094 = vpop.f32.mrf.mxu0
    %v6095 = vadd.f32 %v6021, %v6094
    %v6096 = vpop.f32.mrf.mxu0
    %6097 = vdwg.mxu0
    %v6098 = vld [vmem:[%s45] sm:$0xff]
    %v6099 = vld [vmem:[%s45 + $0x8] sm:$0xff]
    %v6100 = vld [vmem:[%s45 + $0x10] sm:$0xff]
    %v6101 = vld [vmem:[%s45 + $0x18] sm:$0xff]
    %v6103 = vsel %vm350, %v6004, 0
    %v6106 = vsel %vm350, %v6090, 0
    %6108 = vmatprep.subr.mxu0 0.0
    %6109 = vmatpush1.xpose.msra.mxu0 0.0
    %6110 = vmatprep.subr.mxu0 0.0
    %6111 = vmatpush1.xpose.msra.mxu0 0.0
    %6112 = vmatprep.subr.mxu0 0.0
    %6113 = vmatpush1.xpose.msra.mxu0 0.0
    %6114 = vmatprep.subr.mxu0 0.0
    %6115 = vmatpush1.xpose.msra.mxu0 0.0
    %6116 = vmatprep.subr.mxu0 0.0
    %6117 = vmatpush1.xpose.msra.mxu0 0.0
    %6118 = vmatprep.subr.mxu0 0.0
    %6119 = vmatpush1.xpose.msra.mxu0 0.0
    %6120 = vmatprep.subr.mxu0 0.0
    %6121 = vmatpush1.xpose.msra.mxu0 0.0
    %6122 = vmatprep.subr.mxu0 0.0
    %6123 = vmatpush1.xpose.msra.mxu0 0.0
    %6124 = vmatprep.subr.mxu0 0.0
    %6125 = vmatpush1.xpose.msra.mxu0 0.0
    %6126 = vmatprep.subr.mxu0 0.0
    %6127 = vmatpush1.xpose.msra.mxu0 0.0
    %6128 = vmatprep.subr.mxu0 0.0
    %6129 = vmatpush1.xpose.msra.mxu0 0.0
    %6130 = vmatprep.subr.mxu0 0.0
    %6131 = vmatpush1.xpose.msra.mxu0 0.0
    %6132 = vmatprep.subr.mxu0 0.0
    %6133 = vmatpush1.xpose.msra.mxu0 0.0
    %6134 = vmatprep.subr.mxu0 0.0
    %6135 = vmatpush1.xpose.msra.mxu0 0.0
    %6136 = vmatprep.subr.mxu0 0.0
    %6137 = vmatpush1.xpose.msra.mxu0 0.0
    %6138 = vmatprep.subr.mxu0 0.0
    %6139 = vmatpush1.xpose.msra.mxu0 %v6106
    %6140 = vmatprep.subr.mxu0 0.0
    %6141 = vmatpush2.xpose.msra.mxu0 0.0
    %6142 = vmatprep.subr.mxu0 0.0
    %6143 = vmatpush2.xpose.msra.mxu0 0.0
    %6144 = vmatprep.subr.mxu0 0.0
    %6145 = vmatpush2.xpose.msra.mxu0 0.0
    %6146 = vmatprep.subr.mxu0 0.0
    %6147 = vmatpush2.xpose.msra.mxu0 0.0
    %6148 = vmatprep.subr.mxu0 0.0
    %6149 = vmatpush2.xpose.msra.mxu0 0.0
    %6150 = vmatprep.subr.mxu0 0.0
    %6151 = vmatpush2.xpose.msra.mxu0 0.0
    %6152 = vmatprep.subr.mxu0 0.0
    %6153 = vmatpush2.xpose.msra.mxu0 0.0
    %6154 = vmatprep.subr.mxu0 0.0
    %6155 = vmatpush2.xpose.msra.mxu0 0.0
    %6156 = vmatprep.subr.mxu0 0.0
    %6157 = vmatpush2.xpose.msra.mxu0 0.0
    %6158 = vmatprep.subr.mxu0 0.0
    %6159 = vmatpush2.xpose.msra.mxu0 0.0
    %6160 = vmatprep.subr.mxu0 0.0
    %6161 = vmatpush2.xpose.msra.mxu0 0.0
    %6162 = vmatprep.subr.mxu0 0.0
    %6163 = vmatpush2.xpose.msra.mxu0 0.0
    %6164 = vmatprep.subr.mxu0 0.0
    %6165 = vmatpush2.xpose.msra.mxu0 0.0
    %6166 = vmatprep.subr.mxu0 0.0
    %6167 = vmatpush2.xpose.msra.mxu0 0.0
    %6168 = vmatprep.subr.mxu0 0.0
    %6169 = vmatpush2.xpose.msra.mxu0 0.0
    %6170 = vmatprep.subr.mxu0 0.0
    %6171 = vmatpush2.xpose.msra.mxu0 0.0
    %6172 = vmatprep.mubr.f32.mxu0 0.0
    %6173 = vmatmul.mubr.f32.gmra.mxu0 %v6103
    %v6174 = vpop.f32.mrf.mxu0
    %v6175 = vadd.f32 0.0, %v6174
    %v6176 = vpop.f32.mrf.mxu0
    %6177 = vdwg.mxu0
    %v6179 = vsel %vm350, %v6009, 0
    %v6182 = vsel %vm350, %v6095, 0
    %6184 = vmatprep.subr.mxu0 0.0
    %6185 = vmatpush1.xpose.msra.mxu0 0.0
    %6186 = vmatprep.subr.mxu0 0.0
    %6187 = vmatpush1.xpose.msra.mxu0 0.0
    %6188 = vmatprep.subr.mxu0 0.0
    %6189 = vmatpush1.xpose.msra.mxu0 0.0
    %6190 = vmatprep.subr.mxu0 0.0
    %6191 = vmatpush1.xpose.msra.mxu0 0.0
    %6192 = vmatprep.subr.mxu0 0.0
    %6193 = vmatpush1.xpose.msra.mxu0 0.0
    %6194 = vmatprep.subr.mxu0 0.0
    %6195 = vmatpush1.xpose.msra.mxu0 0.0
    %6196 = vmatprep.subr.mxu0 0.0
    %6197 = vmatpush1.xpose.msra.mxu0 0.0
    %6198 = vmatprep.subr.mxu0 0.0
    %6199 = vmatpush1.xpose.msra.mxu0 0.0
    %6200 = vmatprep.subr.mxu0 0.0
    %6201 = vmatpush1.xpose.msra.mxu0 0.0
    %6202 = vmatprep.subr.mxu0 0.0
    %6203 = vmatpush1.xpose.msra.mxu0 0.0
    %6204 = vmatprep.subr.mxu0 0.0
    %6205 = vmatpush1.xpose.msra.mxu0 0.0
    %6206 = vmatprep.subr.mxu0 0.0
    %6207 = vmatpush1.xpose.msra.mxu0 0.0
    %6208 = vmatprep.subr.mxu0 0.0
    %6209 = vmatpush1.xpose.msra.mxu0 0.0
    %6210 = vmatprep.subr.mxu0 0.0
    %6211 = vmatpush1.xpose.msra.mxu0 0.0
    %6212 = vmatprep.subr.mxu0 0.0
    %6213 = vmatpush1.xpose.msra.mxu0 0.0
    %6214 = vmatprep.subr.mxu0 0.0
    %6215 = vmatpush1.xpose.msra.mxu0 %v6182
    %6216 = vmatprep.subr.mxu0 0.0
    %6217 = vmatpush2.xpose.msra.mxu0 0.0
    %6218 = vmatprep.subr.mxu0 0.0
    %6219 = vmatpush2.xpose.msra.mxu0 0.0
    %6220 = vmatprep.subr.mxu0 0.0
    %6221 = vmatpush2.xpose.msra.mxu0 0.0
    %6222 = vmatprep.subr.mxu0 0.0
    %6223 = vmatpush2.xpose.msra.mxu0 0.0
    %6224 = vmatprep.subr.mxu0 0.0
    %6225 = vmatpush2.xpose.msra.mxu0 0.0
    %6226 = vmatprep.subr.mxu0 0.0
    %6227 = vmatpush2.xpose.msra.mxu0 0.0
    %6228 = vmatprep.subr.mxu0 0.0
    %6229 = vmatpush2.xpose.msra.mxu0 0.0
    %6230 = vmatprep.subr.mxu0 0.0
    %6231 = vmatpush2.xpose.msra.mxu0 0.0
    %6232 = vmatprep.subr.mxu0 0.0
    %6233 = vmatpush2.xpose.msra.mxu0 0.0
    %6234 = vmatprep.subr.mxu0 0.0
    %6235 = vmatpush2.xpose.msra.mxu0 0.0
    %6236 = vmatprep.subr.mxu0 0.0
    %6237 = vmatpush2.xpose.msra.mxu0 0.0
    %6238 = vmatprep.subr.mxu0 0.0
    %6239 = vmatpush2.xpose.msra.mxu0 0.0
    %6240 = vmatprep.subr.mxu0 0.0
    %6241 = vmatpush2.xpose.msra.mxu0 0.0
    %6242 = vmatprep.subr.mxu0 0.0
    %6243 = vmatpush2.xpose.msra.mxu0 0.0
    %6244 = vmatprep.subr.mxu0 0.0
    %6245 = vmatpush2.xpose.msra.mxu0 0.0
    %6246 = vmatprep.subr.mxu0 0.0
    %6247 = vmatpush2.xpose.msra.mxu0 0.0
    %6248 = vmatprep.mubr.f32.mxu0 0.0
    %6249 = vmatmul.mubr.f32.gmra.mxu0 %v6179
    %v6250 = vpop.f32.mrf.mxu0
    %v6251 = vadd.f32 0.0, %v6250
    %v6252 = vpop.f32.mrf.mxu0
    %6253 = vdwg.mxu0
    %v6254 = vmul.f32 %v6175, 0.25
    %v6255 = vmul.f32 %v6251, 0.25
    %v6256 = vsel %vm516, %v6254, -inf
    %6257 = vmax.xlane.f32.xlu0 %v6256
    %v6258 = vpop.xlane.xlu0 %6257
    %v6259 = vsel %vm516, %v6255, -inf
    %6260 = vmax.xlane.f32.xlu0 %v6259
    %v6261 = vpop.xlane.xlu0 %6260
    %v6262 = vsub.f32 %v6254, %v6258
    %v6263 = vsub.f32 %v6255, %v6261
    %v6264 = vmul.f32 %v6262, 1.442695
    %v6265 = vpow.pop %v6264
    %v6266 = vmul.f32 %v6263, 1.442695
    %v6267 = vpow.pop %v6266
    %v6268 = vsel %vm516, %v6265, 0.0
    %6269 = vadd.xlane.f32.xlu0 %v6268
    %v6270 = vpop.xlane.xlu0 %6269
    %v6271 = vsel %vm516, %v6267, 0.0
    %6272 = vadd.xlane.f32.xlu0 %v6271
    %v6273 = vpop.xlane.xlu0 %6272
    %v6274 = vrcp.pop %v6270
    %v6275 = vrcp.pop %v6273
    %v6276 = vmul.f32 %v6265, %v6274
    %v6277 = vmul.f32 %v6267, %v6275
    %6278 = vrot.lane.b32.xlu0 %v6090, 96
    %v6279 = vpop.permute.xlu0 %6278
    %v6282 = vsel %vm516, %v6276, 0
    %6284 = vmatprep.subr.mxu0 0.0
    %6285 = vmatpush1.msra.mxu0 0.0
    %6286 = vmatprep.subr.mxu0 0.0
    %6287 = vmatpush1.msra.mxu0 0.0
    %6288 = vmatprep.subr.mxu0 0.0
    %6289 = vmatpush1.msra.mxu0 0.0
    %6290 = vmatprep.subr.mxu0 0.0
    %6291 = vmatpush1.msra.mxu0 0.0
    %6292 = vmatprep.subr.mxu0 0.0
    %6293 = vmatpush1.msra.mxu0 0.0
    %6294 = vmatprep.subr.mxu0 0.0
    %6295 = vmatpush1.msra.mxu0 0.0
    %6296 = vmatprep.subr.mxu0 0.0
    %6297 = vmatpush1.msra.mxu0 0.0
    %6298 = vmatprep.subr.mxu0 0.0
    %6299 = vmatpush1.msra.mxu0 0.0
    %6300 = vmatprep.subr.mxu0 0.0
    %6301 = vmatpush1.msra.mxu0 0.0
    %6302 = vmatprep.subr.mxu0 0.0
    %6303 = vmatpush1.msra.mxu0 0.0
    %6304 = vmatprep.subr.mxu0 0.0
    %6305 = vmatpush1.msra.mxu0 0.0
    %6306 = vmatprep.subr.mxu0 0.0
    %6307 = vmatpush1.msra.mxu0 0.0
    %6308 = vmatprep.subr.mxu0 0.0
    %6309 = vmatpush1.msra.mxu0 0.0
    %6310 = vmatprep.subr.mxu0 0.0
    %6311 = vmatpush1.msra.mxu0 0.0
    %6312 = vmatprep.subr.mxu0 0.0
    %6313 = vmatpush1.msra.mxu0 0.0
    %6314 = vmatprep.subr.mxu0 0.0
    %6315 = vmatpush1.msra.mxu0 %v6279
    %6316 = vmatprep.subr.mxu0 0.0
    %6317 = vmatpush2.msra.mxu0 0.0
    %6318 = vmatprep.subr.mxu0 0.0
    %6319 = vmatpush2.msra.mxu0 0.0
    %6320 = vmatprep.subr.mxu0 0.0
    %6321 = vmatpush2.msra.mxu0 0.0
    %6322 = vmatprep.subr.mxu0 0.0
    %6323 = vmatpush2.msra.mxu0 0.0
    %6324 = vmatprep.subr.mxu0 0.0
    %6325 = vmatpush2.msra.mxu0 0.0
    %6326 = vmatprep.subr.mxu0 0.0
    %6327 = vmatpush2.msra.mxu0 0.0
    %6328 = vmatprep.subr.mxu0 0.0
    %6329 = vmatpush2.msra.mxu0 0.0
    %6330 = vmatprep.subr.mxu0 0.0
    %6331 = vmatpush2.msra.mxu0 0.0
    %6332 = vmatprep.subr.mxu0 0.0
    %6333 = vmatpush2.msra.mxu0 0.0
    %6334 = vmatprep.subr.mxu0 0.0
    %6335 = vmatpush2.msra.mxu0 0.0
    %6336 = vmatprep.subr.mxu0 0.0
    %6337 = vmatpush2.msra.mxu0 0.0
    %6338 = vmatprep.subr.mxu0 0.0
    %6339 = vmatpush2.msra.mxu0 0.0
    %6340 = vmatprep.subr.mxu0 0.0
    %6341 = vmatpush2.msra.mxu0 0.0
    %6342 = vmatprep.subr.mxu0 0.0
    %6343 = vmatpush2.msra.mxu0 0.0
    %6344 = vmatprep.subr.mxu0 0.0
    %6345 = vmatpush2.msra.mxu0 0.0
    %6346 = vmatprep.subr.mxu0 0.0
    %6347 = vmatpush2.msra.mxu0 0.0
    %6348 = vmatprep.mubr.f32.mxu0 0.0
    %6349 = vmatmul.mubr.f32.gmra.mxu0 %v6282
    %v6350 = vpop.f32.mrf.mxu0
    %v6351 = vadd.f32 0.0, %v6350
    %v6352 = vpop.f32.mrf.mxu0
    %6353 = vdwg.mxu0
    %6354 = vrot.lane.b32.xlu0 %v6095, 96
    %v6355 = vpop.permute.xlu0 %6354
    %v6358 = vsel %vm516, %v6277, 0
    %6360 = vmatprep.subr.mxu0 0.0
    %6361 = vmatpush1.msra.mxu0 0.0
    %6362 = vmatprep.subr.mxu0 0.0
    %6363 = vmatpush1.msra.mxu0 0.0
    %6364 = vmatprep.subr.mxu0 0.0
    %6365 = vmatpush1.msra.mxu0 0.0
    %6366 = vmatprep.subr.mxu0 0.0
    %6367 = vmatpush1.msra.mxu0 0.0
    %6368 = vmatprep.subr.mxu0 0.0
    %6369 = vmatpush1.msra.mxu0 0.0
    %6370 = vmatprep.subr.mxu0 0.0
    %6371 = vmatpush1.msra.mxu0 0.0
    %6372 = vmatprep.subr.mxu0 0.0
    %6373 = vmatpush1.msra.mxu0 0.0
    %6374 = vmatprep.subr.mxu0 0.0
    %6375 = vmatpush1.msra.mxu0 0.0
    %6376 = vmatprep.subr.mxu0 0.0
    %6377 = vmatpush1.msra.mxu0 0.0
    %6378 = vmatprep.subr.mxu0 0.0
    %6379 = vmatpush1.msra.mxu0 0.0
    %6380 = vmatprep.subr.mxu0 0.0
    %6381 = vmatpush1.msra.mxu0 0.0
    %6382 = vmatprep.subr.mxu0 0.0
    %6383 = vmatpush1.msra.mxu0 0.0
    %6384 = vmatprep.subr.mxu0 0.0
    %6385 = vmatpush1.msra.mxu0 0.0
    %6386 = vmatprep.subr.mxu0 0.0
    %6387 = vmatpush1.msra.mxu0 0.0
    %6388 = vmatprep.subr.mxu0 0.0
    %6389 = vmatpush1.msra.mxu0 0.0
    %6390 = vmatprep.subr.mxu0 0.0
    %6391 = vmatpush1.msra.mxu0 %v6355
    %6392 = vmatprep.subr.mxu0 0.0
    %6393 = vmatpush2.msra.mxu0 0.0
    %6394 = vmatprep.subr.mxu0 0.0
    %6395 = vmatpush2.msra.mxu0 0.0
    %6396 = vmatprep.subr.mxu0 0.0
    %6397 = vmatpush2.msra.mxu0 0.0
    %6398 = vmatprep.subr.mxu0 0.0
    %6399 = vmatpush2.msra.mxu0 0.0
    %6400 = vmatprep.subr.mxu0 0.0
    %6401 = vmatpush2.msra.mxu0 0.0
    %6402 = vmatprep.subr.mxu0 0.0
    %6403 = vmatpush2.msra.mxu0 0.0
    %6404 = vmatprep.subr.mxu0 0.0
    %6405 = vmatpush2.msra.mxu0 0.0
    %6406 = vmatprep.subr.mxu0 0.0
    %6407 = vmatpush2.msra.mxu0 0.0
    %6408 = vmatprep.subr.mxu0 0.0
    %6409 = vmatpush2.msra.mxu0 0.0
    %6410 = vmatprep.subr.mxu0 0.0
    %6411 = vmatpush2.msra.mxu0 0.0
    %6412 = vmatprep.subr.mxu0 0.0
    %6413 = vmatpush2.msra.mxu0 0.0
    %6414 = vmatprep.subr.mxu0 0.0
    %6415 = vmatpush2.msra.mxu0 0.0
    %6416 = vmatprep.subr.mxu0 0.0
    %6417 = vmatpush2.msra.mxu0 0.0
    %6418 = vmatprep.subr.mxu0 0.0
    %6419 = vmatpush2.msra.mxu0 0.0
    %6420 = vmatprep.subr.mxu0 0.0
    %6421 = vmatpush2.msra.mxu0 0.0
    %6422 = vmatprep.subr.mxu0 0.0
    %6423 = vmatpush2.msra.mxu0 0.0
    %6424 = vmatprep.mubr.f32.mxu0 0.0
    %6425 = vmatmul.mubr.f32.gmra.mxu0 %v6358
    %v6426 = vpop.f32.mrf.mxu0
    %v6427 = vadd.f32 0.0, %v6426
    %v6428 = vpop.f32.mrf.mxu0
    %6429 = vdwg.mxu0
    %6430 = vrot.lane.b32.xlu0 %v6004, 112
    %v6431 = vpop.permute.xlu0 %6430
    %6432 = vrot.lane.b32.xlu0 %v6090, 112
    %v6433 = vpop.permute.xlu0 %6432
    %v6434 = vsel %vm350, %v6431, 0
    %v6436 = vsel %vm350, %v6433, 0
    %6438 = vmatprep.subr.mxu0 0.0
    %6439 = vmatpush1.xpose.msra.mxu0 0.0
    %6440 = vmatprep.subr.mxu0 0.0
    %6441 = vmatpush1.xpose.msra.mxu0 0.0
    %6442 = vmatprep.subr.mxu0 0.0
    %6443 = vmatpush1.xpose.msra.mxu0 0.0
    %6444 = vmatprep.subr.mxu0 0.0
    %6445 = vmatpush1.xpose.msra.mxu0 0.0
    %6446 = vmatprep.subr.mxu0 0.0
    %6447 = vmatpush1.xpose.msra.mxu0 0.0
    %6448 = vmatprep.subr.mxu0 0.0
    %6449 = vmatpush1.xpose.msra.mxu0 0.0
    %6450 = vmatprep.subr.mxu0 0.0
    %6451 = vmatpush1.xpose.msra.mxu0 0.0
    %6452 = vmatprep.subr.mxu0 0.0
    %6453 = vmatpush1.xpose.msra.mxu0 0.0
    %6454 = vmatprep.subr.mxu0 0.0
    %6455 = vmatpush1.xpose.msra.mxu0 0.0
    %6456 = vmatprep.subr.mxu0 0.0
    %6457 = vmatpush1.xpose.msra.mxu0 0.0
    %6458 = vmatprep.subr.mxu0 0.0
    %6459 = vmatpush1.xpose.msra.mxu0 0.0
    %6460 = vmatprep.subr.mxu0 0.0
    %6461 = vmatpush1.xpose.msra.mxu0 0.0
    %6462 = vmatprep.subr.mxu0 0.0
    %6463 = vmatpush1.xpose.msra.mxu0 0.0
    %6464 = vmatprep.subr.mxu0 0.0
    %6465 = vmatpush1.xpose.msra.mxu0 0.0
    %6466 = vmatprep.subr.mxu0 0.0
    %6467 = vmatpush1.xpose.msra.mxu0 0.0
    %6468 = vmatprep.subr.mxu0 0.0
    %6469 = vmatpush1.xpose.msra.mxu0 %v6436
    %6470 = vmatprep.subr.mxu0 0.0
    %6471 = vmatpush2.xpose.msra.mxu0 0.0
    %6472 = vmatprep.subr.mxu0 0.0
    %6473 = vmatpush2.xpose.msra.mxu0 0.0
    %6474 = vmatprep.subr.mxu0 0.0
    %6475 = vmatpush2.xpose.msra.mxu0 0.0
    %6476 = vmatprep.subr.mxu0 0.0
    %6477 = vmatpush2.xpose.msra.mxu0 0.0
    %6478 = vmatprep.subr.mxu0 0.0
    %6479 = vmatpush2.xpose.msra.mxu0 0.0
    %6480 = vmatprep.subr.mxu0 0.0
    %6481 = vmatpush2.xpose.msra.mxu0 0.0
    %6482 = vmatprep.subr.mxu0 0.0
    %6483 = vmatpush2.xpose.msra.mxu0 0.0
    %6484 = vmatprep.subr.mxu0 0.0
    %6485 = vmatpush2.xpose.msra.mxu0 0.0
    %6486 = vmatprep.subr.mxu0 0.0
    %6487 = vmatpush2.xpose.msra.mxu0 0.0
    %6488 = vmatprep.subr.mxu0 0.0
    %6489 = vmatpush2.xpose.msra.mxu0 0.0
    %6490 = vmatprep.subr.mxu0 0.0
    %6491 = vmatpush2.xpose.msra.mxu0 0.0
    %6492 = vmatprep.subr.mxu0 0.0
    %6493 = vmatpush2.xpose.msra.mxu0 0.0
    %6494 = vmatprep.subr.mxu0 0.0
    %6495 = vmatpush2.xpose.msra.mxu0 0.0
    %6496 = vmatprep.subr.mxu0 0.0
    %6497 = vmatpush2.xpose.msra.mxu0 0.0
    %6498 = vmatprep.subr.mxu0 0.0
    %6499 = vmatpush2.xpose.msra.mxu0 0.0
    %6500 = vmatprep.subr.mxu0 0.0
    %6501 = vmatpush2.xpose.msra.mxu0 0.0
    %6502 = vmatprep.mubr.f32.mxu0 0.0
    %6503 = vmatmul.mubr.f32.gmra.mxu0 %v6434
    %v6504 = vpop.f32.mrf.mxu0
    %v6505 = vadd.f32 0.0, %v6504
    %v6506 = vpop.f32.mrf.mxu0
    %6507 = vdwg.mxu0
    %6508 = vrot.lane.b32.xlu0 %v6009, 112
    %v6509 = vpop.permute.xlu0 %6508
    %6510 = vrot.lane.b32.xlu0 %v6095, 112
    %v6511 = vpop.permute.xlu0 %6510
    %v6512 = vsel %vm350, %v6509, 0
    %v6514 = vsel %vm350, %v6511, 0
    %6516 = vmatprep.subr.mxu0 0.0
    %6517 = vmatpush1.xpose.msra.mxu0 0.0
    %6518 = vmatprep.subr.mxu0 0.0
    %6519 = vmatpush1.xpose.msra.mxu0 0.0
    %6520 = vmatprep.subr.mxu0 0.0
    %6521 = vmatpush1.xpose.msra.mxu0 0.0
    %6522 = vmatprep.subr.mxu0 0.0
    %6523 = vmatpush1.xpose.msra.mxu0 0.0
    %6524 = vmatprep.subr.mxu0 0.0
    %6525 = vmatpush1.xpose.msra.mxu0 0.0
    %6526 = vmatprep.subr.mxu0 0.0
    %6527 = vmatpush1.xpose.msra.mxu0 0.0
    %6528 = vmatprep.subr.mxu0 0.0
    %6529 = vmatpush1.xpose.msra.mxu0 0.0
    %6530 = vmatprep.subr.mxu0 0.0
    %6531 = vmatpush1.xpose.msra.mxu0 0.0
    %6532 = vmatprep.subr.mxu0 0.0
    %6533 = vmatpush1.xpose.msra.mxu0 0.0
    %6534 = vmatprep.subr.mxu0 0.0
    %6535 = vmatpush1.xpose.msra.mxu0 0.0
    %6536 = vmatprep.subr.mxu0 0.0
    %6537 = vmatpush1.xpose.msra.mxu0 0.0
    %6538 = vmatprep.subr.mxu0 0.0
    %6539 = vmatpush1.xpose.msra.mxu0 0.0
    %6540 = vmatprep.subr.mxu0 0.0
    %6541 = vmatpush1.xpose.msra.mxu0 0.0
    %6542 = vmatprep.subr.mxu0 0.0
    %6543 = vmatpush1.xpose.msra.mxu0 0.0
    %6544 = vmatprep.subr.mxu0 0.0
    %6545 = vmatpush1.xpose.msra.mxu0 0.0
    %6546 = vmatprep.subr.mxu0 0.0
    %6547 = vmatpush1.xpose.msra.mxu0 %v6514
    %6548 = vmatprep.subr.mxu0 0.0
    %6549 = vmatpush2.xpose.msra.mxu0 0.0
    %6550 = vmatprep.subr.mxu0 0.0
    %6551 = vmatpush2.xpose.msra.mxu0 0.0
    %6552 = vmatprep.subr.mxu0 0.0
    %6553 = vmatpush2.xpose.msra.mxu0 0.0
    %6554 = vmatprep.subr.mxu0 0.0
    %6555 = vmatpush2.xpose.msra.mxu0 0.0
    %6556 = vmatprep.subr.mxu0 0.0
    %6557 = vmatpush2.xpose.msra.mxu0 0.0
    %6558 = vmatprep.subr.mxu0 0.0
    %6559 = vmatpush2.xpose.msra.mxu0 0.0
    %6560 = vmatprep.subr.mxu0 0.0
    %6561 = vmatpush2.xpose.msra.mxu0 0.0
    %6562 = vmatprep.subr.mxu0 0.0
    %6563 = vmatpush2.xpose.msra.mxu0 0.0
    %6564 = vmatprep.subr.mxu0 0.0
    %6565 = vmatpush2.xpose.msra.mxu0 0.0
    %6566 = vmatprep.subr.mxu0 0.0
    %6567 = vmatpush2.xpose.msra.mxu0 0.0
    %6568 = vmatprep.subr.mxu0 0.0
    %6569 = vmatpush2.xpose.msra.mxu0 0.0
    %6570 = vmatprep.subr.mxu0 0.0
    %6571 = vmatpush2.xpose.msra.mxu0 0.0
    %6572 = vmatprep.subr.mxu0 0.0
    %6573 = vmatpush2.xpose.msra.mxu0 0.0
    %6574 = vmatprep.subr.mxu0 0.0
    %6575 = vmatpush2.xpose.msra.mxu0 0.0
    %6576 = vmatprep.subr.mxu0 0.0
    %6577 = vmatpush2.xpose.msra.mxu0 0.0
    %6578 = vmatprep.subr.mxu0 0.0
    %6579 = vmatpush2.xpose.msra.mxu0 0.0
    %6580 = vmatprep.mubr.f32.mxu0 0.0
    %6581 = vmatmul.mubr.f32.gmra.mxu0 %v6512
    %v6582 = vpop.f32.mrf.mxu0
    %v6583 = vadd.f32 0.0, %v6582
    %v6584 = vpop.f32.mrf.mxu0
    %6585 = vdwg.mxu0
    %v6586 = vmul.f32 %v6505, 0.25
    %v6587 = vmul.f32 %v6583, 0.25
    %v6588 = vsel %vm516, %v6586, -inf
    %6589 = vmax.xlane.f32.xlu0 %v6588
    %v6590 = vpop.xlane.xlu0 %6589
    %v6591 = vsel %vm516, %v6587, -inf
    %6592 = vmax.xlane.f32.xlu0 %v6591
    %v6593 = vpop.xlane.xlu0 %6592
    %v6594 = vsub.f32 %v6586, %v6590
    %v6595 = vsub.f32 %v6587, %v6593
    %v6596 = vmul.f32 %v6594, 1.442695
    %v6597 = vpow.pop %v6596
    %v6598 = vmul.f32 %v6595, 1.442695
    %v6599 = vpow.pop %v6598
    %v6600 = vsel %vm516, %v6597, 0.0
    %6601 = vadd.xlane.f32.xlu0 %v6600
    %v6602 = vpop.xlane.xlu0 %6601
    %v6603 = vsel %vm516, %v6599, 0.0
    %6604 = vadd.xlane.f32.xlu0 %v6603
    %v6605 = vpop.xlane.xlu0 %6604
    %v6606 = vrcp.pop %v6602
    %v6607 = vrcp.pop %v6605
    %v6608 = vmul.f32 %v6597, %v6606
    %v6609 = vmul.f32 %v6599, %v6607
    %6610 = vrot.lane.b32.xlu0 %v6090, 80
    %v6611 = vpop.permute.xlu0 %6610
    %v6614 = vsel %vm516, %v6608, 0
    %6616 = vmatprep.subr.mxu0 0.0
    %6617 = vmatpush1.msra.mxu0 0.0
    %6618 = vmatprep.subr.mxu0 0.0
    %6619 = vmatpush1.msra.mxu0 0.0
    %6620 = vmatprep.subr.mxu0 0.0
    %6621 = vmatpush1.msra.mxu0 0.0
    %6622 = vmatprep.subr.mxu0 0.0
    %6623 = vmatpush1.msra.mxu0 0.0
    %6624 = vmatprep.subr.mxu0 0.0
    %6625 = vmatpush1.msra.mxu0 0.0
    %6626 = vmatprep.subr.mxu0 0.0
    %6627 = vmatpush1.msra.mxu0 0.0
    %6628 = vmatprep.subr.mxu0 0.0
    %6629 = vmatpush1.msra.mxu0 0.0
    %6630 = vmatprep.subr.mxu0 0.0
    %6631 = vmatpush1.msra.mxu0 0.0
    %6632 = vmatprep.subr.mxu0 0.0
    %6633 = vmatpush1.msra.mxu0 0.0
    %6634 = vmatprep.subr.mxu0 0.0
    %6635 = vmatpush1.msra.mxu0 0.0
    %6636 = vmatprep.subr.mxu0 0.0
    %6637 = vmatpush1.msra.mxu0 0.0
    %6638 = vmatprep.subr.mxu0 0.0
    %6639 = vmatpush1.msra.mxu0 0.0
    %6640 = vmatprep.subr.mxu0 0.0
    %6641 = vmatpush1.msra.mxu0 0.0
    %6642 = vmatprep.subr.mxu0 0.0
    %6643 = vmatpush1.msra.mxu0 0.0
    %6644 = vmatprep.subr.mxu0 0.0
    %6645 = vmatpush1.msra.mxu0 0.0
    %6646 = vmatprep.subr.mxu0 0.0
    %6647 = vmatpush1.msra.mxu0 %v6611
    %6648 = vmatprep.subr.mxu0 0.0
    %6649 = vmatpush2.msra.mxu0 0.0
    %6650 = vmatprep.subr.mxu0 0.0
    %6651 = vmatpush2.msra.mxu0 0.0
    %6652 = vmatprep.subr.mxu0 0.0
    %6653 = vmatpush2.msra.mxu0 0.0
    %6654 = vmatprep.subr.mxu0 0.0
    %6655 = vmatpush2.msra.mxu0 0.0
    %6656 = vmatprep.subr.mxu0 0.0
    %6657 = vmatpush2.msra.mxu0 0.0
    %6658 = vmatprep.subr.mxu0 0.0
    %6659 = vmatpush2.msra.mxu0 0.0
    %6660 = vmatprep.subr.mxu0 0.0
    %6661 = vmatpush2.msra.mxu0 0.0
    %6662 = vmatprep.subr.mxu0 0.0
    %6663 = vmatpush2.msra.mxu0 0.0
    %6664 = vmatprep.subr.mxu0 0.0
    %6665 = vmatpush2.msra.mxu0 0.0
    %6666 = vmatprep.subr.mxu0 0.0
    %6667 = vmatpush2.msra.mxu0 0.0
    %6668 = vmatprep.subr.mxu0 0.0
    %6669 = vmatpush2.msra.mxu0 0.0
    %6670 = vmatprep.subr.mxu0 0.0
    %6671 = vmatpush2.msra.mxu0 0.0
    %6672 = vmatprep.subr.mxu0 0.0
    %6673 = vmatpush2.msra.mxu0 0.0
    %6674 = vmatprep.subr.mxu0 0.0
    %6675 = vmatpush2.msra.mxu0 0.0
    %6676 = vmatprep.subr.mxu0 0.0
    %6677 = vmatpush2.msra.mxu0 0.0
    %6678 = vmatprep.subr.mxu0 0.0
    %6679 = vmatpush2.msra.mxu0 0.0
    %6680 = vmatprep.mubr.f32.mxu0 0.0
    %6681 = vmatmul.mubr.f32.gmra.mxu0 %v6614
    %v6682 = vpop.f32.mrf.mxu0
    %v6683 = vadd.f32 0.0, %v6682
    %v6684 = vpop.f32.mrf.mxu0
    %6685 = vdwg.mxu0
    %6686 = vrot.lane.b32.xlu0 %v6095, 80
    %v6687 = vpop.permute.xlu0 %6686
    %v6690 = vsel %vm516, %v6609, 0
    %6692 = vmatprep.subr.mxu0 0.0
    %6693 = vmatpush1.msra.mxu0 0.0
    %6694 = vmatprep.subr.mxu0 0.0
    %6695 = vmatpush1.msra.mxu0 0.0
    %6696 = vmatprep.subr.mxu0 0.0
    %6697 = vmatpush1.msra.mxu0 0.0
    %6698 = vmatprep.subr.mxu0 0.0
    %6699 = vmatpush1.msra.mxu0 0.0
    %6700 = vmatprep.subr.mxu0 0.0
    %6701 = vmatpush1.msra.mxu0 0.0
    %6702 = vmatprep.subr.mxu0 0.0
    %6703 = vmatpush1.msra.mxu0 0.0
    %6704 = vmatprep.subr.mxu0 0.0
    %6705 = vmatpush1.msra.mxu0 0.0
    %6706 = vmatprep.subr.mxu0 0.0
    %6707 = vmatpush1.msra.mxu0 0.0
    %6708 = vmatprep.subr.mxu0 0.0
    %6709 = vmatpush1.msra.mxu0 0.0
    %6710 = vmatprep.subr.mxu0 0.0
    %6711 = vmatpush1.msra.mxu0 0.0
    %6712 = vmatprep.subr.mxu0 0.0
    %6713 = vmatpush1.msra.mxu0 0.0
    %6714 = vmatprep.subr.mxu0 0.0
    %6715 = vmatpush1.msra.mxu0 0.0
    %6716 = vmatprep.subr.mxu0 0.0
    %6717 = vmatpush1.msra.mxu0 0.0
    %6718 = vmatprep.subr.mxu0 0.0
    %6719 = vmatpush1.msra.mxu0 0.0
    %6720 = vmatprep.subr.mxu0 0.0
    %6721 = vmatpush1.msra.mxu0 0.0
    %6722 = vmatprep.subr.mxu0 0.0
    %6723 = vmatpush1.msra.mxu0 %v6687
    %6724 = vmatprep.subr.mxu0 0.0
    %6725 = vmatpush2.msra.mxu0 0.0
    %6726 = vmatprep.subr.mxu0 0.0
    %6727 = vmatpush2.msra.mxu0 0.0
    %6728 = vmatprep.subr.mxu0 0.0
    %6729 = vmatpush2.msra.mxu0 0.0
    %6730 = vmatprep.subr.mxu0 0.0
    %6731 = vmatpush2.msra.mxu0 0.0
    %6732 = vmatprep.subr.mxu0 0.0
    %6733 = vmatpush2.msra.mxu0 0.0
    %6734 = vmatprep.subr.mxu0 0.0
    %6735 = vmatpush2.msra.mxu0 0.0
    %6736 = vmatprep.subr.mxu0 0.0
    %6737 = vmatpush2.msra.mxu0 0.0
    %6738 = vmatprep.subr.mxu0 0.0
    %6739 = vmatpush2.msra.mxu0 0.0
    %6740 = vmatprep.subr.mxu0 0.0
    %6741 = vmatpush2.msra.mxu0 0.0
    %6742 = vmatprep.subr.mxu0 0.0
    %6743 = vmatpush2.msra.mxu0 0.0
    %6744 = vmatprep.subr.mxu0 0.0
    %6745 = vmatpush2.msra.mxu0 0.0
    %6746 = vmatprep.subr.mxu0 0.0
    %6747 = vmatpush2.msra.mxu0 0.0
    %6748 = vmatprep.subr.mxu0 0.0
    %6749 = vmatpush2.msra.mxu0 0.0
    %6750 = vmatprep.subr.mxu0 0.0
    %6751 = vmatpush2.msra.mxu0 0.0
    %6752 = vmatprep.subr.mxu0 0.0
    %6753 = vmatpush2.msra.mxu0 0.0
    %6754 = vmatprep.subr.mxu0 0.0
    %6755 = vmatpush2.msra.mxu0 0.0
    %6756 = vmatprep.mubr.f32.mxu0 0.0
    %6757 = vmatmul.mubr.f32.gmra.mxu0 %v6690
    %v6758 = vpop.f32.mrf.mxu0
    %v6759 = vadd.f32 0.0, %v6758
    %v6760 = vpop.f32.mrf.mxu0
    %6761 = vdwg.mxu0
    %v6763 = vsel %vm350, %v6683, 0
    %v6766 = vsel %vm350, %v6759, 0
    %6768 = vmatprep.subr.mxu0 0.0
    %6769 = vmatpush1.msra.mxu0 0.0
    %6770 = vmatprep.subr.mxu0 0.0
    %6771 = vmatpush1.msra.mxu0 0.0
    %6772 = vmatprep.subr.mxu0 0.0
    %6773 = vmatpush1.msra.mxu0 0.0
    %6774 = vmatprep.subr.mxu0 0.0
    %6775 = vmatpush1.msra.mxu0 0.0
    %6776 = vmatprep.subr.mxu0 0.0
    %6777 = vmatpush1.msra.mxu0 0.0
    %6778 = vmatprep.subr.mxu0 0.0
    %6779 = vmatpush1.msra.mxu0 0.0
    %6780 = vmatprep.subr.mxu0 0.0
    %6781 = vmatpush1.msra.mxu0 0.0
    %6782 = vmatprep.subr.mxu0 0.0
    %6783 = vmatpush1.msra.mxu0 0.0
    %6784 = vmatprep.subr.mxu0 0.0
    %6785 = vmatpush1.msra.mxu0 0.0
    %6786 = vmatprep.subr.mxu0 0.0
    %6787 = vmatpush1.msra.mxu0 0.0
    %6788 = vmatprep.subr.mxu0 0.0
    %6789 = vmatpush1.msra.mxu0 0.0
    %6790 = vmatprep.subr.mxu0 0.0
    %6791 = vmatpush1.msra.mxu0 0.0
    %6792 = vmatprep.subr.mxu0 0.0
    %6793 = vmatpush1.msra.mxu0 0.0
    %6794 = vmatprep.subr.mxu0 0.0
    %6795 = vmatpush1.msra.mxu0 0.0
    %6796 = vmatprep.subr.mxu0 0.0
    %6797 = vmatpush1.msra.mxu0 %v6101
    %6798 = vmatprep.subr.mxu0 0.0
    %6799 = vmatpush1.msra.mxu0 %v6100
    %6800 = vmatprep.subr.mxu0 0.0
    %6801 = vmatpush2.msra.mxu0 0.0
    %6802 = vmatprep.subr.mxu0 0.0
    %6803 = vmatpush2.msra.mxu0 0.0
    %6804 = vmatprep.subr.mxu0 0.0
    %6805 = vmatpush2.msra.mxu0 0.0
    %6806 = vmatprep.subr.mxu0 0.0
    %6807 = vmatpush2.msra.mxu0 0.0
    %6808 = vmatprep.subr.mxu0 0.0
    %6809 = vmatpush2.msra.mxu0 0.0
    %6810 = vmatprep.subr.mxu0 0.0
    %6811 = vmatpush2.msra.mxu0 0.0
    %6812 = vmatprep.subr.mxu0 0.0
    %6813 = vmatpush2.msra.mxu0 0.0
    %6814 = vmatprep.subr.mxu0 0.0
    %6815 = vmatpush2.msra.mxu0 0.0
    %6816 = vmatprep.subr.mxu0 0.0
    %6817 = vmatpush2.msra.mxu0 0.0
    %6818 = vmatprep.subr.mxu0 0.0
    %6819 = vmatpush2.msra.mxu0 0.0
    %6820 = vmatprep.subr.mxu0 0.0
    %6821 = vmatpush2.msra.mxu0 0.0
    %6822 = vmatprep.subr.mxu0 0.0
    %6823 = vmatpush2.msra.mxu0 0.0
    %6824 = vmatprep.subr.mxu0 0.0
    %6825 = vmatpush2.msra.mxu0 0.0
    %6826 = vmatprep.subr.mxu0 0.0
    %6827 = vmatpush2.msra.mxu0 0.0
    %6828 = vmatprep.subr.mxu0 0.0
    %6829 = vmatpush2.msra.mxu0 0.0
    %6830 = vmatprep.subr.mxu0 0.0
    %6831 = vmatpush2.msra.mxu0 0.0
    %6832 = vmatprep.mubr.f32.mxu0 0.0
    %6833 = vmatmul.mubr.f32.gmra.mxu0 %v6763
    %v6834 = vpop.f32.mrf.mxu0
    %v6835 = vadd.f32 0.0, %v6834
    %v6836 = vpop.f32.mrf.mxu0
    %6837 = vmatprep.mubr.f32.mxu0 0.0
    %6838 = vmatmul.mubr.f32.gmra.mxu0 %v6766
    %v6839 = vpop.f32.mrf.mxu0
    %v6840 = vadd.f32 0.0, %v6839
    %v6841 = vpop.f32.mrf.mxu0
    %6842 = vdwg.mxu0
    %v6844 = vsel %vm350, %v6351, 0
    %v6847 = vsel %vm350, %v6427, 0
    %6849 = vmatprep.subr.mxu0 0.0
    %6850 = vmatpush1.msra.mxu0 0.0
    %6851 = vmatprep.subr.mxu0 0.0
    %6852 = vmatpush1.msra.mxu0 0.0
    %6853 = vmatprep.subr.mxu0 0.0
    %6854 = vmatpush1.msra.mxu0 0.0
    %6855 = vmatprep.subr.mxu0 0.0
    %6856 = vmatpush1.msra.mxu0 0.0
    %6857 = vmatprep.subr.mxu0 0.0
    %6858 = vmatpush1.msra.mxu0 0.0
    %6859 = vmatprep.subr.mxu0 0.0
    %6860 = vmatpush1.msra.mxu0 0.0
    %6861 = vmatprep.subr.mxu0 0.0
    %6862 = vmatpush1.msra.mxu0 0.0
    %6863 = vmatprep.subr.mxu0 0.0
    %6864 = vmatpush1.msra.mxu0 0.0
    %6865 = vmatprep.subr.mxu0 0.0
    %6866 = vmatpush1.msra.mxu0 0.0
    %6867 = vmatprep.subr.mxu0 0.0
    %6868 = vmatpush1.msra.mxu0 0.0
    %6869 = vmatprep.subr.mxu0 0.0
    %6870 = vmatpush1.msra.mxu0 0.0
    %6871 = vmatprep.subr.mxu0 0.0
    %6872 = vmatpush1.msra.mxu0 0.0
    %6873 = vmatprep.subr.mxu0 0.0
    %6874 = vmatpush1.msra.mxu0 0.0
    %6875 = vmatprep.subr.mxu0 0.0
    %6876 = vmatpush1.msra.mxu0 0.0
    %6877 = vmatprep.subr.mxu0 0.0
    %6878 = vmatpush1.msra.mxu0 %v6099
    %6879 = vmatprep.subr.mxu0 0.0
    %6880 = vmatpush1.msra.mxu0 %v6098
    %6881 = vmatprep.subr.mxu0 0.0
    %6882 = vmatpush2.msra.mxu0 0.0
    %6883 = vmatprep.subr.mxu0 0.0
    %6884 = vmatpush2.msra.mxu0 0.0
    %6885 = vmatprep.subr.mxu0 0.0
    %6886 = vmatpush2.msra.mxu0 0.0
    %6887 = vmatprep.subr.mxu0 0.0
    %6888 = vmatpush2.msra.mxu0 0.0
    %6889 = vmatprep.subr.mxu0 0.0
    %6890 = vmatpush2.msra.mxu0 0.0
    %6891 = vmatprep.subr.mxu0 0.0
    %6892 = vmatpush2.msra.mxu0 0.0
    %6893 = vmatprep.subr.mxu0 0.0
    %6894 = vmatpush2.msra.mxu0 0.0
    %6895 = vmatprep.subr.mxu0 0.0
    %6896 = vmatpush2.msra.mxu0 0.0
    %6897 = vmatprep.subr.mxu0 0.0
    %6898 = vmatpush2.msra.mxu0 0.0
    %6899 = vmatprep.subr.mxu0 0.0
    %6900 = vmatpush2.msra.mxu0 0.0
    %6901 = vmatprep.subr.mxu0 0.0
    %6902 = vmatpush2.msra.mxu0 0.0
    %6903 = vmatprep.subr.mxu0 0.0
    %6904 = vmatpush2.msra.mxu0 0.0
    %6905 = vmatprep.subr.mxu0 0.0
    %6906 = vmatpush2.msra.mxu0 0.0
    %6907 = vmatprep.subr.mxu0 0.0
    %6908 = vmatpush2.msra.mxu0 0.0
    %6909 = vmatprep.subr.mxu0 0.0
    %6910 = vmatpush2.msra.mxu0 0.0
    %6911 = vmatprep.subr.mxu0 0.0
    %6912 = vmatpush2.msra.mxu0 0.0
    %6913 = vmatprep.mubr.f32.mxu0 0.0
    %6914 = vmatmul.mubr.f32.gmra.mxu0 %v6844
    %v6915 = vpop.f32.mrf.mxu0
    %v6916 = vadd.f32 %v6835, %v6915
    %v6917 = vpop.f32.mrf.mxu0
    %6918 = vmatprep.mubr.f32.mxu0 0.0
    %6919 = vmatmul.mubr.f32.gmra.mxu0 %v6847
    %v6920 = vpop.f32.mrf.mxu0
    %v6921 = vadd.f32 %v6840, %v6920
    %v6922 = vpop.f32.mrf.mxu0
    %6923 = vdwg.mxu0
    %v6924 = vlaneseq
    %v6925 = vshrl.u32 %v6924, 7
    %v6926 = vsub.s32 2, %v6925
    %v6927 = vrot.slane %v4951, %v6926
    %v6928 = vadd.f32 %v6916, %v6927
    %v6929 = vadd.f32 %v6921, %v6927
    %v6930 = vadd.f32 %v5921, %v6928
    %v6931 = vadd.f32 %v5922, %v6929
    %v6932 = vsel %vm261, %v6930, 0.0
    %6933 = vadd.xlane.f32.xlu0 %v6932
    %v6934 = vpop.xlane.xlu0 %6933
    %v6935 = vsel %vm261, %v6931, 0.0
    %6936 = vadd.xlane.f32.xlu0 %v6935
    %v6937 = vpop.xlane.xlu0 %6936
    %v6938 = vmul.f32 %v6934, %v1201
    %v6939 = vmul.f32 %v6937, %v1201
    %v6940 = vsub.f32 %v6930, %v6938
    %v6941 = vsub.f32 %v6931, %v6939
    %v6942 = vmul.f32 %v6940, %v6940
    %v6943 = vmul.f32 %v6941, %v6941
    %v6944 = vsel %vm261, %v6942, 0.0
    %6945 = vadd.xlane.f32.xlu0 %v6944
    %v6946 = vpop.xlane.xlu0 %6945
    %v6947 = vsel %vm261, %v6943, 0.0
    %6948 = vadd.xlane.f32.xlu0 %v6947
    %v6949 = vpop.xlane.xlu0 %6948
    %v6950 = vmul.f32 %v6946, %v1201
    %v6951 = vmul.f32 %v6949, %v1201
    %v6952 = vadd.f32 %v6950, 1e-05
    %v6953 = vadd.f32 %v6951, 1e-05
    %v6954 = vrsqrt.pop %v6952
    %v6955 = vrsqrt.pop %v6953
    %v6956 = vmul.f32 %v6940, %v6954
    %v6957 = vmul.f32 %v6941, %v6955
    %v6958 = vlaneseq
    %v6959 = vshrl.u32 %v6958, 7
    %v6960 = vsub.s32 6, %v6959
    %v6961 = vrot.slane %v4951, %v6960
    %v6962 = vmul.f32 %v6956, %v6961
    %v6963 = vmul.f32 %v6957, %v6961
    %v6964 = vlaneseq
    %v6965 = vshrl.u32 %v6964, 7
    %v6966 = vsub.s32 7, %v6965
    %v6967 = vrot.slane %v4951, %v6966
    %v6968 = vadd.f32 %v6962, %v6967
    %v6969 = vadd.f32 %v6963, %v6967
    %v6970 = vld [vmem:[%s39] sm:$0xff]
    %v6971 = vld [vmem:[%s39 + $0x8] sm:$0xff]
    %v6972 = vld [vmem:[%s39 + $0x10] sm:$0xff]
    %v6973 = vld [vmem:[%s39 + $0x18] sm:$0xff]
    %v6974 = vld [vmem:[%s31] sm:$0x1]
    %v6976 = vlaneseq
    %v6977 = vshrl.u32 %v6976, 7
    %v6978 = vsub.s32 0, %v6977
    %v6979 = vrot.slane %v6974, %v6978
    %v6982 = vsel %vm261, %v6968, 0
    %v6985 = vsel %vm261, %v6969, 0
    %6987 = vmatprep.subr.mxu0 0.0
    %6988 = vmatpush1.msra.mxu0 0.0
    %6989 = vmatprep.subr.mxu0 0.0
    %6990 = vmatpush1.msra.mxu0 0.0
    %6991 = vmatprep.subr.mxu0 0.0
    %6992 = vmatpush1.msra.mxu0 0.0
    %6993 = vmatprep.subr.mxu0 0.0
    %6994 = vmatpush1.msra.mxu0 0.0
    %6995 = vmatprep.subr.mxu0 0.0
    %6996 = vmatpush1.msra.mxu0 0.0
    %6997 = vmatprep.subr.mxu0 0.0
    %6998 = vmatpush1.msra.mxu0 0.0
    %6999 = vmatprep.subr.mxu0 0.0
    %7000 = vmatpush1.msra.mxu0 0.0
    %7001 = vmatprep.subr.mxu0 0.0
    %7002 = vmatpush1.msra.mxu0 0.0
    %7003 = vmatprep.subr.mxu0 0.0
    %7004 = vmatpush1.msra.mxu0 0.0
    %7005 = vmatprep.subr.mxu0 0.0
    %7006 = vmatpush1.msra.mxu0 0.0
    %7007 = vmatprep.subr.mxu0 0.0
    %7008 = vmatpush1.msra.mxu0 0.0
    %7009 = vmatprep.subr.mxu0 0.0
    %7010 = vmatpush1.msra.mxu0 0.0
    %7011 = vmatprep.subr.mxu0 0.0
    %7012 = vmatpush1.msra.mxu0 %v6973
    %7013 = vmatprep.subr.mxu0 0.0
    %7014 = vmatpush1.msra.mxu0 %v6972
    %7015 = vmatprep.subr.mxu0 0.0
    %7016 = vmatpush1.msra.mxu0 %v6971
    %7017 = vmatprep.subr.mxu0 0.0
    %7018 = vmatpush1.msra.mxu0 %v6970
    %7019 = vmatprep.subr.mxu0 0.0
    %7020 = vmatpush2.msra.mxu0 0.0
    %7021 = vmatprep.subr.mxu0 0.0
    %7022 = vmatpush2.msra.mxu0 0.0
    %7023 = vmatprep.subr.mxu0 0.0
    %7024 = vmatpush2.msra.mxu0 0.0
    %7025 = vmatprep.subr.mxu0 0.0
    %7026 = vmatpush2.msra.mxu0 0.0
    %7027 = vmatprep.subr.mxu0 0.0
    %7028 = vmatpush2.msra.mxu0 0.0
    %7029 = vmatprep.subr.mxu0 0.0
    %7030 = vmatpush2.msra.mxu0 0.0
    %7031 = vmatprep.subr.mxu0 0.0
    %7032 = vmatpush2.msra.mxu0 0.0
    %7033 = vmatprep.subr.mxu0 0.0
    %7034 = vmatpush2.msra.mxu0 0.0
    %7035 = vmatprep.subr.mxu0 0.0
    %7036 = vmatpush2.msra.mxu0 0.0
    %7037 = vmatprep.subr.mxu0 0.0
    %7038 = vmatpush2.msra.mxu0 0.0
    %7039 = vmatprep.subr.mxu0 0.0
    %7040 = vmatpush2.msra.mxu0 0.0
    %7041 = vmatprep.subr.mxu0 0.0
    %7042 = vmatpush2.msra.mxu0 0.0
    %7043 = vmatprep.subr.mxu0 0.0
    %7044 = vmatpush2.msra.mxu0 0.0
    %7045 = vmatprep.subr.mxu0 0.0
    %7046 = vmatpush2.msra.mxu0 0.0
    %7047 = vmatprep.subr.mxu0 0.0
    %7048 = vmatpush2.msra.mxu0 0.0
    %7049 = vmatprep.subr.mxu0 0.0
    %7050 = vmatpush2.msra.mxu0 0.0
    %7051 = vmatprep.mubr.f32.mxu0 0.0
    %7052 = vmatmul.mubr.f32.gmra.mxu0 %v6982
    %v7053 = vpop.f32.mrf.mxu0
    %v7054 = vadd.f32 %v6979, %v7053
    %v7055 = vpop.f32.mrf.mxu0
    %7056 = vmatprep.mubr.f32.mxu0 0.0
    %7057 = vmatmul.mubr.f32.gmra.mxu0 %v6985
    %v7058 = vpop.f32.mrf.mxu0
    %v7059 = vadd.f32 %v6979, %v7058
    %v7060 = vpop.f32.mrf.mxu0
    %7061 = vdwg.mxu0
    %v7062 = vmax.f32 %v7054, 0.0
    %v7063 = vmax.f32 %v7059, 0.0
    %v7064 = vld [vmem:[%s41] sm:$0xff]
    %v7065 = vld [vmem:[%s41 + $0x8] sm:$0xff]
    %v7066 = vld [vmem:[%s41 + $0x10] sm:$0xff]
    %v7067 = vld [vmem:[%s41 + $0x18] sm:$0xff]
    %v7068 = vld [vmem:[%s41 + $0x20] sm:$0xff]
    %v7069 = vld [vmem:[%s41 + $0x28] sm:$0xff]
    %v7070 = vld [vmem:[%s41 + $0x30] sm:$0xff]
    %v7071 = vld [vmem:[%s41 + $0x38] sm:$0xff]
    %v7072 = vlaneseq
    %v7073 = vshrl.u32 %v7072, 7
    %v7074 = vsub.s32 3, %v7073
    %v7075 = vrot.slane %v4951, %v7074
    %v7077 = vsel %vm1340, %v7062, 0
    %v7080 = vsel %vm1340, %v7063, 0
    %7082 = vmatprep.subr.mxu0 0.0
    %7083 = vmatpush1.msra.mxu0 0.0
    %7084 = vmatprep.subr.mxu0 0.0
    %7085 = vmatpush1.msra.mxu0 0.0
    %7086 = vmatprep.subr.mxu0 0.0
    %7087 = vmatpush1.msra.mxu0 0.0
    %7088 = vmatprep.subr.mxu0 0.0
    %7089 = vmatpush1.msra.mxu0 0.0
    %7090 = vmatprep.subr.mxu0 0.0
    %7091 = vmatpush1.msra.mxu0 0.0
    %7092 = vmatprep.subr.mxu0 0.0
    %7093 = vmatpush1.msra.mxu0 0.0
    %7094 = vmatprep.subr.mxu0 0.0
    %7095 = vmatpush1.msra.mxu0 0.0
    %7096 = vmatprep.subr.mxu0 0.0
    %7097 = vmatpush1.msra.mxu0 0.0
    %7098 = vmatprep.subr.mxu0 0.0
    %7099 = vmatpush1.msra.mxu0 %v7071
    %7100 = vmatprep.subr.mxu0 0.0
    %7101 = vmatpush1.msra.mxu0 %v7070
    %7102 = vmatprep.subr.mxu0 0.0
    %7103 = vmatpush1.msra.mxu0 %v7069
    %7104 = vmatprep.subr.mxu0 0.0
    %7105 = vmatpush1.msra.mxu0 %v7068
    %7106 = vmatprep.subr.mxu0 0.0
    %7107 = vmatpush1.msra.mxu0 %v7067
    %7108 = vmatprep.subr.mxu0 0.0
    %7109 = vmatpush1.msra.mxu0 %v7066
    %7110 = vmatprep.subr.mxu0 0.0
    %7111 = vmatpush1.msra.mxu0 %v7065
    %7112 = vmatprep.subr.mxu0 0.0
    %7113 = vmatpush1.msra.mxu0 %v7064
    %7114 = vmatprep.subr.mxu0 0.0
    %7115 = vmatpush2.msra.mxu0 0.0
    %7116 = vmatprep.subr.mxu0 0.0
    %7117 = vmatpush2.msra.mxu0 0.0
    %7118 = vmatprep.subr.mxu0 0.0
    %7119 = vmatpush2.msra.mxu0 0.0
    %7120 = vmatprep.subr.mxu0 0.0
    %7121 = vmatpush2.msra.mxu0 0.0
    %7122 = vmatprep.subr.mxu0 0.0
    %7123 = vmatpush2.msra.mxu0 0.0
    %7124 = vmatprep.subr.mxu0 0.0
    %7125 = vmatpush2.msra.mxu0 0.0
    %7126 = vmatprep.subr.mxu0 0.0
    %7127 = vmatpush2.msra.mxu0 0.0
    %7128 = vmatprep.subr.mxu0 0.0
    %7129 = vmatpush2.msra.mxu0 0.0
    %7130 = vmatprep.subr.mxu0 0.0
    %7131 = vmatpush2.msra.mxu0 0.0
    %7132 = vmatprep.subr.mxu0 0.0
    %7133 = vmatpush2.msra.mxu0 0.0
    %7134 = vmatprep.subr.mxu0 0.0
    %7135 = vmatpush2.msra.mxu0 0.0
    %7136 = vmatprep.subr.mxu0 0.0
    %7137 = vmatpush2.msra.mxu0 0.0
    %7138 = vmatprep.subr.mxu0 0.0
    %7139 = vmatpush2.msra.mxu0 0.0
    %7140 = vmatprep.subr.mxu0 0.0
    %7141 = vmatpush2.msra.mxu0 0.0
    %7142 = vmatprep.subr.mxu0 0.0
    %7143 = vmatpush2.msra.mxu0 0.0
    %7144 = vmatprep.subr.mxu0 0.0
    %7145 = vmatpush2.msra.mxu0 0.0
    %7146 = vmatprep.mubr.f32.mxu0 0.0
    %7147 = vmatmul.mubr.f32.gmra.mxu0 %v7077
    %v7148 = vpop.f32.mrf.mxu0
    %v7149 = vadd.f32 %v7075, %v7148
    %v7150 = vpop.f32.mrf.mxu0
    %7151 = vmatprep.mubr.f32.mxu0 0.0
    %7152 = vmatmul.mubr.f32.gmra.mxu0 %v7080
    %v7153 = vpop.f32.mrf.mxu0
    %v7154 = vadd.f32 %v7075, %v7153
    %v7155 = vpop.f32.mrf.mxu0
    %7156 = vdwg.mxu0
    %v7157 = vadd.f32 %v6968, %v7149
    %v7158 = vadd.f32 %v6969, %v7154
    %v7159 = vsel %vm261, %v7157, 0.0
    %7160 = vadd.xlane.f32.xlu0 %v7159
    %v7161 = vpop.xlane.xlu0 %7160
    %v7162 = vsel %vm261, %v7158, 0.0
    %7163 = vadd.xlane.f32.xlu0 %v7162
    %v7164 = vpop.xlane.xlu0 %7163
    %v7165 = vmul.f32 %v7161, %v1201
    %v7166 = vmul.f32 %v7164, %v1201
    %v7167 = vsub.f32 %v7157, %v7165
    %v7168 = vsub.f32 %v7158, %v7166
    %v7169 = vmul.f32 %v7167, %v7167
    %v7170 = vmul.f32 %v7168, %v7168
    %v7171 = vsel %vm261, %v7169, 0.0
    %7172 = vadd.xlane.f32.xlu0 %v7171
    %v7173 = vpop.xlane.xlu0 %7172
    %v7174 = vsel %vm261, %v7170, 0.0
    %7175 = vadd.xlane.f32.xlu0 %v7174
    %v7176 = vpop.xlane.xlu0 %7175
    %v7177 = vmul.f32 %v7173, %v1201
    %v7178 = vmul.f32 %v7176, %v1201
    %v7179 = vadd.f32 %v7177, 1e-05
    %v7180 = vadd.f32 %v7178, 1e-05
    %v7181 = vrsqrt.pop %v7179
    %v7182 = vrsqrt.pop %v7180
    %v7183 = vmul.f32 %v7167, %v7181
    %v7184 = vmul.f32 %v7168, %v7182
    %v7185 = vlaneseq
    %v7186 = vshrl.u32 %v7185, 7
    %v7187 = vsub.s32 0, %v7186
    %v7188 = vrot.slane %v4952, %v7187
    %v7189 = vmul.f32 %v7183, %v7188
    %v7190 = vmul.f32 %v7184, %v7188
    %v7191 = vlaneseq
    %v7192 = vshrl.u32 %v7191, 7
    %v7193 = vsub.s32 1, %v7192
    %v7194 = vrot.slane %v4952, %v7193
    %v7195 = vadd.f32 %v7189, %v7194
    %v7196 = vadd.f32 %v7190, %v7194
    %v7197 = vsel %vm261, %v7195, 0.0
    %7198 = vadd.xlane.f32.xlu0 %v7197
    %v7199 = vpop.xlane.xlu0 %7198
    %v7200 = vsel %vm261, %v7196, 0.0
    %7201 = vadd.xlane.f32.xlu0 %v7200
    %v7202 = vpop.xlane.xlu0 %7201
    %v7203 = vmul.f32 %v7199, %v1201
    %v7204 = vmul.f32 %v7202, %v1201
    %v7205 = vsub.f32 %v7195, %v7203
    %v7206 = vsub.f32 %v7196, %v7204
    %v7207 = vmul.f32 %v7205, %v7205
    %v7208 = vmul.f32 %v7206, %v7206
    %v7209 = vsel %vm261, %v7207, 0.0
    %7210 = vadd.xlane.f32.xlu0 %v7209
    %v7211 = vpop.xlane.xlu0 %7210
    %v7212 = vsel %vm261, %v7208, 0.0
    %7213 = vadd.xlane.f32.xlu0 %v7212
    %v7214 = vpop.xlane.xlu0 %7213
    %v7215 = vmul.f32 %v7211, %v1201
    %v7216 = vmul.f32 %v7214, %v1201
    %v7217 = vadd.f32 %v7215, 1e-05
    %v7218 = vadd.f32 %v7216, 1e-05
    %v7219 = vrsqrt.pop %v7217
    %v7220 = vrsqrt.pop %v7218
    %v7221 = vmul.f32 %v7205, %v7219
    %v7222 = vmul.f32 %v7206, %v7220
    %v7223 = vlaneseq
    %v7224 = vshrl.u32 %v7223, 7
    %v7225 = vsub.s32 2, %v7224
    %v7226 = vrot.slane %v2660, %v7225
    %v7227 = vmul.f32 %v7221, %v7226
    %v7228 = vmul.f32 %v7222, %v7226
    %v7229 = vlaneseq
    %v7230 = vshrl.u32 %v7229, 7
    %v7231 = vsub.s32 3, %v7230
    %v7232 = vrot.slane %v2660, %v7231
    %v7233 = vadd.f32 %v7227, %v7232
    %v7234 = vadd.f32 %v7228, %v7232
    %v7235 = vld [vmem:[%s83] sm:$0xff]
    %v7236 = vld [vmem:[%s83 + $0x8] sm:$0xff]
    %v7237 = vld [vmem:[%s83 + $0x10] sm:$0xff]
    %v7238 = vld [vmem:[%s83 + $0x18] sm:$0xff]
    %v7239 = vld [vmem:[%s81] sm:$0x1]
    %v7241 = vlaneseq
    %v7242 = vshrl.u32 %v7241, 7
    %v7243 = vsub.s32 0, %v7242
    %v7244 = vrot.slane %v7239, %v7243
    %v7247 = vsel %vm261, %v7233, 0
    %v7250 = vsel %vm261, %v7234, 0
    %7252 = vmatprep.subr.mxu0 0.0
    %7253 = vmatpush1.msra.mxu0 0.0
    %7254 = vmatprep.subr.mxu0 0.0
    %7255 = vmatpush1.msra.mxu0 0.0
    %7256 = vmatprep.subr.mxu0 0.0
    %7257 = vmatpush1.msra.mxu0 0.0
    %7258 = vmatprep.subr.mxu0 0.0
    %7259 = vmatpush1.msra.mxu0 0.0
    %7260 = vmatprep.subr.mxu0 0.0
    %7261 = vmatpush1.msra.mxu0 0.0
    %7262 = vmatprep.subr.mxu0 0.0
    %7263 = vmatpush1.msra.mxu0 0.0
    %7264 = vmatprep.subr.mxu0 0.0
    %7265 = vmatpush1.msra.mxu0 0.0
    %7266 = vmatprep.subr.mxu0 0.0
    %7267 = vmatpush1.msra.mxu0 0.0
    %7268 = vmatprep.subr.mxu0 0.0
    %7269 = vmatpush1.msra.mxu0 0.0
    %7270 = vmatprep.subr.mxu0 0.0
    %7271 = vmatpush1.msra.mxu0 0.0
    %7272 = vmatprep.subr.mxu0 0.0
    %7273 = vmatpush1.msra.mxu0 0.0
    %7274 = vmatprep.subr.mxu0 0.0
    %7275 = vmatpush1.msra.mxu0 0.0
    %7276 = vmatprep.subr.mxu0 0.0
    %7277 = vmatpush1.msra.mxu0 %v7238
    %7278 = vmatprep.subr.mxu0 0.0
    %7279 = vmatpush1.msra.mxu0 %v7237
    %7280 = vmatprep.subr.mxu0 0.0
    %7281 = vmatpush1.msra.mxu0 %v7236
    %7282 = vmatprep.subr.mxu0 0.0
    %7283 = vmatpush1.msra.mxu0 %v7235
    %7284 = vmatprep.subr.mxu0 0.0
    %7285 = vmatpush2.msra.mxu0 0.0
    %7286 = vmatprep.subr.mxu0 0.0
    %7287 = vmatpush2.msra.mxu0 0.0
    %7288 = vmatprep.subr.mxu0 0.0
    %7289 = vmatpush2.msra.mxu0 0.0
    %7290 = vmatprep.subr.mxu0 0.0
    %7291 = vmatpush2.msra.mxu0 0.0
    %7292 = vmatprep.subr.mxu0 0.0
    %7293 = vmatpush2.msra.mxu0 0.0
    %7294 = vmatprep.subr.mxu0 0.0
    %7295 = vmatpush2.msra.mxu0 0.0
    %7296 = vmatprep.subr.mxu0 0.0
    %7297 = vmatpush2.msra.mxu0 0.0
    %7298 = vmatprep.subr.mxu0 0.0
    %7299 = vmatpush2.msra.mxu0 0.0
    %7300 = vmatprep.subr.mxu0 0.0
    %7301 = vmatpush2.msra.mxu0 0.0
    %7302 = vmatprep.subr.mxu0 0.0
    %7303 = vmatpush2.msra.mxu0 0.0
    %7304 = vmatprep.subr.mxu0 0.0
    %7305 = vmatpush2.msra.mxu0 0.0
    %7306 = vmatprep.subr.mxu0 0.0
    %7307 = vmatpush2.msra.mxu0 0.0
    %7308 = vmatprep.subr.mxu0 0.0
    %7309 = vmatpush2.msra.mxu0 0.0
    %7310 = vmatprep.subr.mxu0 0.0
    %7311 = vmatpush2.msra.mxu0 0.0
    %7312 = vmatprep.subr.mxu0 0.0
    %7313 = vmatpush2.msra.mxu0 0.0
    %7314 = vmatprep.subr.mxu0 0.0
    %7315 = vmatpush2.msra.mxu0 0.0
    %7316 = vmatprep.mubr.f32.mxu0 0.0
    %7317 = vmatmul.mubr.f32.gmra.mxu0 %v7247
    %v7318 = vpop.f32.mrf.mxu0
    %v7319 = vadd.f32 %v7244, %v7318
    %v7320 = vpop.f32.mrf.mxu0
    %7321 = vmatprep.mubr.f32.mxu0 0.0
    %7322 = vmatmul.mubr.f32.gmra.mxu0 %v7250
    %v7323 = vpop.f32.mrf.mxu0
    %v7324 = vadd.f32 %v7244, %v7323
    %v7325 = vpop.f32.mrf.mxu0
    %7326 = vdwg.mxu0
    %7327 = vst [vmem:[#allocation2] sm:$0xff] %v7319
    %7328 = vst [vmem:[#allocation2 + $0x8] sm:$0xff] %v7324
    // Predicated region
    $region174: #{full_transformer_forward.1} parent=1 // pred_check
      _
    $region175: #{full_transformer_forward.1} parent=1 // pred_check_branch
      %7330 = sbr.rel (0) target = $region177
    $region176: #{full_transformer_forward.1} parent=1 // pred_region
      %s7332 = ssub.s32 256, 256
      %7333 = vsyncadd [#allocation3], %s7332
      %s7334 = sshll.u32 [#allocation2], 4
      %s7335 = int_to_ptr.vmem [resolvable:$true] %s7334
      %7340 = dma.vmem_to_hbm [thread:$0]  %s7335, 256, %s87, [#allocation3], 128, 128, 8
    $region177: #{full_transformer_forward.1} parent=1 // pred_fallthru
      _
    // Predicated region
    $region178: #{full_transformer_forward.1} parent=1 // pred_check
      _
    $region179: #{full_transformer_forward.1} parent=1 // pred_check_branch
      %7342 = sbr.rel (0) target = $region181
    $region180: #{full_transformer_forward.1} parent=1 // pred_region
      %7343 = dma.done [#allocation3], 256
    $region181: #{full_transformer_forward.1} parent=1 // pred_fallthru
      _
    %7344 = vsyncpa [#allocation3], 1

</llo_original>
